<compile_context>
chip_gen: v7x
topology: tpu7x:2x2x1
jax: 0.10.0
libtpu: 0.0.40
codegen_flags: <defaults>
</compile_context>

<pallas_src>
import functools

import jax
import jax.numpy as jnp
from jax.experimental import pallas as pl
from jax.experimental.pallas import tpu as pltpu

_MM_DTYPE = jnp.bfloat16     # MXU input dtype
_ACT_DTYPE = jnp.bfloat16    # inter-layer activation storage dtype
_NEG_SLOPE = 0.2             # LeakyReLU slope
_IN_EPS = 1e-5               # InstanceNorm eps


# ----------------------------- Pallas kernels --------------------------------

def _mm_bias_lrelu_kernel(x_ref, w_ref, b_ref, o_ref, *, neg_slope):
    """y = LeakyReLU(x @ w + b).  x:(TM,K) bf16, w:(K,C) bf16, b:(1,C) f32."""
    y = jnp.dot(x_ref[...], w_ref[...], preferred_element_type=jnp.float32)
    y = y + b_ref[...]
    o_ref[...] = jnp.where(y >= 0, y, neg_slope * y).astype(o_ref.dtype)


def _mm_kernel(x_ref, w_ref, o_ref):
    """y = x @ w (no bias, no activation)."""
    o_ref[...] = jnp.dot(x_ref[...], w_ref[...],
                         preferred_element_type=jnp.float32).astype(o_ref.dtype)


def _conv_in_lrelu_kernel(x_ref, w_ref, o_ref, acc_ref, *, eps, neg_slope):
    """Fused Conv + InstanceNorm2d(affine=False) + LeakyReLU for one sample.

    Grid = (N, K_tiles).  acc_ref (P, C) f32 holds the full-spatial conv
    output for the current sample across the K axis; the last K step does a
    true two-pass (centered) IN + LeakyReLU and writes bf16 activations.
    Conv bias is omitted (exactly cancelled by the IN mean subtraction).
    """
    k = pl.program_id(1)

    @pl.when(k == 0)
    def _():
        acc_ref[...] = jnp.zeros_like(acc_ref)

    acc_ref[...] += jnp.dot(x_ref[0], w_ref[...],
                            preferred_element_type=jnp.float32)

    @pl.when(k == pl.num_programs(1) - 1)
    def _():
        y = acc_ref[...]                                   # (P, C) f32
        mean = jnp.mean(y, axis=0, keepdims=True)          # per-channel, full P
        yc = y - mean
        var = jnp.mean(yc * yc, axis=0, keepdims=True)     # biased, centered
        z = yc * jax.lax.rsqrt(var + eps)
        o_ref[0] = jnp.where(z >= 0, z, neg_slope * z).astype(o_ref.dtype)


# ------------------------------- tiling glue ----------------------------------

def _row_tile(m, target=256):
    """Row tile dividing m: prefer multiples of 16 (bf16 sublanes), <= target."""
    if m <= target:
        return m
    for step in (16, 8):
        t = (target // step) * step
        while t >= step:
            if m % t == 0:
                return t
            t -= step
    return m


def _k_tile(k, cap=1024):
    """K tile dividing k, multiple of 128, with >=2 steps when k is large."""
    if k <= cap:
        if k >= 512 and k % 256 == 0:
            return k // 2
        return k
    t = cap
    while t >= 128:
        if k % t == 0:
            return t
        t -= 128
    return k


def _im2col(x, k, stride):
    """x: [N,H,W,C] (already padded) -> [N, Ho*Wo, k*k*C], inner (kh,kw,cin)."""
    N, H, W, C = x.shape
    Ho = (H - k) // stride + 1
    Wo = (W - k) // stride + 1
    cols = []
    for i in range(k):
        for j in range(k):
            cols.append(x[:, i:i + stride * Ho:stride,
                          j:j + stride * Wo:stride, :])
    p = jnp.stack(cols, axis=3)                      # [N, Ho, Wo, k*k, C]
    return p.reshape(N, Ho * Wo, k * k * C), Ho, Wo


def _weight_to_mat(weight):
    """[Cout,Cin,kh,kw] -> [kh*kw*Cin, Cout], inner order (kh,kw,cin)."""
    cout, cin, kh, kw = weight.shape
    return jnp.transpose(weight, (2, 3, 1, 0)).reshape(kh * kw * cin, cout)


# --------------------------- pallas_call wrappers -----------------------------

def _rowwise_matmul(x2d, w_mat, bias, *, out_dtype):
    """x2d [M,K] bf16 @ w_mat [K,C] bf16 (+bias +LReLU if bias given) -> [M,C]."""
    M, K = x2d.shape
    C = w_mat.shape[1]
    TM = _row_tile(M)
    grid = (M // TM,)

    in_specs = [pl.BlockSpec((TM, K), lambda i: (i, 0)),
                pl.BlockSpec((K, C), lambda i: (0, 0))]
    args = [x2d, w_mat]
    if bias is not None:
        in_specs.append(pl.BlockSpec((1, C), lambda i: (0, 0)))
        args.append(bias)
        kernel = functools.partial(_mm_bias_lrelu_kernel, neg_slope=_NEG_SLOPE)
    else:
        kernel = _mm_kernel

    return pl.pallas_call(
        kernel,
        out_shape=jax.ShapeDtypeStruct((M, C), out_dtype),
        grid_spec=pltpu.PrefetchScalarGridSpec(
            num_scalar_prefetch=0, grid=grid,
            in_specs=in_specs,
            out_specs=pl.BlockSpec((TM, C), lambda i: (i, 0))),
        compiler_params=pltpu.CompilerParams(
            dimension_semantics=("parallel",)),
    )(*args)


def _conv_in_lrelu_mm(patches, w_mat, *, out_dtype):
    """Fused conv-matmul + full-extent InstanceNorm + LeakyReLU per sample."""
    N, P, K = patches.shape
    C = w_mat.shape[1]
    TK = _k_tile(K)
    grid = (N, K // TK)

    kernel = functools.partial(_conv_in_lrelu_kernel,
                               eps=_IN_EPS, neg_slope=_NEG_SLOPE)
    return pl.pallas_call(
        kernel,
        out_shape=jax.ShapeDtypeStruct((N, P, C), out_dtype),
        grid_spec=pltpu.PrefetchScalarGridSpec(
            num_scalar_prefetch=0, grid=grid,
            in_specs=[pl.BlockSpec((1, P, TK), lambda n, k: (n, 0, k)),
                      pl.BlockSpec((TK, C), lambda n, k: (k, 0))],
            out_specs=pl.BlockSpec((1, P, C), lambda n, k: (n, 0, 0)),
            scratch_shapes=[pltpu.VMEM((P, C), jnp.float32)]),
        compiler_params=pltpu.CompilerParams(
            # sample axis: parallel (v7x 2 TCs); K axis: accumulator -> arbitrary
            dimension_semantics=("parallel", "arbitrary")),
    )(patches, w_mat)


# ------------------------------ layer wrappers --------------------------------

def conv_lrelu(x, weight, bias, *, stride, pad):
    """Conv + bias + LeakyReLU(0.2), no norm.  Batch folded into matmul rows."""
    N, H, W, Cin = x.shape
    Cout, _, k, _ = weight.shape
    xp = jnp.pad(x.astype(_MM_DTYPE), ((0, 0), pad[0], pad[1], (0, 0)))
    patches, Ho, Wo = _im2col(xp, k, stride)
    M = N * Ho * Wo
    out = _rowwise_matmul(patches.reshape(M, k * k * Cin),
                          _weight_to_mat(weight).astype(_MM_DTYPE),
                          bias.astype(jnp.float32).reshape(1, Cout),
                          out_dtype=_ACT_DTYPE)
    return out.reshape(N, Ho, Wo, Cout)


def conv_in_lrelu(x, weight, *, stride, pad):
    """Conv + InstanceNorm2d(affine=False, eps=1e-5) + LeakyReLU(0.2), fused.
    The conv bias is cancelled exactly by IN's mean subtraction -> skipped."""
    N, H, W, Cin = x.shape
    Cout, _, k, _ = weight.shape
    xp = jnp.pad(x.astype(_MM_DTYPE), ((0, 0), pad[0], pad[1], (0, 0)))
    patches, Ho, Wo = _im2col(xp, k, stride)
    out = _conv_in_lrelu_mm(patches,
                            _weight_to_mat(weight).astype(_MM_DTYPE),
                            out_dtype=_ACT_DTYPE)
    return out.reshape(N, Ho, Wo, Cout)


def conv_final(x, weight, *, stride, pad):
    """Final conv (Cout=1, no bias, no activation).  Pad Cout to 128 lanes so
    the MXU output store is lane-dense; slice the real channel outside."""
    N, H, W, Cin = x.shape
    Cout, _, k, _ = weight.shape
    xp = jnp.pad(x.astype(_MM_DTYPE), ((0, 0), pad[0], pad[1], (0, 0)))
    patches, Ho, Wo = _im2col(xp, k, stride)
    M = N * Ho * Wo
    w_mat = _weight_to_mat(weight).astype(_MM_DTYPE)
    w_mat = jnp.pad(w_mat, ((0, 0), (0, 128 - Cout)))
    out = _rowwise_matmul(patches.reshape(M, k * k * Cin), w_mat, None,
                          out_dtype=jnp.float32)
    return out[:, :Cout].reshape(N, Ho, Wo, Cout)


# --------------------------- Discriminator model -----------------------------

def init_params(key, in_channels=3):
    ks = jax.random.split(key, 5)

    def conv_w(k, cout, cin):
        # deterministic small init (synthetic weights, not a checkpoint)
        return 0.05 * jax.random.normal(k, (cout, cin, 4, 4), jnp.float32)

    return {
        "w1": conv_w(ks[0], 64, in_channels * 2),
        "b1": jnp.zeros((64,), jnp.float32),
        # b2..b4 exist in the torch module but are mathematically cancelled by
        # InstanceNorm's mean subtraction, so the kernels never load them.
        "w2": conv_w(ks[1], 128, 64),  "b2": jnp.zeros((128,), jnp.float32),
        "w3": conv_w(ks[2], 256, 128), "b3": jnp.zeros((256,), jnp.float32),
        "w4": conv_w(ks[3], 512, 256), "b4": jnp.zeros((512,), jnp.float32),
        "w5": conv_w(ks[4], 1, 512),   # final conv has no bias
    }


def discriminator_forward(params, img_A, img_B):
    # img_A, img_B: NCHW [N, 3, H, W]
    x = jnp.concatenate([img_A, img_B], axis=1)              # [N, 6, H, W]
    x = jnp.transpose(x, (0, 2, 3, 1)).astype(jnp.float32)   # -> NHWC
    p11 = ((1, 1), (1, 1))
    x = conv_lrelu(x, params["w1"], params["b1"], stride=2, pad=p11)
    x = conv_in_lrelu(x, params["w2"], stride=2, pad=p11)
    x = conv_in_lrelu(x, params["w3"], stride=2, pad=p11)
    x = conv_in_lrelu(x, params["w4"], stride=2, pad=p11)
    # ZeroPad2d((1,0,1,0)) + Conv2d(512,1,4,padding=1,bias=False)
    # => asymmetric total pad: top=2, bottom=1, left=2, right=1, stride=1.
    x = conv_final(x, params["w5"], stride=1, pad=((2, 1), (2, 1)))
    return jnp.transpose(x, (0, 3, 1, 2)).astype(jnp.float32)  # NCHW [N,1,H/16,W/16]


# ---------------------------------- main -------------------------------------

if __name__ == "__main__":
    key = jax.random.PRNGKey(0)
    k_par, k_a, k_b = jax.random.split(key, 3)

    N, C, H, W = 2, 3, 32, 32
    img_A = jax.random.normal(k_a, (N, C, H, W), jnp.float32)
    img_B = jax.random.normal(k_b, (N, C, H, W), jnp.float32)

    params = init_params(k_par, in_channels=C)

    fwd = jax.jit(discriminator_forward)
    out = fwd(params, img_A, img_B)
    jax.block_until_ready(out)

    assert out.shape == (N, 1, H // 16, W // 16), out.shape
    assert bool(jnp.all(jnp.isfinite(out)))
    print("KERNEL_OK")
</pallas_src>

<mosaic_0001>
module attributes {stable_mosaic.version = 11 : i64} {
  func.func @_mm_bias_lrelu_kernel(%arg0: i32, %arg1: memref<256x96xbf16, #tpu.memory_space<vmem>>, %arg2: memref<96x64xbf16, #tpu.memory_space<vmem>>, %arg3: memref<1x64xf32, #tpu.memory_space<vmem>>, %arg4: memref<256x64xbf16, #tpu.memory_space<vmem>>) attributes {dimension_semantics = [#tpu.dimension_semantics<parallel>], iteration_bounds = array<i64: 2>, scalar_prefetch = 0 : i64, scratch_operands = 0 : i64, tpu.core_type = #tpu.core_type<tc>, window_params = [{transform_indices = @transform_0, window_bounds = array<i64: 256, 96>}, {pipeline_mode = #tpu.pipeline_mode<synchronous>, transform_indices = @transform_1, window_bounds = array<i64: 96, 64>}, {pipeline_mode = #tpu.pipeline_mode<synchronous>, transform_indices = @transform_2, window_bounds = array<i64: 1, 64>}, {transform_indices = @transform_3, window_bounds = array<i64: 256, 64>}]} {
    %c0 = arith.constant 0 : index
    %c0_0 = arith.constant 0 : index
    %0 = vector.load %arg1[%c0, %c0_0] : memref<256x96xbf16, #tpu.memory_space<vmem>>, vector<256x96xbf16>
    %c0_1 = arith.constant 0 : index
    %c0_2 = arith.constant 0 : index
    %1 = vector.load %arg2[%c0_1, %c0_2] : memref<96x64xbf16, #tpu.memory_space<vmem>>, vector<96x64xbf16>
    %cst = arith.constant dense<0.000000e+00> : vector<256x64xf32>
    %2 = tpu.matmul %0, %1, %cst {dimension_numbers = #tpu.dot_dimension_numbers<[1], [0], [0], [1], [0, 0, 1, 1], [], []>} : vector<256x96xbf16>, vector<96x64xbf16>, vector<256x64xf32> -> vector<256x64xf32>
    %c0_3 = arith.constant 0 : index
    %c0_4 = arith.constant 0 : index
    %3 = vector.load %arg3[%c0_3, %c0_4] : memref<1x64xf32, #tpu.memory_space<vmem>>, vector<1x64xf32>
    %4 = vector.broadcast %3 : vector<1x64xf32> to vector<256x64xf32>
    %5 = arith.addf %2, %4 : vector<256x64xf32>
    %cst_5 = arith.constant 0.000000e+00 : f32
    %6 = vector.broadcast %cst_5 : f32 to vector<256x64xf32>
    %7 = arith.cmpf oge, %5, %6 : vector<256x64xf32>
    %cst_6 = arith.constant 2.000000e-01 : f32
    %8 = vector.broadcast %cst_6 : f32 to vector<256x64xf32>
    %9 = arith.mulf %8, %5 : vector<256x64xf32>
    %10 = arith.select %7, %5, %9 : vector<256x64xi1>, vector<256x64xf32>
    %11 = arith.truncf %10 : vector<256x64xf32> to vector<256x64xbf16>
    %c0_7 = arith.constant 0 : index
    %c0_8 = arith.constant 0 : index
    %12 = vector.load %arg4[%c0_7, %c0_8] : memref<256x64xbf16, #tpu.memory_space<vmem>>, vector<256x64xbf16>
    tpu.vector_store %arg4[%c0_7, %c0_8], %11 {strides = array<i32>} : memref<256x64xbf16, #tpu.memory_space<vmem>>, vector<256x64xbf16>,
    return
  }
  func.func @transform_0(%arg0: i32) -> (i32, i32) {
    %c0_i32 = arith.constant 0 : i32
    %c0_i32_0 = arith.constant 0 : i32
    return %arg0, %c0_i32 : i32, i32
  }
  func.func @transform_1(%arg0: i32) -> (i32, i32) {
    %c0_i32 = arith.constant 0 : i32
    %c0_i32_0 = arith.constant 0 : i32
    %c0_i32_1 = arith.constant 0 : i32
    return %c0_i32, %c0_i32_0 : i32, i32
  }
  func.func @transform_2(%arg0: i32) -> (i32, i32) {
    %c0_i32 = arith.constant 0 : i32
    %c0_i32_0 = arith.constant 0 : i32
    %c0_i32_1 = arith.constant 0 : i32
    return %c0_i32, %c0_i32_0 : i32, i32
  }
  func.func @transform_3(%arg0: i32) -> (i32, i32) {
    %c0_i32 = arith.constant 0 : i32
    %c0_i32_0 = arith.constant 0 : i32
    return %arg0, %c0_i32 : i32, i32
  }
}

module attributes {stable_mosaic.version = 11 : i64} {
  func.func @_conv_in_lrelu_kernel(%arg0: i32, %arg1: i32, %arg2: memref<1x64x512xbf16, #tpu.memory_space<vmem>>, %arg3: memref<512x128xbf16, #tpu.memory_space<vmem>>, %arg4: memref<1x64x128xbf16, #tpu.memory_space<vmem>>, %arg5: memref<64x128xf32, #tpu.memory_space<vmem>>) attributes {dimension_semantics = [#tpu.dimension_semantics<parallel>, #tpu.dimension_semantics<arbitrary>], iteration_bounds = array<i64: 2, 2>, scalar_prefetch = 0 : i64, scratch_operands = 1 : i64, tpu.core_type = #tpu.core_type<tc>, window_params = [{transform_indices = @transform_0, window_bounds = array<i64: 1, 64, 512>}, {transform_indices = @transform_1, window_bounds = array<i64: 512, 128>}, {transform_indices = @transform_2, window_bounds = array<i64: 1, 64, 128>}]} {
    %c0_i32 = arith.constant 0 : i32
    %0 = arith.cmpi eq, %arg1, %c0_i32 : i32
    %1 = arith.extui %0 : i1 to i32
    %c0_i32_0 = arith.constant 0 : i32
    %2 = arith.cmpi ne, %1, %c0_i32_0 : i32
    scf.if %2 {
      %cst_10 = arith.constant 0.000000e+00 : f32
      %13 = vector.broadcast %cst_10 : f32 to vector<64x128xf32>
      %c0_11 = arith.constant 0 : index
      %c0_12 = arith.constant 0 : index
      %14 = vector.load %arg5[%c0_11, %c0_12] : memref<64x128xf32, #tpu.memory_space<vmem>>, vector<64x128xf32>
      tpu.vector_store %arg5[%c0_11, %c0_12], %13 {strides = array<i32>} : memref<64x128xf32, #tpu.memory_space<vmem>>, vector<64x128xf32>,
    } else {
    }
    %c0 = arith.constant 0 : index
    %c0_1 = arith.constant 0 : index
    %3 = vector.load %arg5[%c0, %c0_1] : memref<64x128xf32, #tpu.memory_space<vmem>>, vector<64x128xf32>
    %c0_2 = arith.constant 0 : index
    %c0_3 = arith.constant 0 : index
    %c0_4 = arith.constant 0 : index
    %4 = vector.load %arg2[%c0_2, %c0_3, %c0_4] : memref<1x64x512xbf16, #tpu.memory_space<vmem>>, vector<1x64x512xbf16>
    %5 = vector.shape_cast %4 : vector<1x64x512xbf16> to vector<64x512xbf16>
    %c0_5 = arith.constant 0 : index
    %c0_6 = arith.constant 0 : index
    %6 = vector.load %arg3[%c0_5, %c0_6] : memref<512x128xbf16, #tpu.memory_space<vmem>>, vector<512x128xbf16>
    %cst = arith.constant dense<0.000000e+00> : vector<64x128xf32>
    %7 = tpu.matmul %5, %6, %cst {dimension_numbers = #tpu.dot_dimension_numbers<[1], [0], [0], [1], [0, 0, 1, 1], [], []>} : vector<64x512xbf16>, vector<512x128xbf16>, vector<64x128xf32> -> vector<64x128xf32>
    %8 = arith.addf %3, %7 : vector<64x128xf32>
    %c0_7 = arith.constant 0 : index
    %c0_8 = arith.constant 0 : index
    %9 = vector.load %arg5[%c0_7, %c0_8] : memref<64x128xf32, #tpu.memory_space<vmem>>, vector<64x128xf32>
    tpu.vector_store %arg5[%c0_7, %c0_8], %8 {strides = array<i32>} : memref<64x128xf32, #tpu.memory_space<vmem>>, vector<64x128xf32>,
    %c1_i32 = arith.constant 1 : i32
    %10 = arith.cmpi eq, %arg1, %c1_i32 : i32
    %11 = arith.extui %10 : i1 to i32
    %c0_i32_9 = arith.constant 0 : i32
    %12 = arith.cmpi ne, %11, %c0_i32_9 : i32
    scf.if %12 {
      %c0_10 = arith.constant 0 : index
      %c0_11 = arith.constant 0 : index
      %13 = vector.load %arg5[%c0_10, %c0_11] : memref<64x128xf32, #tpu.memory_space<vmem>>, vector<64x128xf32>
      %cst_12 = arith.constant dense<0.000000e+00> : vector<128xf32>
      %14 = vector.multi_reduction <add>, %13, %cst_12 [0] : vector<64x128xf32> to vector<128xf32>
      %15 = vector.shape_cast %14 : vector<128xf32> to vector<1x128xf32>
      %cst_13 = arith.constant 6.400000e+01 : f32
      %16 = vector.broadcast %cst_13 : f32 to vector<1x128xf32>
      %17 = arith.divf %15, %16 : vector<1x128xf32>
      %18 = vector.broadcast %17 : vector<1x128xf32> to vector<64x128xf32>
      %19 = arith.subf %13, %18 : vector<64x128xf32>
      %20 = arith.mulf %19, %19 : vector<64x128xf32>
      %cst_14 = arith.constant dense<0.000000e+00> : vector<128xf32>
      %21 = vector.multi_reduction <add>, %20, %cst_14 [0] : vector<64x128xf32> to vector<128xf32>
      %22 = vector.shape_cast %21 : vector<128xf32> to vector<1x128xf32>
      %cst_15 = arith.constant 6.400000e+01 : f32
      %23 = vector.broadcast %cst_15 : f32 to vector<1x128xf32>
      %24 = arith.divf %22, %23 : vector<1x128xf32>
      %cst_16 = arith.constant 9.99999974E-6 : f32
      %25 = vector.broadcast %cst_16 : f32 to vector<1x128xf32>
      %26 = arith.addf %24, %25 : vector<1x128xf32>
      %27 = math.rsqrt %26 : vector<1x128xf32>
      %28 = vector.broadcast %27 : vector<1x128xf32> to vector<64x128xf32>
      %29 = arith.mulf %19, %28 : vector<64x128xf32>
      %cst_17 = arith.constant 0.000000e+00 : f32
      %30 = vector.broadcast %cst_17 : f32 to vector<64x128xf32>
      %31 = arith.cmpf oge, %29, %30 : vector<64x128xf32>
      %cst_18 = arith.constant 2.000000e-01 : f32
      %32 = vector.broadcast %cst_18 : f32 to vector<64x128xf32>
      %33 = arith.mulf %32, %29 : vector<64x128xf32>
      %34 = arith.select %31, %29, %33 : vector<64x128xi1>, vector<64x128xf32>
      %35 = arith.truncf %34 : vector<64x128xf32> to vector<64x128xbf16>
      %c0_19 = arith.constant 0 : index
      %c0_20 = arith.constant 0 : index
      %c0_21 = arith.constant 0 : index
      %36 = vector.load %arg4[%c0_19, %c0_20, %c0_21] : memref<1x64x128xbf16, #tpu.memory_space<vmem>>, vector<1x64x128xbf16>
      %37 = vector.shape_cast %36 : vector<1x64x128xbf16> to vector<64x128xbf16>
      %38 = vector.shape_cast %35 : vector<64x128xbf16> to vector<1x64x128xbf16>
      tpu.vector_store %arg4[%c0_19, %c0_20, %c0_21], %38 {strides = array<i32>} : memref<1x64x128xbf16, #tpu.memory_space<vmem>>, vector<1x64x128xbf16>,
    } else {
    }
    return
  }
  func.func @transform_0(%arg0: i32, %arg1: i32) -> (i32, i32, i32) {
    %c0_i32 = arith.constant 0 : i32
    %c0_i32_0 = arith.constant 0 : i32
    return %arg0, %c0_i32, %arg1 : i32, i32, i32
  }
  func.func @transform_1(%arg0: i32, %arg1: i32) -> (i32, i32) {
    %c0_i32 = arith.constant 0 : i32
    %c0_i32_0 = arith.constant 0 : i32
    return %arg1, %c0_i32 : i32, i32
  }
  func.func @transform_2(%arg0: i32, %arg1: i32) -> (i32, i32, i32) {
    %c0_i32 = arith.constant 0 : i32
    %c0_i32_0 = arith.constant 0 : i32
    %c0_i32_1 = arith.constant 0 : i32
    return %arg0, %c0_i32, %c0_i32_0 : i32, i32, i32
  }
}

module attributes {stable_mosaic.version = 11 : i64} {
  func.func @_conv_in_lrelu_kernel(%arg0: i32, %arg1: i32, %arg2: memref<1x16x1024xbf16, #tpu.memory_space<vmem>>, %arg3: memref<1024x256xbf16, #tpu.memory_space<vmem>>, %arg4: memref<1x16x256xbf16, #tpu.memory_space<vmem>>, %arg5: memref<16x256xf32, #tpu.memory_space<vmem>>) attributes {dimension_semantics = [#tpu.dimension_semantics<parallel>, #tpu.dimension_semantics<arbitrary>], iteration_bounds = array<i64: 2, 2>, scalar_prefetch = 0 : i64, scratch_operands = 1 : i64, tpu.core_type = #tpu.core_type<tc>, window_params = [{transform_indices = @transform_0, window_bounds = array<i64: 1, 16, 1024>}, {transform_indices = @transform_1, window_bounds = array<i64: 1024, 256>}, {transform_indices = @transform_2, window_bounds = array<i64: 1, 16, 256>}]} {
    %c0_i32 = arith.constant 0 : i32
    %0 = arith.cmpi eq, %arg1, %c0_i32 : i32
    %1 = arith.extui %0 : i1 to i32
    %c0_i32_0 = arith.constant 0 : i32
    %2 = arith.cmpi ne, %1, %c0_i32_0 : i32
    scf.if %2 {
      %cst_10 = arith.constant 0.000000e+00 : f32
      %13 = vector.broadcast %cst_10 : f32 to vector<16x256xf32>
      %c0_11 = arith.constant 0 : index
      %c0_12 = arith.constant 0 : index
      %14 = vector.load %arg5[%c0_11, %c0_12] : memref<16x256xf32, #tpu.memory_space<vmem>>, vector<16x256xf32>
      tpu.vector_store %arg5[%c0_11, %c0_12], %13 {strides = array<i32>} : memref<16x256xf32, #tpu.memory_space<vmem>>, vector<16x256xf32>,
    } else {
    }
    %c0 = arith.constant 0 : index
    %c0_1 = arith.constant 0 : index
    %3 = vector.load %arg5[%c0, %c0_1] : memref<16x256xf32, #tpu.memory_space<vmem>>, vector<16x256xf32>
    %c0_2 = arith.constant 0 : index
    %c0_3 = arith.constant 0 : index
    %c0_4 = arith.constant 0 : index
    %4 = vector.load %arg2[%c0_2, %c0_3, %c0_4] : memref<1x16x1024xbf16, #tpu.memory_space<vmem>>, vector<1x16x1024xbf16>
    %5 = vector.shape_cast %4 : vector<1x16x1024xbf16> to vector<16x1024xbf16>
    %c0_5 = arith.constant 0 : index
    %c0_6 = arith.constant 0 : index
    %6 = vector.load %arg3[%c0_5, %c0_6] : memref<1024x256xbf16, #tpu.memory_space<vmem>>, vector<1024x256xbf16>
    %cst = arith.constant dense<0.000000e+00> : vector<16x256xf32>
    %7 = tpu.matmul %5, %6, %cst {dimension_numbers = #tpu.dot_dimension_numbers<[1], [0], [0], [1], [0, 0, 1, 1], [], []>} : vector<16x1024xbf16>, vector<1024x256xbf16>, vector<16x256xf32> -> vector<16x256xf32>
    %8 = arith.addf %3, %7 : vector<16x256xf32>
    %c0_7 = arith.constant 0 : index
    %c0_8 = arith.constant 0 : index
    %9 = vector.load %arg5[%c0_7, %c0_8] : memref<16x256xf32, #tpu.memory_space<vmem>>, vector<16x256xf32>
    tpu.vector_store %arg5[%c0_7, %c0_8], %8 {strides = array<i32>} : memref<16x256xf32, #tpu.memory_space<vmem>>, vector<16x256xf32>,
    %c1_i32 = arith.constant 1 : i32
    %10 = arith.cmpi eq, %arg1, %c1_i32 : i32
    %11 = arith.extui %10 : i1 to i32
    %c0_i32_9 = arith.constant 0 : i32
    %12 = arith.cmpi ne, %11, %c0_i32_9 : i32
    scf.if %12 {
      %c0_10 = arith.constant 0 : index
      %c0_11 = arith.constant 0 : index
      %13 = vector.load %arg5[%c0_10, %c0_11] : memref<16x256xf32, #tpu.memory_space<vmem>>, vector<16x256xf32>
      %cst_12 = arith.constant dense<0.000000e+00> : vector<256xf32>
      %14 = vector.multi_reduction <add>, %13, %cst_12 [0] : vector<16x256xf32> to vector<256xf32>
      %15 = vector.shape_cast %14 : vector<256xf32> to vector<1x256xf32>
      %cst_13 = arith.constant 1.600000e+01 : f32
      %16 = vector.broadcast %cst_13 : f32 to vector<1x256xf32>
      %17 = arith.divf %15, %16 : vector<1x256xf32>
      %18 = vector.broadcast %17 : vector<1x256xf32> to vector<16x256xf32>
      %19 = arith.subf %13, %18 : vector<16x256xf32>
      %20 = arith.mulf %19, %19 : vector<16x256xf32>
      %cst_14 = arith.constant dense<0.000000e+00> : vector<256xf32>
      %21 = vector.multi_reduction <add>, %20, %cst_14 [0] : vector<16x256xf32> to vector<256xf32>
      %22 = vector.shape_cast %21 : vector<256xf32> to vector<1x256xf32>
      %cst_15 = arith.constant 1.600000e+01 : f32
      %23 = vector.broadcast %cst_15 : f32 to vector<1x256xf32>
      %24 = arith.divf %22, %23 : vector<1x256xf32>
      %cst_16 = arith.constant 9.99999974E-6 : f32
      %25 = vector.broadcast %cst_16 : f32 to vector<1x256xf32>
      %26 = arith.addf %24, %25 : vector<1x256xf32>
      %27 = math.rsqrt %26 : vector<1x256xf32>
      %28 = vector.broadcast %27 : vector<1x256xf32> to vector<16x256xf32>
      %29 = arith.mulf %19, %28 : vector<16x256xf32>
      %cst_17 = arith.constant 0.000000e+00 : f32
      %30 = vector.broadcast %cst_17 : f32 to vector<16x256xf32>
      %31 = arith.cmpf oge, %29, %30 : vector<16x256xf32>
      %cst_18 = arith.constant 2.000000e-01 : f32
      %32 = vector.broadcast %cst_18 : f32 to vector<16x256xf32>
      %33 = arith.mulf %32, %29 : vector<16x256xf32>
      %34 = arith.select %31, %29, %33 : vector<16x256xi1>, vector<16x256xf32>
      %35 = arith.truncf %34 : vector<16x256xf32> to vector<16x256xbf16>
      %c0_19 = arith.constant 0 : index
      %c0_20 = arith.constant 0 : index
      %c0_21 = arith.constant 0 : index
      %36 = vector.load %arg4[%c0_19, %c0_20, %c0_21] : memref<1x16x256xbf16, #tpu.memory_space<vmem>>, vector<1x16x256xbf16>
      %37 = vector.shape_cast %36 : vector<1x16x256xbf16> to vector<16x256xbf16>
      %38 = vector.shape_cast %35 : vector<16x256xbf16> to vector<1x16x256xbf16>
      tpu.vector_store %arg4[%c0_19, %c0_20, %c0_21], %38 {strides = array<i32>} : memref<1x16x256xbf16, #tpu.memory_space<vmem>>, vector<1x16x256xbf16>,
    } else {
    }
    return
  }
  func.func @transform_0(%arg0: i32, %arg1: i32) -> (i32, i32, i32) {
    %c0_i32 = arith.constant 0 : i32
    %c0_i32_0 = arith.constant 0 : i32
    return %arg0, %c0_i32, %arg1 : i32, i32, i32
  }
  func.func @transform_1(%arg0: i32, %arg1: i32) -> (i32, i32) {
    %c0_i32 = arith.constant 0 : i32
    %c0_i32_0 = arith.constant 0 : i32
    return %arg1, %c0_i32 : i32, i32
  }
  func.func @transform_2(%arg0: i32, %arg1: i32) -> (i32, i32, i32) {
    %c0_i32 = arith.constant 0 : i32
    %c0_i32_0 = arith.constant 0 : i32
    %c0_i32_1 = arith.constant 0 : i32
    return %arg0, %c0_i32, %c0_i32_0 : i32, i32, i32
  }
}

module attributes {stable_mosaic.version = 11 : i64} {
  func.func @_conv_in_lrelu_kernel(%arg0: i32, %arg1: i32, %arg2: memref<1x4x1024xbf16, #tpu.memory_space<vmem>>, %arg3: memref<1024x512xbf16, #tpu.memory_space<vmem>>, %arg4: memref<1x4x512xbf16, #tpu.memory_space<vmem>>, %arg5: memref<4x512xf32, #tpu.memory_space<vmem>>) attributes {dimension_semantics = [#tpu.dimension_semantics<parallel>, #tpu.dimension_semantics<arbitrary>], iteration_bounds = array<i64: 2, 4>, scalar_prefetch = 0 : i64, scratch_operands = 1 : i64, tpu.core_type = #tpu.core_type<tc>, window_params = [{transform_indices = @transform_0, window_bounds = array<i64: 1, 4, 1024>}, {transform_indices = @transform_1, window_bounds = array<i64: 1024, 512>}, {transform_indices = @transform_2, window_bounds = array<i64: 1, 4, 512>}]} {
    %c0_i32 = arith.constant 0 : i32
    %0 = arith.cmpi eq, %arg1, %c0_i32 : i32
    %1 = arith.extui %0 : i1 to i32
    %c0_i32_0 = arith.constant 0 : i32
    %2 = arith.cmpi ne, %1, %c0_i32_0 : i32
    scf.if %2 {
      %cst_10 = arith.constant 0.000000e+00 : f32
      %13 = vector.broadcast %cst_10 : f32 to vector<4x512xf32>
      %c0_11 = arith.constant 0 : index
      %c0_12 = arith.constant 0 : index
      %14 = vector.load %arg5[%c0_11, %c0_12] : memref<4x512xf32, #tpu.memory_space<vmem>>, vector<4x512xf32>
      tpu.vector_store %arg5[%c0_11, %c0_12], %13 {strides = array<i32>} : memref<4x512xf32, #tpu.memory_space<vmem>>, vector<4x512xf32>,
    } else {
    }
    %c0 = arith.constant 0 : index
    %c0_1 = arith.constant 0 : index
    %3 = vector.load %arg5[%c0, %c0_1] : memref<4x512xf32, #tpu.memory_space<vmem>>, vector<4x512xf32>
    %c0_2 = arith.constant 0 : index
    %c0_3 = arith.constant 0 : index
    %c0_4 = arith.constant 0 : index
    %4 = vector.load %arg2[%c0_2, %c0_3, %c0_4] : memref<1x4x1024xbf16, #tpu.memory_space<vmem>>, vector<1x4x1024xbf16>
    %5 = vector.shape_cast %4 : vector<1x4x1024xbf16> to vector<4x1024xbf16>
    %c0_5 = arith.constant 0 : index
    %c0_6 = arith.constant 0 : index
    %6 = vector.load %arg3[%c0_5, %c0_6] : memref<1024x512xbf16, #tpu.memory_space<vmem>>, vector<1024x512xbf16>
    %cst = arith.constant dense<0.000000e+00> : vector<4x512xf32>
    %7 = tpu.matmul %5, %6, %cst {dimension_numbers = #tpu.dot_dimension_numbers<[1], [0], [0], [1], [0, 0, 1, 1], [], []>} : vector<4x1024xbf16>, vector<1024x512xbf16>, vector<4x512xf32> -> vector<4x512xf32>
    %8 = arith.addf %3, %7 : vector<4x512xf32>
    %c0_7 = arith.constant 0 : index
    %c0_8 = arith.constant 0 : index
    %9 = vector.load %arg5[%c0_7, %c0_8] : memref<4x512xf32, #tpu.memory_space<vmem>>, vector<4x512xf32>
    tpu.vector_store %arg5[%c0_7, %c0_8], %8 {strides = array<i32>} : memref<4x512xf32, #tpu.memory_space<vmem>>, vector<4x512xf32>,
    %c3_i32 = arith.constant 3 : i32
    %10 = arith.cmpi eq, %arg1, %c3_i32 : i32
    %11 = arith.extui %10 : i1 to i32
    %c0_i32_9 = arith.constant 0 : i32
    %12 = arith.cmpi ne, %11, %c0_i32_9 : i32
    scf.if %12 {
      %c0_10 = arith.constant 0 : index
      %c0_11 = arith.constant 0 : index
      %13 = vector.load %arg5[%c0_10, %c0_11] : memref<4x512xf32, #tpu.memory_space<vmem>>, vector<4x512xf32>
      %cst_12 = arith.constant dense<0.000000e+00> : vector<512xf32>
      %14 = vector.multi_reduction <add>, %13, %cst_12 [0] : vector<4x512xf32> to vector<512xf32>
      %15 = vector.shape_cast %14 : vector<512xf32> to vector<1x512xf32>
      %cst_13 = arith.constant 4.000000e+00 : f32
      %16 = vector.broadcast %cst_13 : f32 to vector<1x512xf32>
      %17 = arith.divf %15, %16 : vector<1x512xf32>
      %18 = vector.broadcast %17 : vector<1x512xf32> to vector<4x512xf32>
      %19 = arith.subf %13, %18 : vector<4x512xf32>
      %20 = arith.mulf %19, %19 : vector<4x512xf32>
      %cst_14 = arith.constant dense<0.000000e+00> : vector<512xf32>
      %21 = vector.multi_reduction <add>, %20, %cst_14 [0] : vector<4x512xf32> to vector<512xf32>
      %22 = vector.shape_cast %21 : vector<512xf32> to vector<1x512xf32>
      %cst_15 = arith.constant 4.000000e+00 : f32
      %23 = vector.broadcast %cst_15 : f32 to vector<1x512xf32>
      %24 = arith.divf %22, %23 : vector<1x512xf32>
      %cst_16 = arith.constant 9.99999974E-6 : f32
      %25 = vector.broadcast %cst_16 : f32 to vector<1x512xf32>
      %26 = arith.addf %24, %25 : vector<1x512xf32>
      %27 = math.rsqrt %26 : vector<1x512xf32>
      %28 = vector.broadcast %27 : vector<1x512xf32> to vector<4x512xf32>
      %29 = arith.mulf %19, %28 : vector<4x512xf32>
      %cst_17 = arith.constant 0.000000e+00 : f32
      %30 = vector.broadcast %cst_17 : f32 to vector<4x512xf32>
      %31 = arith.cmpf oge, %29, %30 : vector<4x512xf32>
      %cst_18 = arith.constant 2.000000e-01 : f32
      %32 = vector.broadcast %cst_18 : f32 to vector<4x512xf32>
      %33 = arith.mulf %32, %29 : vector<4x512xf32>
      %34 = arith.select %31, %29, %33 : vector<4x512xi1>, vector<4x512xf32>
      %35 = arith.truncf %34 : vector<4x512xf32> to vector<4x512xbf16>
      %c0_19 = arith.constant 0 : index
      %c0_20 = arith.constant 0 : index
      %c0_21 = arith.constant 0 : index
      %36 = vector.load %arg4[%c0_19, %c0_20, %c0_21] : memref<1x4x512xbf16, #tpu.memory_space<vmem>>, vector<1x4x512xbf16>
      %37 = vector.shape_cast %36 : vector<1x4x512xbf16> to vector<4x512xbf16>
      %38 = vector.shape_cast %35 : vector<4x512xbf16> to vector<1x4x512xbf16>
      tpu.vector_store %arg4[%c0_19, %c0_20, %c0_21], %38 {strides = array<i32>} : memref<1x4x512xbf16, #tpu.memory_space<vmem>>, vector<1x4x512xbf16>,
    } else {
    }
    return
  }
  func.func @transform_0(%arg0: i32, %arg1: i32) -> (i32, i32, i32) {
    %c0_i32 = arith.constant 0 : i32
    %c0_i32_0 = arith.constant 0 : i32
    return %arg0, %c0_i32, %arg1 : i32, i32, i32
  }
  func.func @transform_1(%arg0: i32, %arg1: i32) -> (i32, i32) {
    %c0_i32 = arith.constant 0 : i32
    %c0_i32_0 = arith.constant 0 : i32
    return %arg1, %c0_i32 : i32, i32
  }
  func.func @transform_2(%arg0: i32, %arg1: i32) -> (i32, i32, i32) {
    %c0_i32 = arith.constant 0 : i32
    %c0_i32_0 = arith.constant 0 : i32
    %c0_i32_1 = arith.constant 0 : i32
    return %arg0, %c0_i32, %c0_i32_0 : i32, i32, i32
  }
}

module attributes {stable_mosaic.version = 11 : i64} {
  func.func @_mm_kernel(%arg0: i32, %arg1: memref<8x8192xbf16, #tpu.memory_space<vmem>>, %arg2: memref<8192x128xbf16, #tpu.memory_space<vmem>>, %arg3: memref<8x128xf32, #tpu.memory_space<vmem>>) attributes {dimension_semantics = [#tpu.dimension_semantics<parallel>], iteration_bounds = array<i64: 1>, scalar_prefetch = 0 : i64, scratch_operands = 0 : i64, tpu.core_type = #tpu.core_type<tc>, window_params = [{transform_indices = @transform_0, window_bounds = array<i64: 8, 8192>}, {pipeline_mode = #tpu.pipeline_mode<synchronous>, transform_indices = @transform_1, window_bounds = array<i64: 8192, 128>}, {transform_indices = @transform_2, window_bounds = array<i64: 8, 128>}]} {
    %c0 = arith.constant 0 : index
    %c0_0 = arith.constant 0 : index
    %0 = vector.load %arg1[%c0, %c0_0] : memref<8x8192xbf16, #tpu.memory_space<vmem>>, vector<8x8192xbf16>
    %c0_1 = arith.constant 0 : index
    %c0_2 = arith.constant 0 : index
    %1 = vector.load %arg2[%c0_1, %c0_2] : memref<8192x128xbf16, #tpu.memory_space<vmem>>, vector<8192x128xbf16>
    %cst = arith.constant dense<0.000000e+00> : vector<8x128xf32>
    %2 = tpu.matmul %0, %1, %cst {dimension_numbers = #tpu.dot_dimension_numbers<[1], [0], [0], [1], [0, 0, 1, 1], [], []>} : vector<8x8192xbf16>, vector<8192x128xbf16>, vector<8x128xf32> -> vector<8x128xf32>
    %c0_3 = arith.constant 0 : index
    %c0_4 = arith.constant 0 : index
    %3 = vector.load %arg3[%c0_3, %c0_4] : memref<8x128xf32, #tpu.memory_space<vmem>>, vector<8x128xf32>
    tpu.vector_store %arg3[%c0_3, %c0_4], %2 {strides = array<i32>} : memref<8x128xf32, #tpu.memory_space<vmem>>, vector<8x128xf32>,
    return
  }
  func.func @transform_0(%arg0: i32) -> (i32, i32) {
    %c0_i32 = arith.constant 0 : i32
    %c0_i32_0 = arith.constant 0 : i32
    return %arg0, %c0_i32 : i32, i32
  }
  func.func @transform_1(%arg0: i32) -> (i32, i32) {
    %c0_i32 = arith.constant 0 : i32
    %c0_i32_0 = arith.constant 0 : i32
    %c0_i32_1 = arith.constant 0 : i32
    return %c0_i32, %c0_i32_0 : i32, i32
  }
  func.func @transform_2(%arg0: i32) -> (i32, i32) {
    %c0_i32 = arith.constant 0 : i32
    %c0_i32_0 = arith.constant 0 : i32
    return %arg0, %c0_i32 : i32, i32
  }
}

</mosaic_0001>

<llo_original>
// kernel: discriminator_forward.5
$region0: #{discriminator_forward.5}
  #allocation0 [shape = 'u32[]', space=smem, size = 0x4, offset = 0x4, fixed_abs, tag = 'smem constant byte address 0x4 - core index']
  #allocation1 [shape = 'u32[144,128]{1,0:T(1,128)}', space=vmem, size = 0x12000, scoped, tag = 'internal scratch']
  %s0 = inlined_call_operand.vmem [shape: bf16[512,96], index: 0, kind: input, shape index: {}]
  %s1 = inlined_call_operand.vmem [shape: bf16[96,64], index: 1, kind: input, shape index: {}]
  %s2 = inlined_call_operand.vmem [shape: f32[1,64], index: 2, kind: input, shape index: {}]
  %s3 = inlined_call_operand.vmem [shape: bf16[512,64], index: 3, kind: output, shape index: {}]
  %s4 = sld [smem:[#allocation0]]
  $region45: #{discriminator_forward.5} parent=0
    _
  %s6 = ssub.s32 1, %s4
  %s7 = scalar_select 0, %s6, %s4
  loop: start=0, step=1, limit=4
  $region2: #{discriminator_forward.5} parent=0 // loop_pre_header
    _
  $region3: #{discriminator_forward.5} parent=0 // loop_header
    %s9 = sphi 0, %s13
    %p10 = scmp.ge.s32.totalorder %s9, 4
    %s19 = sphi 0, %s21
    %s22 = sphi 0, %s19
    %s23 = sphi 0, %s22
    %s39 = sphi 0, %s23
    %s43 = sphi 0, %s43
    %s45 = sphi 0, %s43
    %s46 = sphi 0, %s45
    %s60 = sphi 0, %s46
    %s64 = sphi 0, %s64
    %s66 = sphi 0, %s64
    %s67 = sphi 0, %s66
    %s81 = sphi 0, %s67
    %s87 = sphi 0, %s89
    %s90 = sphi 0, %s87
    %s91 = sphi 0, %s90
    %s107 = sphi 0, %s91
  $region4: #{discriminator_forward.5} parent=0 // loop_header_branch
    %12 = sbr.rel (%p10) target = $region8
  $region5: #{discriminator_forward.5} parent=0 // loop_body
    %s14 = ssub.s32 %s9, 1
    %s15 = ssub.s32 %s9, 2
    %s16 = sadd.s32 %s9, 1
    %s17 = ssub.s32 %s9, %s16
    %p18 = scmp.eq.s32.totalorder %s17, 0
    %s20 = sadd.s32 %s19, 1
    %s21 = scalar_select %p18, %s19, %s20
    %p24 = pneg %p18
    %p25 = scmp.eq.s32.totalorder %s9, 1
    %p26 = por %p24, %p25
    %p27 = scmp.ne.s32.totalorder %s19, %s22
    %p28 = scmp.eq.s32.totalorder %s9, 0
    %p29 = por %p27, %p28
    %p30 = scmp.ne.s32.totalorder %s19, %s22
    %p31 = scmp.eq.s32.totalorder %s14, 1
    %p32 = por %p30, %p31
    %p33 = scmp.ne.s32.totalorder %s22, %s23
    %p34 = scmp.eq.s32.totalorder %s14, 0
    %p35 = por %p33, %p34
    %p36 = scmp.ne.s32.totalorder %s22, %s23
    %p37 = scmp.eq.s32.totalorder %s15, 1
    %p38 = por %p36, %p37
    %p40 = scmp.ne.s32.totalorder %s23, %s39
    %p41 = scmp.eq.s32.totalorder %s15, 0
    %p42 = por %p40, %p41
    %s44 = sadd.s32 %s43, 1
    %p47 = scmp.eq.s32.totalorder %s9, 1
    %p48 = scmp.ne.s32.totalorder %s43, %s45
    %p49 = scmp.eq.s32.totalorder %s9, 0
    %p50 = por %p48, %p49
    %p51 = scmp.ne.s32.totalorder %s43, %s45
    %p52 = scmp.eq.s32.totalorder %s14, 1
    %p53 = por %p51, %p52
    %p54 = scmp.ne.s32.totalorder %s45, %s46
    %p55 = scmp.eq.s32.totalorder %s14, 0
    %p56 = por %p54, %p55
    %p57 = scmp.ne.s32.totalorder %s45, %s46
    %p58 = scmp.eq.s32.totalorder %s15, 1
    %p59 = por %p57, %p58
    %p61 = scmp.ne.s32.totalorder %s46, %s60
    %p62 = scmp.eq.s32.totalorder %s15, 0
    %p63 = por %p61, %p62
    %s65 = sadd.s32 %s64, 1
    %p68 = scmp.eq.s32.totalorder %s9, 1
    %p69 = scmp.ne.s32.totalorder %s64, %s66
    %p70 = scmp.eq.s32.totalorder %s9, 0
    %p71 = por %p69, %p70
    %p72 = scmp.ne.s32.totalorder %s64, %s66
    %p73 = scmp.eq.s32.totalorder %s14, 1
    %p74 = por %p72, %p73
    %p75 = scmp.ne.s32.totalorder %s66, %s67
    %p76 = scmp.eq.s32.totalorder %s14, 0
    %p77 = por %p75, %p76
    %p78 = scmp.ne.s32.totalorder %s66, %s67
    %p79 = scmp.eq.s32.totalorder %s15, 1
    %p80 = por %p78, %p79
    %p82 = scmp.ne.s32.totalorder %s67, %s81
    %p83 = scmp.eq.s32.totalorder %s15, 0
    %p84 = por %p82, %p83
    %s85 = ssub.s32 %s9, %s16
    %p86 = scmp.eq.s32.totalorder %s85, 0
    %s88 = sadd.s32 %s87, 1
    %s89 = scalar_select %p86, %s87, %s88
    %p92 = pneg %p86
    %p93 = scmp.eq.s32.totalorder %s9, 1
    %p94 = por %p92, %p93
    %p95 = scmp.ne.s32.totalorder %s87, %s90
    %p96 = scmp.eq.s32.totalorder %s9, 0
    %p97 = por %p95, %p96
    %p98 = scmp.ne.s32.totalorder %s87, %s90
    %p99 = scmp.eq.s32.totalorder %s14, 1
    %p100 = por %p98, %p99
    %p101 = scmp.ne.s32.totalorder %s90, %s91
    %p102 = scmp.eq.s32.totalorder %s14, 0
    %p103 = por %p101, %p102
    %p104 = scmp.ne.s32.totalorder %s90, %s91
    %p105 = scmp.eq.s32.totalorder %s15, 1
    %p106 = por %p104, %p105
    %p108 = scmp.ne.s32.totalorder %s91, %s107
    %p109 = scmp.eq.s32.totalorder %s15, 0
    %p110 = por %p108, %p109
    %p111 = scmp.le.s32.totalorder 1, %s9
    %p112 = scmp.lt.s32.totalorder %s9, 3
    %p113 = pnand %p111, %p112
    %p114 = pneg %p113
    // Predicated region
    $region9: #{discriminator_forward.5} parent=5 // pred_check
      _
    $region10: #{discriminator_forward.5} parent=5 // pred_check_branch
      %116 = sbr.rel (%p113) target = $region12
    $region11: #{discriminator_forward.5} parent=5 // pred_region
      %s117 = ssub.s32 %s9, 1
      // Predicated region
      $region13: #{discriminator_forward.5} parent=11 // pred_check
        %p118 = pneg %p56
      $region14: #{discriminator_forward.5} parent=11 // pred_check_branch
        %120 = sbr.rel (%p118) target = $region16
      $region15: #{discriminator_forward.5} parent=11 // pred_region
        _
      $region16: #{discriminator_forward.5} parent=11 // pred_fallthru
        _
      // Predicated region
      $region17: #{discriminator_forward.5} parent=11 // pred_check
        %p121 = pneg %p77
      $region18: #{discriminator_forward.5} parent=11 // pred_check_branch
        %123 = sbr.rel (%p121) target = $region20
      $region19: #{discriminator_forward.5} parent=11 // pred_region
        _
      $region20: #{discriminator_forward.5} parent=11 // pred_fallthru
        _
    $region12: #{discriminator_forward.5} parent=5 // pred_fallthru
      _
    %p124 = scmp.lt.s32.totalorder %s9, 2
    // Predicated region
    $region21: #{discriminator_forward.5} parent=5 // pred_check
      %p125 = pneg %p124
    $region22: #{discriminator_forward.5} parent=5 // pred_check_branch
      %127 = sbr.rel (%p125) target = $region24
    $region23: #{discriminator_forward.5} parent=5 // pred_region
      // Predicated region
      $region25: #{discriminator_forward.5} parent=23 // pred_check
        %p128 = pneg %p29
      $region26: #{discriminator_forward.5} parent=23 // pred_check_branch
        %130 = sbr.rel (%p128) target = $region28
      $region27: #{discriminator_forward.5} parent=23 // pred_region
        %s131 = smul.u32 32, %s9
        %p132 = scmp.lt.s32.totalorder %s131, 63
        %s133 = scalar_select %p132, %s131, 63
        %s134 = smul.addr %s133, 4
        %s135 = scalar_lea.vmem %s0, %s134
        %s136 = smul.u32 32, %s9
      $region28: #{discriminator_forward.5} parent=23 // pred_fallthru
        _
    $region24: #{discriminator_forward.5} parent=5 // pred_fallthru
      _
    %p137 = scmp.le.s32.totalorder 1, %s9
    %p138 = scmp.lt.s32.totalorder %s9, 3
    %p139 = pnand %p137, %p138
    %p140 = pneg %p139
    // Predicated region
    $region29: #{discriminator_forward.5} parent=5 // pred_check
      _
    $region30: #{discriminator_forward.5} parent=5 // pred_check_branch
      %142 = sbr.rel (%p139) target = $region32
    $region31: #{discriminator_forward.5} parent=5 // pred_region
      %s143 = ssub.s32 %s9, 1
      %s144 = smul.u32 32, %s14
      %p145 = scmp.lt.s32.totalorder %s144, 63
      %s146 = scalar_select %p145, %s144, 63
      %s147 = smul.addr %s146, 4
      %s148 = scalar_lea.vmem %s0, %s147
      %p149 = pneg %p35
      %p150 = pneg %p32
      %p151 = pneg %p56
      %p152 = pneg %p53
      %p153 = pneg %p77
      %p154 = pneg %p74
      %p155 = pneg %p103
      %p156 = pneg %p100
      %s157 = smul.u32 32, %s14
      %p158 = scmp.lt.s32.totalorder %s157, 63
      %s159 = scalar_select %p158, %s157, 63
      %s160 = smul.addr %s159, 4
      %s161 = scalar_lea.vmem %s3, %s160
      %s162 = smul.u32 32, %s14
      %p163 = scmp.lt.s32.totalorder %s162, 63
      %s164 = scalar_select %p163, %s162, 63
      %s165 = smul.addr %s164, 4
      %s166 = scalar_lea.vmem %s0, %s165
      %s167 = smul.u32 32, %s14
      %s168 = smul.u32 32, %s14
      %p169 = scmp.lt.s32.totalorder %s168, 63
      %s170 = scalar_select %p169, %s168, 63
      %s171 = smul.addr %s170, 4
      %s172 = scalar_lea.vmem %s3, %s171
      %s173 = smul.u32 32, %s14
      %v175 = vld [vmem:[%s166] sm:$0xf]
      %v176 = vld [vmem:[%s166 + $0x4] sm:$0xf]
      %v177 = vld [vmem:[%s166 + $0x8] sm:$0xf]
      %v178 = vld [vmem:[%s166 + $0xc] sm:$0xf]
      %v179 = vld [vmem:[%s166 + $0x10] sm:$0xf]
      %v180 = vld [vmem:[%s166 + $0x14] sm:$0xf]
      %v181 = vld [vmem:[%s166 + $0x18] sm:$0xf]
      %v182 = vld [vmem:[%s166 + $0x1c] sm:$0xf]
      %v183 = vld [vmem:[%s166 + $0x20] sm:$0xf]
      %v184 = vld [vmem:[%s166 + $0x24] sm:$0xf]
      %v185 = vld [vmem:[%s166 + $0x28] sm:$0xf]
      %v186 = vld [vmem:[%s166 + $0x2c] sm:$0xf]
      %v187 = vld [vmem:[%s166 + $0x30] sm:$0xf]
      %v188 = vld [vmem:[%s166 + $0x34] sm:$0xf]
      %v189 = vld [vmem:[%s166 + $0x38] sm:$0xf]
      %v190 = vld [vmem:[%s166 + $0x3c] sm:$0xf]
      %v191 = vld [vmem:[%s166 + $0x40] sm:$0xf]
      %v192 = vld [vmem:[%s166 + $0x44] sm:$0xf]
      %v193 = vld [vmem:[%s166 + $0x48] sm:$0xf]
      %v194 = vld [vmem:[%s166 + $0x4c] sm:$0xf]
      %v195 = vld [vmem:[%s166 + $0x50] sm:$0xf]
      %v196 = vld [vmem:[%s166 + $0x54] sm:$0xf]
      %v197 = vld [vmem:[%s166 + $0x58] sm:$0xf]
      %v198 = vld [vmem:[%s166 + $0x5c] sm:$0xf]
      %v199 = vld [vmem:[%s166 + $0x60] sm:$0xf]
      %v200 = vld [vmem:[%s166 + $0x64] sm:$0xf]
      %v201 = vld [vmem:[%s166 + $0x68] sm:$0xf]
      %v202 = vld [vmem:[%s166 + $0x6c] sm:$0xf]
      %v203 = vld [vmem:[%s166 + $0x70] sm:$0xf]
      %v204 = vld [vmem:[%s166 + $0x74] sm:$0xf]
      %v205 = vld [vmem:[%s166 + $0x78] sm:$0xf]
      %v206 = vld [vmem:[%s166 + $0x7c] sm:$0xf]
      %v207 = vld [vmem:[%s1] sm:$0xf]
      %v208 = vld [vmem:[%s1 + $0x4] sm:$0xf]
      %v209 = vld [vmem:[%s1 + $0x8] sm:$0xf]
      %v210 = vld [vmem:[%s1 + $0xc] sm:$0xf]
      %v211 = vld [vmem:[%s1 + $0x10] sm:$0xf]
      %v212 = vld [vmem:[%s1 + $0x14] sm:$0xf]
      %v213 = vld [vmem:[%s1 + $0x18] sm:$0xf]
      %v214 = vld [vmem:[%s1 + $0x1c] sm:$0xf]
      %v215 = vld [vmem:[%s1 + $0x20] sm:$0xf]
      %v216 = vld [vmem:[%s1 + $0x24] sm:$0xf]
      %v217 = vld [vmem:[%s1 + $0x28] sm:$0xf]
      %v218 = vld [vmem:[%s1 + $0x2c] sm:$0xf]
      %v219 = vld [vmem:[%s2] sm:$0x1]
      %v221 = vlaneseq
      %v222 = vshrl.u32 %v221, 7
      %v223 = vsub.s32 0, %v222
      %v224 = vrot.slane %v219, %v223
      %v258 = vunpack.c.l.b16 %v175
      %v259 = vunpack.c.l.b16 %v176
      %v260 = vunpack.c.l.b16 %v177
      %v261 = vunpack.c.l.b16 %v178
      %v262 = vunpack.c.l.b16 %v179
      %v263 = vunpack.c.l.b16 %v180
      %v264 = vunpack.c.l.b16 %v181
      %v265 = vunpack.c.l.b16 %v182
      %v266 = vunpack.c.l.b16 %v183
      %v267 = vunpack.c.l.b16 %v184
      %v268 = vunpack.c.l.b16 %v185
      %v269 = vunpack.c.l.b16 %v186
      %v270 = vunpack.c.l.b16 %v187
      %v271 = vunpack.c.l.b16 %v188
      %v272 = vunpack.c.l.b16 %v189
      %v273 = vunpack.c.l.b16 %v190
      %v274 = vunpack.c.l.b16 %v191
      %v275 = vunpack.c.l.b16 %v192
      %v276 = vunpack.c.l.b16 %v193
      %v277 = vunpack.c.l.b16 %v194
      %v278 = vunpack.c.l.b16 %v195
      %v279 = vunpack.c.l.b16 %v196
      %v280 = vunpack.c.l.b16 %v197
      %v281 = vunpack.c.l.b16 %v198
      %v282 = vunpack.c.l.b16 %v199
      %v283 = vunpack.c.l.b16 %v200
      %v284 = vunpack.c.l.b16 %v201
      %v285 = vunpack.c.l.b16 %v202
      %v286 = vunpack.c.l.b16 %v203
      %v287 = vunpack.c.l.b16 %v204
      %v288 = vunpack.c.l.b16 %v205
      %v289 = vunpack.c.l.b16 %v206
      %v290 = vpack.c.b16 %v259, %v258
      %v291 = vpack.c.b16 %v261, %v260
      %v292 = vpack.c.b16 %v263, %v262
      %v293 = vpack.c.b16 %v265, %v264
      %v294 = vpack.c.b16 %v267, %v266
      %v295 = vpack.c.b16 %v269, %v268
      %v296 = vpack.c.b16 %v271, %v270
      %v297 = vpack.c.b16 %v273, %v272
      %v298 = vpack.c.b16 %v275, %v274
      %v299 = vpack.c.b16 %v277, %v276
      %v300 = vpack.c.b16 %v279, %v278
      %v301 = vpack.c.b16 %v281, %v280
      %v302 = vpack.c.b16 %v283, %v282
      %v303 = vpack.c.b16 %v285, %v284
      %v304 = vpack.c.b16 %v287, %v286
      %v305 = vpack.c.b16 %v289, %v288
      %v318 = vunpack.c.l.b16 %v207
      %v319 = vunpack.c.l.b16 %v208
      %v320 = vunpack.c.l.b16 %v209
      %v321 = vunpack.c.l.b16 %v210
      %v322 = vunpack.c.l.b16 %v211
      %v323 = vunpack.c.l.b16 %v212
      %v324 = vunpack.c.l.b16 %v213
      %v325 = vunpack.c.l.b16 %v214
      %v326 = vunpack.c.l.b16 %v215
      %v327 = vunpack.c.l.b16 %v216
      %v328 = vunpack.c.l.b16 %v217
      %v329 = vunpack.c.l.b16 %v218
      %v330 = vpack.c.b16 %v319, %v318
      %v331 = vpack.c.b16 %v321, %v320
      %v332 = vpack.c.b16 %v323, %v322
      %v333 = vpack.c.b16 %v325, %v324
      %v334 = vpack.c.b16 %v327, %v326
      %v335 = vpack.c.b16 %v329, %v328
      %vm342 = vcmask 785408
      %v344 = vsel %vm342, %v290, 0
      %v347 = vsel %vm342, %v291, 0
      %v350 = vsel %vm342, %v292, 0
      %v353 = vsel %vm342, %v293, 0
      %v356 = vsel %vm342, %v294, 0
      %v359 = vsel %vm342, %v295, 0
      %v362 = vsel %vm342, %v296, 0
      %v365 = vsel %vm342, %v297, 0
      %v368 = vsel %vm342, %v298, 0
      %v371 = vsel %vm342, %v299, 0
      %v374 = vsel %vm342, %v300, 0
      %v377 = vsel %vm342, %v301, 0
      %v380 = vsel %vm342, %v302, 0
      %v383 = vsel %vm342, %v303, 0
      %v386 = vsel %vm342, %v304, 0
      %v389 = vsel %vm342, %v305, 0
      %391 = vmatprep.subr.bf16.mxu0 0
      %392 = vmatpush1.bf16.msra.mxu0 %v330
      %393 = vmatprep.subr.bf16.mxu0 0
      %394 = vmatpush1.bf16.msra.mxu0 %v331
      %395 = vmatprep.subr.bf16.mxu0 0
      %396 = vmatpush1.bf16.msra.mxu0 %v332
      %397 = vmatprep.subr.bf16.mxu0 0
      %398 = vmatpush1.bf16.msra.mxu0 %v333
      %399 = vmatprep.subr.bf16.mxu0 0
      %400 = vmatpush1.bf16.msra.mxu0 %v334
      %401 = vmatprep.subr.bf16.mxu0 0
      %402 = vmatpush1.bf16.msra.mxu0 %v335
      %403 = vmatprep.subr.bf16.mxu0 0
      %404 = vmatpush1.bf16.msra.mxu0 0
      %405 = vmatprep.subr.bf16.mxu0 0
      %406 = vmatpush1.bf16.msra.mxu0 0
      %407 = vmatprep.subr.bf16.mxu0 0
      %408 = vmatpush1.bf16.msra.mxu0 0
      %409 = vmatprep.subr.bf16.mxu0 0
      %410 = vmatpush1.bf16.msra.mxu0 0
      %411 = vmatprep.subr.bf16.mxu0 0
      %412 = vmatpush1.bf16.msra.mxu0 0
      %413 = vmatprep.subr.bf16.mxu0 0
      %414 = vmatpush1.bf16.msra.mxu0 0
      %415 = vmatprep.subr.bf16.mxu0 0
      %416 = vmatpush1.bf16.msra.mxu0 0
      %417 = vmatprep.subr.bf16.mxu0 0
      %418 = vmatpush1.bf16.msra.mxu0 0
      %419 = vmatprep.subr.bf16.mxu0 0
      %420 = vmatpush1.bf16.msra.mxu0 0
      %421 = vmatprep.subr.bf16.mxu0 0
      %422 = vmatpush1.bf16.msra.mxu0 0
      %423 = vmatprep.mubr.bf16.mxu0 0
      %424 = vmatmul.mubr.bf16.gmra.mrb[0].mxu0 %v344
      %v425 = vpop.f32.mrb[0].mxu0
      %v426 = vadd.f32 %v224, %v425
      %v427 = vpop.f32.mrb[0].mxu0
      %v428 = vpop.f32.mrb[0].mxu0
      %v429 = vadd.f32 %v224, %v428
      %v430 = vpop.f32.mrb[0].mxu0
      %431 = vmatprep.mubr.bf16.mxu0 0
      %432 = vmatmul.mubr.bf16.gmra.mrb[0].mxu0 %v347
      %v433 = vpop.f32.mrb[0].mxu0
      %v434 = vadd.f32 %v224, %v433
      %v435 = vpop.f32.mrb[0].mxu0
      %v436 = vpop.f32.mrb[0].mxu0
      %v437 = vadd.f32 %v224, %v436
      %v438 = vpop.f32.mrb[0].mxu0
      %439 = vmatprep.mubr.bf16.mxu0 0
      %440 = vmatmul.mubr.bf16.gmra.mrb[0].mxu0 %v350
      %v441 = vpop.f32.mrb[0].mxu0
      %v442 = vadd.f32 %v224, %v441
      %v443 = vpop.f32.mrb[0].mxu0
      %v444 = vpop.f32.mrb[0].mxu0
      %v445 = vadd.f32 %v224, %v444
      %v446 = vpop.f32.mrb[0].mxu0
      %447 = vmatprep.mubr.bf16.mxu0 0
      %448 = vmatmul.mubr.bf16.gmra.mrb[0].mxu0 %v353
      %v449 = vpop.f32.mrb[0].mxu0
      %v450 = vadd.f32 %v224, %v449
      %v451 = vpop.f32.mrb[0].mxu0
      %v452 = vpop.f32.mrb[0].mxu0
      %v453 = vadd.f32 %v224, %v452
      %v454 = vpop.f32.mrb[0].mxu0
      %455 = vmatprep.mubr.bf16.mxu0 0
      %456 = vmatmul.mubr.bf16.gmra.mrb[0].mxu0 %v356
      %v457 = vpop.f32.mrb[0].mxu0
      %v458 = vadd.f32 %v224, %v457
      %v459 = vpop.f32.mrb[0].mxu0
      %v460 = vpop.f32.mrb[0].mxu0
      %v461 = vadd.f32 %v224, %v460
      %v462 = vpop.f32.mrb[0].mxu0
      %463 = vmatprep.mubr.bf16.mxu0 0
      %464 = vmatmul.mubr.bf16.gmra.mrb[0].mxu0 %v359
      %v465 = vpop.f32.mrb[0].mxu0
      %v466 = vadd.f32 %v224, %v465
      %v467 = vpop.f32.mrb[0].mxu0
      %v468 = vpop.f32.mrb[0].mxu0
      %v469 = vadd.f32 %v224, %v468
      %v470 = vpop.f32.mrb[0].mxu0
      %471 = vmatprep.mubr.bf16.mxu0 0
      %472 = vmatmul.mubr.bf16.gmra.mrb[0].mxu0 %v362
      %v473 = vpop.f32.mrb[0].mxu0
      %v474 = vadd.f32 %v224, %v473
      %v475 = vpop.f32.mrb[0].mxu0
      %v476 = vpop.f32.mrb[0].mxu0
      %v477 = vadd.f32 %v224, %v476
      %v478 = vpop.f32.mrb[0].mxu0
      %479 = vmatprep.mubr.bf16.mxu0 0
      %480 = vmatmul.mubr.bf16.gmra.mrb[0].mxu0 %v365
      %v481 = vpop.f32.mrb[0].mxu0
      %v482 = vadd.f32 %v224, %v481
      %v483 = vpop.f32.mrb[0].mxu0
      %v484 = vpop.f32.mrb[0].mxu0
      %v485 = vadd.f32 %v224, %v484
      %v486 = vpop.f32.mrb[0].mxu0
      %487 = vmatprep.mubr.bf16.mxu0 0
      %488 = vmatmul.mubr.bf16.gmra.mrb[0].mxu0 %v368
      %v489 = vpop.f32.mrb[0].mxu0
      %v490 = vadd.f32 %v224, %v489
      %v491 = vpop.f32.mrb[0].mxu0
      %v492 = vpop.f32.mrb[0].mxu0
      %v493 = vadd.f32 %v224, %v492
      %v494 = vpop.f32.mrb[0].mxu0
      %495 = vmatprep.mubr.bf16.mxu0 0
      %496 = vmatmul.mubr.bf16.gmra.mrb[0].mxu0 %v371
      %v497 = vpop.f32.mrb[0].mxu0
      %v498 = vadd.f32 %v224, %v497
      %v499 = vpop.f32.mrb[0].mxu0
      %v500 = vpop.f32.mrb[0].mxu0
      %v501 = vadd.f32 %v224, %v500
      %v502 = vpop.f32.mrb[0].mxu0
      %503 = vmatprep.mubr.bf16.mxu0 0
      %504 = vmatmul.mubr.bf16.gmra.mrb[0].mxu0 %v374
      %v505 = vpop.f32.mrb[0].mxu0
      %v506 = vadd.f32 %v224, %v505
      %v507 = vpop.f32.mrb[0].mxu0
      %v508 = vpop.f32.mrb[0].mxu0
      %v509 = vadd.f32 %v224, %v508
      %v510 = vpop.f32.mrb[0].mxu0
      %511 = vmatprep.mubr.bf16.mxu0 0
      %512 = vmatmul.mubr.bf16.gmra.mrb[0].mxu0 %v377
      %v513 = vpop.f32.mrb[0].mxu0
      %v514 = vadd.f32 %v224, %v513
      %v515 = vpop.f32.mrb[0].mxu0
      %v516 = vpop.f32.mrb[0].mxu0
      %v517 = vadd.f32 %v224, %v516
      %v518 = vpop.f32.mrb[0].mxu0
      %519 = vmatprep.mubr.bf16.mxu0 0
      %520 = vmatmul.mubr.bf16.gmra.mrb[0].mxu0 %v380
      %v521 = vpop.f32.mrb[0].mxu0
      %v522 = vadd.f32 %v224, %v521
      %v523 = vpop.f32.mrb[0].mxu0
      %v524 = vpop.f32.mrb[0].mxu0
      %v525 = vadd.f32 %v224, %v524
      %v526 = vpop.f32.mrb[0].mxu0
      %527 = vmatprep.mubr.bf16.mxu0 0
      %528 = vmatmul.mubr.bf16.gmra.mrb[0].mxu0 %v383
      %v529 = vpop.f32.mrb[0].mxu0
      %v530 = vadd.f32 %v224, %v529
      %v531 = vpop.f32.mrb[0].mxu0
      %v532 = vpop.f32.mrb[0].mxu0
      %v533 = vadd.f32 %v224, %v532
      %v534 = vpop.f32.mrb[0].mxu0
      %535 = vmatprep.mubr.bf16.mxu0 0
      %536 = vmatmul.mubr.bf16.gmra.mrb[0].mxu0 %v386
      %v537 = vpop.f32.mrb[0].mxu0
      %v538 = vadd.f32 %v224, %v537
      %v539 = vpop.f32.mrb[0].mxu0
      %v540 = vpop.f32.mrb[0].mxu0
      %v541 = vadd.f32 %v224, %v540
      %v542 = vpop.f32.mrb[0].mxu0
      %543 = vmatprep.mubr.bf16.mxu0 0
      %544 = vmatmul.mubr.bf16.gmra.mrb[0].mxu0 %v389
      %v545 = vpop.f32.mrb[0].mxu0
      %v546 = vadd.f32 %v224, %v545
      %v547 = vpop.f32.mrb[0].mxu0
      %v548 = vpop.f32.mrb[0].mxu0
      %v549 = vadd.f32 %v224, %v548
      %v550 = vpop.f32.mrb[0].mxu0
      %551 = vdwg.mxu0
      %vm552 = vcmp.ge.f32.partialorder %v426, 0.0
      %vm553 = vcmp.ge.f32.partialorder %v429, 0.0
      %vm554 = vcmp.ge.f32.partialorder %v434, 0.0
      %vm555 = vcmp.ge.f32.partialorder %v437, 0.0
      %vm556 = vcmp.ge.f32.partialorder %v442, 0.0
      %vm557 = vcmp.ge.f32.partialorder %v445, 0.0
      %vm558 = vcmp.ge.f32.partialorder %v450, 0.0
      %vm559 = vcmp.ge.f32.partialorder %v453, 0.0
      %vm560 = vcmp.ge.f32.partialorder %v458, 0.0
      %vm561 = vcmp.ge.f32.partialorder %v461, 0.0
      %vm562 = vcmp.ge.f32.partialorder %v466, 0.0
      %vm563 = vcmp.ge.f32.partialorder %v469, 0.0
      %vm564 = vcmp.ge.f32.partialorder %v474, 0.0
      %vm565 = vcmp.ge.f32.partialorder %v477, 0.0
      %vm566 = vcmp.ge.f32.partialorder %v482, 0.0
      %vm567 = vcmp.ge.f32.partialorder %v485, 0.0
      %vm568 = vcmp.ge.f32.partialorder %v490, 0.0
      %vm569 = vcmp.ge.f32.partialorder %v493, 0.0
      %vm570 = vcmp.ge.f32.partialorder %v498, 0.0
      %vm571 = vcmp.ge.f32.partialorder %v501, 0.0
      %vm572 = vcmp.ge.f32.partialorder %v506, 0.0
      %vm573 = vcmp.ge.f32.partialorder %v509, 0.0
      %vm574 = vcmp.ge.f32.partialorder %v514, 0.0
      %vm575 = vcmp.ge.f32.partialorder %v517, 0.0
      %vm576 = vcmp.ge.f32.partialorder %v522, 0.0
      %vm577 = vcmp.ge.f32.partialorder %v525, 0.0
      %vm578 = vcmp.ge.f32.partialorder %v530, 0.0
      %vm579 = vcmp.ge.f32.partialorder %v533, 0.0
      %vm580 = vcmp.ge.f32.partialorder %v538, 0.0
      %vm581 = vcmp.ge.f32.partialorder %v541, 0.0
      %vm582 = vcmp.ge.f32.partialorder %v546, 0.0
      %vm583 = vcmp.ge.f32.partialorder %v549, 0.0
      %v584 = vmul.f32 %v426, 0.2
      %v585 = vmul.f32 %v429, 0.2
      %v586 = vmul.f32 %v434, 0.2
      %v587 = vmul.f32 %v437, 0.2
      %v588 = vmul.f32 %v442, 0.2
      %v589 = vmul.f32 %v445, 0.2
      %v590 = vmul.f32 %v450, 0.2
      %v591 = vmul.f32 %v453, 0.2
      %v592 = vmul.f32 %v458, 0.2
      %v593 = vmul.f32 %v461, 0.2
      %v594 = vmul.f32 %v466, 0.2
      %v595 = vmul.f32 %v469, 0.2
      %v596 = vmul.f32 %v474, 0.2
      %v597 = vmul.f32 %v477, 0.2
      %v598 = vmul.f32 %v482, 0.2
      %v599 = vmul.f32 %v485, 0.2
      %v600 = vmul.f32 %v490, 0.2
      %v601 = vmul.f32 %v493, 0.2
      %v602 = vmul.f32 %v498, 0.2
      %v603 = vmul.f32 %v501, 0.2
      %v604 = vmul.f32 %v506, 0.2
      %v605 = vmul.f32 %v509, 0.2
      %v606 = vmul.f32 %v514, 0.2
      %v607 = vmul.f32 %v517, 0.2
      %v608 = vmul.f32 %v522, 0.2
      %v609 = vmul.f32 %v525, 0.2
      %v610 = vmul.f32 %v530, 0.2
      %v611 = vmul.f32 %v533, 0.2
      %v612 = vmul.f32 %v538, 0.2
      %v613 = vmul.f32 %v541, 0.2
      %v614 = vmul.f32 %v546, 0.2
      %v615 = vmul.f32 %v549, 0.2
      %v616 = vsel %vm552, %v426, %v584
      %v617 = vsel %vm553, %v429, %v585
      %v618 = vsel %vm554, %v434, %v586
      %v619 = vsel %vm555, %v437, %v587
      %v620 = vsel %vm556, %v442, %v588
      %v621 = vsel %vm557, %v445, %v589
      %v622 = vsel %vm558, %v450, %v590
      %v623 = vsel %vm559, %v453, %v591
      %v624 = vsel %vm560, %v458, %v592
      %v625 = vsel %vm561, %v461, %v593
      %v626 = vsel %vm562, %v466, %v594
      %v627 = vsel %vm563, %v469, %v595
      %v628 = vsel %vm564, %v474, %v596
      %v629 = vsel %vm565, %v477, %v597
      %v630 = vsel %vm566, %v482, %v598
      %v631 = vsel %vm567, %v485, %v599
      %v632 = vsel %vm568, %v490, %v600
      %v633 = vsel %vm569, %v493, %v601
      %v634 = vsel %vm570, %v498, %v602
      %v635 = vsel %vm571, %v501, %v603
      %v636 = vsel %vm572, %v506, %v604
      %v637 = vsel %vm573, %v509, %v605
      %v638 = vsel %vm574, %v514, %v606
      %v639 = vsel %vm575, %v517, %v607
      %v640 = vsel %vm576, %v522, %v608
      %v641 = vsel %vm577, %v525, %v609
      %v642 = vsel %vm578, %v530, %v610
      %v643 = vsel %vm579, %v533, %v611
      %v644 = vsel %vm580, %v538, %v612
      %v645 = vsel %vm581, %v541, %v613
      %v646 = vsel %vm582, %v546, %v614
      %v647 = vsel %vm583, %v549, %v615
      %v648 = vpack.c.bf16 %v617, %v616
      %v649 = vpack.c.bf16 %v619, %v618
      %v650 = vpack.c.bf16 %v621, %v620
      %v651 = vpack.c.bf16 %v623, %v622
      %v652 = vpack.c.bf16 %v625, %v624
      %v653 = vpack.c.bf16 %v627, %v626
      %v654 = vpack.c.bf16 %v629, %v628
      %v655 = vpack.c.bf16 %v631, %v630
      %v656 = vpack.c.bf16 %v633, %v632
      %v657 = vpack.c.bf16 %v635, %v634
      %v658 = vpack.c.bf16 %v637, %v636
      %v659 = vpack.c.bf16 %v639, %v638
      %v660 = vpack.c.bf16 %v641, %v640
      %v661 = vpack.c.bf16 %v643, %v642
      %v662 = vpack.c.bf16 %v645, %v644
      %v663 = vpack.c.bf16 %v647, %v646
      %v680 = vunpack.c.l.b16 %v648
      %v681 = vunpack.c.h.b16 %v648
      %v682 = vunpack.c.l.b16 %v649
      %v683 = vunpack.c.h.b16 %v649
      %v684 = vunpack.c.l.b16 %v650
      %v685 = vunpack.c.h.b16 %v650
      %v686 = vunpack.c.l.b16 %v651
      %v687 = vunpack.c.h.b16 %v651
      %v688 = vunpack.c.l.b16 %v652
      %v689 = vunpack.c.h.b16 %v652
      %v690 = vunpack.c.l.b16 %v653
      %v691 = vunpack.c.h.b16 %v653
      %v692 = vunpack.c.l.b16 %v654
      %v693 = vunpack.c.h.b16 %v654
      %v694 = vunpack.c.l.b16 %v655
      %v695 = vunpack.c.h.b16 %v655
      %v696 = vunpack.c.l.b16 %v656
      %v697 = vunpack.c.h.b16 %v656
      %v698 = vunpack.c.l.b16 %v657
      %v699 = vunpack.c.h.b16 %v657
      %v700 = vunpack.c.l.b16 %v658
      %v701 = vunpack.c.h.b16 %v658
      %v702 = vunpack.c.l.b16 %v659
      %v703 = vunpack.c.h.b16 %v659
      %v704 = vunpack.c.l.b16 %v660
      %v705 = vunpack.c.h.b16 %v660
      %v706 = vunpack.c.l.b16 %v661
      %v707 = vunpack.c.h.b16 %v661
      %v708 = vunpack.c.l.b16 %v662
      %v709 = vunpack.c.h.b16 %v662
      %v710 = vunpack.c.l.b16 %v663
      %v711 = vunpack.c.h.b16 %v663
      %v712 = vpack.c.b16 %v680, %v680
      %v713 = vpack.c.b16 %v681, %v681
      %v714 = vpack.c.b16 %v682, %v682
      %v715 = vpack.c.b16 %v683, %v683
      %v716 = vpack.c.b16 %v684, %v684
      %v717 = vpack.c.b16 %v685, %v685
      %v718 = vpack.c.b16 %v686, %v686
      %v719 = vpack.c.b16 %v687, %v687
      %v720 = vpack.c.b16 %v688, %v688
      %v721 = vpack.c.b16 %v689, %v689
      %v722 = vpack.c.b16 %v690, %v690
      %v723 = vpack.c.b16 %v691, %v691
      %v724 = vpack.c.b16 %v692, %v692
      %v725 = vpack.c.b16 %v693, %v693
      %v726 = vpack.c.b16 %v694, %v694
      %v727 = vpack.c.b16 %v695, %v695
      %v728 = vpack.c.b16 %v696, %v696
      %v729 = vpack.c.b16 %v697, %v697
      %v730 = vpack.c.b16 %v698, %v698
      %v731 = vpack.c.b16 %v699, %v699
      %v732 = vpack.c.b16 %v700, %v700
      %v733 = vpack.c.b16 %v701, %v701
      %v734 = vpack.c.b16 %v702, %v702
      %v735 = vpack.c.b16 %v703, %v703
      %v736 = vpack.c.b16 %v704, %v704
      %v737 = vpack.c.b16 %v705, %v705
      %v738 = vpack.c.b16 %v706, %v706
      %v739 = vpack.c.b16 %v707, %v707
      %v740 = vpack.c.b16 %v708, %v708
      %v741 = vpack.c.b16 %v709, %v709
      %v742 = vpack.c.b16 %v710, %v710
      %v743 = vpack.c.b16 %v711, %v711
      %vm776 = vcmask 519168
      %777 = vst.msk [vmem:[%s172] sm:$0xf] %vm776, %v712
      %778 = vst.msk [vmem:[%s172 + $0x4] sm:$0xf] %vm776, %v713
      %779 = vst.msk [vmem:[%s172 + $0x8] sm:$0xf] %vm776, %v714
      %780 = vst.msk [vmem:[%s172 + $0xc] sm:$0xf] %vm776, %v715
      %781 = vst.msk [vmem:[%s172 + $0x10] sm:$0xf] %vm776, %v716
      %782 = vst.msk [vmem:[%s172 + $0x14] sm:$0xf] %vm776, %v717
      %783 = vst.msk [vmem:[%s172 + $0x18] sm:$0xf] %vm776, %v718
      %784 = vst.msk [vmem:[%s172 + $0x1c] sm:$0xf] %vm776, %v719
      %785 = vst.msk [vmem:[%s172 + $0x20] sm:$0xf] %vm776, %v720
      %786 = vst.msk [vmem:[%s172 + $0x24] sm:$0xf] %vm776, %v721
      %787 = vst.msk [vmem:[%s172 + $0x28] sm:$0xf] %vm776, %v722
      %788 = vst.msk [vmem:[%s172 + $0x2c] sm:$0xf] %vm776, %v723
      %789 = vst.msk [vmem:[%s172 + $0x30] sm:$0xf] %vm776, %v724
      %790 = vst.msk [vmem:[%s172 + $0x34] sm:$0xf] %vm776, %v725
      %791 = vst.msk [vmem:[%s172 + $0x38] sm:$0xf] %vm776, %v726
      %792 = vst.msk [vmem:[%s172 + $0x3c] sm:$0xf] %vm776, %v727
      %793 = vst.msk [vmem:[%s172 + $0x40] sm:$0xf] %vm776, %v728
      %794 = vst.msk [vmem:[%s172 + $0x44] sm:$0xf] %vm776, %v729
      %795 = vst.msk [vmem:[%s172 + $0x48] sm:$0xf] %vm776, %v730
      %796 = vst.msk [vmem:[%s172 + $0x4c] sm:$0xf] %vm776, %v731
      %797 = vst.msk [vmem:[%s172 + $0x50] sm:$0xf] %vm776, %v732
      %798 = vst.msk [vmem:[%s172 + $0x54] sm:$0xf] %vm776, %v733
      %799 = vst.msk [vmem:[%s172 + $0x58] sm:$0xf] %vm776, %v734
      %800 = vst.msk [vmem:[%s172 + $0x5c] sm:$0xf] %vm776, %v735
      %801 = vst.msk [vmem:[%s172 + $0x60] sm:$0xf] %vm776, %v736
      %802 = vst.msk [vmem:[%s172 + $0x64] sm:$0xf] %vm776, %v737
      %803 = vst.msk [vmem:[%s172 + $0x68] sm:$0xf] %vm776, %v738
      %804 = vst.msk [vmem:[%s172 + $0x6c] sm:$0xf] %vm776, %v739
      %805 = vst.msk [vmem:[%s172 + $0x70] sm:$0xf] %vm776, %v740
      %806 = vst.msk [vmem:[%s172 + $0x74] sm:$0xf] %vm776, %v741
      %807 = vst.msk [vmem:[%s172 + $0x78] sm:$0xf] %vm776, %v742
      %808 = vst.msk [vmem:[%s172 + $0x7c] sm:$0xf] %vm776, %v743
      %s809 = smul.u32 32, %s14
      %p810 = scmp.lt.s32.totalorder %s809, 63
      %s811 = scalar_select %p810, %s809, 63
      %s812 = smul.addr %s811, 4
      %s813 = scalar_lea.vmem %s3, %s812
      // Predicated region
      $region33: #{discriminator_forward.5} parent=31 // pred_check
        %p814 = pneg %p100
      $region34: #{discriminator_forward.5} parent=31 // pred_check_branch
        %816 = sbr.rel (%p814) target = $region36
      $region35: #{discriminator_forward.5} parent=31 // pred_region
        %s817 = smul.u32 32, %s14
      $region36: #{discriminator_forward.5} parent=31 // pred_fallthru
        _
    $region32: #{discriminator_forward.5} parent=5 // pred_fallthru
      _
    %p818 = scmp.le.s32.totalorder 2, %s9
    // Predicated region
    $region37: #{discriminator_forward.5} parent=5 // pred_check
      %p819 = pneg %p818
    $region38: #{discriminator_forward.5} parent=5 // pred_check_branch
      %821 = sbr.rel (%p819) target = $region40
    $region39: #{discriminator_forward.5} parent=5 // pred_region
      %s822 = ssub.s32 %s9, 2
      // Predicated region
      $region41: #{discriminator_forward.5} parent=39 // pred_check
        %p823 = pneg %p106
      $region42: #{discriminator_forward.5} parent=39 // pred_check_branch
        %825 = sbr.rel (%p823) target = $region44
      $region43: #{discriminator_forward.5} parent=39 // pred_region
        %s826 = smul.u32 32, %s15
        %p827 = scmp.lt.s32.totalorder %s826, 63
        %s828 = scalar_select %p827, %s826, 63
        %s829 = smul.addr %s828, 4
        %s830 = scalar_lea.vmem %s3, %s829
      $region44: #{discriminator_forward.5} parent=39 // pred_fallthru
        _
    $region40: #{discriminator_forward.5} parent=5 // pred_fallthru
      _
  $region6: #{discriminator_forward.5} parent=0 // loop_footer
    %s13 = sadd.s32 1, %s9
  $region7: #{discriminator_forward.5} parent=0 // loop_footer_branch
    %8 = sbr.rel target = $region3
  $region8: #{discriminator_forward.5} parent=0 // loop_exit
    _

// kernel: discriminator_forward.6
$region0: #{discriminator_forward.6}
  #allocation0 [shape = 'u32[]', space=smem, size = 0x4, offset = 0x4, fixed_abs, tag = 'smem constant byte address 0x4 - core index']
  #allocation1 [shape = 'u32[144,128]{1,0:T(1,128)}', space=vmem, size = 0x12000, scoped, tag = 'internal scratch']
  #allocation2 [shape = 'f32[64,128]{1,0:T(8,128)}', space=vmem, size = 0x8000, scoped, tag = 'scratch operand']
  %s0 = inlined_call_operand.vmem [shape: bf16[2,64,1024], index: 0, kind: input, shape index: {}]
  %s1 = inlined_call_operand.vmem [shape: bf16[1024,128], index: 1, kind: input, shape index: {}]
  %s2 = inlined_call_operand.vmem [shape: bf16[2,64,128], index: 2, kind: output, shape index: {}]
  %s3 = sld [smem:[#allocation0]]
  $region72: #{discriminator_forward.6} parent=0
    _
  %s5 = ssub.s32 1, %s3
  %s6 = scalar_select 0, %s5, %s3
  $region1: #{discriminator_forward.6} parent=0
    #allocation3 [shape = 'u8[131072]{0}', space=vmem, size = 0x20000, scoped, tag = 'input window, operand 0']
    loop: start=0, step=1, limit=6
    $region2: #{discriminator_forward.6} parent=1 // loop_pre_header
      _
    $region3: #{discriminator_forward.6} parent=1 // loop_header
      %s8 = sphi 0, %s12
      %p9 = scmp.ge.s32.totalorder %s8, 6
      %s15 = sphi 0, %s27
      %s16 = sphi 0, %s23
      %s17 = sphi 0, %s15
      %s18 = sphi 0, %s16
      %s19 = sphi 0, %s17
      %s20 = sphi 0, %s18
      %s32 = sphi 0, %s34
      %s35 = sphi 0, %s32
      %s36 = sphi 0, %s35
      %s52 = sphi 0, %s36
      %s58 = sphi 0, %s60
      %s61 = sphi 0, %s58
      %s62 = sphi 0, %s61
      %s78 = sphi 0, %s62
      %s84 = sphi 0, %s86
      %s87 = sphi 0, %s84
      %s88 = sphi 0, %s87
      %s104 = sphi 0, %s88
    $region4: #{discriminator_forward.6} parent=1 // loop_header_branch
      %11 = sbr.rel (%p9) target = $region8
    $region5: #{discriminator_forward.6} parent=1 // loop_body
      %s13 = ssub.s32 %s8, 1
      %s14 = ssub.s32 %s8, 2
      %s21 = sadd.s32 1, %s16
      %p22 = scmp.ge.s32.totalorder %s21, 2
      %s23 = scalar_select %p22, 0, %s21
      %s24 = sadd.s32 1, %s15
      %s25 = scalar_select %p22, %s24, %s15
      %p26 = scmp.ge.s32.totalorder %s25, 2
      %s27 = scalar_select %p26, 0, %s25
      %s28 = ssub.s32 %s15, %s27
      %s29 = ssub.s32 %s16, %s23
      %s30 = sor.u32 %s28, %s29
      %p31 = scmp.eq.s32.totalorder %s30, 0
      %s33 = sadd.s32 %s32, 1
      %s34 = scalar_select %p31, %s32, %s33
      %p37 = pneg %p31
      %p38 = scmp.eq.s32.totalorder %s8, 3
      %p39 = por %p37, %p38
      %p40 = scmp.ne.s32.totalorder %s32, %s35
      %p41 = scmp.eq.s32.totalorder %s8, 0
      %p42 = por %p40, %p41
      %p43 = scmp.ne.s32.totalorder %s32, %s35
      %p44 = scmp.eq.s32.totalorder %s13, 3
      %p45 = por %p43, %p44
      %p46 = scmp.ne.s32.totalorder %s35, %s36
      %p47 = scmp.eq.s32.totalorder %s13, 0
      %p48 = por %p46, %p47
      %p49 = scmp.ne.s32.totalorder %s35, %s36
      %p50 = scmp.eq.s32.totalorder %s14, 3
      %p51 = por %p49, %p50
      %p53 = scmp.ne.s32.totalorder %s36, %s52
      %p54 = scmp.eq.s32.totalorder %s14, 0
      %p55 = por %p53, %p54
      %s56 = ssub.s32 %s16, %s23
      %p57 = scmp.eq.s32.totalorder %s56, 0
      %s59 = sadd.s32 %s58, 1
      %s60 = scalar_select %p57, %s58, %s59
      %p63 = pneg %p57
      %p64 = scmp.eq.s32.totalorder %s8, 3
      %p65 = por %p63, %p64
      %p66 = scmp.ne.s32.totalorder %s58, %s61
      %p67 = scmp.eq.s32.totalorder %s8, 0
      %p68 = por %p66, %p67
      %p69 = scmp.ne.s32.totalorder %s58, %s61
      %p70 = scmp.eq.s32.totalorder %s13, 3
      %p71 = por %p69, %p70
      %p72 = scmp.ne.s32.totalorder %s61, %s62
      %p73 = scmp.eq.s32.totalorder %s13, 0
      %p74 = por %p72, %p73
      %p75 = scmp.ne.s32.totalorder %s61, %s62
      %p76 = scmp.eq.s32.totalorder %s14, 3
      %p77 = por %p75, %p76
      %p79 = scmp.ne.s32.totalorder %s62, %s78
      %p80 = scmp.eq.s32.totalorder %s14, 0
      %p81 = por %p79, %p80
      %s82 = ssub.s32 %s15, %s27
      %p83 = scmp.eq.s32.totalorder %s82, 0
      %s85 = sadd.s32 %s84, 1
      %s86 = scalar_select %p83, %s84, %s85
      %p89 = pneg %p83
      %p90 = scmp.eq.s32.totalorder %s8, 3
      %p91 = por %p89, %p90
      %p92 = scmp.ne.s32.totalorder %s84, %s87
      %p93 = scmp.eq.s32.totalorder %s8, 0
      %p94 = por %p92, %p93
      %p95 = scmp.ne.s32.totalorder %s84, %s87
      %p96 = scmp.eq.s32.totalorder %s13, 3
      %p97 = por %p95, %p96
      %p98 = scmp.ne.s32.totalorder %s87, %s88
      %p99 = scmp.eq.s32.totalorder %s13, 0
      %p100 = por %p98, %p99
      %p101 = scmp.ne.s32.totalorder %s87, %s88
      %p102 = scmp.eq.s32.totalorder %s14, 3
      %p103 = por %p101, %p102
      %p105 = scmp.ne.s32.totalorder %s88, %s104
      %p106 = scmp.eq.s32.totalorder %s14, 0
      %p107 = por %p105, %p106
      %p108 = scmp.le.s32.totalorder 1, %s8
      %p109 = scmp.lt.s32.totalorder %s8, 5
      %p110 = pnand %p108, %p109
      %p111 = pneg %p110
      // Predicated region
      $region9: #{discriminator_forward.6} parent=5 // pred_check
        _
      $region10: #{discriminator_forward.6} parent=5 // pred_check_branch
        %113 = sbr.rel (%p110) target = $region12
      $region11: #{discriminator_forward.6} parent=5 // pred_region
        %s114 = ssub.s32 %s8, 1
      $region12: #{discriminator_forward.6} parent=5 // pred_fallthru
        _
      %p115 = scmp.lt.s32.totalorder %s8, 4
      // Predicated region
      $region13: #{discriminator_forward.6} parent=5 // pred_check
        %p116 = pneg %p115
      $region14: #{discriminator_forward.6} parent=5 // pred_check_branch
        %118 = sbr.rel (%p116) target = $region16
      $region15: #{discriminator_forward.6} parent=5 // pred_region
        // Predicated region
        $region17: #{discriminator_forward.6} parent=15 // pred_check
          %p119 = pneg %p42
        $region18: #{discriminator_forward.6} parent=15 // pred_check_branch
          %121 = sbr.rel (%p119) target = $region20
        $region19: #{discriminator_forward.6} parent=15 // pred_region
          %s122 = sand.u32 %s32, 1
          %s123 = sand.u32 %s32, 1
          %s124 = smul.addr %s123, 128
          %s125 = scalar_lea.vmem [#allocation3], %s124
          %s126 = smul.u32 4, %s16
          %s127 = smul.addr %s15, 64
          %s128 = sadd.s32 %s126, %s127
          %s129 = smul.addr %s128, 4
          %s130 = scalar_lea.vmem %s0, %s129
          // Predicated region
          $region21: #{discriminator_forward.6} parent=19 // pred_check
            _
          $region22: #{discriminator_forward.6} parent=19 // pred_check_branch
            %132 = sbr.rel (0) target = $region24
          $region23: #{discriminator_forward.6} parent=19 // pred_region
            // Predicated region
            $region25: #{discriminator_forward.6} parent=23 // pred_check
              _
            $region26: #{discriminator_forward.6} parent=23 // pred_check_branch
              %134 = sbr.rel (0) target = $region28
            $region27: #{discriminator_forward.6} parent=23 // pred_region
              loop: start=0, step=1, limit=1
              $region29: #{discriminator_forward.6} parent=27 // loop_pre_header
                _
              $region30: #{discriminator_forward.6} parent=27 // loop_header
                %s136 = sphi 0, %s140
                %p137 = scmp.ge.s32.totalorder %s136, 1
                %s141 = sphi %s130, %s130
                %s142 = sphi %s125, %s125
              $region31: #{discriminator_forward.6} parent=27 // loop_header_branch
                %139 = sbr.rel (%p137) target = $region35
              $region32: #{discriminator_forward.6} parent=27 // loop_body
                %v143 = vld [vmem:[%s141] sm:$0xff]
                %144 = vst [vmem:[%s142] sm:$0xff] %v143
                %v145 = vld [vmem:[%s141 + $0x8] sm:$0xff]
                %146 = vst [vmem:[%s142 + $0x8] sm:$0xff] %v145
                %v147 = vld [vmem:[%s141 + $0x20] sm:$0xff]
                %148 = vst [vmem:[%s142 + $0x10] sm:$0xff] %v147
                %v149 = vld [vmem:[%s141 + $0x28] sm:$0xff]
                %150 = vst [vmem:[%s142 + $0x18] sm:$0xff] %v149
                %v151 = vld [vmem:[%s141 + $0x40] sm:$0xff]
                %152 = vst [vmem:[%s142 + $0x20] sm:$0xff] %v151
                %v153 = vld [vmem:[%s141 + $0x48] sm:$0xff]
                %154 = vst [vmem:[%s142 + $0x28] sm:$0xff] %v153
                %v155 = vld [vmem:[%s141 + $0x60] sm:$0xff]
                %156 = vst [vmem:[%s142 + $0x30] sm:$0xff] %v155
                %v157 = vld [vmem:[%s141 + $0x68] sm:$0xff]
                %158 = vst [vmem:[%s142 + $0x38] sm:$0xff] %v157
                %v159 = vld [vmem:[%s141 + $0x80] sm:$0xff]
                %160 = vst [vmem:[%s142 + $0x40] sm:$0xff] %v159
                %v161 = vld [vmem:[%s141 + $0x88] sm:$0xff]
                %162 = vst [vmem:[%s142 + $0x48] sm:$0xff] %v161
                %v163 = vld [vmem:[%s141 + $0xa0] sm:$0xff]
                %164 = vst [vmem:[%s142 + $0x50] sm:$0xff] %v163
                %v165 = vld [vmem:[%s141 + $0xa8] sm:$0xff]
                %166 = vst [vmem:[%s142 + $0x58] sm:$0xff] %v165
                %v167 = vld [vmem:[%s141 + $0xc0] sm:$0xff]
                %168 = vst [vmem:[%s142 + $0x60] sm:$0xff] %v167
                %v169 = vld [vmem:[%s141 + $0xc8] sm:$0xff]
                %170 = vst [vmem:[%s142 + $0x68] sm:$0xff] %v169
                %v171 = vld [vmem:[%s141 + $0xe0] sm:$0xff]
                %172 = vst [vmem:[%s142 + $0x70] sm:$0xff] %v171
                %v173 = vld [vmem:[%s141 + $0xe8] sm:$0xff]
                %174 = vst [vmem:[%s142 + $0x78] sm:$0xff] %v173
              $region33: #{discriminator_forward.6} parent=27 // loop_footer
                %s140 = sadd.s32 1, %s136
              $region34: #{discriminator_forward.6} parent=27 // loop_footer_branch
                %135 = sbr.rel target = $region30
              $region35: #{discriminator_forward.6} parent=27 // loop_exit
                _
            $region28: #{discriminator_forward.6} parent=23 // pred_fallthru
              _
            // Predicated region
            $region36: #{discriminator_forward.6} parent=23 // pred_check
              _
            $region37: #{discriminator_forward.6} parent=23 // pred_check_branch
              %176 = sbr.rel target = $region39
            $region38: #{discriminator_forward.6} parent=23 // pred_region
              _
            $region39: #{discriminator_forward.6} parent=23 // pred_fallthru
              _
          $region24: #{discriminator_forward.6} parent=19 // pred_fallthru
            _
          %177 = vnop
        $region20: #{discriminator_forward.6} parent=15 // pred_fallthru
          _
        // Predicated region
        $region40: #{discriminator_forward.6} parent=15 // pred_check
          %p178 = pneg %p68
        $region41: #{discriminator_forward.6} parent=15 // pred_check_branch
          %180 = sbr.rel (%p178) target = $region43
        $region42: #{discriminator_forward.6} parent=15 // pred_region
          %s181 = smul.u32 64, %s16
          %p182 = scmp.lt.s32.totalorder %s181, 127
          %s183 = scalar_select %p182, %s181, 127
          %s184 = smul.addr %s183, 4
          %s185 = scalar_lea.vmem %s1, %s184
          %s186 = smul.u32 64, %s16
        $region43: #{discriminator_forward.6} parent=15 // pred_fallthru
          _
      $region16: #{discriminator_forward.6} parent=5 // pred_fallthru
        _
      %p187 = scmp.le.s32.totalorder 1, %s8
      %p188 = scmp.lt.s32.totalorder %s8, 5
      %p189 = pnand %p187, %p188
      %p190 = pneg %p189
      // Predicated region
      $region44: #{discriminator_forward.6} parent=5 // pred_check
        _
      $region45: #{discriminator_forward.6} parent=5 // pred_check_branch
        %192 = sbr.rel (%p189) target = $region47
      $region46: #{discriminator_forward.6} parent=5 // pred_region
        %s193 = ssub.s32 %s8, 1
        %s194 = sand.u32 %s35, 1
        %s195 = sand.u32 %s35, 1
        %s196 = smul.addr %s195, 128
        %s197 = scalar_lea.vmem [#allocation3], %s196
        // Predicated region
        $region48: #{discriminator_forward.6} parent=46 // pred_check
          %p198 = pneg %p48
        $region49: #{discriminator_forward.6} parent=46 // pred_check_branch
          %200 = sbr.rel (%p198) target = $region51
        $region50: #{discriminator_forward.6} parent=46 // pred_region
          _
        $region51: #{discriminator_forward.6} parent=46 // pred_fallthru
          _
        %s201 = sand.u32 %s35, 1
        %s202 = sand.u32 %s35, 1
        %s203 = smul.addr %s202, 128
        %s204 = scalar_lea.vmem [#allocation3], %s203
        %p205 = pneg %p48
        %p206 = pneg %p45
        %s207 = smul.u32 64, %s18
        %p208 = scmp.lt.s32.totalorder %s207, 127
        %s209 = scalar_select %p208, %s207, 127
        %s210 = smul.addr %s209, 4
        %s211 = scalar_lea.vmem %s1, %s210
        %p212 = pneg %p74
        %p213 = pneg %p71
        %p214 = pneg %p100
        %p215 = pneg %p97
        %p216 = scmp.lt.s32.totalorder %s17, 1
        %s217 = scalar_select %p216, %s17, 1
        %s218 = smul.addr %s217, 8
        %s219 = smul.addr %s218, 4
        %s220 = scalar_lea.vmem %s2, %s219
        %s221 = smul.u32 4, %s18
        %s222 = smul.u32 64, %s18
        %p223 = scmp.lt.s32.totalorder %s222, 127
        %s224 = scalar_select %p223, %s222, 127
        %s225 = smul.addr %s224, 4
        %s226 = scalar_lea.vmem %s1, %s225
        %s227 = smul.u32 64, %s18
        %p228 = scmp.lt.s32.totalorder %s17, 1
        %s229 = scalar_select %p228, %s17, 1
        %s230 = smul.addr %s229, 8
        %s231 = smul.addr %s230, 4
        %s232 = scalar_lea.vmem %s2, %s231
        %p234 = scmp.eq.s32.totalorder %s18, 0
        // Predicated region
        $region52: #{discriminator_forward.6} parent=46 // pred_check
          %p235 = pneg %p234
        $region53: #{discriminator_forward.6} parent=46 // pred_check_branch
          %237 = sbr.rel (%p235) target = $region55
        $region54: #{discriminator_forward.6} parent=46 // pred_region
          %238 = vst [vmem:[#allocation2] sm:$0xff] 0.0
          %239 = vst [vmem:[#allocation2 + $0x8] sm:$0xff] 0.0
          %240 = vst [vmem:[#allocation2 + $0x10] sm:$0xff] 0.0
          %241 = vst [vmem:[#allocation2 + $0x18] sm:$0xff] 0.0
          %242 = vst [vmem:[#allocation2 + $0x20] sm:$0xff] 0.0
          %243 = vst [vmem:[#allocation2 + $0x28] sm:$0xff] 0.0
          %244 = vst [vmem:[#allocation2 + $0x30] sm:$0xff] 0.0
          %245 = vst [vmem:[#allocation2 + $0x38] sm:$0xff] 0.0
        $region55: #{discriminator_forward.6} parent=46 // pred_fallthru
          _
        %v246 = vld [vmem:[#allocation2] sm:$0xff]
        %v247 = vld [vmem:[#allocation2 + $0x8] sm:$0xff]
        %v248 = vld [vmem:[#allocation2 + $0x10] sm:$0xff]
        %v249 = vld [vmem:[#allocation2 + $0x18] sm:$0xff]
        %v250 = vld [vmem:[#allocation2 + $0x20] sm:$0xff]
        %v251 = vld [vmem:[#allocation2 + $0x28] sm:$0xff]
        %v252 = vld [vmem:[#allocation2 + $0x30] sm:$0xff]
        %v253 = vld [vmem:[#allocation2 + $0x38] sm:$0xff]
        %v254 = vld [vmem:[%s197] sm:$0xff]
        %v255 = vld [vmem:[%s197 + $0x8] sm:$0xff]
        %v256 = vld [vmem:[%s197 + $0x10] sm:$0xff]
        %v257 = vld [vmem:[%s197 + $0x18] sm:$0xff]
        %v258 = vld [vmem:[%s197 + $0x20] sm:$0xff]
        %v259 = vld [vmem:[%s197 + $0x28] sm:$0xff]
        %v260 = vld [vmem:[%s197 + $0x30] sm:$0xff]
        %v261 = vld [vmem:[%s197 + $0x38] sm:$0xff]
        %v262 = vld [vmem:[%s197 + $0x40] sm:$0xff]
        %v263 = vld [vmem:[%s197 + $0x48] sm:$0xff]
        %v264 = vld [vmem:[%s197 + $0x50] sm:$0xff]
        %v265 = vld [vmem:[%s197 + $0x58] sm:$0xff]
        %v266 = vld [vmem:[%s197 + $0x60] sm:$0xff]
        %v267 = vld [vmem:[%s197 + $0x68] sm:$0xff]
        %v268 = vld [vmem:[%s197 + $0x70] sm:$0xff]
        %v269 = vld [vmem:[%s197 + $0x78] sm:$0xff]
        %v270 = vld [vmem:[%s226] sm:$0xf]
        %v271 = vld [vmem:[%s226 + $0x4] sm:$0xf]
        %v272 = vld [vmem:[%s226 + $0x8] sm:$0xf]
        %v273 = vld [vmem:[%s226 + $0xc] sm:$0xf]
        %v274 = vld [vmem:[%s226 + $0x10] sm:$0xf]
        %v275 = vld [vmem:[%s226 + $0x14] sm:$0xf]
        %v276 = vld [vmem:[%s226 + $0x18] sm:$0xf]
        %v277 = vld [vmem:[%s226 + $0x1c] sm:$0xf]
        %v278 = vld [vmem:[%s226 + $0x20] sm:$0xf]
        %v279 = vld [vmem:[%s226 + $0x24] sm:$0xf]
        %v280 = vld [vmem:[%s226 + $0x28] sm:$0xf]
        %v281 = vld [vmem:[%s226 + $0x2c] sm:$0xf]
        %v282 = vld [vmem:[%s226 + $0x30] sm:$0xf]
        %v283 = vld [vmem:[%s226 + $0x34] sm:$0xf]
        %v284 = vld [vmem:[%s226 + $0x38] sm:$0xf]
        %v285 = vld [vmem:[%s226 + $0x3c] sm:$0xf]
        %v286 = vld [vmem:[%s226 + $0x40] sm:$0xf]
        %v287 = vld [vmem:[%s226 + $0x44] sm:$0xf]
        %v288 = vld [vmem:[%s226 + $0x48] sm:$0xf]
        %v289 = vld [vmem:[%s226 + $0x4c] sm:$0xf]
        %v290 = vld [vmem:[%s226 + $0x50] sm:$0xf]
        %v291 = vld [vmem:[%s226 + $0x54] sm:$0xf]
        %v292 = vld [vmem:[%s226 + $0x58] sm:$0xf]
        %v293 = vld [vmem:[%s226 + $0x5c] sm:$0xf]
        %v294 = vld [vmem:[%s226 + $0x60] sm:$0xf]
        %v295 = vld [vmem:[%s226 + $0x64] sm:$0xf]
        %v296 = vld [vmem:[%s226 + $0x68] sm:$0xf]
        %v297 = vld [vmem:[%s226 + $0x6c] sm:$0xf]
        %v298 = vld [vmem:[%s226 + $0x70] sm:$0xf]
        %v299 = vld [vmem:[%s226 + $0x74] sm:$0xf]
        %v300 = vld [vmem:[%s226 + $0x78] sm:$0xf]
        %v301 = vld [vmem:[%s226 + $0x7c] sm:$0xf]
        %v302 = vld [vmem:[%s226 + $0x80] sm:$0xf]
        %v303 = vld [vmem:[%s226 + $0x84] sm:$0xf]
        %v304 = vld [vmem:[%s226 + $0x88] sm:$0xf]
        %v305 = vld [vmem:[%s226 + $0x8c] sm:$0xf]
        %v306 = vld [vmem:[%s226 + $0x90] sm:$0xf]
        %v307 = vld [vmem:[%s226 + $0x94] sm:$0xf]
        %v308 = vld [vmem:[%s226 + $0x98] sm:$0xf]
        %v309 = vld [vmem:[%s226 + $0x9c] sm:$0xf]
        %v310 = vld [vmem:[%s226 + $0xa0] sm:$0xf]
        %v311 = vld [vmem:[%s226 + $0xa4] sm:$0xf]
        %v312 = vld [vmem:[%s226 + $0xa8] sm:$0xf]
        %v313 = vld [vmem:[%s226 + $0xac] sm:$0xf]
        %v314 = vld [vmem:[%s226 + $0xb0] sm:$0xf]
        %v315 = vld [vmem:[%s226 + $0xb4] sm:$0xf]
        %v316 = vld [vmem:[%s226 + $0xb8] sm:$0xf]
        %v317 = vld [vmem:[%s226 + $0xbc] sm:$0xf]
        %v318 = vld [vmem:[%s226 + $0xc0] sm:$0xf]
        %v319 = vld [vmem:[%s226 + $0xc4] sm:$0xf]
        %v320 = vld [vmem:[%s226 + $0xc8] sm:$0xf]
        %v321 = vld [vmem:[%s226 + $0xcc] sm:$0xf]
        %v322 = vld [vmem:[%s226 + $0xd0] sm:$0xf]
        %v323 = vld [vmem:[%s226 + $0xd4] sm:$0xf]
        %v324 = vld [vmem:[%s226 + $0xd8] sm:$0xf]
        %v325 = vld [vmem:[%s226 + $0xdc] sm:$0xf]
        %v326 = vld [vmem:[%s226 + $0xe0] sm:$0xf]
        %v327 = vld [vmem:[%s226 + $0xe4] sm:$0xf]
        %v328 = vld [vmem:[%s226 + $0xe8] sm:$0xf]
        %v329 = vld [vmem:[%s226 + $0xec] sm:$0xf]
        %v330 = vld [vmem:[%s226 + $0xf0] sm:$0xf]
        %v331 = vld [vmem:[%s226 + $0xf4] sm:$0xf]
        %v332 = vld [vmem:[%s226 + $0xf8] sm:$0xf]
        %v333 = vld [vmem:[%s226 + $0xfc] sm:$0xf]
        %v350 = vunpack.c.l.b16 %v254
        %v351 = vunpack.c.h.b16 %v254
        %v352 = vunpack.c.l.b16 %v255
        %v353 = vunpack.c.h.b16 %v255
        %v354 = vunpack.c.l.b16 %v256
        %v355 = vunpack.c.h.b16 %v256
        %v356 = vunpack.c.l.b16 %v257
        %v357 = vunpack.c.h.b16 %v257
        %v358 = vunpack.c.l.b16 %v258
        %v359 = vunpack.c.h.b16 %v258
        %v360 = vunpack.c.l.b16 %v259
        %v361 = vunpack.c.h.b16 %v259
        %v362 = vunpack.c.l.b16 %v260
        %v363 = vunpack.c.h.b16 %v260
        %v364 = vunpack.c.l.b16 %v261
        %v365 = vunpack.c.h.b16 %v261
        %v366 = vunpack.c.l.b16 %v262
        %v367 = vunpack.c.h.b16 %v262
        %v368 = vunpack.c.l.b16 %v263
        %v369 = vunpack.c.h.b16 %v263
        %v370 = vunpack.c.l.b16 %v264
        %v371 = vunpack.c.h.b16 %v264
        %v372 = vunpack.c.l.b16 %v265
        %v373 = vunpack.c.h.b16 %v265
        %v374 = vunpack.c.l.b16 %v266
        %v375 = vunpack.c.h.b16 %v266
        %v376 = vunpack.c.l.b16 %v267
        %v377 = vunpack.c.h.b16 %v267
        %v378 = vunpack.c.l.b16 %v268
        %v379 = vunpack.c.h.b16 %v268
        %v380 = vunpack.c.l.b16 %v269
        %v381 = vunpack.c.h.b16 %v269
        %v382 = vpack.c.b16 %v354, %v350
        %v383 = vpack.c.b16 %v355, %v351
        %v384 = vpack.c.b16 %v356, %v352
        %v385 = vpack.c.b16 %v357, %v353
        %v386 = vpack.c.b16 %v362, %v358
        %v387 = vpack.c.b16 %v363, %v359
        %v388 = vpack.c.b16 %v364, %v360
        %v389 = vpack.c.b16 %v365, %v361
        %v390 = vpack.c.b16 %v370, %v366
        %v391 = vpack.c.b16 %v371, %v367
        %v392 = vpack.c.b16 %v372, %v368
        %v393 = vpack.c.b16 %v373, %v369
        %v394 = vpack.c.b16 %v378, %v374
        %v395 = vpack.c.b16 %v379, %v375
        %v396 = vpack.c.b16 %v380, %v376
        %v397 = vpack.c.b16 %v381, %v377
        %v478 = vunpack.c.l.b16 %v270
        %v479 = vunpack.c.l.b16 %v271
        %v480 = vunpack.c.l.b16 %v272
        %v481 = vunpack.c.l.b16 %v273
        %v482 = vunpack.c.l.b16 %v274
        %v483 = vunpack.c.l.b16 %v275
        %v484 = vunpack.c.l.b16 %v276
        %v485 = vunpack.c.l.b16 %v277
        %v486 = vunpack.c.l.b16 %v278
        %v487 = vunpack.c.l.b16 %v279
        %v488 = vunpack.c.l.b16 %v280
        %v489 = vunpack.c.l.b16 %v281
        %v490 = vunpack.c.l.b16 %v282
        %v491 = vunpack.c.l.b16 %v283
        %v492 = vunpack.c.l.b16 %v284
        %v493 = vunpack.c.l.b16 %v285
        %v494 = vunpack.c.l.b16 %v286
        %v495 = vunpack.c.l.b16 %v287
        %v496 = vunpack.c.l.b16 %v288
        %v497 = vunpack.c.l.b16 %v289
        %v498 = vunpack.c.l.b16 %v290
        %v499 = vunpack.c.l.b16 %v291
        %v500 = vunpack.c.l.b16 %v292
        %v501 = vunpack.c.l.b16 %v293
        %v502 = vunpack.c.l.b16 %v294
        %v503 = vunpack.c.l.b16 %v295
        %v504 = vunpack.c.l.b16 %v296
        %v505 = vunpack.c.l.b16 %v297
        %v506 = vunpack.c.l.b16 %v298
        %v507 = vunpack.c.l.b16 %v299
        %v508 = vunpack.c.l.b16 %v300
        %v509 = vunpack.c.l.b16 %v301
        %v510 = vunpack.c.l.b16 %v302
        %v511 = vunpack.c.l.b16 %v303
        %v512 = vunpack.c.l.b16 %v304
        %v513 = vunpack.c.l.b16 %v305
        %v514 = vunpack.c.l.b16 %v306
        %v515 = vunpack.c.l.b16 %v307
        %v516 = vunpack.c.l.b16 %v308
        %v517 = vunpack.c.l.b16 %v309
        %v518 = vunpack.c.l.b16 %v310
        %v519 = vunpack.c.l.b16 %v311
        %v520 = vunpack.c.l.b16 %v312
        %v521 = vunpack.c.l.b16 %v313
        %v522 = vunpack.c.l.b16 %v314
        %v523 = vunpack.c.l.b16 %v315
        %v524 = vunpack.c.l.b16 %v316
        %v525 = vunpack.c.l.b16 %v317
        %v526 = vunpack.c.l.b16 %v318
        %v527 = vunpack.c.l.b16 %v319
        %v528 = vunpack.c.l.b16 %v320
        %v529 = vunpack.c.l.b16 %v321
        %v530 = vunpack.c.l.b16 %v322
        %v531 = vunpack.c.l.b16 %v323
        %v532 = vunpack.c.l.b16 %v324
        %v533 = vunpack.c.l.b16 %v325
        %v534 = vunpack.c.l.b16 %v326
        %v535 = vunpack.c.l.b16 %v327
        %v536 = vunpack.c.l.b16 %v328
        %v537 = vunpack.c.l.b16 %v329
        %v538 = vunpack.c.l.b16 %v330
        %v539 = vunpack.c.l.b16 %v331
        %v540 = vunpack.c.l.b16 %v332
        %v541 = vunpack.c.l.b16 %v333
        %v542 = vpack.c.b16 %v479, %v478
        %v543 = vpack.c.b16 %v481, %v480
        %v544 = vpack.c.b16 %v483, %v482
        %v545 = vpack.c.b16 %v485, %v484
        %v546 = vpack.c.b16 %v487, %v486
        %v547 = vpack.c.b16 %v489, %v488
        %v548 = vpack.c.b16 %v491, %v490
        %v549 = vpack.c.b16 %v493, %v492
        %v550 = vpack.c.b16 %v495, %v494
        %v551 = vpack.c.b16 %v497, %v496
        %v552 = vpack.c.b16 %v499, %v498
        %v553 = vpack.c.b16 %v501, %v500
        %v554 = vpack.c.b16 %v503, %v502
        %v555 = vpack.c.b16 %v505, %v504
        %v556 = vpack.c.b16 %v507, %v506
        %v557 = vpack.c.b16 %v509, %v508
        %v558 = vpack.c.b16 %v511, %v510
        %v559 = vpack.c.b16 %v513, %v512
        %v560 = vpack.c.b16 %v515, %v514
        %v561 = vpack.c.b16 %v517, %v516
        %v562 = vpack.c.b16 %v519, %v518
        %v563 = vpack.c.b16 %v521, %v520
        %v564 = vpack.c.b16 %v523, %v522
        %v565 = vpack.c.b16 %v525, %v524
        %v566 = vpack.c.b16 %v527, %v526
        %v567 = vpack.c.b16 %v529, %v528
        %v568 = vpack.c.b16 %v531, %v530
        %v569 = vpack.c.b16 %v533, %v532
        %v570 = vpack.c.b16 %v535, %v534
        %v571 = vpack.c.b16 %v537, %v536
        %v572 = vpack.c.b16 %v539, %v538
        %v573 = vpack.c.b16 %v541, %v540
        %606 = vmatprep.subr.bf16.mxu0 0
        %607 = vmatpush1.bf16.msra.mxu0 %v542
        %608 = vmatprep.subr.bf16.mxu0 0
        %609 = vmatpush1.bf16.msra.mxu0 %v543
        %610 = vmatprep.subr.bf16.mxu0 0
        %611 = vmatpush1.bf16.msra.mxu0 %v544
        %612 = vmatprep.subr.bf16.mxu0 0
        %613 = vmatpush1.bf16.msra.mxu0 %v545
        %614 = vmatprep.subr.bf16.mxu0 0
        %615 = vmatpush1.bf16.msra.mxu0 %v546
        %616 = vmatprep.subr.bf16.mxu0 0
        %617 = vmatpush1.bf16.msra.mxu0 %v547
        %618 = vmatprep.subr.bf16.mxu0 0
        %619 = vmatpush1.bf16.msra.mxu0 %v548
        %620 = vmatprep.subr.bf16.mxu0 0
        %621 = vmatpush1.bf16.msra.mxu0 %v549
        %622 = vmatprep.subr.bf16.mxu0 0
        %623 = vmatpush1.bf16.msra.mxu0 %v550
        %624 = vmatprep.subr.bf16.mxu0 0
        %625 = vmatpush1.bf16.msra.mxu0 %v551
        %626 = vmatprep.subr.bf16.mxu0 0
        %627 = vmatpush1.bf16.msra.mxu0 %v552
        %628 = vmatprep.subr.bf16.mxu0 0
        %629 = vmatpush1.bf16.msra.mxu0 %v553
        %630 = vmatprep.subr.bf16.mxu0 0
        %631 = vmatpush1.bf16.msra.mxu0 %v554
        %632 = vmatprep.subr.bf16.mxu0 0
        %633 = vmatpush1.bf16.msra.mxu0 %v555
        %634 = vmatprep.subr.bf16.mxu0 0
        %635 = vmatpush1.bf16.msra.mxu0 %v556
        %636 = vmatprep.subr.bf16.mxu0 0
        %637 = vmatpush1.bf16.msra.mxu0 %v557
        %638 = vmatprep.mubr.bf16.mxu0 %v383
        %639 = vmatmul.mubr.bf16.gmra.mrb[0].mxu0 %v382
        %v640 = vpop.f32.mrb[0].mxu0
        %v641 = vadd.f32 0.0, %v640
        %v642 = vpop.f32.mrb[0].mxu0
        %v643 = vpop.f32.mrb[0].mxu0
        %v644 = vadd.f32 0.0, %v643
        %v645 = vpop.f32.mrb[0].mxu0
        %646 = vmatprep.mubr.bf16.mxu0 %v387
        %647 = vmatmul.mubr.bf16.gmra.mrb[0].mxu0 %v386
        %v648 = vpop.f32.mrb[0].mxu0
        %v649 = vadd.f32 0.0, %v648
        %v650 = vpop.f32.mrb[0].mxu0
        %v651 = vpop.f32.mrb[0].mxu0
        %v652 = vadd.f32 0.0, %v651
        %v653 = vpop.f32.mrb[0].mxu0
        %654 = vmatprep.mubr.bf16.mxu0 %v391
        %655 = vmatmul.mubr.bf16.gmra.mrb[0].mxu0 %v390
        %v656 = vpop.f32.mrb[0].mxu0
        %v657 = vadd.f32 0.0, %v656
        %v658 = vpop.f32.mrb[0].mxu0
        %v659 = vpop.f32.mrb[0].mxu0
        %v660 = vadd.f32 0.0, %v659
        %v661 = vpop.f32.mrb[0].mxu0
        %662 = vmatprep.mubr.bf16.mxu0 %v395
        %663 = vmatmul.mubr.bf16.gmra.mrb[0].mxu0 %v394
        %v664 = vpop.f32.mrb[0].mxu0
        %v665 = vadd.f32 0.0, %v664
        %v666 = vpop.f32.mrb[0].mxu0
        %v667 = vpop.f32.mrb[0].mxu0
        %v668 = vadd.f32 0.0, %v667
        %v669 = vpop.f32.mrb[0].mxu0
        %670 = vdwg.mxu0
        %671 = vmatprep.subr.bf16.mxu0 0
        %672 = vmatpush1.bf16.msra.mxu0 %v558
        %673 = vmatprep.subr.bf16.mxu0 0
        %674 = vmatpush1.bf16.msra.mxu0 %v559
        %675 = vmatprep.subr.bf16.mxu0 0
        %676 = vmatpush1.bf16.msra.mxu0 %v560
        %677 = vmatprep.subr.bf16.mxu0 0
        %678 = vmatpush1.bf16.msra.mxu0 %v561
        %679 = vmatprep.subr.bf16.mxu0 0
        %680 = vmatpush1.bf16.msra.mxu0 %v562
        %681 = vmatprep.subr.bf16.mxu0 0
        %682 = vmatpush1.bf16.msra.mxu0 %v563
        %683 = vmatprep.subr.bf16.mxu0 0
        %684 = vmatpush1.bf16.msra.mxu0 %v564
        %685 = vmatprep.subr.bf16.mxu0 0
        %686 = vmatpush1.bf16.msra.mxu0 %v565
        %687 = vmatprep.subr.bf16.mxu0 0
        %688 = vmatpush1.bf16.msra.mxu0 %v566
        %689 = vmatprep.subr.bf16.mxu0 0
        %690 = vmatpush1.bf16.msra.mxu0 %v567
        %691 = vmatprep.subr.bf16.mxu0 0
        %692 = vmatpush1.bf16.msra.mxu0 %v568
        %693 = vmatprep.subr.bf16.mxu0 0
        %694 = vmatpush1.bf16.msra.mxu0 %v569
        %695 = vmatprep.subr.bf16.mxu0 0
        %696 = vmatpush1.bf16.msra.mxu0 %v570
        %697 = vmatprep.subr.bf16.mxu0 0
        %698 = vmatpush1.bf16.msra.mxu0 %v571
        %699 = vmatprep.subr.bf16.mxu0 0
        %700 = vmatpush1.bf16.msra.mxu0 %v572
        %701 = vmatprep.subr.bf16.mxu0 0
        %702 = vmatpush1.bf16.msra.mxu0 %v573
        %703 = vmatprep.mubr.bf16.mxu0 %v385
        %704 = vmatmul.mubr.bf16.gmra.mrb[0].mxu0 %v384
        %v705 = vpop.f32.mrb[0].mxu0
        %v706 = vadd.f32 %v641, %v705
        %v707 = vpop.f32.mrb[0].mxu0
        %v708 = vpop.f32.mrb[0].mxu0
        %v709 = vadd.f32 %v644, %v708
        %v710 = vpop.f32.mrb[0].mxu0
        %711 = vmatprep.mubr.bf16.mxu0 %v389
        %712 = vmatmul.mubr.bf16.gmra.mrb[0].mxu0 %v388
        %v713 = vpop.f32.mrb[0].mxu0
        %v714 = vadd.f32 %v649, %v713
        %v715 = vpop.f32.mrb[0].mxu0
        %v716 = vpop.f32.mrb[0].mxu0
        %v717 = vadd.f32 %v652, %v716
        %v718 = vpop.f32.mrb[0].mxu0
        %719 = vmatprep.mubr.bf16.mxu0 %v393
        %720 = vmatmul.mubr.bf16.gmra.mrb[0].mxu0 %v392
        %v721 = vpop.f32.mrb[0].mxu0
        %v722 = vadd.f32 %v657, %v721
        %v723 = vpop.f32.mrb[0].mxu0
        %v724 = vpop.f32.mrb[0].mxu0
        %v725 = vadd.f32 %v660, %v724
        %v726 = vpop.f32.mrb[0].mxu0
        %727 = vmatprep.mubr.bf16.mxu0 %v397
        %728 = vmatmul.mubr.bf16.gmra.mrb[0].mxu0 %v396
        %v729 = vpop.f32.mrb[0].mxu0
        %v730 = vadd.f32 %v665, %v729
        %v731 = vpop.f32.mrb[0].mxu0
        %v732 = vpop.f32.mrb[0].mxu0
        %v733 = vadd.f32 %v668, %v732
        %v734 = vpop.f32.mrb[0].mxu0
        %735 = vdwg.mxu0
        %v736 = vadd.f32 %v246, %v706
        %v737 = vadd.f32 %v247, %v709
        %v738 = vadd.f32 %v248, %v714
        %v739 = vadd.f32 %v249, %v717
        %v740 = vadd.f32 %v250, %v722
        %v741 = vadd.f32 %v251, %v725
        %v742 = vadd.f32 %v252, %v730
        %v743 = vadd.f32 %v253, %v733
        %744 = vst [vmem:[#allocation2] sm:$0xff] %v736
        %745 = vst [vmem:[#allocation2 + $0x8] sm:$0xff] %v737
        %746 = vst [vmem:[#allocation2 + $0x10] sm:$0xff] %v738
        %747 = vst [vmem:[#allocation2 + $0x18] sm:$0xff] %v739
        %748 = vst [vmem:[#allocation2 + $0x20] sm:$0xff] %v740
        %749 = vst [vmem:[#allocation2 + $0x28] sm:$0xff] %v741
        %750 = vst [vmem:[#allocation2 + $0x30] sm:$0xff] %v742
        %751 = vst [vmem:[#allocation2 + $0x38] sm:$0xff] %v743
        %p752 = scmp.eq.s32.totalorder %s18, 1
        // Predicated region
        $region56: #{discriminator_forward.6} parent=46 // pred_check
          %p753 = pneg %p752
        $region57: #{discriminator_forward.6} parent=46 // pred_check_branch
          %755 = sbr.rel (%p753) target = $region59
        $region58: #{discriminator_forward.6} parent=46 // pred_region
          %v756 = vld [vmem:[#allocation2] sm:$0xff]
          %v757 = vld [vmem:[#allocation2 + $0x8] sm:$0xff]
          %v758 = vld [vmem:[#allocation2 + $0x10] sm:$0xff]
          %v759 = vld [vmem:[#allocation2 + $0x18] sm:$0xff]
          %v760 = vld [vmem:[#allocation2 + $0x20] sm:$0xff]
          %v761 = vld [vmem:[#allocation2 + $0x28] sm:$0xff]
          %v762 = vld [vmem:[#allocation2 + $0x30] sm:$0xff]
          %v763 = vld [vmem:[#allocation2 + $0x38] sm:$0xff]
          %v764 = vadd.f32 %v756, %v757
          %v765 = vadd.f32 %v764, %v758
          %v766 = vadd.f32 %v765, %v759
          %v767 = vadd.f32 %v766, %v760
          %v768 = vadd.f32 %v767, %v761
          %v769 = vadd.f32 %v768, %v762
          %v770 = vadd.f32 %v769, %v763
          %v771 = vrot.slane %v770, 4
          %v772 = vadd.f32 %v770, %v771
          %v773 = vrot.slane %v772, 2
          %v774 = vadd.f32 %v772, %v773
          %v775 = vrot.slane %v774, 1
          %v776 = vadd.f32 %v774, %v775
          %v777 = vrcp.pop 64.0
          %v778 = vmul.f32 %v776, %v777
          %v779 = vsub.f32 %v756, %v778
          %v780 = vsub.f32 %v757, %v778
          %v781 = vsub.f32 %v758, %v778
          %v782 = vsub.f32 %v759, %v778
          %v783 = vsub.f32 %v760, %v778
          %v784 = vsub.f32 %v761, %v778
          %v785 = vsub.f32 %v762, %v778
          %v786 = vsub.f32 %v763, %v778
          %v787 = vmul.f32 %v779, %v779
          %v788 = vmul.f32 %v780, %v780
          %v789 = vmul.f32 %v781, %v781
          %v790 = vmul.f32 %v782, %v782
          %v791 = vmul.f32 %v783, %v783
          %v792 = vmul.f32 %v784, %v784
          %v793 = vmul.f32 %v785, %v785
          %v794 = vmul.f32 %v786, %v786
          %v795 = vadd.f32 %v787, %v788
          %v796 = vadd.f32 %v795, %v789
          %v797 = vadd.f32 %v796, %v790
          %v798 = vadd.f32 %v797, %v791
          %v799 = vadd.f32 %v798, %v792
          %v800 = vadd.f32 %v799, %v793
          %v801 = vadd.f32 %v800, %v794
          %v802 = vrot.slane %v801, 4
          %v803 = vadd.f32 %v801, %v802
          %v804 = vrot.slane %v803, 2
          %v805 = vadd.f32 %v803, %v804
          %v806 = vrot.slane %v805, 1
          %v807 = vadd.f32 %v805, %v806
          %v808 = vmul.f32 %v807, %v777
          %v809 = vadd.f32 %v808, 1e-05
          %v810 = vrsqrt.pop %v809
          %v811 = vmul.f32 %v779, %v810
          %v812 = vmul.f32 %v780, %v810
          %v813 = vmul.f32 %v781, %v810
          %v814 = vmul.f32 %v782, %v810
          %v815 = vmul.f32 %v783, %v810
          %v816 = vmul.f32 %v784, %v810
          %v817 = vmul.f32 %v785, %v810
          %v818 = vmul.f32 %v786, %v810
          %vm819 = vcmp.ge.f32.partialorder %v811, 0.0
          %vm820 = vcmp.ge.f32.partialorder %v812, 0.0
          %vm821 = vcmp.ge.f32.partialorder %v813, 0.0
          %vm822 = vcmp.ge.f32.partialorder %v814, 0.0
          %vm823 = vcmp.ge.f32.partialorder %v815, 0.0
          %vm824 = vcmp.ge.f32.partialorder %v816, 0.0
          %vm825 = vcmp.ge.f32.partialorder %v817, 0.0
          %vm826 = vcmp.ge.f32.partialorder %v818, 0.0
          %v827 = vmul.f32 %v811, 0.2
          %v828 = vmul.f32 %v812, 0.2
          %v829 = vmul.f32 %v813, 0.2
          %v830 = vmul.f32 %v814, 0.2
          %v831 = vmul.f32 %v815, 0.2
          %v832 = vmul.f32 %v816, 0.2
          %v833 = vmul.f32 %v817, 0.2
          %v834 = vmul.f32 %v818, 0.2
          %v835 = vsel %vm819, %v811, %v827
          %v836 = vsel %vm820, %v812, %v828
          %v837 = vsel %vm821, %v813, %v829
          %v838 = vsel %vm822, %v814, %v830
          %v839 = vsel %vm823, %v815, %v831
          %v840 = vsel %vm824, %v816, %v832
          %v841 = vsel %vm825, %v817, %v833
          %v842 = vsel %vm826, %v818, %v834
          %v843 = vpack.c.bf16 %v836, %v835
          %v844 = vpack.c.bf16 %v838, %v837
          %v845 = vpack.c.bf16 %v840, %v839
          %v846 = vpack.c.bf16 %v842, %v841
          %v851 = vunpack.c.l.b16 %v843
          %v852 = vunpack.c.h.b16 %v843
          %v853 = vunpack.c.l.b16 %v844
          %v854 = vunpack.c.h.b16 %v844
          %v855 = vunpack.c.l.b16 %v845
          %v856 = vunpack.c.h.b16 %v845
          %v857 = vunpack.c.l.b16 %v846
          %v858 = vunpack.c.h.b16 %v846
          %v859 = vpack.c.b16 %v851, %v851
          %v860 = vpack.c.b16 %v852, %v852
          %v861 = vpack.c.b16 %v853, %v853
          %v862 = vpack.c.b16 %v854, %v854
          %v863 = vpack.c.b16 %v855, %v855
          %v864 = vpack.c.b16 %v856, %v856
          %v865 = vpack.c.b16 %v857, %v857
          %v866 = vpack.c.b16 %v858, %v858
          %875 = vst [vmem:[%s232] sm:$0xf] %v859
          %876 = vst [vmem:[%s232 + $0x4] sm:$0xf] %v860
          %877 = vst [vmem:[%s232 + $0x8] sm:$0xf] %v861
          %878 = vst [vmem:[%s232 + $0xc] sm:$0xf] %v862
          %879 = vst [vmem:[%s232 + $0x10] sm:$0xf] %v863
          %880 = vst [vmem:[%s232 + $0x14] sm:$0xf] %v864
          %881 = vst [vmem:[%s232 + $0x18] sm:$0xf] %v865
          %882 = vst [vmem:[%s232 + $0x1c] sm:$0xf] %v866
        $region59: #{discriminator_forward.6} parent=46 // pred_fallthru
          _
        %p883 = scmp.lt.s32.totalorder %s17, 1
        %s884 = scalar_select %p883, %s17, 1
        %s885 = smul.addr %s884, 8
        %s886 = smul.addr %s885, 4
        %s887 = scalar_lea.vmem %s2, %s886
        // Predicated region
        $region60: #{discriminator_forward.6} parent=46 // pred_check
          %p888 = pneg %p97
        $region61: #{discriminator_forward.6} parent=46 // pred_check_branch
          %890 = sbr.rel (%p888) target = $region63
        $region62: #{discriminator_forward.6} parent=46 // pred_region
          _
        $region63: #{discriminator_forward.6} parent=46 // pred_fallthru
          _
      $region47: #{discriminator_forward.6} parent=5 // pred_fallthru
        _
      %p891 = scmp.le.s32.totalorder 2, %s8
      // Predicated region
      $region64: #{discriminator_forward.6} parent=5 // pred_check
        %p892 = pneg %p891
      $region65: #{discriminator_forward.6} parent=5 // pred_check_branch
        %894 = sbr.rel (%p892) target = $region67
      $region66: #{discriminator_forward.6} parent=5 // pred_region
        %s895 = ssub.s32 %s8, 2
        // Predicated region
        $region68: #{discriminator_forward.6} parent=66 // pred_check
          %p896 = pneg %p103
        $region69: #{discriminator_forward.6} parent=66 // pred_check_branch
          %898 = sbr.rel (%p896) target = $region71
        $region70: #{discriminator_forward.6} parent=66 // pred_region
          %p899 = scmp.lt.s32.totalorder %s19, 1
          %s900 = scalar_select %p899, %s19, 1
          %s901 = smul.addr %s900, 8
          %s902 = smul.addr %s901, 4
          %s903 = scalar_lea.vmem %s2, %s902
        $region71: #{discriminator_forward.6} parent=66 // pred_fallthru
          _
      $region67: #{discriminator_forward.6} parent=5 // pred_fallthru
        _
    $region6: #{discriminator_forward.6} parent=1 // loop_footer
      %s12 = sadd.s32 1, %s8
    $region7: #{discriminator_forward.6} parent=1 // loop_footer_branch
      %7 = sbr.rel target = $region3
    $region8: #{discriminator_forward.6} parent=1 // loop_exit
      _

// kernel: discriminator_forward.7
$region0: #{discriminator_forward.7}
  #allocation0 [shape = 'u32[]', space=smem, size = 0x4, offset = 0x4, fixed_abs, tag = 'smem constant byte address 0x4 - core index']
  #allocation1 [shape = 'u32[144,128]{1,0:T(1,128)}', space=vmem, size = 0x12000, scoped, tag = 'internal scratch']
  #allocation2 [shape = 'f32[16,256]{1,0:T(8,128)}', space=vmem, size = 0x4000, scoped, tag = 'scratch operand']
  %s0 = inlined_call_operand.vmem [shape: bf16[2,16,2048], index: 0, kind: input, shape index: {}]
  %s1 = inlined_call_operand.vmem [shape: bf16[2048,256], index: 1, kind: input, shape index: {}]
  %s2 = inlined_call_operand.vmem [shape: bf16[2,16,256], index: 2, kind: output, shape index: {}]
  %s3 = sld [smem:[#allocation0]]
  $region72: #{discriminator_forward.7} parent=0
    _
  %s5 = ssub.s32 1, %s3
  %s6 = scalar_select 0, %s5, %s3
  $region1: #{discriminator_forward.7} parent=0
    #allocation3 [shape = 'u8[65536]{0}', space=vmem, size = 0x10000, scoped, tag = 'input window, operand 0']
    loop: start=0, step=1, limit=6
    $region2: #{discriminator_forward.7} parent=1 // loop_pre_header
      _
    $region3: #{discriminator_forward.7} parent=1 // loop_header
      %s8 = sphi 0, %s12
      %p9 = scmp.ge.s32.totalorder %s8, 6
      %s15 = sphi 0, %s27
      %s16 = sphi 0, %s23
      %s17 = sphi 0, %s15
      %s18 = sphi 0, %s16
      %s19 = sphi 0, %s17
      %s20 = sphi 0, %s18
      %s32 = sphi 0, %s34
      %s35 = sphi 0, %s32
      %s36 = sphi 0, %s35
      %s52 = sphi 0, %s36
      %s58 = sphi 0, %s60
      %s61 = sphi 0, %s58
      %s62 = sphi 0, %s61
      %s78 = sphi 0, %s62
      %s84 = sphi 0, %s86
      %s87 = sphi 0, %s84
      %s88 = sphi 0, %s87
      %s104 = sphi 0, %s88
    $region4: #{discriminator_forward.7} parent=1 // loop_header_branch
      %11 = sbr.rel (%p9) target = $region8
    $region5: #{discriminator_forward.7} parent=1 // loop_body
      %s13 = ssub.s32 %s8, 1
      %s14 = ssub.s32 %s8, 2
      %s21 = sadd.s32 1, %s16
      %p22 = scmp.ge.s32.totalorder %s21, 2
      %s23 = scalar_select %p22, 0, %s21
      %s24 = sadd.s32 1, %s15
      %s25 = scalar_select %p22, %s24, %s15
      %p26 = scmp.ge.s32.totalorder %s25, 2
      %s27 = scalar_select %p26, 0, %s25
      %s28 = ssub.s32 %s15, %s27
      %s29 = ssub.s32 %s16, %s23
      %s30 = sor.u32 %s28, %s29
      %p31 = scmp.eq.s32.totalorder %s30, 0
      %s33 = sadd.s32 %s32, 1
      %s34 = scalar_select %p31, %s32, %s33
      %p37 = pneg %p31
      %p38 = scmp.eq.s32.totalorder %s8, 3
      %p39 = por %p37, %p38
      %p40 = scmp.ne.s32.totalorder %s32, %s35
      %p41 = scmp.eq.s32.totalorder %s8, 0
      %p42 = por %p40, %p41
      %p43 = scmp.ne.s32.totalorder %s32, %s35
      %p44 = scmp.eq.s32.totalorder %s13, 3
      %p45 = por %p43, %p44
      %p46 = scmp.ne.s32.totalorder %s35, %s36
      %p47 = scmp.eq.s32.totalorder %s13, 0
      %p48 = por %p46, %p47
      %p49 = scmp.ne.s32.totalorder %s35, %s36
      %p50 = scmp.eq.s32.totalorder %s14, 3
      %p51 = por %p49, %p50
      %p53 = scmp.ne.s32.totalorder %s36, %s52
      %p54 = scmp.eq.s32.totalorder %s14, 0
      %p55 = por %p53, %p54
      %s56 = ssub.s32 %s16, %s23
      %p57 = scmp.eq.s32.totalorder %s56, 0
      %s59 = sadd.s32 %s58, 1
      %s60 = scalar_select %p57, %s58, %s59
      %p63 = pneg %p57
      %p64 = scmp.eq.s32.totalorder %s8, 3
      %p65 = por %p63, %p64
      %p66 = scmp.ne.s32.totalorder %s58, %s61
      %p67 = scmp.eq.s32.totalorder %s8, 0
      %p68 = por %p66, %p67
      %p69 = scmp.ne.s32.totalorder %s58, %s61
      %p70 = scmp.eq.s32.totalorder %s13, 3
      %p71 = por %p69, %p70
      %p72 = scmp.ne.s32.totalorder %s61, %s62
      %p73 = scmp.eq.s32.totalorder %s13, 0
      %p74 = por %p72, %p73
      %p75 = scmp.ne.s32.totalorder %s61, %s62
      %p76 = scmp.eq.s32.totalorder %s14, 3
      %p77 = por %p75, %p76
      %p79 = scmp.ne.s32.totalorder %s62, %s78
      %p80 = scmp.eq.s32.totalorder %s14, 0
      %p81 = por %p79, %p80
      %s82 = ssub.s32 %s15, %s27
      %p83 = scmp.eq.s32.totalorder %s82, 0
      %s85 = sadd.s32 %s84, 1
      %s86 = scalar_select %p83, %s84, %s85
      %p89 = pneg %p83
      %p90 = scmp.eq.s32.totalorder %s8, 3
      %p91 = por %p89, %p90
      %p92 = scmp.ne.s32.totalorder %s84, %s87
      %p93 = scmp.eq.s32.totalorder %s8, 0
      %p94 = por %p92, %p93
      %p95 = scmp.ne.s32.totalorder %s84, %s87
      %p96 = scmp.eq.s32.totalorder %s13, 3
      %p97 = por %p95, %p96
      %p98 = scmp.ne.s32.totalorder %s87, %s88
      %p99 = scmp.eq.s32.totalorder %s13, 0
      %p100 = por %p98, %p99
      %p101 = scmp.ne.s32.totalorder %s87, %s88
      %p102 = scmp.eq.s32.totalorder %s14, 3
      %p103 = por %p101, %p102
      %p105 = scmp.ne.s32.totalorder %s88, %s104
      %p106 = scmp.eq.s32.totalorder %s14, 0
      %p107 = por %p105, %p106
      %p108 = scmp.le.s32.totalorder 1, %s8
      %p109 = scmp.lt.s32.totalorder %s8, 5
      %p110 = pnand %p108, %p109
      %p111 = pneg %p110
      // Predicated region
      $region9: #{discriminator_forward.7} parent=5 // pred_check
        _
      $region10: #{discriminator_forward.7} parent=5 // pred_check_branch
        %113 = sbr.rel (%p110) target = $region12
      $region11: #{discriminator_forward.7} parent=5 // pred_region
        %s114 = ssub.s32 %s8, 1
      $region12: #{discriminator_forward.7} parent=5 // pred_fallthru
        _
      %p115 = scmp.lt.s32.totalorder %s8, 4
      // Predicated region
      $region13: #{discriminator_forward.7} parent=5 // pred_check
        %p116 = pneg %p115
      $region14: #{discriminator_forward.7} parent=5 // pred_check_branch
        %118 = sbr.rel (%p116) target = $region16
      $region15: #{discriminator_forward.7} parent=5 // pred_region
        // Predicated region
        $region17: #{discriminator_forward.7} parent=15 // pred_check
          %p119 = pneg %p42
        $region18: #{discriminator_forward.7} parent=15 // pred_check_branch
          %121 = sbr.rel (%p119) target = $region20
        $region19: #{discriminator_forward.7} parent=15 // pred_region
          %s122 = sand.u32 %s32, 1
          %s123 = sand.u32 %s32, 1
          %s124 = smul.addr %s123, 64
          %s125 = scalar_lea.vmem [#allocation3], %s124
          %s126 = smul.u32 8, %s16
          %s127 = smul.addr %s15, 32
          %s128 = sadd.s32 %s126, %s127
          %s129 = smul.addr %s128, 4
          %s130 = scalar_lea.vmem %s0, %s129
          // Predicated region
          $region21: #{discriminator_forward.7} parent=19 // pred_check
            _
          $region22: #{discriminator_forward.7} parent=19 // pred_check_branch
            %132 = sbr.rel (0) target = $region24
          $region23: #{discriminator_forward.7} parent=19 // pred_region
            // Predicated region
            $region25: #{discriminator_forward.7} parent=23 // pred_check
              _
            $region26: #{discriminator_forward.7} parent=23 // pred_check_branch
              %134 = sbr.rel (0) target = $region28
            $region27: #{discriminator_forward.7} parent=23 // pred_region
              loop: start=0, step=1, limit=1
              $region29: #{discriminator_forward.7} parent=27 // loop_pre_header
                _
              $region30: #{discriminator_forward.7} parent=27 // loop_header
                %s136 = sphi 0, %s140
                %p137 = scmp.ge.s32.totalorder %s136, 1
                %s141 = sphi %s130, %s130
                %s142 = sphi %s125, %s125
              $region31: #{discriminator_forward.7} parent=27 // loop_header_branch
                %139 = sbr.rel (%p137) target = $region35
              $region32: #{discriminator_forward.7} parent=27 // loop_body
                %v143 = vld [vmem:[%s141] sm:$0xff]
                %144 = vst [vmem:[%s142] sm:$0xff] %v143
                %v145 = vld [vmem:[%s141 + $0x8] sm:$0xff]
                %146 = vst [vmem:[%s142 + $0x8] sm:$0xff] %v145
                %v147 = vld [vmem:[%s141 + $0x10] sm:$0xff]
                %148 = vst [vmem:[%s142 + $0x10] sm:$0xff] %v147
                %v149 = vld [vmem:[%s141 + $0x18] sm:$0xff]
                %150 = vst [vmem:[%s142 + $0x18] sm:$0xff] %v149
                %v151 = vld [vmem:[%s141 + $0x40] sm:$0xff]
                %152 = vst [vmem:[%s142 + $0x20] sm:$0xff] %v151
                %v153 = vld [vmem:[%s141 + $0x48] sm:$0xff]
                %154 = vst [vmem:[%s142 + $0x28] sm:$0xff] %v153
                %v155 = vld [vmem:[%s141 + $0x50] sm:$0xff]
                %156 = vst [vmem:[%s142 + $0x30] sm:$0xff] %v155
                %v157 = vld [vmem:[%s141 + $0x58] sm:$0xff]
                %158 = vst [vmem:[%s142 + $0x38] sm:$0xff] %v157
              $region33: #{discriminator_forward.7} parent=27 // loop_footer
                %s140 = sadd.s32 1, %s136
              $region34: #{discriminator_forward.7} parent=27 // loop_footer_branch
                %135 = sbr.rel target = $region30
              $region35: #{discriminator_forward.7} parent=27 // loop_exit
                _
            $region28: #{discriminator_forward.7} parent=23 // pred_fallthru
              _
            // Predicated region
            $region36: #{discriminator_forward.7} parent=23 // pred_check
              _
            $region37: #{discriminator_forward.7} parent=23 // pred_check_branch
              %160 = sbr.rel target = $region39
            $region38: #{discriminator_forward.7} parent=23 // pred_region
              _
            $region39: #{discriminator_forward.7} parent=23 // pred_fallthru
              _
          $region24: #{discriminator_forward.7} parent=19 // pred_fallthru
            _
          %161 = vnop
        $region20: #{discriminator_forward.7} parent=15 // pred_fallthru
          _
        // Predicated region
        $region40: #{discriminator_forward.7} parent=15 // pred_check
          %p162 = pneg %p68
        $region41: #{discriminator_forward.7} parent=15 // pred_check_branch
          %164 = sbr.rel (%p162) target = $region43
        $region42: #{discriminator_forward.7} parent=15 // pred_region
          %s165 = smul.u32 128, %s16
          %p166 = scmp.lt.s32.totalorder %s165, 255
          %s167 = scalar_select %p166, %s165, 255
          %s168 = smul.addr %s167, 2
          %s169 = smul.addr %s168, 4
          %s170 = scalar_lea.vmem %s1, %s169
          %s171 = smul.u32 128, %s16
        $region43: #{discriminator_forward.7} parent=15 // pred_fallthru
          _
      $region16: #{discriminator_forward.7} parent=5 // pred_fallthru
        _
      %p172 = scmp.le.s32.totalorder 1, %s8
      %p173 = scmp.lt.s32.totalorder %s8, 5
      %p174 = pnand %p172, %p173
      %p175 = pneg %p174
      // Predicated region
      $region44: #{discriminator_forward.7} parent=5 // pred_check
        _
      $region45: #{discriminator_forward.7} parent=5 // pred_check_branch
        %177 = sbr.rel (%p174) target = $region47
      $region46: #{discriminator_forward.7} parent=5 // pred_region
        %s178 = ssub.s32 %s8, 1
        %s179 = sand.u32 %s35, 1
        %s180 = sand.u32 %s35, 1
        %s181 = smul.addr %s180, 64
        %s182 = scalar_lea.vmem [#allocation3], %s181
        // Predicated region
        $region48: #{discriminator_forward.7} parent=46 // pred_check
          %p183 = pneg %p48
        $region49: #{discriminator_forward.7} parent=46 // pred_check_branch
          %185 = sbr.rel (%p183) target = $region51
        $region50: #{discriminator_forward.7} parent=46 // pred_region
          _
        $region51: #{discriminator_forward.7} parent=46 // pred_fallthru
          _
        %s186 = sand.u32 %s35, 1
        %s187 = sand.u32 %s35, 1
        %s188 = smul.addr %s187, 64
        %s189 = scalar_lea.vmem [#allocation3], %s188
        %p190 = pneg %p48
        %p191 = pneg %p45
        %s192 = smul.u32 128, %s18
        %p193 = scmp.lt.s32.totalorder %s192, 255
        %s194 = scalar_select %p193, %s192, 255
        %s195 = smul.addr %s194, 2
        %s196 = smul.addr %s195, 4
        %s197 = scalar_lea.vmem %s1, %s196
        %p198 = pneg %p74
        %p199 = pneg %p71
        %p200 = pneg %p100
        %p201 = pneg %p97
        %p202 = scmp.lt.s32.totalorder %s17, 1
        %s203 = scalar_select %p202, %s17, 1
        %s204 = smul.addr %s203, 4
        %s205 = smul.addr %s204, 4
        %s206 = scalar_lea.vmem %s2, %s205
        %s207 = smul.u32 8, %s18
        %s208 = smul.u32 128, %s18
        %p209 = scmp.lt.s32.totalorder %s208, 255
        %s210 = scalar_select %p209, %s208, 255
        %s211 = smul.addr %s210, 2
        %s212 = smul.addr %s211, 4
        %s213 = scalar_lea.vmem %s1, %s212
        %s214 = smul.u32 128, %s18
        %p215 = scmp.lt.s32.totalorder %s17, 1
        %s216 = scalar_select %p215, %s17, 1
        %s217 = smul.addr %s216, 4
        %s218 = smul.addr %s217, 4
        %s219 = scalar_lea.vmem %s2, %s218
        %p220 = scmp.eq.s32.totalorder %s18, 0
        // Predicated region
        $region52: #{discriminator_forward.7} parent=46 // pred_check
          %p221 = pneg %p220
        $region53: #{discriminator_forward.7} parent=46 // pred_check_branch
          %223 = sbr.rel (%p221) target = $region55
        $region54: #{discriminator_forward.7} parent=46 // pred_region
          %224 = vst [vmem:[#allocation2] sm:$0xff] 0.0
          %225 = vst [vmem:[#allocation2 + $0x8] sm:$0xff] 0.0
          %226 = vst [vmem:[#allocation2 + $0x10] sm:$0xff] 0.0
          %227 = vst [vmem:[#allocation2 + $0x18] sm:$0xff] 0.0
        $region55: #{discriminator_forward.7} parent=46 // pred_fallthru
          _
        %v228 = vld [vmem:[#allocation2] sm:$0xff]
        %v229 = vld [vmem:[#allocation2 + $0x8] sm:$0xff]
        %v230 = vld [vmem:[#allocation2 + $0x10] sm:$0xff]
        %v231 = vld [vmem:[#allocation2 + $0x18] sm:$0xff]
        %v232 = vld [vmem:[%s182] sm:$0xff]
        %v233 = vld [vmem:[%s182 + $0x8] sm:$0xff]
        %v234 = vld [vmem:[%s182 + $0x10] sm:$0xff]
        %v235 = vld [vmem:[%s182 + $0x18] sm:$0xff]
        %v236 = vld [vmem:[%s182 + $0x20] sm:$0xff]
        %v237 = vld [vmem:[%s182 + $0x28] sm:$0xff]
        %v238 = vld [vmem:[%s182 + $0x30] sm:$0xff]
        %v239 = vld [vmem:[%s182 + $0x38] sm:$0xff]
        %v240 = vld [vmem:[%s213] sm:$0xff]
        %v241 = vld [vmem:[%s213 + $0x8] sm:$0xff]
        %v242 = vld [vmem:[%s213 + $0x10] sm:$0xff]
        %v243 = vld [vmem:[%s213 + $0x18] sm:$0xff]
        %v244 = vld [vmem:[%s213 + $0x20] sm:$0xff]
        %v245 = vld [vmem:[%s213 + $0x28] sm:$0xff]
        %v246 = vld [vmem:[%s213 + $0x30] sm:$0xff]
        %v247 = vld [vmem:[%s213 + $0x38] sm:$0xff]
        %v248 = vld [vmem:[%s213 + $0x40] sm:$0xff]
        %v249 = vld [vmem:[%s213 + $0x48] sm:$0xff]
        %v250 = vld [vmem:[%s213 + $0x50] sm:$0xff]
        %v251 = vld [vmem:[%s213 + $0x58] sm:$0xff]
        %v252 = vld [vmem:[%s213 + $0x60] sm:$0xff]
        %v253 = vld [vmem:[%s213 + $0x68] sm:$0xff]
        %v254 = vld [vmem:[%s213 + $0x70] sm:$0xff]
        %v255 = vld [vmem:[%s213 + $0x78] sm:$0xff]
        %v256 = vld [vmem:[%s213 + $0x80] sm:$0xff]
        %v257 = vld [vmem:[%s213 + $0x88] sm:$0xff]
        %v258 = vld [vmem:[%s213 + $0x90] sm:$0xff]
        %v259 = vld [vmem:[%s213 + $0x98] sm:$0xff]
        %v260 = vld [vmem:[%s213 + $0xa0] sm:$0xff]
        %v261 = vld [vmem:[%s213 + $0xa8] sm:$0xff]
        %v262 = vld [vmem:[%s213 + $0xb0] sm:$0xff]
        %v263 = vld [vmem:[%s213 + $0xb8] sm:$0xff]
        %v264 = vld [vmem:[%s213 + $0xc0] sm:$0xff]
        %v265 = vld [vmem:[%s213 + $0xc8] sm:$0xff]
        %v266 = vld [vmem:[%s213 + $0xd0] sm:$0xff]
        %v267 = vld [vmem:[%s213 + $0xd8] sm:$0xff]
        %v268 = vld [vmem:[%s213 + $0xe0] sm:$0xff]
        %v269 = vld [vmem:[%s213 + $0xe8] sm:$0xff]
        %v270 = vld [vmem:[%s213 + $0xf0] sm:$0xff]
        %v271 = vld [vmem:[%s213 + $0xf8] sm:$0xff]
        %v272 = vld [vmem:[%s213 + $0x100] sm:$0xff]
        %v273 = vld [vmem:[%s213 + $0x108] sm:$0xff]
        %v274 = vld [vmem:[%s213 + $0x110] sm:$0xff]
        %v275 = vld [vmem:[%s213 + $0x118] sm:$0xff]
        %v276 = vld [vmem:[%s213 + $0x120] sm:$0xff]
        %v277 = vld [vmem:[%s213 + $0x128] sm:$0xff]
        %v278 = vld [vmem:[%s213 + $0x130] sm:$0xff]
        %v279 = vld [vmem:[%s213 + $0x138] sm:$0xff]
        %v280 = vld [vmem:[%s213 + $0x140] sm:$0xff]
        %v281 = vld [vmem:[%s213 + $0x148] sm:$0xff]
        %v282 = vld [vmem:[%s213 + $0x150] sm:$0xff]
        %v283 = vld [vmem:[%s213 + $0x158] sm:$0xff]
        %v284 = vld [vmem:[%s213 + $0x160] sm:$0xff]
        %v285 = vld [vmem:[%s213 + $0x168] sm:$0xff]
        %v286 = vld [vmem:[%s213 + $0x170] sm:$0xff]
        %v287 = vld [vmem:[%s213 + $0x178] sm:$0xff]
        %v288 = vld [vmem:[%s213 + $0x180] sm:$0xff]
        %v289 = vld [vmem:[%s213 + $0x188] sm:$0xff]
        %v290 = vld [vmem:[%s213 + $0x190] sm:$0xff]
        %v291 = vld [vmem:[%s213 + $0x198] sm:$0xff]
        %v292 = vld [vmem:[%s213 + $0x1a0] sm:$0xff]
        %v293 = vld [vmem:[%s213 + $0x1a8] sm:$0xff]
        %v294 = vld [vmem:[%s213 + $0x1b0] sm:$0xff]
        %v295 = vld [vmem:[%s213 + $0x1b8] sm:$0xff]
        %v296 = vld [vmem:[%s213 + $0x1c0] sm:$0xff]
        %v297 = vld [vmem:[%s213 + $0x1c8] sm:$0xff]
        %v298 = vld [vmem:[%s213 + $0x1d0] sm:$0xff]
        %v299 = vld [vmem:[%s213 + $0x1d8] sm:$0xff]
        %v300 = vld [vmem:[%s213 + $0x1e0] sm:$0xff]
        %v301 = vld [vmem:[%s213 + $0x1e8] sm:$0xff]
        %v302 = vld [vmem:[%s213 + $0x1f0] sm:$0xff]
        %v303 = vld [vmem:[%s213 + $0x1f8] sm:$0xff]
        %v304 = vld [vmem:[%s213 + $0x200] sm:$0xff]
        %v305 = vld [vmem:[%s213 + $0x208] sm:$0xff]
        %v306 = vld [vmem:[%s213 + $0x210] sm:$0xff]
        %v307 = vld [vmem:[%s213 + $0x218] sm:$0xff]
        %v308 = vld [vmem:[%s213 + $0x220] sm:$0xff]
        %v309 = vld [vmem:[%s213 + $0x228] sm:$0xff]
        %v310 = vld [vmem:[%s213 + $0x230] sm:$0xff]
        %v311 = vld [vmem:[%s213 + $0x238] sm:$0xff]
        %v312 = vld [vmem:[%s213 + $0x240] sm:$0xff]
        %v313 = vld [vmem:[%s213 + $0x248] sm:$0xff]
        %v314 = vld [vmem:[%s213 + $0x250] sm:$0xff]
        %v315 = vld [vmem:[%s213 + $0x258] sm:$0xff]
        %v316 = vld [vmem:[%s213 + $0x260] sm:$0xff]
        %v317 = vld [vmem:[%s213 + $0x268] sm:$0xff]
        %v318 = vld [vmem:[%s213 + $0x270] sm:$0xff]
        %v319 = vld [vmem:[%s213 + $0x278] sm:$0xff]
        %v320 = vld [vmem:[%s213 + $0x280] sm:$0xff]
        %v321 = vld [vmem:[%s213 + $0x288] sm:$0xff]
        %v322 = vld [vmem:[%s213 + $0x290] sm:$0xff]
        %v323 = vld [vmem:[%s213 + $0x298] sm:$0xff]
        %v324 = vld [vmem:[%s213 + $0x2a0] sm:$0xff]
        %v325 = vld [vmem:[%s213 + $0x2a8] sm:$0xff]
        %v326 = vld [vmem:[%s213 + $0x2b0] sm:$0xff]
        %v327 = vld [vmem:[%s213 + $0x2b8] sm:$0xff]
        %v328 = vld [vmem:[%s213 + $0x2c0] sm:$0xff]
        %v329 = vld [vmem:[%s213 + $0x2c8] sm:$0xff]
        %v330 = vld [vmem:[%s213 + $0x2d0] sm:$0xff]
        %v331 = vld [vmem:[%s213 + $0x2d8] sm:$0xff]
        %v332 = vld [vmem:[%s213 + $0x2e0] sm:$0xff]
        %v333 = vld [vmem:[%s213 + $0x2e8] sm:$0xff]
        %v334 = vld [vmem:[%s213 + $0x2f0] sm:$0xff]
        %v335 = vld [vmem:[%s213 + $0x2f8] sm:$0xff]
        %v336 = vld [vmem:[%s213 + $0x300] sm:$0xff]
        %v337 = vld [vmem:[%s213 + $0x308] sm:$0xff]
        %v338 = vld [vmem:[%s213 + $0x310] sm:$0xff]
        %v339 = vld [vmem:[%s213 + $0x318] sm:$0xff]
        %v340 = vld [vmem:[%s213 + $0x320] sm:$0xff]
        %v341 = vld [vmem:[%s213 + $0x328] sm:$0xff]
        %v342 = vld [vmem:[%s213 + $0x330] sm:$0xff]
        %v343 = vld [vmem:[%s213 + $0x338] sm:$0xff]
        %v344 = vld [vmem:[%s213 + $0x340] sm:$0xff]
        %v345 = vld [vmem:[%s213 + $0x348] sm:$0xff]
        %v346 = vld [vmem:[%s213 + $0x350] sm:$0xff]
        %v347 = vld [vmem:[%s213 + $0x358] sm:$0xff]
        %v348 = vld [vmem:[%s213 + $0x360] sm:$0xff]
        %v349 = vld [vmem:[%s213 + $0x368] sm:$0xff]
        %v350 = vld [vmem:[%s213 + $0x370] sm:$0xff]
        %v351 = vld [vmem:[%s213 + $0x378] sm:$0xff]
        %v352 = vld [vmem:[%s213 + $0x380] sm:$0xff]
        %v353 = vld [vmem:[%s213 + $0x388] sm:$0xff]
        %v354 = vld [vmem:[%s213 + $0x390] sm:$0xff]
        %v355 = vld [vmem:[%s213 + $0x398] sm:$0xff]
        %v356 = vld [vmem:[%s213 + $0x3a0] sm:$0xff]
        %v357 = vld [vmem:[%s213 + $0x3a8] sm:$0xff]
        %v358 = vld [vmem:[%s213 + $0x3b0] sm:$0xff]
        %v359 = vld [vmem:[%s213 + $0x3b8] sm:$0xff]
        %v360 = vld [vmem:[%s213 + $0x3c0] sm:$0xff]
        %v361 = vld [vmem:[%s213 + $0x3c8] sm:$0xff]
        %v362 = vld [vmem:[%s213 + $0x3d0] sm:$0xff]
        %v363 = vld [vmem:[%s213 + $0x3d8] sm:$0xff]
        %v364 = vld [vmem:[%s213 + $0x3e0] sm:$0xff]
        %v365 = vld [vmem:[%s213 + $0x3e8] sm:$0xff]
        %v366 = vld [vmem:[%s213 + $0x3f0] sm:$0xff]
        %v367 = vld [vmem:[%s213 + $0x3f8] sm:$0xff]
        %v376 = vunpack.c.l.b16 %v232
        %v377 = vunpack.c.h.b16 %v232
        %v378 = vunpack.c.l.b16 %v233
        %v379 = vunpack.c.h.b16 %v233
        %v380 = vunpack.c.l.b16 %v234
        %v381 = vunpack.c.h.b16 %v234
        %v382 = vunpack.c.l.b16 %v235
        %v383 = vunpack.c.h.b16 %v235
        %v384 = vunpack.c.l.b16 %v236
        %v385 = vunpack.c.h.b16 %v236
        %v386 = vunpack.c.l.b16 %v237
        %v387 = vunpack.c.h.b16 %v237
        %v388 = vunpack.c.l.b16 %v238
        %v389 = vunpack.c.h.b16 %v238
        %v390 = vunpack.c.l.b16 %v239
        %v391 = vunpack.c.h.b16 %v239
        %v392 = vpack.c.b16 %v384, %v376
        %v393 = vpack.c.b16 %v385, %v377
        %v394 = vpack.c.b16 %v386, %v378
        %v395 = vpack.c.b16 %v387, %v379
        %v396 = vpack.c.b16 %v388, %v380
        %v397 = vpack.c.b16 %v389, %v381
        %v398 = vpack.c.b16 %v390, %v382
        %v399 = vpack.c.b16 %v391, %v383
        %v536 = vunpack.c.l.b16 %v240
        %v537 = vunpack.c.h.b16 %v240
        %v538 = vunpack.c.l.b16 %v241
        %v539 = vunpack.c.h.b16 %v241
        %v540 = vunpack.c.l.b16 %v242
        %v541 = vunpack.c.h.b16 %v242
        %v542 = vunpack.c.l.b16 %v243
        %v543 = vunpack.c.h.b16 %v243
        %v544 = vunpack.c.l.b16 %v244
        %v545 = vunpack.c.h.b16 %v244
        %v546 = vunpack.c.l.b16 %v245
        %v547 = vunpack.c.h.b16 %v245
        %v548 = vunpack.c.l.b16 %v246
        %v549 = vunpack.c.h.b16 %v246
        %v550 = vunpack.c.l.b16 %v247
        %v551 = vunpack.c.h.b16 %v247
        %v552 = vunpack.c.l.b16 %v248
        %v553 = vunpack.c.h.b16 %v248
        %v554 = vunpack.c.l.b16 %v249
        %v555 = vunpack.c.h.b16 %v249
        %v556 = vunpack.c.l.b16 %v250
        %v557 = vunpack.c.h.b16 %v250
        %v558 = vunpack.c.l.b16 %v251
        %v559 = vunpack.c.h.b16 %v251
        %v560 = vunpack.c.l.b16 %v252
        %v561 = vunpack.c.h.b16 %v252
        %v562 = vunpack.c.l.b16 %v253
        %v563 = vunpack.c.h.b16 %v253
        %v564 = vunpack.c.l.b16 %v254
        %v565 = vunpack.c.h.b16 %v254
        %v566 = vunpack.c.l.b16 %v255
        %v567 = vunpack.c.h.b16 %v255
        %v568 = vunpack.c.l.b16 %v256
        %v569 = vunpack.c.h.b16 %v256
        %v570 = vunpack.c.l.b16 %v257
        %v571 = vunpack.c.h.b16 %v257
        %v572 = vunpack.c.l.b16 %v258
        %v573 = vunpack.c.h.b16 %v258
        %v574 = vunpack.c.l.b16 %v259
        %v575 = vunpack.c.h.b16 %v259
        %v576 = vunpack.c.l.b16 %v260
        %v577 = vunpack.c.h.b16 %v260
        %v578 = vunpack.c.l.b16 %v261
        %v579 = vunpack.c.h.b16 %v261
        %v580 = vunpack.c.l.b16 %v262
        %v581 = vunpack.c.h.b16 %v262
        %v582 = vunpack.c.l.b16 %v263
        %v583 = vunpack.c.h.b16 %v263
        %v584 = vunpack.c.l.b16 %v264
        %v585 = vunpack.c.h.b16 %v264
        %v586 = vunpack.c.l.b16 %v265
        %v587 = vunpack.c.h.b16 %v265
        %v588 = vunpack.c.l.b16 %v266
        %v589 = vunpack.c.h.b16 %v266
        %v590 = vunpack.c.l.b16 %v267
        %v591 = vunpack.c.h.b16 %v267
        %v592 = vunpack.c.l.b16 %v268
        %v593 = vunpack.c.h.b16 %v268
        %v594 = vunpack.c.l.b16 %v269
        %v595 = vunpack.c.h.b16 %v269
        %v596 = vunpack.c.l.b16 %v270
        %v597 = vunpack.c.h.b16 %v270
        %v598 = vunpack.c.l.b16 %v271
        %v599 = vunpack.c.h.b16 %v271
        %v600 = vunpack.c.l.b16 %v272
        %v601 = vunpack.c.h.b16 %v272
        %v602 = vunpack.c.l.b16 %v273
        %v603 = vunpack.c.h.b16 %v273
        %v604 = vunpack.c.l.b16 %v274
        %v605 = vunpack.c.h.b16 %v274
        %v606 = vunpack.c.l.b16 %v275
        %v607 = vunpack.c.h.b16 %v275
        %v608 = vunpack.c.l.b16 %v276
        %v609 = vunpack.c.h.b16 %v276
        %v610 = vunpack.c.l.b16 %v277
        %v611 = vunpack.c.h.b16 %v277
        %v612 = vunpack.c.l.b16 %v278
        %v613 = vunpack.c.h.b16 %v278
        %v614 = vunpack.c.l.b16 %v279
        %v615 = vunpack.c.h.b16 %v279
        %v616 = vunpack.c.l.b16 %v280
        %v617 = vunpack.c.h.b16 %v280
        %v618 = vunpack.c.l.b16 %v281
        %v619 = vunpack.c.h.b16 %v281
        %v620 = vunpack.c.l.b16 %v282
        %v621 = vunpack.c.h.b16 %v282
        %v622 = vunpack.c.l.b16 %v283
        %v623 = vunpack.c.h.b16 %v283
        %v624 = vunpack.c.l.b16 %v284
        %v625 = vunpack.c.h.b16 %v284
        %v626 = vunpack.c.l.b16 %v285
        %v627 = vunpack.c.h.b16 %v285
        %v628 = vunpack.c.l.b16 %v286
        %v629 = vunpack.c.h.b16 %v286
        %v630 = vunpack.c.l.b16 %v287
        %v631 = vunpack.c.h.b16 %v287
        %v632 = vunpack.c.l.b16 %v288
        %v633 = vunpack.c.h.b16 %v288
        %v634 = vunpack.c.l.b16 %v289
        %v635 = vunpack.c.h.b16 %v289
        %v636 = vunpack.c.l.b16 %v290
        %v637 = vunpack.c.h.b16 %v290
        %v638 = vunpack.c.l.b16 %v291
        %v639 = vunpack.c.h.b16 %v291
        %v640 = vunpack.c.l.b16 %v292
        %v641 = vunpack.c.h.b16 %v292
        %v642 = vunpack.c.l.b16 %v293
        %v643 = vunpack.c.h.b16 %v293
        %v644 = vunpack.c.l.b16 %v294
        %v645 = vunpack.c.h.b16 %v294
        %v646 = vunpack.c.l.b16 %v295
        %v647 = vunpack.c.h.b16 %v295
        %v648 = vunpack.c.l.b16 %v296
        %v649 = vunpack.c.h.b16 %v296
        %v650 = vunpack.c.l.b16 %v297
        %v651 = vunpack.c.h.b16 %v297
        %v652 = vunpack.c.l.b16 %v298
        %v653 = vunpack.c.h.b16 %v298
        %v654 = vunpack.c.l.b16 %v299
        %v655 = vunpack.c.h.b16 %v299
        %v656 = vunpack.c.l.b16 %v300
        %v657 = vunpack.c.h.b16 %v300
        %v658 = vunpack.c.l.b16 %v301
        %v659 = vunpack.c.h.b16 %v301
        %v660 = vunpack.c.l.b16 %v302
        %v661 = vunpack.c.h.b16 %v302
        %v662 = vunpack.c.l.b16 %v303
        %v663 = vunpack.c.h.b16 %v303
        %v664 = vunpack.c.l.b16 %v304
        %v665 = vunpack.c.h.b16 %v304
        %v666 = vunpack.c.l.b16 %v305
        %v667 = vunpack.c.h.b16 %v305
        %v668 = vunpack.c.l.b16 %v306
        %v669 = vunpack.c.h.b16 %v306
        %v670 = vunpack.c.l.b16 %v307
        %v671 = vunpack.c.h.b16 %v307
        %v672 = vunpack.c.l.b16 %v308
        %v673 = vunpack.c.h.b16 %v308
        %v674 = vunpack.c.l.b16 %v309
        %v675 = vunpack.c.h.b16 %v309
        %v676 = vunpack.c.l.b16 %v310
        %v677 = vunpack.c.h.b16 %v310
        %v678 = vunpack.c.l.b16 %v311
        %v679 = vunpack.c.h.b16 %v311
        %v680 = vunpack.c.l.b16 %v312
        %v681 = vunpack.c.h.b16 %v312
        %v682 = vunpack.c.l.b16 %v313
        %v683 = vunpack.c.h.b16 %v313
        %v684 = vunpack.c.l.b16 %v314
        %v685 = vunpack.c.h.b16 %v314
        %v686 = vunpack.c.l.b16 %v315
        %v687 = vunpack.c.h.b16 %v315
        %v688 = vunpack.c.l.b16 %v316
        %v689 = vunpack.c.h.b16 %v316
        %v690 = vunpack.c.l.b16 %v317
        %v691 = vunpack.c.h.b16 %v317
        %v692 = vunpack.c.l.b16 %v318
        %v693 = vunpack.c.h.b16 %v318
        %v694 = vunpack.c.l.b16 %v319
        %v695 = vunpack.c.h.b16 %v319
        %v696 = vunpack.c.l.b16 %v320
        %v697 = vunpack.c.h.b16 %v320
        %v698 = vunpack.c.l.b16 %v321
        %v699 = vunpack.c.h.b16 %v321
        %v700 = vunpack.c.l.b16 %v322
        %v701 = vunpack.c.h.b16 %v322
        %v702 = vunpack.c.l.b16 %v323
        %v703 = vunpack.c.h.b16 %v323
        %v704 = vunpack.c.l.b16 %v324
        %v705 = vunpack.c.h.b16 %v324
        %v706 = vunpack.c.l.b16 %v325
        %v707 = vunpack.c.h.b16 %v325
        %v708 = vunpack.c.l.b16 %v326
        %v709 = vunpack.c.h.b16 %v326
        %v710 = vunpack.c.l.b16 %v327
        %v711 = vunpack.c.h.b16 %v327
        %v712 = vunpack.c.l.b16 %v328
        %v713 = vunpack.c.h.b16 %v328
        %v714 = vunpack.c.l.b16 %v329
        %v715 = vunpack.c.h.b16 %v329
        %v716 = vunpack.c.l.b16 %v330
        %v717 = vunpack.c.h.b16 %v330
        %v718 = vunpack.c.l.b16 %v331
        %v719 = vunpack.c.h.b16 %v331
        %v720 = vunpack.c.l.b16 %v332
        %v721 = vunpack.c.h.b16 %v332
        %v722 = vunpack.c.l.b16 %v333
        %v723 = vunpack.c.h.b16 %v333
        %v724 = vunpack.c.l.b16 %v334
        %v725 = vunpack.c.h.b16 %v334
        %v726 = vunpack.c.l.b16 %v335
        %v727 = vunpack.c.h.b16 %v335
        %v728 = vunpack.c.l.b16 %v336
        %v729 = vunpack.c.h.b16 %v336
        %v730 = vunpack.c.l.b16 %v337
        %v731 = vunpack.c.h.b16 %v337
        %v732 = vunpack.c.l.b16 %v338
        %v733 = vunpack.c.h.b16 %v338
        %v734 = vunpack.c.l.b16 %v339
        %v735 = vunpack.c.h.b16 %v339
        %v736 = vunpack.c.l.b16 %v340
        %v737 = vunpack.c.h.b16 %v340
        %v738 = vunpack.c.l.b16 %v341
        %v739 = vunpack.c.h.b16 %v341
        %v740 = vunpack.c.l.b16 %v342
        %v741 = vunpack.c.h.b16 %v342
        %v742 = vunpack.c.l.b16 %v343
        %v743 = vunpack.c.h.b16 %v343
        %v744 = vunpack.c.l.b16 %v344
        %v745 = vunpack.c.h.b16 %v344
        %v746 = vunpack.c.l.b16 %v345
        %v747 = vunpack.c.h.b16 %v345
        %v748 = vunpack.c.l.b16 %v346
        %v749 = vunpack.c.h.b16 %v346
        %v750 = vunpack.c.l.b16 %v347
        %v751 = vunpack.c.h.b16 %v347
        %v752 = vunpack.c.l.b16 %v348
        %v753 = vunpack.c.h.b16 %v348
        %v754 = vunpack.c.l.b16 %v349
        %v755 = vunpack.c.h.b16 %v349
        %v756 = vunpack.c.l.b16 %v350
        %v757 = vunpack.c.h.b16 %v350
        %v758 = vunpack.c.l.b16 %v351
        %v759 = vunpack.c.h.b16 %v351
        %v760 = vunpack.c.l.b16 %v352
        %v761 = vunpack.c.h.b16 %v352
        %v762 = vunpack.c.l.b16 %v353
        %v763 = vunpack.c.h.b16 %v353
        %v764 = vunpack.c.l.b16 %v354
        %v765 = vunpack.c.h.b16 %v354
        %v766 = vunpack.c.l.b16 %v355
        %v767 = vunpack.c.h.b16 %v355
        %v768 = vunpack.c.l.b16 %v356
        %v769 = vunpack.c.h.b16 %v356
        %v770 = vunpack.c.l.b16 %v357
        %v771 = vunpack.c.h.b16 %v357
        %v772 = vunpack.c.l.b16 %v358
        %v773 = vunpack.c.h.b16 %v358
        %v774 = vunpack.c.l.b16 %v359
        %v775 = vunpack.c.h.b16 %v359
        %v776 = vunpack.c.l.b16 %v360
        %v777 = vunpack.c.h.b16 %v360
        %v778 = vunpack.c.l.b16 %v361
        %v779 = vunpack.c.h.b16 %v361
        %v780 = vunpack.c.l.b16 %v362
        %v781 = vunpack.c.h.b16 %v362
        %v782 = vunpack.c.l.b16 %v363
        %v783 = vunpack.c.h.b16 %v363
        %v784 = vunpack.c.l.b16 %v364
        %v785 = vunpack.c.h.b16 %v364
        %v786 = vunpack.c.l.b16 %v365
        %v787 = vunpack.c.h.b16 %v365
        %v788 = vunpack.c.l.b16 %v366
        %v789 = vunpack.c.h.b16 %v366
        %v790 = vunpack.c.l.b16 %v367
        %v791 = vunpack.c.h.b16 %v367
        %v792 = vpack.c.b16 %v538, %v536
        %v793 = vpack.c.b16 %v539, %v537
        %v794 = vpack.c.b16 %v542, %v540
        %v795 = vpack.c.b16 %v543, %v541
        %v796 = vpack.c.b16 %v546, %v544
        %v797 = vpack.c.b16 %v547, %v545
        %v798 = vpack.c.b16 %v550, %v548
        %v799 = vpack.c.b16 %v551, %v549
        %v800 = vpack.c.b16 %v554, %v552
        %v801 = vpack.c.b16 %v555, %v553
        %v802 = vpack.c.b16 %v558, %v556
        %v803 = vpack.c.b16 %v559, %v557
        %v804 = vpack.c.b16 %v562, %v560
        %v805 = vpack.c.b16 %v563, %v561
        %v806 = vpack.c.b16 %v566, %v564
        %v807 = vpack.c.b16 %v567, %v565
        %v808 = vpack.c.b16 %v570, %v568
        %v809 = vpack.c.b16 %v571, %v569
        %v810 = vpack.c.b16 %v574, %v572
        %v811 = vpack.c.b16 %v575, %v573
        %v812 = vpack.c.b16 %v578, %v576
        %v813 = vpack.c.b16 %v579, %v577
        %v814 = vpack.c.b16 %v582, %v580
        %v815 = vpack.c.b16 %v583, %v581
        %v816 = vpack.c.b16 %v586, %v584
        %v817 = vpack.c.b16 %v587, %v585
        %v818 = vpack.c.b16 %v590, %v588
        %v819 = vpack.c.b16 %v591, %v589
        %v820 = vpack.c.b16 %v594, %v592
        %v821 = vpack.c.b16 %v595, %v593
        %v822 = vpack.c.b16 %v598, %v596
        %v823 = vpack.c.b16 %v599, %v597
        %v824 = vpack.c.b16 %v602, %v600
        %v825 = vpack.c.b16 %v603, %v601
        %v826 = vpack.c.b16 %v606, %v604
        %v827 = vpack.c.b16 %v607, %v605
        %v828 = vpack.c.b16 %v610, %v608
        %v829 = vpack.c.b16 %v611, %v609
        %v830 = vpack.c.b16 %v614, %v612
        %v831 = vpack.c.b16 %v615, %v613
        %v832 = vpack.c.b16 %v618, %v616
        %v833 = vpack.c.b16 %v619, %v617
        %v834 = vpack.c.b16 %v622, %v620
        %v835 = vpack.c.b16 %v623, %v621
        %v836 = vpack.c.b16 %v626, %v624
        %v837 = vpack.c.b16 %v627, %v625
        %v838 = vpack.c.b16 %v630, %v628
        %v839 = vpack.c.b16 %v631, %v629
        %v840 = vpack.c.b16 %v634, %v632
        %v841 = vpack.c.b16 %v635, %v633
        %v842 = vpack.c.b16 %v638, %v636
        %v843 = vpack.c.b16 %v639, %v637
        %v844 = vpack.c.b16 %v642, %v640
        %v845 = vpack.c.b16 %v643, %v641
        %v846 = vpack.c.b16 %v646, %v644
        %v847 = vpack.c.b16 %v647, %v645
        %v848 = vpack.c.b16 %v650, %v648
        %v849 = vpack.c.b16 %v651, %v649
        %v850 = vpack.c.b16 %v654, %v652
        %v851 = vpack.c.b16 %v655, %v653
        %v852 = vpack.c.b16 %v658, %v656
        %v853 = vpack.c.b16 %v659, %v657
        %v854 = vpack.c.b16 %v662, %v660
        %v855 = vpack.c.b16 %v663, %v661
        %v856 = vpack.c.b16 %v666, %v664
        %v857 = vpack.c.b16 %v667, %v665
        %v858 = vpack.c.b16 %v670, %v668
        %v859 = vpack.c.b16 %v671, %v669
        %v860 = vpack.c.b16 %v674, %v672
        %v861 = vpack.c.b16 %v675, %v673
        %v862 = vpack.c.b16 %v678, %v676
        %v863 = vpack.c.b16 %v679, %v677
        %v864 = vpack.c.b16 %v682, %v680
        %v865 = vpack.c.b16 %v683, %v681
        %v866 = vpack.c.b16 %v686, %v684
        %v867 = vpack.c.b16 %v687, %v685
        %v868 = vpack.c.b16 %v690, %v688
        %v869 = vpack.c.b16 %v691, %v689
        %v870 = vpack.c.b16 %v694, %v692
        %v871 = vpack.c.b16 %v695, %v693
        %v872 = vpack.c.b16 %v698, %v696
        %v873 = vpack.c.b16 %v699, %v697
        %v874 = vpack.c.b16 %v702, %v700
        %v875 = vpack.c.b16 %v703, %v701
        %v876 = vpack.c.b16 %v706, %v704
        %v877 = vpack.c.b16 %v707, %v705
        %v878 = vpack.c.b16 %v710, %v708
        %v879 = vpack.c.b16 %v711, %v709
        %v880 = vpack.c.b16 %v714, %v712
        %v881 = vpack.c.b16 %v715, %v713
        %v882 = vpack.c.b16 %v718, %v716
        %v883 = vpack.c.b16 %v719, %v717
        %v884 = vpack.c.b16 %v722, %v720
        %v885 = vpack.c.b16 %v723, %v721
        %v886 = vpack.c.b16 %v726, %v724
        %v887 = vpack.c.b16 %v727, %v725
        %v888 = vpack.c.b16 %v730, %v728
        %v889 = vpack.c.b16 %v731, %v729
        %v890 = vpack.c.b16 %v734, %v732
        %v891 = vpack.c.b16 %v735, %v733
        %v892 = vpack.c.b16 %v738, %v736
        %v893 = vpack.c.b16 %v739, %v737
        %v894 = vpack.c.b16 %v742, %v740
        %v895 = vpack.c.b16 %v743, %v741
        %v896 = vpack.c.b16 %v746, %v744
        %v897 = vpack.c.b16 %v747, %v745
        %v898 = vpack.c.b16 %v750, %v748
        %v899 = vpack.c.b16 %v751, %v749
        %v900 = vpack.c.b16 %v754, %v752
        %v901 = vpack.c.b16 %v755, %v753
        %v902 = vpack.c.b16 %v758, %v756
        %v903 = vpack.c.b16 %v759, %v757
        %v904 = vpack.c.b16 %v762, %v760
        %v905 = vpack.c.b16 %v763, %v761
        %v906 = vpack.c.b16 %v766, %v764
        %v907 = vpack.c.b16 %v767, %v765
        %v908 = vpack.c.b16 %v770, %v768
        %v909 = vpack.c.b16 %v771, %v769
        %v910 = vpack.c.b16 %v774, %v772
        %v911 = vpack.c.b16 %v775, %v773
        %v912 = vpack.c.b16 %v778, %v776
        %v913 = vpack.c.b16 %v779, %v777
        %v914 = vpack.c.b16 %v782, %v780
        %v915 = vpack.c.b16 %v783, %v781
        %v916 = vpack.c.b16 %v786, %v784
        %v917 = vpack.c.b16 %v787, %v785
        %v918 = vpack.c.b16 %v790, %v788
        %v919 = vpack.c.b16 %v791, %v789
        %1048 = vmatprep.subr.bf16.mxu0 %v793
        %1049 = vmatpush1.bf16.msra.mxu0 %v792
        %1050 = vmatprep.subr.bf16.mxu0 %v795
        %1051 = vmatpush1.bf16.msra.mxu0 %v794
        %1052 = vmatprep.subr.bf16.mxu0 %v797
        %1053 = vmatpush1.bf16.msra.mxu0 %v796
        %1054 = vmatprep.subr.bf16.mxu0 %v799
        %1055 = vmatpush1.bf16.msra.mxu0 %v798
        %1056 = vmatprep.subr.bf16.mxu0 %v801
        %1057 = vmatpush1.bf16.msra.mxu0 %v800
        %1058 = vmatprep.subr.bf16.mxu0 %v803
        %1059 = vmatpush1.bf16.msra.mxu0 %v802
        %1060 = vmatprep.subr.bf16.mxu0 %v805
        %1061 = vmatpush1.bf16.msra.mxu0 %v804
        %1062 = vmatprep.subr.bf16.mxu0 %v807
        %1063 = vmatpush1.bf16.msra.mxu0 %v806
        %1064 = vmatprep.subr.bf16.mxu0 %v809
        %1065 = vmatpush1.bf16.msra.mxu0 %v808
        %1066 = vmatprep.subr.bf16.mxu0 %v811
        %1067 = vmatpush1.bf16.msra.mxu0 %v810
        %1068 = vmatprep.subr.bf16.mxu0 %v813
        %1069 = vmatpush1.bf16.msra.mxu0 %v812
        %1070 = vmatprep.subr.bf16.mxu0 %v815
        %1071 = vmatpush1.bf16.msra.mxu0 %v814
        %1072 = vmatprep.subr.bf16.mxu0 %v817
        %1073 = vmatpush1.bf16.msra.mxu0 %v816
        %1074 = vmatprep.subr.bf16.mxu0 %v819
        %1075 = vmatpush1.bf16.msra.mxu0 %v818
        %1076 = vmatprep.subr.bf16.mxu0 %v821
        %1077 = vmatpush1.bf16.msra.mxu0 %v820
        %1078 = vmatprep.subr.bf16.mxu0 %v823
        %1079 = vmatpush1.bf16.msra.mxu0 %v822
        %1080 = vmatprep.mubr.bf16.mxu0 %v393
        %1081 = vmatmul.mubr.bf16.gmra.mrb[0].mxu0 %v392
        %v1082 = vpop.f32.mrb[0].mxu0
        %v1083 = vadd.f32 0.0, %v1082
        %v1084 = vpop.f32.mrb[0].mxu0
        %v1085 = vadd.f32 0.0, %v1084
        %v1086 = vpop.f32.mrb[0].mxu0
        %v1087 = vadd.f32 0.0, %v1086
        %v1088 = vpop.f32.mrb[0].mxu0
        %v1089 = vadd.f32 0.0, %v1088
        %1090 = vdwg.mxu0
        %1091 = vmatprep.subr.bf16.mxu0 %v825
        %1092 = vmatpush1.bf16.msra.mxu0 %v824
        %1093 = vmatprep.subr.bf16.mxu0 %v827
        %1094 = vmatpush1.bf16.msra.mxu0 %v826
        %1095 = vmatprep.subr.bf16.mxu0 %v829
        %1096 = vmatpush1.bf16.msra.mxu0 %v828
        %1097 = vmatprep.subr.bf16.mxu0 %v831
        %1098 = vmatpush1.bf16.msra.mxu0 %v830
        %1099 = vmatprep.subr.bf16.mxu0 %v833
        %1100 = vmatpush1.bf16.msra.mxu0 %v832
        %1101 = vmatprep.subr.bf16.mxu0 %v835
        %1102 = vmatpush1.bf16.msra.mxu0 %v834
        %1103 = vmatprep.subr.bf16.mxu0 %v837
        %1104 = vmatpush1.bf16.msra.mxu0 %v836
        %1105 = vmatprep.subr.bf16.mxu0 %v839
        %1106 = vmatpush1.bf16.msra.mxu0 %v838
        %1107 = vmatprep.subr.bf16.mxu0 %v841
        %1108 = vmatpush1.bf16.msra.mxu0 %v840
        %1109 = vmatprep.subr.bf16.mxu0 %v843
        %1110 = vmatpush1.bf16.msra.mxu0 %v842
        %1111 = vmatprep.subr.bf16.mxu0 %v845
        %1112 = vmatpush1.bf16.msra.mxu0 %v844
        %1113 = vmatprep.subr.bf16.mxu0 %v847
        %1114 = vmatpush1.bf16.msra.mxu0 %v846
        %1115 = vmatprep.subr.bf16.mxu0 %v849
        %1116 = vmatpush1.bf16.msra.mxu0 %v848
        %1117 = vmatprep.subr.bf16.mxu0 %v851
        %1118 = vmatpush1.bf16.msra.mxu0 %v850
        %1119 = vmatprep.subr.bf16.mxu0 %v853
        %1120 = vmatpush1.bf16.msra.mxu0 %v852
        %1121 = vmatprep.subr.bf16.mxu0 %v855
        %1122 = vmatpush1.bf16.msra.mxu0 %v854
        %1123 = vmatprep.mubr.bf16.mxu0 %v395
        %1124 = vmatmul.mubr.bf16.gmra.mrb[0].mxu0 %v394
        %v1125 = vpop.f32.mrb[0].mxu0
        %v1126 = vadd.f32 %v1083, %v1125
        %v1127 = vpop.f32.mrb[0].mxu0
        %v1128 = vadd.f32 %v1085, %v1127
        %v1129 = vpop.f32.mrb[0].mxu0
        %v1130 = vadd.f32 %v1087, %v1129
        %v1131 = vpop.f32.mrb[0].mxu0
        %v1132 = vadd.f32 %v1089, %v1131
        %1133 = vdwg.mxu0
        %1134 = vmatprep.subr.bf16.mxu0 %v857
        %1135 = vmatpush1.bf16.msra.mxu0 %v856
        %1136 = vmatprep.subr.bf16.mxu0 %v859
        %1137 = vmatpush1.bf16.msra.mxu0 %v858
        %1138 = vmatprep.subr.bf16.mxu0 %v861
        %1139 = vmatpush1.bf16.msra.mxu0 %v860
        %1140 = vmatprep.subr.bf16.mxu0 %v863
        %1141 = vmatpush1.bf16.msra.mxu0 %v862
        %1142 = vmatprep.subr.bf16.mxu0 %v865
        %1143 = vmatpush1.bf16.msra.mxu0 %v864
        %1144 = vmatprep.subr.bf16.mxu0 %v867
        %1145 = vmatpush1.bf16.msra.mxu0 %v866
        %1146 = vmatprep.subr.bf16.mxu0 %v869
        %1147 = vmatpush1.bf16.msra.mxu0 %v868
        %1148 = vmatprep.subr.bf16.mxu0 %v871
        %1149 = vmatpush1.bf16.msra.mxu0 %v870
        %1150 = vmatprep.subr.bf16.mxu0 %v873
        %1151 = vmatpush1.bf16.msra.mxu0 %v872
        %1152 = vmatprep.subr.bf16.mxu0 %v875
        %1153 = vmatpush1.bf16.msra.mxu0 %v874
        %1154 = vmatprep.subr.bf16.mxu0 %v877
        %1155 = vmatpush1.bf16.msra.mxu0 %v876
        %1156 = vmatprep.subr.bf16.mxu0 %v879
        %1157 = vmatpush1.bf16.msra.mxu0 %v878
        %1158 = vmatprep.subr.bf16.mxu0 %v881
        %1159 = vmatpush1.bf16.msra.mxu0 %v880
        %1160 = vmatprep.subr.bf16.mxu0 %v883
        %1161 = vmatpush1.bf16.msra.mxu0 %v882
        %1162 = vmatprep.subr.bf16.mxu0 %v885
        %1163 = vmatpush1.bf16.msra.mxu0 %v884
        %1164 = vmatprep.subr.bf16.mxu0 %v887
        %1165 = vmatpush1.bf16.msra.mxu0 %v886
        %1166 = vmatprep.mubr.bf16.mxu0 %v397
        %1167 = vmatmul.mubr.bf16.gmra.mrb[0].mxu0 %v396
        %v1168 = vpop.f32.mrb[0].mxu0
        %v1169 = vadd.f32 %v1126, %v1168
        %v1170 = vpop.f32.mrb[0].mxu0
        %v1171 = vadd.f32 %v1128, %v1170
        %v1172 = vpop.f32.mrb[0].mxu0
        %v1173 = vadd.f32 %v1130, %v1172
        %v1174 = vpop.f32.mrb[0].mxu0
        %v1175 = vadd.f32 %v1132, %v1174
        %1176 = vdwg.mxu0
        %1177 = vmatprep.subr.bf16.mxu0 %v889
        %1178 = vmatpush1.bf16.msra.mxu0 %v888
        %1179 = vmatprep.subr.bf16.mxu0 %v891
        %1180 = vmatpush1.bf16.msra.mxu0 %v890
        %1181 = vmatprep.subr.bf16.mxu0 %v893
        %1182 = vmatpush1.bf16.msra.mxu0 %v892
        %1183 = vmatprep.subr.bf16.mxu0 %v895
        %1184 = vmatpush1.bf16.msra.mxu0 %v894
        %1185 = vmatprep.subr.bf16.mxu0 %v897
        %1186 = vmatpush1.bf16.msra.mxu0 %v896
        %1187 = vmatprep.subr.bf16.mxu0 %v899
        %1188 = vmatpush1.bf16.msra.mxu0 %v898
        %1189 = vmatprep.subr.bf16.mxu0 %v901
        %1190 = vmatpush1.bf16.msra.mxu0 %v900
        %1191 = vmatprep.subr.bf16.mxu0 %v903
        %1192 = vmatpush1.bf16.msra.mxu0 %v902
        %1193 = vmatprep.subr.bf16.mxu0 %v905
        %1194 = vmatpush1.bf16.msra.mxu0 %v904
        %1195 = vmatprep.subr.bf16.mxu0 %v907
        %1196 = vmatpush1.bf16.msra.mxu0 %v906
        %1197 = vmatprep.subr.bf16.mxu0 %v909
        %1198 = vmatpush1.bf16.msra.mxu0 %v908
        %1199 = vmatprep.subr.bf16.mxu0 %v911
        %1200 = vmatpush1.bf16.msra.mxu0 %v910
        %1201 = vmatprep.subr.bf16.mxu0 %v913
        %1202 = vmatpush1.bf16.msra.mxu0 %v912
        %1203 = vmatprep.subr.bf16.mxu0 %v915
        %1204 = vmatpush1.bf16.msra.mxu0 %v914
        %1205 = vmatprep.subr.bf16.mxu0 %v917
        %1206 = vmatpush1.bf16.msra.mxu0 %v916
        %1207 = vmatprep.subr.bf16.mxu0 %v919
        %1208 = vmatpush1.bf16.msra.mxu0 %v918
        %1209 = vmatprep.mubr.bf16.mxu0 %v399
        %1210 = vmatmul.mubr.bf16.gmra.mrb[0].mxu0 %v398
        %v1211 = vpop.f32.mrb[0].mxu0
        %v1212 = vadd.f32 %v1169, %v1211
        %v1213 = vpop.f32.mrb[0].mxu0
        %v1214 = vadd.f32 %v1171, %v1213
        %v1215 = vpop.f32.mrb[0].mxu0
        %v1216 = vadd.f32 %v1173, %v1215
        %v1217 = vpop.f32.mrb[0].mxu0
        %v1218 = vadd.f32 %v1175, %v1217
        %1219 = vdwg.mxu0
        %v1220 = vadd.f32 %v228, %v1212
        %v1221 = vadd.f32 %v229, %v1214
        %v1222 = vadd.f32 %v230, %v1216
        %v1223 = vadd.f32 %v231, %v1218
        %1224 = vst [vmem:[#allocation2] sm:$0xff] %v1220
        %1225 = vst [vmem:[#allocation2 + $0x8] sm:$0xff] %v1221
        %1226 = vst [vmem:[#allocation2 + $0x10] sm:$0xff] %v1222
        %1227 = vst [vmem:[#allocation2 + $0x18] sm:$0xff] %v1223
        %p1228 = scmp.eq.s32.totalorder %s18, 1
        // Predicated region
        $region56: #{discriminator_forward.7} parent=46 // pred_check
          %p1229 = pneg %p1228
        $region57: #{discriminator_forward.7} parent=46 // pred_check_branch
          %1231 = sbr.rel (%p1229) target = $region59
        $region58: #{discriminator_forward.7} parent=46 // pred_region
          %v1232 = vld [vmem:[#allocation2] sm:$0xff]
          %v1233 = vld [vmem:[#allocation2 + $0x8] sm:$0xff]
          %v1234 = vld [vmem:[#allocation2 + $0x10] sm:$0xff]
          %v1235 = vld [vmem:[#allocation2 + $0x18] sm:$0xff]
          %v1236 = vadd.f32 %v1232, %v1234
          %v1237 = vrot.slane %v1236, 4
          %v1238 = vadd.f32 %v1236, %v1237
          %v1239 = vrot.slane %v1238, 2
          %v1240 = vadd.f32 %v1238, %v1239
          %v1241 = vrot.slane %v1240, 1
          %v1242 = vadd.f32 %v1240, %v1241
          %v1243 = vadd.f32 %v1233, %v1235
          %v1244 = vrot.slane %v1243, 4
          %v1245 = vadd.f32 %v1243, %v1244
          %v1246 = vrot.slane %v1245, 2
          %v1247 = vadd.f32 %v1245, %v1246
          %v1248 = vrot.slane %v1247, 1
          %v1249 = vadd.f32 %v1247, %v1248
          %v1250 = vrcp.pop 16.0
          %v1251 = vmul.f32 %v1242, %v1250
          %v1252 = vmul.f32 %v1249, %v1250
          %v1253 = vsub.f32 %v1232, %v1251
          %v1254 = vsub.f32 %v1233, %v1252
          %v1255 = vsub.f32 %v1234, %v1251
          %v1256 = vsub.f32 %v1235, %v1252
          %v1257 = vmul.f32 %v1253, %v1253
          %v1258 = vmul.f32 %v1254, %v1254
          %v1259 = vmul.f32 %v1255, %v1255
          %v1260 = vmul.f32 %v1256, %v1256
          %v1261 = vadd.f32 %v1257, %v1259
          %v1262 = vrot.slane %v1261, 4
          %v1263 = vadd.f32 %v1261, %v1262
          %v1264 = vrot.slane %v1263, 2
          %v1265 = vadd.f32 %v1263, %v1264
          %v1266 = vrot.slane %v1265, 1
          %v1267 = vadd.f32 %v1265, %v1266
          %v1268 = vadd.f32 %v1258, %v1260
          %v1269 = vrot.slane %v1268, 4
          %v1270 = vadd.f32 %v1268, %v1269
          %v1271 = vrot.slane %v1270, 2
          %v1272 = vadd.f32 %v1270, %v1271
          %v1273 = vrot.slane %v1272, 1
          %v1274 = vadd.f32 %v1272, %v1273
          %v1275 = vmul.f32 %v1267, %v1250
          %v1276 = vmul.f32 %v1274, %v1250
          %v1277 = vadd.f32 %v1275, 1e-05
          %v1278 = vadd.f32 %v1276, 1e-05
          %v1279 = vrsqrt.pop %v1277
          %v1280 = vrsqrt.pop %v1278
          %v1281 = vmul.f32 %v1253, %v1279
          %v1282 = vmul.f32 %v1254, %v1280
          %v1283 = vmul.f32 %v1255, %v1279
          %v1284 = vmul.f32 %v1256, %v1280
          %vm1285 = vcmp.ge.f32.partialorder %v1281, 0.0
          %vm1286 = vcmp.ge.f32.partialorder %v1282, 0.0
          %vm1287 = vcmp.ge.f32.partialorder %v1283, 0.0
          %vm1288 = vcmp.ge.f32.partialorder %v1284, 0.0
          %v1289 = vmul.f32 %v1281, 0.2
          %v1290 = vmul.f32 %v1282, 0.2
          %v1291 = vmul.f32 %v1283, 0.2
          %v1292 = vmul.f32 %v1284, 0.2
          %v1293 = vsel %vm1285, %v1281, %v1289
          %v1294 = vsel %vm1286, %v1282, %v1290
          %v1295 = vsel %vm1287, %v1283, %v1291
          %v1296 = vsel %vm1288, %v1284, %v1292
          %v1297 = vpack.c.bf16 %v1295, %v1293
          %v1298 = vpack.c.bf16 %v1296, %v1294
          %v1301 = vunpack.c.l.b16 %v1297
          %v1302 = vunpack.c.l.b16 %v1298
          %v1303 = vunpack.c.h.b16 %v1297
          %v1304 = vunpack.c.h.b16 %v1298
          %v1305 = vpack.c.b16 %v1302, %v1301
          %v1306 = vpack.c.b16 %v1304, %v1303
          %1309 = vst [vmem:[%s219] sm:$0xff] %v1305
          %1310 = vst [vmem:[%s219 + $0x8] sm:$0xff] %v1306
        $region59: #{discriminator_forward.7} parent=46 // pred_fallthru
          _
        %p1311 = scmp.lt.s32.totalorder %s17, 1
        %s1312 = scalar_select %p1311, %s17, 1
        %s1313 = smul.addr %s1312, 4
        %s1314 = smul.addr %s1313, 4
        %s1315 = scalar_lea.vmem %s2, %s1314
        // Predicated region
        $region60: #{discriminator_forward.7} parent=46 // pred_check
          %p1316 = pneg %p97
        $region61: #{discriminator_forward.7} parent=46 // pred_check_branch
          %1318 = sbr.rel (%p1316) target = $region63
        $region62: #{discriminator_forward.7} parent=46 // pred_region
          _
        $region63: #{discriminator_forward.7} parent=46 // pred_fallthru
          _
      $region47: #{discriminator_forward.7} parent=5 // pred_fallthru
        _
      %p1319 = scmp.le.s32.totalorder 2, %s8
      // Predicated region
      $region64: #{discriminator_forward.7} parent=5 // pred_check
        %p1320 = pneg %p1319
      $region65: #{discriminator_forward.7} parent=5 // pred_check_branch
        %1322 = sbr.rel (%p1320) target = $region67
      $region66: #{discriminator_forward.7} parent=5 // pred_region
        %s1323 = ssub.s32 %s8, 2
        // Predicated region
        $region68: #{discriminator_forward.7} parent=66 // pred_check
          %p1324 = pneg %p103
        $region69: #{discriminator_forward.7} parent=66 // pred_check_branch
          %1326 = sbr.rel (%p1324) target = $region71
        $region70: #{discriminator_forward.7} parent=66 // pred_region
          %p1327 = scmp.lt.s32.totalorder %s19, 1
          %s1328 = scalar_select %p1327, %s19, 1
          %s1329 = smul.addr %s1328, 4
          %s1330 = smul.addr %s1329, 4
          %s1331 = scalar_lea.vmem %s2, %s1330
        $region71: #{discriminator_forward.7} parent=66 // pred_fallthru
          _
      $region67: #{discriminator_forward.7} parent=5 // pred_fallthru
        _
    $region6: #{discriminator_forward.7} parent=1 // loop_footer
      %s12 = sadd.s32 1, %s8
    $region7: #{discriminator_forward.7} parent=1 // loop_footer_branch
      %7 = sbr.rel target = $region3
    $region8: #{discriminator_forward.7} parent=1 // loop_exit
      _

// kernel: discriminator_forward.8
$region0: #{discriminator_forward.8}
  #allocation0 [shape = 'u32[]', space=smem, size = 0x4, offset = 0x4, fixed_abs, tag = 'smem constant byte address 0x4 - core index']
  #allocation1 [shape = 'u32[144,128]{1,0:T(1,128)}', space=vmem, size = 0x12000, scoped, tag = 'internal scratch']
  #allocation2 [shape = 'f32[4,512]{1,0:T(4,128)}', space=vmem, size = 0x2000, scoped, tag = 'scratch operand']
  %s0 = inlined_call_operand.vmem [shape: bf16[2,4,4096], index: 0, kind: input, shape index: {}]
  %s1 = inlined_call_operand.vmem [shape: bf16[4096,512], index: 1, kind: input, shape index: {}]
  %s2 = inlined_call_operand.vmem [shape: bf16[2,4,512], index: 2, kind: output, shape index: {}]
  %s3 = sld [smem:[#allocation0]]
  $region49: #{discriminator_forward.8} parent=0
    _
  %s5 = ssub.s32 1, %s3
  %s6 = scalar_select 0, %s5, %s3
  loop: start=0, step=1, limit=10
  $region2: #{discriminator_forward.8} parent=0 // loop_pre_header
    _
  $region3: #{discriminator_forward.8} parent=0 // loop_header
    %s8 = sphi 0, %s12
    %p9 = scmp.ge.s32.totalorder %s8, 10
    %s15 = sphi 0, %s27
    %s16 = sphi 0, %s23
    %s17 = sphi 0, %s15
    %s18 = sphi 0, %s16
    %s19 = sphi 0, %s17
    %s20 = sphi 0, %s18
    %s32 = sphi 0, %s34
    %s35 = sphi 0, %s32
    %s36 = sphi 0, %s35
    %s52 = sphi 0, %s36
    %s58 = sphi 0, %s60
    %s61 = sphi 0, %s58
    %s62 = sphi 0, %s61
    %s78 = sphi 0, %s62
    %s84 = sphi 0, %s86
    %s87 = sphi 0, %s84
    %s88 = sphi 0, %s87
    %s104 = sphi 0, %s88
  $region4: #{discriminator_forward.8} parent=0 // loop_header_branch
    %11 = sbr.rel (%p9) target = $region8
  $region5: #{discriminator_forward.8} parent=0 // loop_body
    %s13 = ssub.s32 %s8, 1
    %s14 = ssub.s32 %s8, 2
    %s21 = sadd.s32 1, %s16
    %p22 = scmp.ge.s32.totalorder %s21, 4
    %s23 = scalar_select %p22, 0, %s21
    %s24 = sadd.s32 1, %s15
    %s25 = scalar_select %p22, %s24, %s15
    %p26 = scmp.ge.s32.totalorder %s25, 2
    %s27 = scalar_select %p26, 0, %s25
    %s28 = ssub.s32 %s15, %s27
    %s29 = ssub.s32 %s16, %s23
    %s30 = sor.u32 %s28, %s29
    %p31 = scmp.eq.s32.totalorder %s30, 0
    %s33 = sadd.s32 %s32, 1
    %s34 = scalar_select %p31, %s32, %s33
    %p37 = pneg %p31
    %p38 = scmp.eq.s32.totalorder %s8, 7
    %p39 = por %p37, %p38
    %p40 = scmp.ne.s32.totalorder %s32, %s35
    %p41 = scmp.eq.s32.totalorder %s8, 0
    %p42 = por %p40, %p41
    %p43 = scmp.ne.s32.totalorder %s32, %s35
    %p44 = scmp.eq.s32.totalorder %s13, 7
    %p45 = por %p43, %p44
    %p46 = scmp.ne.s32.totalorder %s35, %s36
    %p47 = scmp.eq.s32.totalorder %s13, 0
    %p48 = por %p46, %p47
    %p49 = scmp.ne.s32.totalorder %s35, %s36
    %p50 = scmp.eq.s32.totalorder %s14, 7
    %p51 = por %p49, %p50
    %p53 = scmp.ne.s32.totalorder %s36, %s52
    %p54 = scmp.eq.s32.totalorder %s14, 0
    %p55 = por %p53, %p54
    %s56 = ssub.s32 %s16, %s23
    %p57 = scmp.eq.s32.totalorder %s56, 0
    %s59 = sadd.s32 %s58, 1
    %s60 = scalar_select %p57, %s58, %s59
    %p63 = pneg %p57
    %p64 = scmp.eq.s32.totalorder %s8, 7
    %p65 = por %p63, %p64
    %p66 = scmp.ne.s32.totalorder %s58, %s61
    %p67 = scmp.eq.s32.totalorder %s8, 0
    %p68 = por %p66, %p67
    %p69 = scmp.ne.s32.totalorder %s58, %s61
    %p70 = scmp.eq.s32.totalorder %s13, 7
    %p71 = por %p69, %p70
    %p72 = scmp.ne.s32.totalorder %s61, %s62
    %p73 = scmp.eq.s32.totalorder %s13, 0
    %p74 = por %p72, %p73
    %p75 = scmp.ne.s32.totalorder %s61, %s62
    %p76 = scmp.eq.s32.totalorder %s14, 7
    %p77 = por %p75, %p76
    %p79 = scmp.ne.s32.totalorder %s62, %s78
    %p80 = scmp.eq.s32.totalorder %s14, 0
    %p81 = por %p79, %p80
    %s82 = ssub.s32 %s15, %s27
    %p83 = scmp.eq.s32.totalorder %s82, 0
    %s85 = sadd.s32 %s84, 1
    %s86 = scalar_select %p83, %s84, %s85
    %p89 = pneg %p83
    %p90 = scmp.eq.s32.totalorder %s8, 7
    %p91 = por %p89, %p90
    %p92 = scmp.ne.s32.totalorder %s84, %s87
    %p93 = scmp.eq.s32.totalorder %s8, 0
    %p94 = por %p92, %p93
    %p95 = scmp.ne.s32.totalorder %s84, %s87
    %p96 = scmp.eq.s32.totalorder %s13, 7
    %p97 = por %p95, %p96
    %p98 = scmp.ne.s32.totalorder %s87, %s88
    %p99 = scmp.eq.s32.totalorder %s13, 0
    %p100 = por %p98, %p99
    %p101 = scmp.ne.s32.totalorder %s87, %s88
    %p102 = scmp.eq.s32.totalorder %s14, 7
    %p103 = por %p101, %p102
    %p105 = scmp.ne.s32.totalorder %s88, %s104
    %p106 = scmp.eq.s32.totalorder %s14, 0
    %p107 = por %p105, %p106
    %p108 = scmp.le.s32.totalorder 1, %s8
    %p109 = scmp.lt.s32.totalorder %s8, 9
    %p110 = pnand %p108, %p109
    %p111 = pneg %p110
    // Predicated region
    $region9: #{discriminator_forward.8} parent=5 // pred_check
      _
    $region10: #{discriminator_forward.8} parent=5 // pred_check_branch
      %113 = sbr.rel (%p110) target = $region12
    $region11: #{discriminator_forward.8} parent=5 // pred_region
      %s114 = ssub.s32 %s8, 1
    $region12: #{discriminator_forward.8} parent=5 // pred_fallthru
      _
    %p115 = scmp.lt.s32.totalorder %s8, 8
    // Predicated region
    $region13: #{discriminator_forward.8} parent=5 // pred_check
      %p116 = pneg %p115
    $region14: #{discriminator_forward.8} parent=5 // pred_check_branch
      %118 = sbr.rel (%p116) target = $region16
    $region15: #{discriminator_forward.8} parent=5 // pred_region
      // Predicated region
      $region17: #{discriminator_forward.8} parent=15 // pred_check
        %p119 = pneg %p42
      $region18: #{discriminator_forward.8} parent=15 // pred_check_branch
        %121 = sbr.rel (%p119) target = $region20
      $region19: #{discriminator_forward.8} parent=15 // pred_region
        %s122 = smul.u32 8, %s16
        %p123 = scmp.lt.s32.totalorder %s15, 1
        %s124 = scalar_select %p123, %s15, 1
        %p125 = scmp.lt.s32.totalorder %s122, 31
        %s126 = scalar_select %p125, %s122, 31
        %s127 = smul.addr %s124, 32
        %s128 = sadd.s32 %s126, %s127
        %s129 = smul.addr %s128, 2
        %s130 = scalar_lea.vmem %s0, %s129
        %s131 = smul.u32 8, %s16
      $region20: #{discriminator_forward.8} parent=15 // pred_fallthru
        _
      // Predicated region
      $region21: #{discriminator_forward.8} parent=15 // pred_check
        %p132 = pneg %p68
      $region22: #{discriminator_forward.8} parent=15 // pred_check_branch
        %134 = sbr.rel (%p132) target = $region24
      $region23: #{discriminator_forward.8} parent=15 // pred_region
        %s135 = smul.u32 128, %s16
        %p136 = scmp.lt.s32.totalorder %s135, 511
        %s137 = scalar_select %p136, %s135, 511
        %s138 = smul.addr %s137, 4
        %s139 = smul.addr %s138, 4
        %s140 = scalar_lea.vmem %s1, %s139
        %s141 = smul.u32 128, %s16
      $region24: #{discriminator_forward.8} parent=15 // pred_fallthru
        _
    $region16: #{discriminator_forward.8} parent=5 // pred_fallthru
      _
    %p142 = scmp.le.s32.totalorder 1, %s8
    %p143 = scmp.lt.s32.totalorder %s8, 9
    %p144 = pnand %p142, %p143
    %p145 = pneg %p144
    // Predicated region
    $region25: #{discriminator_forward.8} parent=5 // pred_check
      _
    $region26: #{discriminator_forward.8} parent=5 // pred_check_branch
      %147 = sbr.rel (%p144) target = $region28
    $region27: #{discriminator_forward.8} parent=5 // pred_region
      %s148 = ssub.s32 %s8, 1
      %s149 = smul.u32 8, %s18
      %p150 = scmp.lt.s32.totalorder %s17, 1
      %s151 = scalar_select %p150, %s17, 1
      %p152 = scmp.lt.s32.totalorder %s149, 31
      %s153 = scalar_select %p152, %s149, 31
      %s154 = smul.addr %s151, 32
      %s155 = sadd.s32 %s153, %s154
      %s156 = smul.addr %s155, 2
      %s157 = scalar_lea.vmem %s0, %s156
      %p158 = pneg %p48
      %p159 = pneg %p45
      %s160 = smul.u32 128, %s18
      %p161 = scmp.lt.s32.totalorder %s160, 511
      %s162 = scalar_select %p161, %s160, 511
      %s163 = smul.addr %s162, 4
      %s164 = smul.addr %s163, 4
      %s165 = scalar_lea.vmem %s1, %s164
      %p166 = pneg %p74
      %p167 = pneg %p71
      %p168 = pneg %p100
      %p169 = pneg %p97
      %p170 = scmp.lt.s32.totalorder %s17, 1
      %s171 = scalar_select %p170, %s17, 1
      %s172 = smul.addr %s171, 4
      %s173 = smul.addr %s172, 2
      %s174 = scalar_lea.vmem %s2, %s173
      %s175 = smul.u32 8, %s18
      %p176 = scmp.lt.s32.totalorder %s17, 1
      %s177 = scalar_select %p176, %s17, 1
      %p178 = scmp.lt.s32.totalorder %s175, 31
      %s179 = scalar_select %p178, %s175, 31
      %s180 = smul.addr %s177, 32
      %s181 = sadd.s32 %s179, %s180
      %s182 = smul.addr %s181, 2
      %s183 = scalar_lea.vmem %s0, %s182
      %s184 = smul.u32 8, %s18
      %s185 = smul.u32 128, %s18
      %p186 = scmp.lt.s32.totalorder %s185, 511
      %s187 = scalar_select %p186, %s185, 511
      %s188 = smul.addr %s187, 4
      %s189 = smul.addr %s188, 4
      %s190 = scalar_lea.vmem %s1, %s189
      %s191 = smul.u32 128, %s18
      %p192 = scmp.lt.s32.totalorder %s17, 1
      %s193 = scalar_select %p192, %s17, 1
      %s194 = smul.addr %s193, 4
      %s195 = smul.addr %s194, 2
      %s196 = scalar_lea.vmem %s2, %s195
      %p197 = scmp.eq.s32.totalorder %s18, 0
      // Predicated region
      $region29: #{discriminator_forward.8} parent=27 // pred_check
        %p198 = pneg %p197
      $region30: #{discriminator_forward.8} parent=27 // pred_check_branch
        %200 = sbr.rel (%p198) target = $region32
      $region31: #{discriminator_forward.8} parent=27 // pred_region
        %201 = vst [vmem:[#allocation2] sm:$0xff] 0.0
        %202 = vst [vmem:[#allocation2 + $0x8] sm:$0xff] 0.0
      $region32: #{discriminator_forward.8} parent=27 // pred_fallthru
        _
      %v203 = vld [vmem:[#allocation2] sm:$0xff]
      %v204 = vld [vmem:[#allocation2 + $0x8] sm:$0xff]
      %v205 = vld [vmem:[%s183] sm:$0xff]
      %v206 = vld [vmem:[%s183 + $0x8] sm:$0xff]
      %v207 = vld [vmem:[%s190] sm:$0xff]
      %v208 = vld [vmem:[%s190 + $0x8] sm:$0xff]
      %v209 = vld [vmem:[%s190 + $0x10] sm:$0xff]
      %v210 = vld [vmem:[%s190 + $0x18] sm:$0xff]
      %v211 = vld [vmem:[%s190 + $0x20] sm:$0xff]
      %v212 = vld [vmem:[%s190 + $0x28] sm:$0xff]
      %v213 = vld [vmem:[%s190 + $0x30] sm:$0xff]
      %v214 = vld [vmem:[%s190 + $0x38] sm:$0xff]
      %v215 = vld [vmem:[%s190 + $0x40] sm:$0xff]
      %v216 = vld [vmem:[%s190 + $0x48] sm:$0xff]
      %v217 = vld [vmem:[%s190 + $0x50] sm:$0xff]
      %v218 = vld [vmem:[%s190 + $0x58] sm:$0xff]
      %v219 = vld [vmem:[%s190 + $0x60] sm:$0xff]
      %v220 = vld [vmem:[%s190 + $0x68] sm:$0xff]
      %v221 = vld [vmem:[%s190 + $0x70] sm:$0xff]
      %v222 = vld [vmem:[%s190 + $0x78] sm:$0xff]
      %v223 = vld [vmem:[%s190 + $0x80] sm:$0xff]
      %v224 = vld [vmem:[%s190 + $0x88] sm:$0xff]
      %v225 = vld [vmem:[%s190 + $0x90] sm:$0xff]
      %v226 = vld [vmem:[%s190 + $0x98] sm:$0xff]
      %v227 = vld [vmem:[%s190 + $0xa0] sm:$0xff]
      %v228 = vld [vmem:[%s190 + $0xa8] sm:$0xff]
      %v229 = vld [vmem:[%s190 + $0xb0] sm:$0xff]
      %v230 = vld [vmem:[%s190 + $0xb8] sm:$0xff]
      %v231 = vld [vmem:[%s190 + $0xc0] sm:$0xff]
      %v232 = vld [vmem:[%s190 + $0xc8] sm:$0xff]
      %v233 = vld [vmem:[%s190 + $0xd0] sm:$0xff]
      %v234 = vld [vmem:[%s190 + $0xd8] sm:$0xff]
      %v235 = vld [vmem:[%s190 + $0xe0] sm:$0xff]
      %v236 = vld [vmem:[%s190 + $0xe8] sm:$0xff]
      %v237 = vld [vmem:[%s190 + $0xf0] sm:$0xff]
      %v238 = vld [vmem:[%s190 + $0xf8] sm:$0xff]
      %v239 = vld [vmem:[%s190 + $0x100] sm:$0xff]
      %v240 = vld [vmem:[%s190 + $0x108] sm:$0xff]
      %v241 = vld [vmem:[%s190 + $0x110] sm:$0xff]
      %v242 = vld [vmem:[%s190 + $0x118] sm:$0xff]
      %v243 = vld [vmem:[%s190 + $0x120] sm:$0xff]
      %v244 = vld [vmem:[%s190 + $0x128] sm:$0xff]
      %v245 = vld [vmem:[%s190 + $0x130] sm:$0xff]
      %v246 = vld [vmem:[%s190 + $0x138] sm:$0xff]
      %v247 = vld [vmem:[%s190 + $0x140] sm:$0xff]
      %v248 = vld [vmem:[%s190 + $0x148] sm:$0xff]
      %v249 = vld [vmem:[%s190 + $0x150] sm:$0xff]
      %v250 = vld [vmem:[%s190 + $0x158] sm:$0xff]
      %v251 = vld [vmem:[%s190 + $0x160] sm:$0xff]
      %v252 = vld [vmem:[%s190 + $0x168] sm:$0xff]
      %v253 = vld [vmem:[%s190 + $0x170] sm:$0xff]
      %v254 = vld [vmem:[%s190 + $0x178] sm:$0xff]
      %v255 = vld [vmem:[%s190 + $0x180] sm:$0xff]
      %v256 = vld [vmem:[%s190 + $0x188] sm:$0xff]
      %v257 = vld [vmem:[%s190 + $0x190] sm:$0xff]
      %v258 = vld [vmem:[%s190 + $0x198] sm:$0xff]
      %v259 = vld [vmem:[%s190 + $0x1a0] sm:$0xff]
      %v260 = vld [vmem:[%s190 + $0x1a8] sm:$0xff]
      %v261 = vld [vmem:[%s190 + $0x1b0] sm:$0xff]
      %v262 = vld [vmem:[%s190 + $0x1b8] sm:$0xff]
      %v263 = vld [vmem:[%s190 + $0x1c0] sm:$0xff]
      %v264 = vld [vmem:[%s190 + $0x1c8] sm:$0xff]
      %v265 = vld [vmem:[%s190 + $0x1d0] sm:$0xff]
      %v266 = vld [vmem:[%s190 + $0x1d8] sm:$0xff]
      %v267 = vld [vmem:[%s190 + $0x1e0] sm:$0xff]
      %v268 = vld [vmem:[%s190 + $0x1e8] sm:$0xff]
      %v269 = vld [vmem:[%s190 + $0x1f0] sm:$0xff]
      %v270 = vld [vmem:[%s190 + $0x1f8] sm:$0xff]
      %v271 = vld [vmem:[%s190 + $0x200] sm:$0xff]
      %v272 = vld [vmem:[%s190 + $0x208] sm:$0xff]
      %v273 = vld [vmem:[%s190 + $0x210] sm:$0xff]
      %v274 = vld [vmem:[%s190 + $0x218] sm:$0xff]
      %v275 = vld [vmem:[%s190 + $0x220] sm:$0xff]
      %v276 = vld [vmem:[%s190 + $0x228] sm:$0xff]
      %v277 = vld [vmem:[%s190 + $0x230] sm:$0xff]
      %v278 = vld [vmem:[%s190 + $0x238] sm:$0xff]
      %v279 = vld [vmem:[%s190 + $0x240] sm:$0xff]
      %v280 = vld [vmem:[%s190 + $0x248] sm:$0xff]
      %v281 = vld [vmem:[%s190 + $0x250] sm:$0xff]
      %v282 = vld [vmem:[%s190 + $0x258] sm:$0xff]
      %v283 = vld [vmem:[%s190 + $0x260] sm:$0xff]
      %v284 = vld [vmem:[%s190 + $0x268] sm:$0xff]
      %v285 = vld [vmem:[%s190 + $0x270] sm:$0xff]
      %v286 = vld [vmem:[%s190 + $0x278] sm:$0xff]
      %v287 = vld [vmem:[%s190 + $0x280] sm:$0xff]
      %v288 = vld [vmem:[%s190 + $0x288] sm:$0xff]
      %v289 = vld [vmem:[%s190 + $0x290] sm:$0xff]
      %v290 = vld [vmem:[%s190 + $0x298] sm:$0xff]
      %v291 = vld [vmem:[%s190 + $0x2a0] sm:$0xff]
      %v292 = vld [vmem:[%s190 + $0x2a8] sm:$0xff]
      %v293 = vld [vmem:[%s190 + $0x2b0] sm:$0xff]
      %v294 = vld [vmem:[%s190 + $0x2b8] sm:$0xff]
      %v295 = vld [vmem:[%s190 + $0x2c0] sm:$0xff]
      %v296 = vld [vmem:[%s190 + $0x2c8] sm:$0xff]
      %v297 = vld [vmem:[%s190 + $0x2d0] sm:$0xff]
      %v298 = vld [vmem:[%s190 + $0x2d8] sm:$0xff]
      %v299 = vld [vmem:[%s190 + $0x2e0] sm:$0xff]
      %v300 = vld [vmem:[%s190 + $0x2e8] sm:$0xff]
      %v301 = vld [vmem:[%s190 + $0x2f0] sm:$0xff]
      %v302 = vld [vmem:[%s190 + $0x2f8] sm:$0xff]
      %v303 = vld [vmem:[%s190 + $0x300] sm:$0xff]
      %v304 = vld [vmem:[%s190 + $0x308] sm:$0xff]
      %v305 = vld [vmem:[%s190 + $0x310] sm:$0xff]
      %v306 = vld [vmem:[%s190 + $0x318] sm:$0xff]
      %v307 = vld [vmem:[%s190 + $0x320] sm:$0xff]
      %v308 = vld [vmem:[%s190 + $0x328] sm:$0xff]
      %v309 = vld [vmem:[%s190 + $0x330] sm:$0xff]
      %v310 = vld [vmem:[%s190 + $0x338] sm:$0xff]
      %v311 = vld [vmem:[%s190 + $0x340] sm:$0xff]
      %v312 = vld [vmem:[%s190 + $0x348] sm:$0xff]
      %v313 = vld [vmem:[%s190 + $0x350] sm:$0xff]
      %v314 = vld [vmem:[%s190 + $0x358] sm:$0xff]
      %v315 = vld [vmem:[%s190 + $0x360] sm:$0xff]
      %v316 = vld [vmem:[%s190 + $0x368] sm:$0xff]
      %v317 = vld [vmem:[%s190 + $0x370] sm:$0xff]
      %v318 = vld [vmem:[%s190 + $0x378] sm:$0xff]
      %v319 = vld [vmem:[%s190 + $0x380] sm:$0xff]
      %v320 = vld [vmem:[%s190 + $0x388] sm:$0xff]
      %v321 = vld [vmem:[%s190 + $0x390] sm:$0xff]
      %v322 = vld [vmem:[%s190 + $0x398] sm:$0xff]
      %v323 = vld [vmem:[%s190 + $0x3a0] sm:$0xff]
      %v324 = vld [vmem:[%s190 + $0x3a8] sm:$0xff]
      %v325 = vld [vmem:[%s190 + $0x3b0] sm:$0xff]
      %v326 = vld [vmem:[%s190 + $0x3b8] sm:$0xff]
      %v327 = vld [vmem:[%s190 + $0x3c0] sm:$0xff]
      %v328 = vld [vmem:[%s190 + $0x3c8] sm:$0xff]
      %v329 = vld [vmem:[%s190 + $0x3d0] sm:$0xff]
      %v330 = vld [vmem:[%s190 + $0x3d8] sm:$0xff]
      %v331 = vld [vmem:[%s190 + $0x3e0] sm:$0xff]
      %v332 = vld [vmem:[%s190 + $0x3e8] sm:$0xff]
      %v333 = vld [vmem:[%s190 + $0x3f0] sm:$0xff]
      %v334 = vld [vmem:[%s190 + $0x3f8] sm:$0xff]
      %v335 = vld [vmem:[%s190 + $0x400] sm:$0xff]
      %v336 = vld [vmem:[%s190 + $0x408] sm:$0xff]
      %v337 = vld [vmem:[%s190 + $0x410] sm:$0xff]
      %v338 = vld [vmem:[%s190 + $0x418] sm:$0xff]
      %v339 = vld [vmem:[%s190 + $0x420] sm:$0xff]
      %v340 = vld [vmem:[%s190 + $0x428] sm:$0xff]
      %v341 = vld [vmem:[%s190 + $0x430] sm:$0xff]
      %v342 = vld [vmem:[%s190 + $0x438] sm:$0xff]
      %v343 = vld [vmem:[%s190 + $0x440] sm:$0xff]
      %v344 = vld [vmem:[%s190 + $0x448] sm:$0xff]
      %v345 = vld [vmem:[%s190 + $0x450] sm:$0xff]
      %v346 = vld [vmem:[%s190 + $0x458] sm:$0xff]
      %v347 = vld [vmem:[%s190 + $0x460] sm:$0xff]
      %v348 = vld [vmem:[%s190 + $0x468] sm:$0xff]
      %v349 = vld [vmem:[%s190 + $0x470] sm:$0xff]
      %v350 = vld [vmem:[%s190 + $0x478] sm:$0xff]
      %v351 = vld [vmem:[%s190 + $0x480] sm:$0xff]
      %v352 = vld [vmem:[%s190 + $0x488] sm:$0xff]
      %v353 = vld [vmem:[%s190 + $0x490] sm:$0xff]
      %v354 = vld [vmem:[%s190 + $0x498] sm:$0xff]
      %v355 = vld [vmem:[%s190 + $0x4a0] sm:$0xff]
      %v356 = vld [vmem:[%s190 + $0x4a8] sm:$0xff]
      %v357 = vld [vmem:[%s190 + $0x4b0] sm:$0xff]
      %v358 = vld [vmem:[%s190 + $0x4b8] sm:$0xff]
      %v359 = vld [vmem:[%s190 + $0x4c0] sm:$0xff]
      %v360 = vld [vmem:[%s190 + $0x4c8] sm:$0xff]
      %v361 = vld [vmem:[%s190 + $0x4d0] sm:$0xff]
      %v362 = vld [vmem:[%s190 + $0x4d8] sm:$0xff]
      %v363 = vld [vmem:[%s190 + $0x4e0] sm:$0xff]
      %v364 = vld [vmem:[%s190 + $0x4e8] sm:$0xff]
      %v365 = vld [vmem:[%s190 + $0x4f0] sm:$0xff]
      %v366 = vld [vmem:[%s190 + $0x4f8] sm:$0xff]
      %v367 = vld [vmem:[%s190 + $0x500] sm:$0xff]
      %v368 = vld [vmem:[%s190 + $0x508] sm:$0xff]
      %v369 = vld [vmem:[%s190 + $0x510] sm:$0xff]
      %v370 = vld [vmem:[%s190 + $0x518] sm:$0xff]
      %v371 = vld [vmem:[%s190 + $0x520] sm:$0xff]
      %v372 = vld [vmem:[%s190 + $0x528] sm:$0xff]
      %v373 = vld [vmem:[%s190 + $0x530] sm:$0xff]
      %v374 = vld [vmem:[%s190 + $0x538] sm:$0xff]
      %v375 = vld [vmem:[%s190 + $0x540] sm:$0xff]
      %v376 = vld [vmem:[%s190 + $0x548] sm:$0xff]
      %v377 = vld [vmem:[%s190 + $0x550] sm:$0xff]
      %v378 = vld [vmem:[%s190 + $0x558] sm:$0xff]
      %v379 = vld [vmem:[%s190 + $0x560] sm:$0xff]
      %v380 = vld [vmem:[%s190 + $0x568] sm:$0xff]
      %v381 = vld [vmem:[%s190 + $0x570] sm:$0xff]
      %v382 = vld [vmem:[%s190 + $0x578] sm:$0xff]
      %v383 = vld [vmem:[%s190 + $0x580] sm:$0xff]
      %v384 = vld [vmem:[%s190 + $0x588] sm:$0xff]
      %v385 = vld [vmem:[%s190 + $0x590] sm:$0xff]
      %v386 = vld [vmem:[%s190 + $0x598] sm:$0xff]
      %v387 = vld [vmem:[%s190 + $0x5a0] sm:$0xff]
      %v388 = vld [vmem:[%s190 + $0x5a8] sm:$0xff]
      %v389 = vld [vmem:[%s190 + $0x5b0] sm:$0xff]
      %v390 = vld [vmem:[%s190 + $0x5b8] sm:$0xff]
      %v391 = vld [vmem:[%s190 + $0x5c0] sm:$0xff]
      %v392 = vld [vmem:[%s190 + $0x5c8] sm:$0xff]
      %v393 = vld [vmem:[%s190 + $0x5d0] sm:$0xff]
      %v394 = vld [vmem:[%s190 + $0x5d8] sm:$0xff]
      %v395 = vld [vmem:[%s190 + $0x5e0] sm:$0xff]
      %v396 = vld [vmem:[%s190 + $0x5e8] sm:$0xff]
      %v397 = vld [vmem:[%s190 + $0x5f0] sm:$0xff]
      %v398 = vld [vmem:[%s190 + $0x5f8] sm:$0xff]
      %v399 = vld [vmem:[%s190 + $0x600] sm:$0xff]
      %v400 = vld [vmem:[%s190 + $0x608] sm:$0xff]
      %v401 = vld [vmem:[%s190 + $0x610] sm:$0xff]
      %v402 = vld [vmem:[%s190 + $0x618] sm:$0xff]
      %v403 = vld [vmem:[%s190 + $0x620] sm:$0xff]
      %v404 = vld [vmem:[%s190 + $0x628] sm:$0xff]
      %v405 = vld [vmem:[%s190 + $0x630] sm:$0xff]
      %v406 = vld [vmem:[%s190 + $0x638] sm:$0xff]
      %v407 = vld [vmem:[%s190 + $0x640] sm:$0xff]
      %v408 = vld [vmem:[%s190 + $0x648] sm:$0xff]
      %v409 = vld [vmem:[%s190 + $0x650] sm:$0xff]
      %v410 = vld [vmem:[%s190 + $0x658] sm:$0xff]
      %v411 = vld [vmem:[%s190 + $0x660] sm:$0xff]
      %v412 = vld [vmem:[%s190 + $0x668] sm:$0xff]
      %v413 = vld [vmem:[%s190 + $0x670] sm:$0xff]
      %v414 = vld [vmem:[%s190 + $0x678] sm:$0xff]
      %v415 = vld [vmem:[%s190 + $0x680] sm:$0xff]
      %v416 = vld [vmem:[%s190 + $0x688] sm:$0xff]
      %v417 = vld [vmem:[%s190 + $0x690] sm:$0xff]
      %v418 = vld [vmem:[%s190 + $0x698] sm:$0xff]
      %v419 = vld [vmem:[%s190 + $0x6a0] sm:$0xff]
      %v420 = vld [vmem:[%s190 + $0x6a8] sm:$0xff]
      %v421 = vld [vmem:[%s190 + $0x6b0] sm:$0xff]
      %v422 = vld [vmem:[%s190 + $0x6b8] sm:$0xff]
      %v423 = vld [vmem:[%s190 + $0x6c0] sm:$0xff]
      %v424 = vld [vmem:[%s190 + $0x6c8] sm:$0xff]
      %v425 = vld [vmem:[%s190 + $0x6d0] sm:$0xff]
      %v426 = vld [vmem:[%s190 + $0x6d8] sm:$0xff]
      %v427 = vld [vmem:[%s190 + $0x6e0] sm:$0xff]
      %v428 = vld [vmem:[%s190 + $0x6e8] sm:$0xff]
      %v429 = vld [vmem:[%s190 + $0x6f0] sm:$0xff]
      %v430 = vld [vmem:[%s190 + $0x6f8] sm:$0xff]
      %v431 = vld [vmem:[%s190 + $0x700] sm:$0xff]
      %v432 = vld [vmem:[%s190 + $0x708] sm:$0xff]
      %v433 = vld [vmem:[%s190 + $0x710] sm:$0xff]
      %v434 = vld [vmem:[%s190 + $0x718] sm:$0xff]
      %v435 = vld [vmem:[%s190 + $0x720] sm:$0xff]
      %v436 = vld [vmem:[%s190 + $0x728] sm:$0xff]
      %v437 = vld [vmem:[%s190 + $0x730] sm:$0xff]
      %v438 = vld [vmem:[%s190 + $0x738] sm:$0xff]
      %v439 = vld [vmem:[%s190 + $0x740] sm:$0xff]
      %v440 = vld [vmem:[%s190 + $0x748] sm:$0xff]
      %v441 = vld [vmem:[%s190 + $0x750] sm:$0xff]
      %v442 = vld [vmem:[%s190 + $0x758] sm:$0xff]
      %v443 = vld [vmem:[%s190 + $0x760] sm:$0xff]
      %v444 = vld [vmem:[%s190 + $0x768] sm:$0xff]
      %v445 = vld [vmem:[%s190 + $0x770] sm:$0xff]
      %v446 = vld [vmem:[%s190 + $0x778] sm:$0xff]
      %v447 = vld [vmem:[%s190 + $0x780] sm:$0xff]
      %v448 = vld [vmem:[%s190 + $0x788] sm:$0xff]
      %v449 = vld [vmem:[%s190 + $0x790] sm:$0xff]
      %v450 = vld [vmem:[%s190 + $0x798] sm:$0xff]
      %v451 = vld [vmem:[%s190 + $0x7a0] sm:$0xff]
      %v452 = vld [vmem:[%s190 + $0x7a8] sm:$0xff]
      %v453 = vld [vmem:[%s190 + $0x7b0] sm:$0xff]
      %v454 = vld [vmem:[%s190 + $0x7b8] sm:$0xff]
      %v455 = vld [vmem:[%s190 + $0x7c0] sm:$0xff]
      %v456 = vld [vmem:[%s190 + $0x7c8] sm:$0xff]
      %v457 = vld [vmem:[%s190 + $0x7d0] sm:$0xff]
      %v458 = vld [vmem:[%s190 + $0x7d8] sm:$0xff]
      %v459 = vld [vmem:[%s190 + $0x7e0] sm:$0xff]
      %v460 = vld [vmem:[%s190 + $0x7e8] sm:$0xff]
      %v461 = vld [vmem:[%s190 + $0x7f0] sm:$0xff]
      %v462 = vld [vmem:[%s190 + $0x7f8] sm:$0xff]
      %v465 = vcombine.high %v205, %v205
      %v467 = vunpack.c.l.s4 1983009808
      %v468 = vunpack.c.0.s8 %v467
      %v469 = vlaneseq
      %v470 = vshrl.u32 %v469, 7
      %v471 = vsub.s32 %v468, %v470
      %v472 = vrot.slane %v205, %v471
      %v474 = vunpack.c.l.s4 1983009808
      %v475 = vunpack.c.0.s8 %v474
      %v476 = vlaneseq
      %v477 = vshrl.u32 %v476, 7
      %v478 = vsub.s32 %v475, %v477
      %v479 = vrot.slane %v465, %v478
      %v480 = vcombine.high %v472, %v472
      %v481 = vcombine.high %v479, %v479
      %v482 = vcombine.high %v206, %v206
      %v484 = vunpack.c.l.s4 1983009808
      %v485 = vunpack.c.0.s8 %v484
      %v486 = vlaneseq
      %v487 = vshrl.u32 %v486, 7
      %v488 = vsub.s32 %v485, %v487
      %v489 = vrot.slane %v206, %v488
      %v491 = vunpack.c.l.s4 1983009808
      %v492 = vunpack.c.0.s8 %v491
      %v493 = vlaneseq
      %v494 = vshrl.u32 %v493, 7
      %v495 = vsub.s32 %v492, %v494
      %v496 = vrot.slane %v482, %v495
      %v497 = vcombine.high %v489, %v489
      %v498 = vcombine.high %v496, %v496
      %v763 = vunpack.c.l.b16 %v207
      %v764 = vunpack.c.h.b16 %v207
      %v765 = vunpack.c.l.b16 %v208
      %v766 = vunpack.c.h.b16 %v208
      %v767 = vunpack.c.l.b16 %v209
      %v768 = vunpack.c.h.b16 %v209
      %v769 = vunpack.c.l.b16 %v210
      %v770 = vunpack.c.h.b16 %v210
      %v771 = vunpack.c.l.b16 %v211
      %v772 = vunpack.c.h.b16 %v211
      %v773 = vunpack.c.l.b16 %v212
      %v774 = vunpack.c.h.b16 %v212
      %v775 = vunpack.c.l.b16 %v213
      %v776 = vunpack.c.h.b16 %v213
      %v777 = vunpack.c.l.b16 %v214
      %v778 = vunpack.c.h.b16 %v214
      %v779 = vunpack.c.l.b16 %v215
      %v780 = vunpack.c.h.b16 %v215
      %v781 = vunpack.c.l.b16 %v216
      %v782 = vunpack.c.h.b16 %v216
      %v783 = vunpack.c.l.b16 %v217
      %v784 = vunpack.c.h.b16 %v217
      %v785 = vunpack.c.l.b16 %v218
      %v786 = vunpack.c.h.b16 %v218
      %v787 = vunpack.c.l.b16 %v219
      %v788 = vunpack.c.h.b16 %v219
      %v789 = vunpack.c.l.b16 %v220
      %v790 = vunpack.c.h.b16 %v220
      %v791 = vunpack.c.l.b16 %v221
      %v792 = vunpack.c.h.b16 %v221
      %v793 = vunpack.c.l.b16 %v222
      %v794 = vunpack.c.h.b16 %v222
      %v795 = vunpack.c.l.b16 %v223
      %v796 = vunpack.c.h.b16 %v223
      %v797 = vunpack.c.l.b16 %v224
      %v798 = vunpack.c.h.b16 %v224
      %v799 = vunpack.c.l.b16 %v225
      %v800 = vunpack.c.h.b16 %v225
      %v801 = vunpack.c.l.b16 %v226
      %v802 = vunpack.c.h.b16 %v226
      %v803 = vunpack.c.l.b16 %v227
      %v804 = vunpack.c.h.b16 %v227
      %v805 = vunpack.c.l.b16 %v228
      %v806 = vunpack.c.h.b16 %v228
      %v807 = vunpack.c.l.b16 %v229
      %v808 = vunpack.c.h.b16 %v229
      %v809 = vunpack.c.l.b16 %v230
      %v810 = vunpack.c.h.b16 %v230
      %v811 = vunpack.c.l.b16 %v231
      %v812 = vunpack.c.h.b16 %v231
      %v813 = vunpack.c.l.b16 %v232
      %v814 = vunpack.c.h.b16 %v232
      %v815 = vunpack.c.l.b16 %v233
      %v816 = vunpack.c.h.b16 %v233
      %v817 = vunpack.c.l.b16 %v234
      %v818 = vunpack.c.h.b16 %v234
      %v819 = vunpack.c.l.b16 %v235
      %v820 = vunpack.c.h.b16 %v235
      %v821 = vunpack.c.l.b16 %v236
      %v822 = vunpack.c.h.b16 %v236
      %v823 = vunpack.c.l.b16 %v237
      %v824 = vunpack.c.h.b16 %v237
      %v825 = vunpack.c.l.b16 %v238
      %v826 = vunpack.c.h.b16 %v238
      %v827 = vunpack.c.l.b16 %v239
      %v828 = vunpack.c.h.b16 %v239
      %v829 = vunpack.c.l.b16 %v240
      %v830 = vunpack.c.h.b16 %v240
      %v831 = vunpack.c.l.b16 %v241
      %v832 = vunpack.c.h.b16 %v241
      %v833 = vunpack.c.l.b16 %v242
      %v834 = vunpack.c.h.b16 %v242
      %v835 = vunpack.c.l.b16 %v243
      %v836 = vunpack.c.h.b16 %v243
      %v837 = vunpack.c.l.b16 %v244
      %v838 = vunpack.c.h.b16 %v244
      %v839 = vunpack.c.l.b16 %v245
      %v840 = vunpack.c.h.b16 %v245
      %v841 = vunpack.c.l.b16 %v246
      %v842 = vunpack.c.h.b16 %v246
      %v843 = vunpack.c.l.b16 %v247
      %v844 = vunpack.c.h.b16 %v247
      %v845 = vunpack.c.l.b16 %v248
      %v846 = vunpack.c.h.b16 %v248
      %v847 = vunpack.c.l.b16 %v249
      %v848 = vunpack.c.h.b16 %v249
      %v849 = vunpack.c.l.b16 %v250
      %v850 = vunpack.c.h.b16 %v250
      %v851 = vunpack.c.l.b16 %v251
      %v852 = vunpack.c.h.b16 %v251
      %v853 = vunpack.c.l.b16 %v252
      %v854 = vunpack.c.h.b16 %v252
      %v855 = vunpack.c.l.b16 %v253
      %v856 = vunpack.c.h.b16 %v253
      %v857 = vunpack.c.l.b16 %v254
      %v858 = vunpack.c.h.b16 %v254
      %v859 = vunpack.c.l.b16 %v255
      %v860 = vunpack.c.h.b16 %v255
      %v861 = vunpack.c.l.b16 %v256
      %v862 = vunpack.c.h.b16 %v256
      %v863 = vunpack.c.l.b16 %v257
      %v864 = vunpack.c.h.b16 %v257
      %v865 = vunpack.c.l.b16 %v258
      %v866 = vunpack.c.h.b16 %v258
      %v867 = vunpack.c.l.b16 %v259
      %v868 = vunpack.c.h.b16 %v259
      %v869 = vunpack.c.l.b16 %v260
      %v870 = vunpack.c.h.b16 %v260
      %v871 = vunpack.c.l.b16 %v261
      %v872 = vunpack.c.h.b16 %v261
      %v873 = vunpack.c.l.b16 %v262
      %v874 = vunpack.c.h.b16 %v262
      %v875 = vunpack.c.l.b16 %v263
      %v876 = vunpack.c.h.b16 %v263
      %v877 = vunpack.c.l.b16 %v264
      %v878 = vunpack.c.h.b16 %v264
      %v879 = vunpack.c.l.b16 %v265
      %v880 = vunpack.c.h.b16 %v265
      %v881 = vunpack.c.l.b16 %v266
      %v882 = vunpack.c.h.b16 %v266
      %v883 = vunpack.c.l.b16 %v267
      %v884 = vunpack.c.h.b16 %v267
      %v885 = vunpack.c.l.b16 %v268
      %v886 = vunpack.c.h.b16 %v268
      %v887 = vunpack.c.l.b16 %v269
      %v888 = vunpack.c.h.b16 %v269
      %v889 = vunpack.c.l.b16 %v270
      %v890 = vunpack.c.h.b16 %v270
      %v891 = vunpack.c.l.b16 %v271
      %v892 = vunpack.c.h.b16 %v271
      %v893 = vunpack.c.l.b16 %v272
      %v894 = vunpack.c.h.b16 %v272
      %v895 = vunpack.c.l.b16 %v273
      %v896 = vunpack.c.h.b16 %v273
      %v897 = vunpack.c.l.b16 %v274
      %v898 = vunpack.c.h.b16 %v274
      %v899 = vunpack.c.l.b16 %v275
      %v900 = vunpack.c.h.b16 %v275
      %v901 = vunpack.c.l.b16 %v276
      %v902 = vunpack.c.h.b16 %v276
      %v903 = vunpack.c.l.b16 %v277
      %v904 = vunpack.c.h.b16 %v277
      %v905 = vunpack.c.l.b16 %v278
      %v906 = vunpack.c.h.b16 %v278
      %v907 = vunpack.c.l.b16 %v279
      %v908 = vunpack.c.h.b16 %v279
      %v909 = vunpack.c.l.b16 %v280
      %v910 = vunpack.c.h.b16 %v280
      %v911 = vunpack.c.l.b16 %v281
      %v912 = vunpack.c.h.b16 %v281
      %v913 = vunpack.c.l.b16 %v282
      %v914 = vunpack.c.h.b16 %v282
      %v915 = vunpack.c.l.b16 %v283
      %v916 = vunpack.c.h.b16 %v283
      %v917 = vunpack.c.l.b16 %v284
      %v918 = vunpack.c.h.b16 %v284
      %v919 = vunpack.c.l.b16 %v285
      %v920 = vunpack.c.h.b16 %v285
      %v921 = vunpack.c.l.b16 %v286
      %v922 = vunpack.c.h.b16 %v286
      %v923 = vunpack.c.l.b16 %v287
      %v924 = vunpack.c.h.b16 %v287
      %v925 = vunpack.c.l.b16 %v288
      %v926 = vunpack.c.h.b16 %v288
      %v927 = vunpack.c.l.b16 %v289
      %v928 = vunpack.c.h.b16 %v289
      %v929 = vunpack.c.l.b16 %v290
      %v930 = vunpack.c.h.b16 %v290
      %v931 = vunpack.c.l.b16 %v291
      %v932 = vunpack.c.h.b16 %v291
      %v933 = vunpack.c.l.b16 %v292
      %v934 = vunpack.c.h.b16 %v292
      %v935 = vunpack.c.l.b16 %v293
      %v936 = vunpack.c.h.b16 %v293
      %v937 = vunpack.c.l.b16 %v294
      %v938 = vunpack.c.h.b16 %v294
      %v939 = vunpack.c.l.b16 %v295
      %v940 = vunpack.c.h.b16 %v295
      %v941 = vunpack.c.l.b16 %v296
      %v942 = vunpack.c.h.b16 %v296
      %v943 = vunpack.c.l.b16 %v297
      %v944 = vunpack.c.h.b16 %v297
      %v945 = vunpack.c.l.b16 %v298
      %v946 = vunpack.c.h.b16 %v298
      %v947 = vunpack.c.l.b16 %v299
      %v948 = vunpack.c.h.b16 %v299
      %v949 = vunpack.c.l.b16 %v300
      %v950 = vunpack.c.h.b16 %v300
      %v951 = vunpack.c.l.b16 %v301
      %v952 = vunpack.c.h.b16 %v301
      %v953 = vunpack.c.l.b16 %v302
      %v954 = vunpack.c.h.b16 %v302
      %v955 = vunpack.c.l.b16 %v303
      %v956 = vunpack.c.h.b16 %v303
      %v957 = vunpack.c.l.b16 %v304
      %v958 = vunpack.c.h.b16 %v304
      %v959 = vunpack.c.l.b16 %v305
      %v960 = vunpack.c.h.b16 %v305
      %v961 = vunpack.c.l.b16 %v306
      %v962 = vunpack.c.h.b16 %v306
      %v963 = vunpack.c.l.b16 %v307
      %v964 = vunpack.c.h.b16 %v307
      %v965 = vunpack.c.l.b16 %v308
      %v966 = vunpack.c.h.b16 %v308
      %v967 = vunpack.c.l.b16 %v309
      %v968 = vunpack.c.h.b16 %v309
      %v969 = vunpack.c.l.b16 %v310
      %v970 = vunpack.c.h.b16 %v310
      %v971 = vunpack.c.l.b16 %v311
      %v972 = vunpack.c.h.b16 %v311
      %v973 = vunpack.c.l.b16 %v312
      %v974 = vunpack.c.h.b16 %v312
      %v975 = vunpack.c.l.b16 %v313
      %v976 = vunpack.c.h.b16 %v313
      %v977 = vunpack.c.l.b16 %v314
      %v978 = vunpack.c.h.b16 %v314
      %v979 = vunpack.c.l.b16 %v315
      %v980 = vunpack.c.h.b16 %v315
      %v981 = vunpack.c.l.b16 %v316
      %v982 = vunpack.c.h.b16 %v316
      %v983 = vunpack.c.l.b16 %v317
      %v984 = vunpack.c.h.b16 %v317
      %v985 = vunpack.c.l.b16 %v318
      %v986 = vunpack.c.h.b16 %v318
      %v987 = vunpack.c.l.b16 %v319
      %v988 = vunpack.c.h.b16 %v319
      %v989 = vunpack.c.l.b16 %v320
      %v990 = vunpack.c.h.b16 %v320
      %v991 = vunpack.c.l.b16 %v321
      %v992 = vunpack.c.h.b16 %v321
      %v993 = vunpack.c.l.b16 %v322
      %v994 = vunpack.c.h.b16 %v322
      %v995 = vunpack.c.l.b16 %v323
      %v996 = vunpack.c.h.b16 %v323
      %v997 = vunpack.c.l.b16 %v324
      %v998 = vunpack.c.h.b16 %v324
      %v999 = vunpack.c.l.b16 %v325
      %v1000 = vunpack.c.h.b16 %v325
      %v1001 = vunpack.c.l.b16 %v326
      %v1002 = vunpack.c.h.b16 %v326
      %v1003 = vunpack.c.l.b16 %v327
      %v1004 = vunpack.c.h.b16 %v327
      %v1005 = vunpack.c.l.b16 %v328
      %v1006 = vunpack.c.h.b16 %v328
      %v1007 = vunpack.c.l.b16 %v329
      %v1008 = vunpack.c.h.b16 %v329
      %v1009 = vunpack.c.l.b16 %v330
      %v1010 = vunpack.c.h.b16 %v330
      %v1011 = vunpack.c.l.b16 %v331
      %v1012 = vunpack.c.h.b16 %v331
      %v1013 = vunpack.c.l.b16 %v332
      %v1014 = vunpack.c.h.b16 %v332
      %v1015 = vunpack.c.l.b16 %v333
      %v1016 = vunpack.c.h.b16 %v333
      %v1017 = vunpack.c.l.b16 %v334
      %v1018 = vunpack.c.h.b16 %v334
      %v1019 = vunpack.c.l.b16 %v335
      %v1020 = vunpack.c.h.b16 %v335
      %v1021 = vunpack.c.l.b16 %v336
      %v1022 = vunpack.c.h.b16 %v336
      %v1023 = vunpack.c.l.b16 %v337
      %v1024 = vunpack.c.h.b16 %v337
      %v1025 = vunpack.c.l.b16 %v338
      %v1026 = vunpack.c.h.b16 %v338
      %v1027 = vunpack.c.l.b16 %v339
      %v1028 = vunpack.c.h.b16 %v339
      %v1029 = vunpack.c.l.b16 %v340
      %v1030 = vunpack.c.h.b16 %v340
      %v1031 = vunpack.c.l.b16 %v341
      %v1032 = vunpack.c.h.b16 %v341
      %v1033 = vunpack.c.l.b16 %v342
      %v1034 = vunpack.c.h.b16 %v342
      %v1035 = vunpack.c.l.b16 %v343
      %v1036 = vunpack.c.h.b16 %v343
      %v1037 = vunpack.c.l.b16 %v344
      %v1038 = vunpack.c.h.b16 %v344
      %v1039 = vunpack.c.l.b16 %v345
      %v1040 = vunpack.c.h.b16 %v345
      %v1041 = vunpack.c.l.b16 %v346
      %v1042 = vunpack.c.h.b16 %v346
      %v1043 = vunpack.c.l.b16 %v347
      %v1044 = vunpack.c.h.b16 %v347
      %v1045 = vunpack.c.l.b16 %v348
      %v1046 = vunpack.c.h.b16 %v348
      %v1047 = vunpack.c.l.b16 %v349
      %v1048 = vunpack.c.h.b16 %v349
      %v1049 = vunpack.c.l.b16 %v350
      %v1050 = vunpack.c.h.b16 %v350
      %v1051 = vunpack.c.l.b16 %v351
      %v1052 = vunpack.c.h.b16 %v351
      %v1053 = vunpack.c.l.b16 %v352
      %v1054 = vunpack.c.h.b16 %v352
      %v1055 = vunpack.c.l.b16 %v353
      %v1056 = vunpack.c.h.b16 %v353
      %v1057 = vunpack.c.l.b16 %v354
      %v1058 = vunpack.c.h.b16 %v354
      %v1059 = vunpack.c.l.b16 %v355
      %v1060 = vunpack.c.h.b16 %v355
      %v1061 = vunpack.c.l.b16 %v356
      %v1062 = vunpack.c.h.b16 %v356
      %v1063 = vunpack.c.l.b16 %v357
      %v1064 = vunpack.c.h.b16 %v357
      %v1065 = vunpack.c.l.b16 %v358
      %v1066 = vunpack.c.h.b16 %v358
      %v1067 = vunpack.c.l.b16 %v359
      %v1068 = vunpack.c.h.b16 %v359
      %v1069 = vunpack.c.l.b16 %v360
      %v1070 = vunpack.c.h.b16 %v360
      %v1071 = vunpack.c.l.b16 %v361
      %v1072 = vunpack.c.h.b16 %v361
      %v1073 = vunpack.c.l.b16 %v362
      %v1074 = vunpack.c.h.b16 %v362
      %v1075 = vunpack.c.l.b16 %v363
      %v1076 = vunpack.c.h.b16 %v363
      %v1077 = vunpack.c.l.b16 %v364
      %v1078 = vunpack.c.h.b16 %v364
      %v1079 = vunpack.c.l.b16 %v365
      %v1080 = vunpack.c.h.b16 %v365
      %v1081 = vunpack.c.l.b16 %v366
      %v1082 = vunpack.c.h.b16 %v366
      %v1083 = vunpack.c.l.b16 %v367
      %v1084 = vunpack.c.h.b16 %v367
      %v1085 = vunpack.c.l.b16 %v368
      %v1086 = vunpack.c.h.b16 %v368
      %v1087 = vunpack.c.l.b16 %v369
      %v1088 = vunpack.c.h.b16 %v369
      %v1089 = vunpack.c.l.b16 %v370
      %v1090 = vunpack.c.h.b16 %v370
      %v1091 = vunpack.c.l.b16 %v371
      %v1092 = vunpack.c.h.b16 %v371
      %v1093 = vunpack.c.l.b16 %v372
      %v1094 = vunpack.c.h.b16 %v372
      %v1095 = vunpack.c.l.b16 %v373
      %v1096 = vunpack.c.h.b16 %v373
      %v1097 = vunpack.c.l.b16 %v374
      %v1098 = vunpack.c.h.b16 %v374
      %v1099 = vunpack.c.l.b16 %v375
      %v1100 = vunpack.c.h.b16 %v375
      %v1101 = vunpack.c.l.b16 %v376
      %v1102 = vunpack.c.h.b16 %v376
      %v1103 = vunpack.c.l.b16 %v377
      %v1104 = vunpack.c.h.b16 %v377
      %v1105 = vunpack.c.l.b16 %v378
      %v1106 = vunpack.c.h.b16 %v378
      %v1107 = vunpack.c.l.b16 %v379
      %v1108 = vunpack.c.h.b16 %v379
      %v1109 = vunpack.c.l.b16 %v380
      %v1110 = vunpack.c.h.b16 %v380
      %v1111 = vunpack.c.l.b16 %v381
      %v1112 = vunpack.c.h.b16 %v381
      %v1113 = vunpack.c.l.b16 %v382
      %v1114 = vunpack.c.h.b16 %v382
      %v1115 = vunpack.c.l.b16 %v383
      %v1116 = vunpack.c.h.b16 %v383
      %v1117 = vunpack.c.l.b16 %v384
      %v1118 = vunpack.c.h.b16 %v384
      %v1119 = vunpack.c.l.b16 %v385
      %v1120 = vunpack.c.h.b16 %v385
      %v1121 = vunpack.c.l.b16 %v386
      %v1122 = vunpack.c.h.b16 %v386
      %v1123 = vunpack.c.l.b16 %v387
      %v1124 = vunpack.c.h.b16 %v387
      %v1125 = vunpack.c.l.b16 %v388
      %v1126 = vunpack.c.h.b16 %v388
      %v1127 = vunpack.c.l.b16 %v389
      %v1128 = vunpack.c.h.b16 %v389
      %v1129 = vunpack.c.l.b16 %v390
      %v1130 = vunpack.c.h.b16 %v390
      %v1131 = vunpack.c.l.b16 %v391
      %v1132 = vunpack.c.h.b16 %v391
      %v1133 = vunpack.c.l.b16 %v392
      %v1134 = vunpack.c.h.b16 %v392
      %v1135 = vunpack.c.l.b16 %v393
      %v1136 = vunpack.c.h.b16 %v393
      %v1137 = vunpack.c.l.b16 %v394
      %v1138 = vunpack.c.h.b16 %v394
      %v1139 = vunpack.c.l.b16 %v395
      %v1140 = vunpack.c.h.b16 %v395
      %v1141 = vunpack.c.l.b16 %v396
      %v1142 = vunpack.c.h.b16 %v396
      %v1143 = vunpack.c.l.b16 %v397
      %v1144 = vunpack.c.h.b16 %v397
      %v1145 = vunpack.c.l.b16 %v398
      %v1146 = vunpack.c.h.b16 %v398
      %v1147 = vunpack.c.l.b16 %v399
      %v1148 = vunpack.c.h.b16 %v399
      %v1149 = vunpack.c.l.b16 %v400
      %v1150 = vunpack.c.h.b16 %v400
      %v1151 = vunpack.c.l.b16 %v401
      %v1152 = vunpack.c.h.b16 %v401
      %v1153 = vunpack.c.l.b16 %v402
      %v1154 = vunpack.c.h.b16 %v402
      %v1155 = vunpack.c.l.b16 %v403
      %v1156 = vunpack.c.h.b16 %v403
      %v1157 = vunpack.c.l.b16 %v404
      %v1158 = vunpack.c.h.b16 %v404
      %v1159 = vunpack.c.l.b16 %v405
      %v1160 = vunpack.c.h.b16 %v405
      %v1161 = vunpack.c.l.b16 %v406
      %v1162 = vunpack.c.h.b16 %v406
      %v1163 = vunpack.c.l.b16 %v407
      %v1164 = vunpack.c.h.b16 %v407
      %v1165 = vunpack.c.l.b16 %v408
      %v1166 = vunpack.c.h.b16 %v408
      %v1167 = vunpack.c.l.b16 %v409
      %v1168 = vunpack.c.h.b16 %v409
      %v1169 = vunpack.c.l.b16 %v410
      %v1170 = vunpack.c.h.b16 %v410
      %v1171 = vunpack.c.l.b16 %v411
      %v1172 = vunpack.c.h.b16 %v411
      %v1173 = vunpack.c.l.b16 %v412
      %v1174 = vunpack.c.h.b16 %v412
      %v1175 = vunpack.c.l.b16 %v413
      %v1176 = vunpack.c.h.b16 %v413
      %v1177 = vunpack.c.l.b16 %v414
      %v1178 = vunpack.c.h.b16 %v414
      %v1179 = vunpack.c.l.b16 %v415
      %v1180 = vunpack.c.h.b16 %v415
      %v1181 = vunpack.c.l.b16 %v416
      %v1182 = vunpack.c.h.b16 %v416
      %v1183 = vunpack.c.l.b16 %v417
      %v1184 = vunpack.c.h.b16 %v417
      %v1185 = vunpack.c.l.b16 %v418
      %v1186 = vunpack.c.h.b16 %v418
      %v1187 = vunpack.c.l.b16 %v419
      %v1188 = vunpack.c.h.b16 %v419
      %v1189 = vunpack.c.l.b16 %v420
      %v1190 = vunpack.c.h.b16 %v420
      %v1191 = vunpack.c.l.b16 %v421
      %v1192 = vunpack.c.h.b16 %v421
      %v1193 = vunpack.c.l.b16 %v422
      %v1194 = vunpack.c.h.b16 %v422
      %v1195 = vunpack.c.l.b16 %v423
      %v1196 = vunpack.c.h.b16 %v423
      %v1197 = vunpack.c.l.b16 %v424
      %v1198 = vunpack.c.h.b16 %v424
      %v1199 = vunpack.c.l.b16 %v425
      %v1200 = vunpack.c.h.b16 %v425
      %v1201 = vunpack.c.l.b16 %v426
      %v1202 = vunpack.c.h.b16 %v426
      %v1203 = vunpack.c.l.b16 %v427
      %v1204 = vunpack.c.h.b16 %v427
      %v1205 = vunpack.c.l.b16 %v428
      %v1206 = vunpack.c.h.b16 %v428
      %v1207 = vunpack.c.l.b16 %v429
      %v1208 = vunpack.c.h.b16 %v429
      %v1209 = vunpack.c.l.b16 %v430
      %v1210 = vunpack.c.h.b16 %v430
      %v1211 = vunpack.c.l.b16 %v431
      %v1212 = vunpack.c.h.b16 %v431
      %v1213 = vunpack.c.l.b16 %v432
      %v1214 = vunpack.c.h.b16 %v432
      %v1215 = vunpack.c.l.b16 %v433
      %v1216 = vunpack.c.h.b16 %v433
      %v1217 = vunpack.c.l.b16 %v434
      %v1218 = vunpack.c.h.b16 %v434
      %v1219 = vunpack.c.l.b16 %v435
      %v1220 = vunpack.c.h.b16 %v435
      %v1221 = vunpack.c.l.b16 %v436
      %v1222 = vunpack.c.h.b16 %v436
      %v1223 = vunpack.c.l.b16 %v437
      %v1224 = vunpack.c.h.b16 %v437
      %v1225 = vunpack.c.l.b16 %v438
      %v1226 = vunpack.c.h.b16 %v438
      %v1227 = vunpack.c.l.b16 %v439
      %v1228 = vunpack.c.h.b16 %v439
      %v1229 = vunpack.c.l.b16 %v440
      %v1230 = vunpack.c.h.b16 %v440
      %v1231 = vunpack.c.l.b16 %v441
      %v1232 = vunpack.c.h.b16 %v441
      %v1233 = vunpack.c.l.b16 %v442
      %v1234 = vunpack.c.h.b16 %v442
      %v1235 = vunpack.c.l.b16 %v443
      %v1236 = vunpack.c.h.b16 %v443
      %v1237 = vunpack.c.l.b16 %v444
      %v1238 = vunpack.c.h.b16 %v444
      %v1239 = vunpack.c.l.b16 %v445
      %v1240 = vunpack.c.h.b16 %v445
      %v1241 = vunpack.c.l.b16 %v446
      %v1242 = vunpack.c.h.b16 %v446
      %v1243 = vunpack.c.l.b16 %v447
      %v1244 = vunpack.c.h.b16 %v447
      %v1245 = vunpack.c.l.b16 %v448
      %v1246 = vunpack.c.h.b16 %v448
      %v1247 = vunpack.c.l.b16 %v449
      %v1248 = vunpack.c.h.b16 %v449
      %v1249 = vunpack.c.l.b16 %v450
      %v1250 = vunpack.c.h.b16 %v450
      %v1251 = vunpack.c.l.b16 %v451
      %v1252 = vunpack.c.h.b16 %v451
      %v1253 = vunpack.c.l.b16 %v452
      %v1254 = vunpack.c.h.b16 %v452
      %v1255 = vunpack.c.l.b16 %v453
      %v1256 = vunpack.c.h.b16 %v453
      %v1257 = vunpack.c.l.b16 %v454
      %v1258 = vunpack.c.h.b16 %v454
      %v1259 = vunpack.c.l.b16 %v455
      %v1260 = vunpack.c.h.b16 %v455
      %v1261 = vunpack.c.l.b16 %v456
      %v1262 = vunpack.c.h.b16 %v456
      %v1263 = vunpack.c.l.b16 %v457
      %v1264 = vunpack.c.h.b16 %v457
      %v1265 = vunpack.c.l.b16 %v458
      %v1266 = vunpack.c.h.b16 %v458
      %v1267 = vunpack.c.l.b16 %v459
      %v1268 = vunpack.c.h.b16 %v459
      %v1269 = vunpack.c.l.b16 %v460
      %v1270 = vunpack.c.h.b16 %v460
      %v1271 = vunpack.c.l.b16 %v461
      %v1272 = vunpack.c.h.b16 %v461
      %v1273 = vunpack.c.l.b16 %v462
      %v1274 = vunpack.c.h.b16 %v462
      %v1275 = vpack.c.b16 %v767, %v763
      %v1276 = vpack.c.b16 %v768, %v764
      %v1277 = vpack.c.b16 %v769, %v765
      %v1278 = vpack.c.b16 %v770, %v766
      %v1279 = vpack.c.b16 %v775, %v771
      %v1280 = vpack.c.b16 %v776, %v772
      %v1281 = vpack.c.b16 %v777, %v773
      %v1282 = vpack.c.b16 %v778, %v774
      %v1283 = vpack.c.b16 %v783, %v779
      %v1284 = vpack.c.b16 %v784, %v780
      %v1285 = vpack.c.b16 %v785, %v781
      %v1286 = vpack.c.b16 %v786, %v782
      %v1287 = vpack.c.b16 %v791, %v787
      %v1288 = vpack.c.b16 %v792, %v788
      %v1289 = vpack.c.b16 %v793, %v789
      %v1290 = vpack.c.b16 %v794, %v790
      %v1291 = vpack.c.b16 %v799, %v795
      %v1292 = vpack.c.b16 %v800, %v796
      %v1293 = vpack.c.b16 %v801, %v797
      %v1294 = vpack.c.b16 %v802, %v798
      %v1295 = vpack.c.b16 %v807, %v803
      %v1296 = vpack.c.b16 %v808, %v804
      %v1297 = vpack.c.b16 %v809, %v805
      %v1298 = vpack.c.b16 %v810, %v806
      %v1299 = vpack.c.b16 %v815, %v811
      %v1300 = vpack.c.b16 %v816, %v812
      %v1301 = vpack.c.b16 %v817, %v813
      %v1302 = vpack.c.b16 %v818, %v814
      %v1303 = vpack.c.b16 %v823, %v819
      %v1304 = vpack.c.b16 %v824, %v820
      %v1305 = vpack.c.b16 %v825, %v821
      %v1306 = vpack.c.b16 %v826, %v822
      %v1307 = vpack.c.b16 %v831, %v827
      %v1308 = vpack.c.b16 %v832, %v828
      %v1309 = vpack.c.b16 %v833, %v829
      %v1310 = vpack.c.b16 %v834, %v830
      %v1311 = vpack.c.b16 %v839, %v835
      %v1312 = vpack.c.b16 %v840, %v836
      %v1313 = vpack.c.b16 %v841, %v837
      %v1314 = vpack.c.b16 %v842, %v838
      %v1315 = vpack.c.b16 %v847, %v843
      %v1316 = vpack.c.b16 %v848, %v844
      %v1317 = vpack.c.b16 %v849, %v845
      %v1318 = vpack.c.b16 %v850, %v846
      %v1319 = vpack.c.b16 %v855, %v851
      %v1320 = vpack.c.b16 %v856, %v852
      %v1321 = vpack.c.b16 %v857, %v853
      %v1322 = vpack.c.b16 %v858, %v854
      %v1323 = vpack.c.b16 %v863, %v859
      %v1324 = vpack.c.b16 %v864, %v860
      %v1325 = vpack.c.b16 %v865, %v861
      %v1326 = vpack.c.b16 %v866, %v862
      %v1327 = vpack.c.b16 %v871, %v867
      %v1328 = vpack.c.b16 %v872, %v868
      %v1329 = vpack.c.b16 %v873, %v869
      %v1330 = vpack.c.b16 %v874, %v870
      %v1331 = vpack.c.b16 %v879, %v875
      %v1332 = vpack.c.b16 %v880, %v876
      %v1333 = vpack.c.b16 %v881, %v877
      %v1334 = vpack.c.b16 %v882, %v878
      %v1335 = vpack.c.b16 %v887, %v883
      %v1336 = vpack.c.b16 %v888, %v884
      %v1337 = vpack.c.b16 %v889, %v885
      %v1338 = vpack.c.b16 %v890, %v886
      %v1339 = vpack.c.b16 %v895, %v891
      %v1340 = vpack.c.b16 %v896, %v892
      %v1341 = vpack.c.b16 %v897, %v893
      %v1342 = vpack.c.b16 %v898, %v894
      %v1343 = vpack.c.b16 %v903, %v899
      %v1344 = vpack.c.b16 %v904, %v900
      %v1345 = vpack.c.b16 %v905, %v901
      %v1346 = vpack.c.b16 %v906, %v902
      %v1347 = vpack.c.b16 %v911, %v907
      %v1348 = vpack.c.b16 %v912, %v908
      %v1349 = vpack.c.b16 %v913, %v909
      %v1350 = vpack.c.b16 %v914, %v910
      %v1351 = vpack.c.b16 %v919, %v915
      %v1352 = vpack.c.b16 %v920, %v916
      %v1353 = vpack.c.b16 %v921, %v917
      %v1354 = vpack.c.b16 %v922, %v918
      %v1355 = vpack.c.b16 %v927, %v923
      %v1356 = vpack.c.b16 %v928, %v924
      %v1357 = vpack.c.b16 %v929, %v925
      %v1358 = vpack.c.b16 %v930, %v926
      %v1359 = vpack.c.b16 %v935, %v931
      %v1360 = vpack.c.b16 %v936, %v932
      %v1361 = vpack.c.b16 %v937, %v933
      %v1362 = vpack.c.b16 %v938, %v934
      %v1363 = vpack.c.b16 %v943, %v939
      %v1364 = vpack.c.b16 %v944, %v940
      %v1365 = vpack.c.b16 %v945, %v941
      %v1366 = vpack.c.b16 %v946, %v942
      %v1367 = vpack.c.b16 %v951, %v947
      %v1368 = vpack.c.b16 %v952, %v948
      %v1369 = vpack.c.b16 %v953, %v949
      %v1370 = vpack.c.b16 %v954, %v950
      %v1371 = vpack.c.b16 %v959, %v955
      %v1372 = vpack.c.b16 %v960, %v956
      %v1373 = vpack.c.b16 %v961, %v957
      %v1374 = vpack.c.b16 %v962, %v958
      %v1375 = vpack.c.b16 %v967, %v963
      %v1376 = vpack.c.b16 %v968, %v964
      %v1377 = vpack.c.b16 %v969, %v965
      %v1378 = vpack.c.b16 %v970, %v966
      %v1379 = vpack.c.b16 %v975, %v971
      %v1380 = vpack.c.b16 %v976, %v972
      %v1381 = vpack.c.b16 %v977, %v973
      %v1382 = vpack.c.b16 %v978, %v974
      %v1383 = vpack.c.b16 %v983, %v979
      %v1384 = vpack.c.b16 %v984, %v980
      %v1385 = vpack.c.b16 %v985, %v981
      %v1386 = vpack.c.b16 %v986, %v982
      %v1387 = vpack.c.b16 %v991, %v987
      %v1388 = vpack.c.b16 %v992, %v988
      %v1389 = vpack.c.b16 %v993, %v989
      %v1390 = vpack.c.b16 %v994, %v990
      %v1391 = vpack.c.b16 %v999, %v995
      %v1392 = vpack.c.b16 %v1000, %v996
      %v1393 = vpack.c.b16 %v1001, %v997
      %v1394 = vpack.c.b16 %v1002, %v998
      %v1395 = vpack.c.b16 %v1007, %v1003
      %v1396 = vpack.c.b16 %v1008, %v1004
      %v1397 = vpack.c.b16 %v1009, %v1005
      %v1398 = vpack.c.b16 %v1010, %v1006
      %v1399 = vpack.c.b16 %v1015, %v1011
      %v1400 = vpack.c.b16 %v1016, %v1012
      %v1401 = vpack.c.b16 %v1017, %v1013
      %v1402 = vpack.c.b16 %v1018, %v1014
      %v1403 = vpack.c.b16 %v1023, %v1019
      %v1404 = vpack.c.b16 %v1024, %v1020
      %v1405 = vpack.c.b16 %v1025, %v1021
      %v1406 = vpack.c.b16 %v1026, %v1022
      %v1407 = vpack.c.b16 %v1031, %v1027
      %v1408 = vpack.c.b16 %v1032, %v1028
      %v1409 = vpack.c.b16 %v1033, %v1029
      %v1410 = vpack.c.b16 %v1034, %v1030
      %v1411 = vpack.c.b16 %v1039, %v1035
      %v1412 = vpack.c.b16 %v1040, %v1036
      %v1413 = vpack.c.b16 %v1041, %v1037
      %v1414 = vpack.c.b16 %v1042, %v1038
      %v1415 = vpack.c.b16 %v1047, %v1043
      %v1416 = vpack.c.b16 %v1048, %v1044
      %v1417 = vpack.c.b16 %v1049, %v1045
      %v1418 = vpack.c.b16 %v1050, %v1046
      %v1419 = vpack.c.b16 %v1055, %v1051
      %v1420 = vpack.c.b16 %v1056, %v1052
      %v1421 = vpack.c.b16 %v1057, %v1053
      %v1422 = vpack.c.b16 %v1058, %v1054
      %v1423 = vpack.c.b16 %v1063, %v1059
      %v1424 = vpack.c.b16 %v1064, %v1060
      %v1425 = vpack.c.b16 %v1065, %v1061
      %v1426 = vpack.c.b16 %v1066, %v1062
      %v1427 = vpack.c.b16 %v1071, %v1067
      %v1428 = vpack.c.b16 %v1072, %v1068
      %v1429 = vpack.c.b16 %v1073, %v1069
      %v1430 = vpack.c.b16 %v1074, %v1070
      %v1431 = vpack.c.b16 %v1079, %v1075
      %v1432 = vpack.c.b16 %v1080, %v1076
      %v1433 = vpack.c.b16 %v1081, %v1077
      %v1434 = vpack.c.b16 %v1082, %v1078
      %v1435 = vpack.c.b16 %v1087, %v1083
      %v1436 = vpack.c.b16 %v1088, %v1084
      %v1437 = vpack.c.b16 %v1089, %v1085
      %v1438 = vpack.c.b16 %v1090, %v1086
      %v1439 = vpack.c.b16 %v1095, %v1091
      %v1440 = vpack.c.b16 %v1096, %v1092
      %v1441 = vpack.c.b16 %v1097, %v1093
      %v1442 = vpack.c.b16 %v1098, %v1094
      %v1443 = vpack.c.b16 %v1103, %v1099
      %v1444 = vpack.c.b16 %v1104, %v1100
      %v1445 = vpack.c.b16 %v1105, %v1101
      %v1446 = vpack.c.b16 %v1106, %v1102
      %v1447 = vpack.c.b16 %v1111, %v1107
      %v1448 = vpack.c.b16 %v1112, %v1108
      %v1449 = vpack.c.b16 %v1113, %v1109
      %v1450 = vpack.c.b16 %v1114, %v1110
      %v1451 = vpack.c.b16 %v1119, %v1115
      %v1452 = vpack.c.b16 %v1120, %v1116
      %v1453 = vpack.c.b16 %v1121, %v1117
      %v1454 = vpack.c.b16 %v1122, %v1118
      %v1455 = vpack.c.b16 %v1127, %v1123
      %v1456 = vpack.c.b16 %v1128, %v1124
      %v1457 = vpack.c.b16 %v1129, %v1125
      %v1458 = vpack.c.b16 %v1130, %v1126
      %v1459 = vpack.c.b16 %v1135, %v1131
      %v1460 = vpack.c.b16 %v1136, %v1132
      %v1461 = vpack.c.b16 %v1137, %v1133
      %v1462 = vpack.c.b16 %v1138, %v1134
      %v1463 = vpack.c.b16 %v1143, %v1139
      %v1464 = vpack.c.b16 %v1144, %v1140
      %v1465 = vpack.c.b16 %v1145, %v1141
      %v1466 = vpack.c.b16 %v1146, %v1142
      %v1467 = vpack.c.b16 %v1151, %v1147
      %v1468 = vpack.c.b16 %v1152, %v1148
      %v1469 = vpack.c.b16 %v1153, %v1149
      %v1470 = vpack.c.b16 %v1154, %v1150
      %v1471 = vpack.c.b16 %v1159, %v1155
      %v1472 = vpack.c.b16 %v1160, %v1156
      %v1473 = vpack.c.b16 %v1161, %v1157
      %v1474 = vpack.c.b16 %v1162, %v1158
      %v1475 = vpack.c.b16 %v1167, %v1163
      %v1476 = vpack.c.b16 %v1168, %v1164
      %v1477 = vpack.c.b16 %v1169, %v1165
      %v1478 = vpack.c.b16 %v1170, %v1166
      %v1479 = vpack.c.b16 %v1175, %v1171
      %v1480 = vpack.c.b16 %v1176, %v1172
      %v1481 = vpack.c.b16 %v1177, %v1173
      %v1482 = vpack.c.b16 %v1178, %v1174
      %v1483 = vpack.c.b16 %v1183, %v1179
      %v1484 = vpack.c.b16 %v1184, %v1180
      %v1485 = vpack.c.b16 %v1185, %v1181
      %v1486 = vpack.c.b16 %v1186, %v1182
      %v1487 = vpack.c.b16 %v1191, %v1187
      %v1488 = vpack.c.b16 %v1192, %v1188
      %v1489 = vpack.c.b16 %v1193, %v1189
      %v1490 = vpack.c.b16 %v1194, %v1190
      %v1491 = vpack.c.b16 %v1199, %v1195
      %v1492 = vpack.c.b16 %v1200, %v1196
      %v1493 = vpack.c.b16 %v1201, %v1197
      %v1494 = vpack.c.b16 %v1202, %v1198
      %v1495 = vpack.c.b16 %v1207, %v1203
      %v1496 = vpack.c.b16 %v1208, %v1204
      %v1497 = vpack.c.b16 %v1209, %v1205
      %v1498 = vpack.c.b16 %v1210, %v1206
      %v1499 = vpack.c.b16 %v1215, %v1211
      %v1500 = vpack.c.b16 %v1216, %v1212
      %v1501 = vpack.c.b16 %v1217, %v1213
      %v1502 = vpack.c.b16 %v1218, %v1214
      %v1503 = vpack.c.b16 %v1223, %v1219
      %v1504 = vpack.c.b16 %v1224, %v1220
      %v1505 = vpack.c.b16 %v1225, %v1221
      %v1506 = vpack.c.b16 %v1226, %v1222
      %v1507 = vpack.c.b16 %v1231, %v1227
      %v1508 = vpack.c.b16 %v1232, %v1228
      %v1509 = vpack.c.b16 %v1233, %v1229
      %v1510 = vpack.c.b16 %v1234, %v1230
      %v1511 = vpack.c.b16 %v1239, %v1235
      %v1512 = vpack.c.b16 %v1240, %v1236
      %v1513 = vpack.c.b16 %v1241, %v1237
      %v1514 = vpack.c.b16 %v1242, %v1238
      %v1515 = vpack.c.b16 %v1247, %v1243
      %v1516 = vpack.c.b16 %v1248, %v1244
      %v1517 = vpack.c.b16 %v1249, %v1245
      %v1518 = vpack.c.b16 %v1250, %v1246
      %v1519 = vpack.c.b16 %v1255, %v1251
      %v1520 = vpack.c.b16 %v1256, %v1252
      %v1521 = vpack.c.b16 %v1257, %v1253
      %v1522 = vpack.c.b16 %v1258, %v1254
      %v1523 = vpack.c.b16 %v1263, %v1259
      %v1524 = vpack.c.b16 %v1264, %v1260
      %v1525 = vpack.c.b16 %v1265, %v1261
      %v1526 = vpack.c.b16 %v1266, %v1262
      %v1527 = vpack.c.b16 %v1271, %v1267
      %v1528 = vpack.c.b16 %v1272, %v1268
      %v1529 = vpack.c.b16 %v1273, %v1269
      %v1530 = vpack.c.b16 %v1274, %v1270
      %1787 = vmatprep.subr.bf16.mxu0 %v1276
      %1788 = vmatpush1.bf16.msra.mxu0 %v1275
      %1789 = vmatprep.subr.bf16.mxu0 %v1280
      %1790 = vmatpush1.bf16.msra.mxu0 %v1279
      %1791 = vmatprep.subr.bf16.mxu0 %v1284
      %1792 = vmatpush1.bf16.msra.mxu0 %v1283
      %1793 = vmatprep.subr.bf16.mxu0 %v1288
      %1794 = vmatpush1.bf16.msra.mxu0 %v1287
      %1795 = vmatprep.subr.bf16.mxu0 %v1292
      %1796 = vmatpush1.bf16.msra.mxu0 %v1291
      %1797 = vmatprep.subr.bf16.mxu0 %v1296
      %1798 = vmatpush1.bf16.msra.mxu0 %v1295
      %1799 = vmatprep.subr.bf16.mxu0 %v1300
      %1800 = vmatpush1.bf16.msra.mxu0 %v1299
      %1801 = vmatprep.subr.bf16.mxu0 %v1304
      %1802 = vmatpush1.bf16.msra.mxu0 %v1303
      %1803 = vmatprep.subr.bf16.mxu0 %v1308
      %1804 = vmatpush1.bf16.msra.mxu0 %v1307
      %1805 = vmatprep.subr.bf16.mxu0 %v1312
      %1806 = vmatpush1.bf16.msra.mxu0 %v1311
      %1807 = vmatprep.subr.bf16.mxu0 %v1316
      %1808 = vmatpush1.bf16.msra.mxu0 %v1315
      %1809 = vmatprep.subr.bf16.mxu0 %v1320
      %1810 = vmatpush1.bf16.msra.mxu0 %v1319
      %1811 = vmatprep.subr.bf16.mxu0 %v1324
      %1812 = vmatpush1.bf16.msra.mxu0 %v1323
      %1813 = vmatprep.subr.bf16.mxu0 %v1328
      %1814 = vmatpush1.bf16.msra.mxu0 %v1327
      %1815 = vmatprep.subr.bf16.mxu0 %v1332
      %1816 = vmatpush1.bf16.msra.mxu0 %v1331
      %1817 = vmatprep.subr.bf16.mxu0 %v1336
      %1818 = vmatpush1.bf16.msra.mxu0 %v1335
      %1819 = vmatprep.mubr.bf16.mxu0 %v480
      %1820 = vmatmul.mubr.bf16.gmra.mrb[0].mxu0 %v472
      %v1821 = vpop.f32.mrb[0].mxu0
      %v1822 = vadd.f32 0.0, %v1821
      %v1823 = vpop.f32.mrb[0].mxu0
      %v1824 = vadd.f32 0.0, %v1823
      %v1825 = vpop.f32.mrb[0].mxu0
      %v1826 = vpop.f32.mrb[0].mxu0
      %1827 = vdwg.mxu0
      %1828 = vmatprep.subr.bf16.mxu0 %v1340
      %1829 = vmatpush1.bf16.msra.mxu0 %v1339
      %1830 = vmatprep.subr.bf16.mxu0 %v1344
      %1831 = vmatpush1.bf16.msra.mxu0 %v1343
      %1832 = vmatprep.subr.bf16.mxu0 %v1348
      %1833 = vmatpush1.bf16.msra.mxu0 %v1347
      %1834 = vmatprep.subr.bf16.mxu0 %v1352
      %1835 = vmatpush1.bf16.msra.mxu0 %v1351
      %1836 = vmatprep.subr.bf16.mxu0 %v1356
      %1837 = vmatpush1.bf16.msra.mxu0 %v1355
      %1838 = vmatprep.subr.bf16.mxu0 %v1360
      %1839 = vmatpush1.bf16.msra.mxu0 %v1359
      %1840 = vmatprep.subr.bf16.mxu0 %v1364
      %1841 = vmatpush1.bf16.msra.mxu0 %v1363
      %1842 = vmatprep.subr.bf16.mxu0 %v1368
      %1843 = vmatpush1.bf16.msra.mxu0 %v1367
      %1844 = vmatprep.subr.bf16.mxu0 %v1372
      %1845 = vmatpush1.bf16.msra.mxu0 %v1371
      %1846 = vmatprep.subr.bf16.mxu0 %v1376
      %1847 = vmatpush1.bf16.msra.mxu0 %v1375
      %1848 = vmatprep.subr.bf16.mxu0 %v1380
      %1849 = vmatpush1.bf16.msra.mxu0 %v1379
      %1850 = vmatprep.subr.bf16.mxu0 %v1384
      %1851 = vmatpush1.bf16.msra.mxu0 %v1383
      %1852 = vmatprep.subr.bf16.mxu0 %v1388
      %1853 = vmatpush1.bf16.msra.mxu0 %v1387
      %1854 = vmatprep.subr.bf16.mxu0 %v1392
      %1855 = vmatpush1.bf16.msra.mxu0 %v1391
      %1856 = vmatprep.subr.bf16.mxu0 %v1396
      %1857 = vmatpush1.bf16.msra.mxu0 %v1395
      %1858 = vmatprep.subr.bf16.mxu0 %v1400
      %1859 = vmatpush1.bf16.msra.mxu0 %v1399
      %1860 = vmatprep.mubr.bf16.mxu0 %v481
      %1861 = vmatmul.mubr.bf16.gmra.mrb[0].mxu0 %v479
      %v1862 = vpop.f32.mrb[0].mxu0
      %v1863 = vadd.f32 %v1822, %v1862
      %v1864 = vpop.f32.mrb[0].mxu0
      %v1865 = vadd.f32 %v1824, %v1864
      %v1866 = vpop.f32.mrb[0].mxu0
      %v1867 = vpop.f32.mrb[0].mxu0
      %1868 = vdwg.mxu0
      %1869 = vmatprep.subr.bf16.mxu0 %v1404
      %1870 = vmatpush1.bf16.msra.mxu0 %v1403
      %1871 = vmatprep.subr.bf16.mxu0 %v1408
      %1872 = vmatpush1.bf16.msra.mxu0 %v1407
      %1873 = vmatprep.subr.bf16.mxu0 %v1412
      %1874 = vmatpush1.bf16.msra.mxu0 %v1411
      %1875 = vmatprep.subr.bf16.mxu0 %v1416
      %1876 = vmatpush1.bf16.msra.mxu0 %v1415
      %1877 = vmatprep.subr.bf16.mxu0 %v1420
      %1878 = vmatpush1.bf16.msra.mxu0 %v1419
      %1879 = vmatprep.subr.bf16.mxu0 %v1424
      %1880 = vmatpush1.bf16.msra.mxu0 %v1423
      %1881 = vmatprep.subr.bf16.mxu0 %v1428
      %1882 = vmatpush1.bf16.msra.mxu0 %v1427
      %1883 = vmatprep.subr.bf16.mxu0 %v1432
      %1884 = vmatpush1.bf16.msra.mxu0 %v1431
      %1885 = vmatprep.subr.bf16.mxu0 %v1436
      %1886 = vmatpush1.bf16.msra.mxu0 %v1435
      %1887 = vmatprep.subr.bf16.mxu0 %v1440
      %1888 = vmatpush1.bf16.msra.mxu0 %v1439
      %1889 = vmatprep.subr.bf16.mxu0 %v1444
      %1890 = vmatpush1.bf16.msra.mxu0 %v1443
      %1891 = vmatprep.subr.bf16.mxu0 %v1448
      %1892 = vmatpush1.bf16.msra.mxu0 %v1447
      %1893 = vmatprep.subr.bf16.mxu0 %v1452
      %1894 = vmatpush1.bf16.msra.mxu0 %v1451
      %1895 = vmatprep.subr.bf16.mxu0 %v1456
      %1896 = vmatpush1.bf16.msra.mxu0 %v1455
      %1897 = vmatprep.subr.bf16.mxu0 %v1460
      %1898 = vmatpush1.bf16.msra.mxu0 %v1459
      %1899 = vmatprep.subr.bf16.mxu0 %v1464
      %1900 = vmatpush1.bf16.msra.mxu0 %v1463
      %1901 = vmatprep.mubr.bf16.mxu0 %v497
      %1902 = vmatmul.mubr.bf16.gmra.mrb[0].mxu0 %v489
      %v1903 = vpop.f32.mrb[0].mxu0
      %v1904 = vadd.f32 %v1863, %v1903
      %v1905 = vpop.f32.mrb[0].mxu0
      %v1906 = vadd.f32 %v1865, %v1905
      %v1907 = vpop.f32.mrb[0].mxu0
      %v1908 = vpop.f32.mrb[0].mxu0
      %1909 = vdwg.mxu0
      %1910 = vmatprep.subr.bf16.mxu0 %v1468
      %1911 = vmatpush1.bf16.msra.mxu0 %v1467
      %1912 = vmatprep.subr.bf16.mxu0 %v1472
      %1913 = vmatpush1.bf16.msra.mxu0 %v1471
      %1914 = vmatprep.subr.bf16.mxu0 %v1476
      %1915 = vmatpush1.bf16.msra.mxu0 %v1475
      %1916 = vmatprep.subr.bf16.mxu0 %v1480
      %1917 = vmatpush1.bf16.msra.mxu0 %v1479
      %1918 = vmatprep.subr.bf16.mxu0 %v1484
      %1919 = vmatpush1.bf16.msra.mxu0 %v1483
      %1920 = vmatprep.subr.bf16.mxu0 %v1488
      %1921 = vmatpush1.bf16.msra.mxu0 %v1487
      %1922 = vmatprep.subr.bf16.mxu0 %v1492
      %1923 = vmatpush1.bf16.msra.mxu0 %v1491
      %1924 = vmatprep.subr.bf16.mxu0 %v1496
      %1925 = vmatpush1.bf16.msra.mxu0 %v1495
      %1926 = vmatprep.subr.bf16.mxu0 %v1500
      %1927 = vmatpush1.bf16.msra.mxu0 %v1499
      %1928 = vmatprep.subr.bf16.mxu0 %v1504
      %1929 = vmatpush1.bf16.msra.mxu0 %v1503
      %1930 = vmatprep.subr.bf16.mxu0 %v1508
      %1931 = vmatpush1.bf16.msra.mxu0 %v1507
      %1932 = vmatprep.subr.bf16.mxu0 %v1512
      %1933 = vmatpush1.bf16.msra.mxu0 %v1511
      %1934 = vmatprep.subr.bf16.mxu0 %v1516
      %1935 = vmatpush1.bf16.msra.mxu0 %v1515
      %1936 = vmatprep.subr.bf16.mxu0 %v1520
      %1937 = vmatpush1.bf16.msra.mxu0 %v1519
      %1938 = vmatprep.subr.bf16.mxu0 %v1524
      %1939 = vmatpush1.bf16.msra.mxu0 %v1523
      %1940 = vmatprep.subr.bf16.mxu0 %v1528
      %1941 = vmatpush1.bf16.msra.mxu0 %v1527
      %1942 = vmatprep.mubr.bf16.mxu0 %v498
      %1943 = vmatmul.mubr.bf16.gmra.mrb[0].mxu0 %v496
      %v1944 = vpop.f32.mrb[0].mxu0
      %v1945 = vadd.f32 %v1904, %v1944
      %v1946 = vpop.f32.mrb[0].mxu0
      %v1947 = vadd.f32 %v1906, %v1946
      %v1948 = vpop.f32.mrb[0].mxu0
      %v1949 = vpop.f32.mrb[0].mxu0
      %1950 = vdwg.mxu0
      %1951 = vmatprep.subr.bf16.mxu0 %v1278
      %1952 = vmatpush1.bf16.msra.mxu0 %v1277
      %1953 = vmatprep.subr.bf16.mxu0 %v1282
      %1954 = vmatpush1.bf16.msra.mxu0 %v1281
      %1955 = vmatprep.subr.bf16.mxu0 %v1286
      %1956 = vmatpush1.bf16.msra.mxu0 %v1285
      %1957 = vmatprep.subr.bf16.mxu0 %v1290
      %1958 = vmatpush1.bf16.msra.mxu0 %v1289
      %1959 = vmatprep.subr.bf16.mxu0 %v1294
      %1960 = vmatpush1.bf16.msra.mxu0 %v1293
      %1961 = vmatprep.subr.bf16.mxu0 %v1298
      %1962 = vmatpush1.bf16.msra.mxu0 %v1297
      %1963 = vmatprep.subr.bf16.mxu0 %v1302
      %1964 = vmatpush1.bf16.msra.mxu0 %v1301
      %1965 = vmatprep.subr.bf16.mxu0 %v1306
      %1966 = vmatpush1.bf16.msra.mxu0 %v1305
      %1967 = vmatprep.subr.bf16.mxu0 %v1310
      %1968 = vmatpush1.bf16.msra.mxu0 %v1309
      %1969 = vmatprep.subr.bf16.mxu0 %v1314
      %1970 = vmatpush1.bf16.msra.mxu0 %v1313
      %1971 = vmatprep.subr.bf16.mxu0 %v1318
      %1972 = vmatpush1.bf16.msra.mxu0 %v1317
      %1973 = vmatprep.subr.bf16.mxu0 %v1322
      %1974 = vmatpush1.bf16.msra.mxu0 %v1321
      %1975 = vmatprep.subr.bf16.mxu0 %v1326
      %1976 = vmatpush1.bf16.msra.mxu0 %v1325
      %1977 = vmatprep.subr.bf16.mxu0 %v1330
      %1978 = vmatpush1.bf16.msra.mxu0 %v1329
      %1979 = vmatprep.subr.bf16.mxu0 %v1334
      %1980 = vmatpush1.bf16.msra.mxu0 %v1333
      %1981 = vmatprep.subr.bf16.mxu0 %v1338
      %1982 = vmatpush1.bf16.msra.mxu0 %v1337
      %1983 = vmatprep.mubr.bf16.mxu0 %v480
      %1984 = vmatmul.mubr.bf16.gmra.mrb[0].mxu0 %v472
      %v1985 = vpop.f32.mrb[0].mxu0
      %v1986 = vadd.f32 0.0, %v1985
      %v1987 = vpop.f32.mrb[0].mxu0
      %v1988 = vadd.f32 0.0, %v1987
      %v1989 = vpop.f32.mrb[0].mxu0
      %v1990 = vpop.f32.mrb[0].mxu0
      %1991 = vdwg.mxu0
      %1992 = vmatprep.subr.bf16.mxu0 %v1342
      %1993 = vmatpush1.bf16.msra.mxu0 %v1341
      %1994 = vmatprep.subr.bf16.mxu0 %v1346
      %1995 = vmatpush1.bf16.msra.mxu0 %v1345
      %1996 = vmatprep.subr.bf16.mxu0 %v1350
      %1997 = vmatpush1.bf16.msra.mxu0 %v1349
      %1998 = vmatprep.subr.bf16.mxu0 %v1354
      %1999 = vmatpush1.bf16.msra.mxu0 %v1353
      %2000 = vmatprep.subr.bf16.mxu0 %v1358
      %2001 = vmatpush1.bf16.msra.mxu0 %v1357
      %2002 = vmatprep.subr.bf16.mxu0 %v1362
      %2003 = vmatpush1.bf16.msra.mxu0 %v1361
      %2004 = vmatprep.subr.bf16.mxu0 %v1366
      %2005 = vmatpush1.bf16.msra.mxu0 %v1365
      %2006 = vmatprep.subr.bf16.mxu0 %v1370
      %2007 = vmatpush1.bf16.msra.mxu0 %v1369
      %2008 = vmatprep.subr.bf16.mxu0 %v1374
      %2009 = vmatpush1.bf16.msra.mxu0 %v1373
      %2010 = vmatprep.subr.bf16.mxu0 %v1378
      %2011 = vmatpush1.bf16.msra.mxu0 %v1377
      %2012 = vmatprep.subr.bf16.mxu0 %v1382
      %2013 = vmatpush1.bf16.msra.mxu0 %v1381
      %2014 = vmatprep.subr.bf16.mxu0 %v1386
      %2015 = vmatpush1.bf16.msra.mxu0 %v1385
      %2016 = vmatprep.subr.bf16.mxu0 %v1390
      %2017 = vmatpush1.bf16.msra.mxu0 %v1389
      %2018 = vmatprep.subr.bf16.mxu0 %v1394
      %2019 = vmatpush1.bf16.msra.mxu0 %v1393
      %2020 = vmatprep.subr.bf16.mxu0 %v1398
      %2021 = vmatpush1.bf16.msra.mxu0 %v1397
      %2022 = vmatprep.subr.bf16.mxu0 %v1402
      %2023 = vmatpush1.bf16.msra.mxu0 %v1401
      %2024 = vmatprep.mubr.bf16.mxu0 %v481
      %2025 = vmatmul.mubr.bf16.gmra.mrb[0].mxu0 %v479
      %v2026 = vpop.f32.mrb[0].mxu0
      %v2027 = vadd.f32 %v1986, %v2026
      %v2028 = vpop.f32.mrb[0].mxu0
      %v2029 = vadd.f32 %v1988, %v2028
      %v2030 = vpop.f32.mrb[0].mxu0
      %v2031 = vpop.f32.mrb[0].mxu0
      %2032 = vdwg.mxu0
      %2033 = vmatprep.subr.bf16.mxu0 %v1406
      %2034 = vmatpush1.bf16.msra.mxu0 %v1405
      %2035 = vmatprep.subr.bf16.mxu0 %v1410
      %2036 = vmatpush1.bf16.msra.mxu0 %v1409
      %2037 = vmatprep.subr.bf16.mxu0 %v1414
      %2038 = vmatpush1.bf16.msra.mxu0 %v1413
      %2039 = vmatprep.subr.bf16.mxu0 %v1418
      %2040 = vmatpush1.bf16.msra.mxu0 %v1417
      %2041 = vmatprep.subr.bf16.mxu0 %v1422
      %2042 = vmatpush1.bf16.msra.mxu0 %v1421
      %2043 = vmatprep.subr.bf16.mxu0 %v1426
      %2044 = vmatpush1.bf16.msra.mxu0 %v1425
      %2045 = vmatprep.subr.bf16.mxu0 %v1430
      %2046 = vmatpush1.bf16.msra.mxu0 %v1429
      %2047 = vmatprep.subr.bf16.mxu0 %v1434
      %2048 = vmatpush1.bf16.msra.mxu0 %v1433
      %2049 = vmatprep.subr.bf16.mxu0 %v1438
      %2050 = vmatpush1.bf16.msra.mxu0 %v1437
      %2051 = vmatprep.subr.bf16.mxu0 %v1442
      %2052 = vmatpush1.bf16.msra.mxu0 %v1441
      %2053 = vmatprep.subr.bf16.mxu0 %v1446
      %2054 = vmatpush1.bf16.msra.mxu0 %v1445
      %2055 = vmatprep.subr.bf16.mxu0 %v1450
      %2056 = vmatpush1.bf16.msra.mxu0 %v1449
      %2057 = vmatprep.subr.bf16.mxu0 %v1454
      %2058 = vmatpush1.bf16.msra.mxu0 %v1453
      %2059 = vmatprep.subr.bf16.mxu0 %v1458
      %2060 = vmatpush1.bf16.msra.mxu0 %v1457
      %2061 = vmatprep.subr.bf16.mxu0 %v1462
      %2062 = vmatpush1.bf16.msra.mxu0 %v1461
      %2063 = vmatprep.subr.bf16.mxu0 %v1466
      %2064 = vmatpush1.bf16.msra.mxu0 %v1465
      %2065 = vmatprep.mubr.bf16.mxu0 %v497
      %2066 = vmatmul.mubr.bf16.gmra.mrb[0].mxu0 %v489
      %v2067 = vpop.f32.mrb[0].mxu0
      %v2068 = vadd.f32 %v2027, %v2067
      %v2069 = vpop.f32.mrb[0].mxu0
      %v2070 = vadd.f32 %v2029, %v2069
      %v2071 = vpop.f32.mrb[0].mxu0
      %v2072 = vpop.f32.mrb[0].mxu0
      %2073 = vdwg.mxu0
      %2074 = vmatprep.subr.bf16.mxu0 %v1470
      %2075 = vmatpush1.bf16.msra.mxu0 %v1469
      %2076 = vmatprep.subr.bf16.mxu0 %v1474
      %2077 = vmatpush1.bf16.msra.mxu0 %v1473
      %2078 = vmatprep.subr.bf16.mxu0 %v1478
      %2079 = vmatpush1.bf16.msra.mxu0 %v1477
      %2080 = vmatprep.subr.bf16.mxu0 %v1482
      %2081 = vmatpush1.bf16.msra.mxu0 %v1481
      %2082 = vmatprep.subr.bf16.mxu0 %v1486
      %2083 = vmatpush1.bf16.msra.mxu0 %v1485
      %2084 = vmatprep.subr.bf16.mxu0 %v1490
      %2085 = vmatpush1.bf16.msra.mxu0 %v1489
      %2086 = vmatprep.subr.bf16.mxu0 %v1494
      %2087 = vmatpush1.bf16.msra.mxu0 %v1493
      %2088 = vmatprep.subr.bf16.mxu0 %v1498
      %2089 = vmatpush1.bf16.msra.mxu0 %v1497
      %2090 = vmatprep.subr.bf16.mxu0 %v1502
      %2091 = vmatpush1.bf16.msra.mxu0 %v1501
      %2092 = vmatprep.subr.bf16.mxu0 %v1506
      %2093 = vmatpush1.bf16.msra.mxu0 %v1505
      %2094 = vmatprep.subr.bf16.mxu0 %v1510
      %2095 = vmatpush1.bf16.msra.mxu0 %v1509
      %2096 = vmatprep.subr.bf16.mxu0 %v1514
      %2097 = vmatpush1.bf16.msra.mxu0 %v1513
      %2098 = vmatprep.subr.bf16.mxu0 %v1518
      %2099 = vmatpush1.bf16.msra.mxu0 %v1517
      %2100 = vmatprep.subr.bf16.mxu0 %v1522
      %2101 = vmatpush1.bf16.msra.mxu0 %v1521
      %2102 = vmatprep.subr.bf16.mxu0 %v1526
      %2103 = vmatpush1.bf16.msra.mxu0 %v1525
      %2104 = vmatprep.subr.bf16.mxu0 %v1530
      %2105 = vmatpush1.bf16.msra.mxu0 %v1529
      %2106 = vmatprep.mubr.bf16.mxu0 %v498
      %2107 = vmatmul.mubr.bf16.gmra.mrb[0].mxu0 %v496
      %v2108 = vpop.f32.mrb[0].mxu0
      %v2109 = vadd.f32 %v2068, %v2108
      %v2110 = vpop.f32.mrb[0].mxu0
      %v2111 = vadd.f32 %v2070, %v2110
      %v2112 = vpop.f32.mrb[0].mxu0
      %v2113 = vpop.f32.mrb[0].mxu0
      %2114 = vdwg.mxu0
      %v2119 = vcombine.low %v1945, %v1947
      %v2120 = vcombine.low %v2109, %v2111
      %v2123 = vadd.f32 %v203, %v2119
      %v2124 = vadd.f32 %v204, %v2120
      %2125 = vst [vmem:[#allocation2] sm:$0xff] %v2123
      %2126 = vst [vmem:[#allocation2 + $0x8] sm:$0xff] %v2124
      %p2127 = scmp.eq.s32.totalorder %s18, 3
      // Predicated region
      $region33: #{discriminator_forward.8} parent=27 // pred_check
        %p2128 = pneg %p2127
      $region34: #{discriminator_forward.8} parent=27 // pred_check_branch
        %2130 = sbr.rel (%p2128) target = $region36
      $region35: #{discriminator_forward.8} parent=27 // pred_region
        %v2131 = vld [vmem:[#allocation2] sm:$0xff]
        %v2132 = vld [vmem:[#allocation2 + $0x8] sm:$0xff]
        %v2135 = vcombine.high %v2131, %v2131
        %v2136 = vcombine.high %v2132, %v2132
        %vm2139 = vcmask 1043456
        %v2140 = vsel %vm2139, %v2131, 0.0
        %v2141 = vrot.slane %v2140, 4
        %v2142 = vadd.f32 %v2140, %v2141
        %v2143 = vrot.slane %v2142, 2
        %v2144 = vadd.f32 %v2142, %v2143
        %v2145 = vrot.slane %v2144, 1
        %v2146 = vadd.f32 %v2144, %v2145
        %v2147 = vsel %vm2139, %v2135, 0.0
        %v2148 = vrot.slane %v2147, 4
        %v2149 = vadd.f32 %v2147, %v2148
        %v2150 = vrot.slane %v2149, 2
        %v2151 = vadd.f32 %v2149, %v2150
        %v2152 = vrot.slane %v2151, 1
        %v2153 = vadd.f32 %v2151, %v2152
        %v2154 = vsel %vm2139, %v2132, 0.0
        %v2155 = vrot.slane %v2154, 4
        %v2156 = vadd.f32 %v2154, %v2155
        %v2157 = vrot.slane %v2156, 2
        %v2158 = vadd.f32 %v2156, %v2157
        %v2159 = vrot.slane %v2158, 1
        %v2160 = vadd.f32 %v2158, %v2159
        %v2161 = vsel %vm2139, %v2136, 0.0
        %v2162 = vrot.slane %v2161, 4
        %v2163 = vadd.f32 %v2161, %v2162
        %v2164 = vrot.slane %v2163, 2
        %v2165 = vadd.f32 %v2163, %v2164
        %v2166 = vrot.slane %v2165, 1
        %v2167 = vadd.f32 %v2165, %v2166
        %v2168 = vrcp.pop 4.0
        %v2169 = vmul.f32 %v2146, %v2168
        %v2170 = vmul.f32 %v2153, %v2168
        %v2171 = vmul.f32 %v2160, %v2168
        %v2172 = vmul.f32 %v2167, %v2168
        %v2177 = vcombine.low %v2169, %v2170
        %v2178 = vcombine.low %v2171, %v2172
        %v2181 = vsub.f32 %v2131, %v2177
        %v2182 = vsub.f32 %v2132, %v2178
        %v2183 = vmul.f32 %v2181, %v2181
        %v2184 = vmul.f32 %v2182, %v2182
        %v2187 = vcombine.high %v2183, %v2183
        %v2188 = vcombine.high %v2184, %v2184
        %v2191 = vsel %vm2139, %v2183, 0.0
        %v2192 = vrot.slane %v2191, 4
        %v2193 = vadd.f32 %v2191, %v2192
        %v2194 = vrot.slane %v2193, 2
        %v2195 = vadd.f32 %v2193, %v2194
        %v2196 = vrot.slane %v2195, 1
        %v2197 = vadd.f32 %v2195, %v2196
        %v2198 = vsel %vm2139, %v2187, 0.0
        %v2199 = vrot.slane %v2198, 4
        %v2200 = vadd.f32 %v2198, %v2199
        %v2201 = vrot.slane %v2200, 2
        %v2202 = vadd.f32 %v2200, %v2201
        %v2203 = vrot.slane %v2202, 1
        %v2204 = vadd.f32 %v2202, %v2203
        %v2205 = vsel %vm2139, %v2184, 0.0
        %v2206 = vrot.slane %v2205, 4
        %v2207 = vadd.f32 %v2205, %v2206
        %v2208 = vrot.slane %v2207, 2
        %v2209 = vadd.f32 %v2207, %v2208
        %v2210 = vrot.slane %v2209, 1
        %v2211 = vadd.f32 %v2209, %v2210
        %v2212 = vsel %vm2139, %v2188, 0.0
        %v2213 = vrot.slane %v2212, 4
        %v2214 = vadd.f32 %v2212, %v2213
        %v2215 = vrot.slane %v2214, 2
        %v2216 = vadd.f32 %v2214, %v2215
        %v2217 = vrot.slane %v2216, 1
        %v2218 = vadd.f32 %v2216, %v2217
        %v2219 = vmul.f32 %v2197, %v2168
        %v2220 = vmul.f32 %v2204, %v2168
        %v2221 = vmul.f32 %v2211, %v2168
        %v2222 = vmul.f32 %v2218, %v2168
        %v2223 = vadd.f32 %v2219, 1e-05
        %v2224 = vadd.f32 %v2220, 1e-05
        %v2225 = vadd.f32 %v2221, 1e-05
        %v2226 = vadd.f32 %v2222, 1e-05
        %v2227 = vrsqrt.pop %v2223
        %v2228 = vrsqrt.pop %v2224
        %v2229 = vrsqrt.pop %v2225
        %v2230 = vrsqrt.pop %v2226
        %v2235 = vcombine.low %v2227, %v2228
        %v2236 = vcombine.low %v2229, %v2230
        %v2239 = vmul.f32 %v2181, %v2235
        %v2240 = vmul.f32 %v2182, %v2236
        %vm2241 = vcmp.ge.f32.partialorder %v2239, 0.0
        %vm2242 = vcmp.ge.f32.partialorder %v2240, 0.0
        %v2243 = vmul.f32 %v2239, 0.2
        %v2244 = vmul.f32 %v2240, 0.2
        %v2245 = vsel %vm2241, %v2239, %v2243
        %v2246 = vsel %vm2242, %v2240, %v2244
        %v2249 = vcombine.high %v2245, %v2245
        %v2250 = vcombine.high %v2246, %v2246
        %v2253 = vpack.c.bf16 %v2245, %v2245
        %v2254 = vpack.c.bf16 %v2249, %v2249
        %v2255 = vpack.c.bf16 %v2246, %v2246
        %v2256 = vpack.c.bf16 %v2250, %v2250
        %v2261 = vcombine.low %v2253, %v2254
        %v2262 = vcombine.low %v2255, %v2256
        %v2264 = vunpack.c.l.s4 1983009808
        %v2265 = vunpack.c.0.s8 %v2264
        %v2266 = vlaneseq
        %v2267 = vshrl.u32 %v2266, 7
        %v2268 = vsub.s32 %v2265, %v2267
        %v2269 = vrot.slane %v2261, %v2268
        %v2271 = vunpack.c.l.s4 1983009808
        %v2272 = vunpack.c.0.s8 %v2271
        %v2273 = vlaneseq
        %v2274 = vshrl.u32 %v2273, 7
        %v2275 = vsub.s32 %v2272, %v2274
        %v2276 = vrot.slane %v2262, %v2275
        %v2277 = vcombine.low %v2269, %v2276
        %2279 = vst [vmem:[%s196] sm:$0xff] %v2277
      $region36: #{discriminator_forward.8} parent=27 // pred_fallthru
        _
      %p2280 = scmp.lt.s32.totalorder %s17, 1
      %s2281 = scalar_select %p2280, %s17, 1
      %s2282 = smul.addr %s2281, 4
      %s2283 = smul.addr %s2282, 2
      %s2284 = scalar_lea.vmem %s2, %s2283
      // Predicated region
      $region37: #{discriminator_forward.8} parent=27 // pred_check
        %p2285 = pneg %p97
      $region38: #{discriminator_forward.8} parent=27 // pred_check_branch
        %2287 = sbr.rel (%p2285) target = $region40
      $region39: #{discriminator_forward.8} parent=27 // pred_region
        _
      $region40: #{discriminator_forward.8} parent=27 // pred_fallthru
        _
    $region28: #{discriminator_forward.8} parent=5 // pred_fallthru
      _
    %p2288 = scmp.le.s32.totalorder 2, %s8
    // Predicated region
    $region41: #{discriminator_forward.8} parent=5 // pred_check
      %p2289 = pneg %p2288
    $region42: #{discriminator_forward.8} parent=5 // pred_check_branch
      %2291 = sbr.rel (%p2289) target = $region44
    $region43: #{discriminator_forward.8} parent=5 // pred_region
      %s2292 = ssub.s32 %s8, 2
      // Predicated region
      $region45: #{discriminator_forward.8} parent=43 // pred_check
        %p2293 = pneg %p103
      $region46: #{discriminator_forward.8} parent=43 // pred_check_branch
        %2295 = sbr.rel (%p2293) target = $region48
      $region47: #{discriminator_forward.8} parent=43 // pred_region
        %p2296 = scmp.lt.s32.totalorder %s19, 1
        %s2297 = scalar_select %p2296, %s19, 1
        %s2298 = smul.addr %s2297, 4
        %s2299 = smul.addr %s2298, 2
        %s2300 = scalar_lea.vmem %s2, %s2299
      $region48: #{discriminator_forward.8} parent=43 // pred_fallthru
        _
    $region44: #{discriminator_forward.8} parent=5 // pred_fallthru
      _
  $region6: #{discriminator_forward.8} parent=0 // loop_footer
    %s12 = sadd.s32 1, %s8
  $region7: #{discriminator_forward.8} parent=0 // loop_footer_branch
    %7 = sbr.rel target = $region3
  $region8: #{discriminator_forward.8} parent=0 // loop_exit
    _

// kernel: discriminator_forward.9
$region0: #{discriminator_forward.9}
  #allocation0 [shape = 'u32[]', space=smem, size = 0x4, offset = 0x4, fixed_abs, tag = 'smem constant byte address 0x4 - core index']
  #allocation1 [shape = 'u32[144,128]{1,0:T(1,128)}', space=vmem, size = 0x12000, scoped, tag = 'internal scratch']
  %s0 = inlined_call_operand.vmem [shape: bf16[8,8192], index: 0, kind: input, shape index: {}]
  %s1 = inlined_call_operand.vmem [shape: bf16[8192,128], index: 1, kind: input, shape index: {}]
  %s2 = inlined_call_operand.vmem [shape: f32[8,128], index: 2, kind: output, shape index: {}]
  %s3 = sld [smem:[#allocation0]]
  $region18: #{discriminator_forward.9} parent=0
    _
  %s5 = ssub.s32 1, %s3
  %s6 = scalar_select 0, %s5, %s3
  // Predicated region
  $region2: #{discriminator_forward.9} parent=0 // pred_check
    _
  $region3: #{discriminator_forward.9} parent=0 // pred_check_branch
    %8 = sbr.rel (0) target = $region5
  $region4: #{discriminator_forward.9} parent=0 // pred_region
    _
  $region5: #{discriminator_forward.9} parent=0 // pred_fallthru
    _
  // Predicated region
  $region6: #{discriminator_forward.9} parent=0 // pred_check
    _
  $region7: #{discriminator_forward.9} parent=0 // pred_check_branch
    %10 = sbr.rel (0) target = $region9
  $region8: #{discriminator_forward.9} parent=0 // pred_region
    _
  $region9: #{discriminator_forward.9} parent=0 // pred_fallthru
    _
  %v12 = vld [vmem:[%s0] sm:$0xff]
  %v13 = vld [vmem:[%s0 + $0x8] sm:$0xff]
  %v14 = vld [vmem:[%s0 + $0x10] sm:$0xff]
  %v15 = vld [vmem:[%s0 + $0x18] sm:$0xff]
  %v16 = vld [vmem:[%s0 + $0x20] sm:$0xff]
  %v17 = vld [vmem:[%s0 + $0x28] sm:$0xff]
  %v18 = vld [vmem:[%s0 + $0x30] sm:$0xff]
  %v19 = vld [vmem:[%s0 + $0x38] sm:$0xff]
  %v20 = vld [vmem:[%s0 + $0x40] sm:$0xff]
  %v21 = vld [vmem:[%s0 + $0x48] sm:$0xff]
  %v22 = vld [vmem:[%s0 + $0x50] sm:$0xff]
  %v23 = vld [vmem:[%s0 + $0x58] sm:$0xff]
  %v24 = vld [vmem:[%s0 + $0x60] sm:$0xff]
  %v25 = vld [vmem:[%s0 + $0x68] sm:$0xff]
  %v26 = vld [vmem:[%s0 + $0x70] sm:$0xff]
  %v27 = vld [vmem:[%s0 + $0x78] sm:$0xff]
  %v28 = vld [vmem:[%s0 + $0x80] sm:$0xff]
  %v29 = vld [vmem:[%s0 + $0x88] sm:$0xff]
  %v30 = vld [vmem:[%s0 + $0x90] sm:$0xff]
  %v31 = vld [vmem:[%s0 + $0x98] sm:$0xff]
  %v32 = vld [vmem:[%s0 + $0xa0] sm:$0xff]
  %v33 = vld [vmem:[%s0 + $0xa8] sm:$0xff]
  %v34 = vld [vmem:[%s0 + $0xb0] sm:$0xff]
  %v35 = vld [vmem:[%s0 + $0xb8] sm:$0xff]
  %v36 = vld [vmem:[%s0 + $0xc0] sm:$0xff]
  %v37 = vld [vmem:[%s0 + $0xc8] sm:$0xff]
  %v38 = vld [vmem:[%s0 + $0xd0] sm:$0xff]
  %v39 = vld [vmem:[%s0 + $0xd8] sm:$0xff]
  %v40 = vld [vmem:[%s0 + $0xe0] sm:$0xff]
  %v41 = vld [vmem:[%s0 + $0xe8] sm:$0xff]
  %v42 = vld [vmem:[%s0 + $0xf0] sm:$0xff]
  %v43 = vld [vmem:[%s0 + $0xf8] sm:$0xff]
  %v44 = vld [vmem:[%s1] sm:$0xf]
  %v45 = vld [vmem:[%s1 + $0x4] sm:$0xf]
  %v46 = vld [vmem:[%s1 + $0x8] sm:$0xf]
  %v47 = vld [vmem:[%s1 + $0xc] sm:$0xf]
  %v48 = vld [vmem:[%s1 + $0x10] sm:$0xf]
  %v49 = vld [vmem:[%s1 + $0x14] sm:$0xf]
  %v50 = vld [vmem:[%s1 + $0x18] sm:$0xf]
  %v51 = vld [vmem:[%s1 + $0x1c] sm:$0xf]
  %v52 = vld [vmem:[%s1 + $0x20] sm:$0xf]
  %v53 = vld [vmem:[%s1 + $0x24] sm:$0xf]
  %v54 = vld [vmem:[%s1 + $0x28] sm:$0xf]
  %v55 = vld [vmem:[%s1 + $0x2c] sm:$0xf]
  %v56 = vld [vmem:[%s1 + $0x30] sm:$0xf]
  %v57 = vld [vmem:[%s1 + $0x34] sm:$0xf]
  %v58 = vld [vmem:[%s1 + $0x38] sm:$0xf]
  %v59 = vld [vmem:[%s1 + $0x3c] sm:$0xf]
  %v60 = vld [vmem:[%s1 + $0x40] sm:$0xf]
  %v61 = vld [vmem:[%s1 + $0x44] sm:$0xf]
  %v62 = vld [vmem:[%s1 + $0x48] sm:$0xf]
  %v63 = vld [vmem:[%s1 + $0x4c] sm:$0xf]
  %v64 = vld [vmem:[%s1 + $0x50] sm:$0xf]
  %v65 = vld [vmem:[%s1 + $0x54] sm:$0xf]
  %v66 = vld [vmem:[%s1 + $0x58] sm:$0xf]
  %v67 = vld [vmem:[%s1 + $0x5c] sm:$0xf]
  %v68 = vld [vmem:[%s1 + $0x60] sm:$0xf]
  %v69 = vld [vmem:[%s1 + $0x64] sm:$0xf]
  %v70 = vld [vmem:[%s1 + $0x68] sm:$0xf]
  %v71 = vld [vmem:[%s1 + $0x6c] sm:$0xf]
  %v72 = vld [vmem:[%s1 + $0x70] sm:$0xf]
  %v73 = vld [vmem:[%s1 + $0x74] sm:$0xf]
  %v74 = vld [vmem:[%s1 + $0x78] sm:$0xf]
  %v75 = vld [vmem:[%s1 + $0x7c] sm:$0xf]
  %v76 = vld [vmem:[%s1 + $0x80] sm:$0xf]
  %v77 = vld [vmem:[%s1 + $0x84] sm:$0xf]
  %v78 = vld [vmem:[%s1 + $0x88] sm:$0xf]
  %v79 = vld [vmem:[%s1 + $0x8c] sm:$0xf]
  %v80 = vld [vmem:[%s1 + $0x90] sm:$0xf]
  %v81 = vld [vmem:[%s1 + $0x94] sm:$0xf]
  %v82 = vld [vmem:[%s1 + $0x98] sm:$0xf]
  %v83 = vld [vmem:[%s1 + $0x9c] sm:$0xf]
  %v84 = vld [vmem:[%s1 + $0xa0] sm:$0xf]
  %v85 = vld [vmem:[%s1 + $0xa4] sm:$0xf]
  %v86 = vld [vmem:[%s1 + $0xa8] sm:$0xf]
  %v87 = vld [vmem:[%s1 + $0xac] sm:$0xf]
  %v88 = vld [vmem:[%s1 + $0xb0] sm:$0xf]
  %v89 = vld [vmem:[%s1 + $0xb4] sm:$0xf]
  %v90 = vld [vmem:[%s1 + $0xb8] sm:$0xf]
  %v91 = vld [vmem:[%s1 + $0xbc] sm:$0xf]
  %v92 = vld [vmem:[%s1 + $0xc0] sm:$0xf]
  %v93 = vld [vmem:[%s1 + $0xc4] sm:$0xf]
  %v94 = vld [vmem:[%s1 + $0xc8] sm:$0xf]
  %v95 = vld [vmem:[%s1 + $0xcc] sm:$0xf]
  %v96 = vld [vmem:[%s1 + $0xd0] sm:$0xf]
  %v97 = vld [vmem:[%s1 + $0xd4] sm:$0xf]
  %v98 = vld [vmem:[%s1 + $0xd8] sm:$0xf]
  %v99 = vld [vmem:[%s1 + $0xdc] sm:$0xf]
  %v100 = vld [vmem:[%s1 + $0xe0] sm:$0xf]
  %v101 = vld [vmem:[%s1 + $0xe4] sm:$0xf]
  %v102 = vld [vmem:[%s1 + $0xe8] sm:$0xf]
  %v103 = vld [vmem:[%s1 + $0xec] sm:$0xf]
  %v104 = vld [vmem:[%s1 + $0xf0] sm:$0xf]
  %v105 = vld [vmem:[%s1 + $0xf4] sm:$0xf]
  %v106 = vld [vmem:[%s1 + $0xf8] sm:$0xf]
  %v107 = vld [vmem:[%s1 + $0xfc] sm:$0xf]
  %v108 = vld [vmem:[%s1 + $0x100] sm:$0xf]
  %v109 = vld [vmem:[%s1 + $0x104] sm:$0xf]
  %v110 = vld [vmem:[%s1 + $0x108] sm:$0xf]
  %v111 = vld [vmem:[%s1 + $0x10c] sm:$0xf]
  %v112 = vld [vmem:[%s1 + $0x110] sm:$0xf]
  %v113 = vld [vmem:[%s1 + $0x114] sm:$0xf]
  %v114 = vld [vmem:[%s1 + $0x118] sm:$0xf]
  %v115 = vld [vmem:[%s1 + $0x11c] sm:$0xf]
  %v116 = vld [vmem:[%s1 + $0x120] sm:$0xf]
  %v117 = vld [vmem:[%s1 + $0x124] sm:$0xf]
  %v118 = vld [vmem:[%s1 + $0x128] sm:$0xf]
  %v119 = vld [vmem:[%s1 + $0x12c] sm:$0xf]
  %v120 = vld [vmem:[%s1 + $0x130] sm:$0xf]
  %v121 = vld [vmem:[%s1 + $0x134] sm:$0xf]
  %v122 = vld [vmem:[%s1 + $0x138] sm:$0xf]
  %v123 = vld [vmem:[%s1 + $0x13c] sm:$0xf]
  %v124 = vld [vmem:[%s1 + $0x140] sm:$0xf]
  %v125 = vld [vmem:[%s1 + $0x144] sm:$0xf]
  %v126 = vld [vmem:[%s1 + $0x148] sm:$0xf]
  %v127 = vld [vmem:[%s1 + $0x14c] sm:$0xf]
  %v128 = vld [vmem:[%s1 + $0x150] sm:$0xf]
  %v129 = vld [vmem:[%s1 + $0x154] sm:$0xf]
  %v130 = vld [vmem:[%s1 + $0x158] sm:$0xf]
  %v131 = vld [vmem:[%s1 + $0x15c] sm:$0xf]
  %v132 = vld [vmem:[%s1 + $0x160] sm:$0xf]
  %v133 = vld [vmem:[%s1 + $0x164] sm:$0xf]
  %v134 = vld [vmem:[%s1 + $0x168] sm:$0xf]
  %v135 = vld [vmem:[%s1 + $0x16c] sm:$0xf]
  %v136 = vld [vmem:[%s1 + $0x170] sm:$0xf]
  %v137 = vld [vmem:[%s1 + $0x174] sm:$0xf]
  %v138 = vld [vmem:[%s1 + $0x178] sm:$0xf]
  %v139 = vld [vmem:[%s1 + $0x17c] sm:$0xf]
  %v140 = vld [vmem:[%s1 + $0x180] sm:$0xf]
  %v141 = vld [vmem:[%s1 + $0x184] sm:$0xf]
  %v142 = vld [vmem:[%s1 + $0x188] sm:$0xf]
  %v143 = vld [vmem:[%s1 + $0x18c] sm:$0xf]
  %v144 = vld [vmem:[%s1 + $0x190] sm:$0xf]
  %v145 = vld [vmem:[%s1 + $0x194] sm:$0xf]
  %v146 = vld [vmem:[%s1 + $0x198] sm:$0xf]
  %v147 = vld [vmem:[%s1 + $0x19c] sm:$0xf]
  %v148 = vld [vmem:[%s1 + $0x1a0] sm:$0xf]
  %v149 = vld [vmem:[%s1 + $0x1a4] sm:$0xf]
  %v150 = vld [vmem:[%s1 + $0x1a8] sm:$0xf]
  %v151 = vld [vmem:[%s1 + $0x1ac] sm:$0xf]
  %v152 = vld [vmem:[%s1 + $0x1b0] sm:$0xf]
  %v153 = vld [vmem:[%s1 + $0x1b4] sm:$0xf]
  %v154 = vld [vmem:[%s1 + $0x1b8] sm:$0xf]
  %v155 = vld [vmem:[%s1 + $0x1bc] sm:$0xf]
  %v156 = vld [vmem:[%s1 + $0x1c0] sm:$0xf]
  %v157 = vld [vmem:[%s1 + $0x1c4] sm:$0xf]
  %v158 = vld [vmem:[%s1 + $0x1c8] sm:$0xf]
  %v159 = vld [vmem:[%s1 + $0x1cc] sm:$0xf]
  %v160 = vld [vmem:[%s1 + $0x1d0] sm:$0xf]
  %v161 = vld [vmem:[%s1 + $0x1d4] sm:$0xf]
  %v162 = vld [vmem:[%s1 + $0x1d8] sm:$0xf]
  %v163 = vld [vmem:[%s1 + $0x1dc] sm:$0xf]
  %v164 = vld [vmem:[%s1 + $0x1e0] sm:$0xf]
  %v165 = vld [vmem:[%s1 + $0x1e4] sm:$0xf]
  %v166 = vld [vmem:[%s1 + $0x1e8] sm:$0xf]
  %v167 = vld [vmem:[%s1 + $0x1ec] sm:$0xf]
  %v168 = vld [vmem:[%s1 + $0x1f0] sm:$0xf]
  %v169 = vld [vmem:[%s1 + $0x1f4] sm:$0xf]
  %v170 = vld [vmem:[%s1 + $0x1f8] sm:$0xf]
  %v171 = vld [vmem:[%s1 + $0x1fc] sm:$0xf]
  %v172 = vld [vmem:[%s1 + $0x200] sm:$0xf]
  %v173 = vld [vmem:[%s1 + $0x204] sm:$0xf]
  %v174 = vld [vmem:[%s1 + $0x208] sm:$0xf]
  %v175 = vld [vmem:[%s1 + $0x20c] sm:$0xf]
  %v176 = vld [vmem:[%s1 + $0x210] sm:$0xf]
  %v177 = vld [vmem:[%s1 + $0x214] sm:$0xf]
  %v178 = vld [vmem:[%s1 + $0x218] sm:$0xf]
  %v179 = vld [vmem:[%s1 + $0x21c] sm:$0xf]
  %v180 = vld [vmem:[%s1 + $0x220] sm:$0xf]
  %v181 = vld [vmem:[%s1 + $0x224] sm:$0xf]
  %v182 = vld [vmem:[%s1 + $0x228] sm:$0xf]
  %v183 = vld [vmem:[%s1 + $0x22c] sm:$0xf]
  %v184 = vld [vmem:[%s1 + $0x230] sm:$0xf]
  %v185 = vld [vmem:[%s1 + $0x234] sm:$0xf]
  %v186 = vld [vmem:[%s1 + $0x238] sm:$0xf]
  %v187 = vld [vmem:[%s1 + $0x23c] sm:$0xf]
  %v188 = vld [vmem:[%s1 + $0x240] sm:$0xf]
  %v189 = vld [vmem:[%s1 + $0x244] sm:$0xf]
  %v190 = vld [vmem:[%s1 + $0x248] sm:$0xf]
  %v191 = vld [vmem:[%s1 + $0x24c] sm:$0xf]
  %v192 = vld [vmem:[%s1 + $0x250] sm:$0xf]
  %v193 = vld [vmem:[%s1 + $0x254] sm:$0xf]
  %v194 = vld [vmem:[%s1 + $0x258] sm:$0xf]
  %v195 = vld [vmem:[%s1 + $0x25c] sm:$0xf]
  %v196 = vld [vmem:[%s1 + $0x260] sm:$0xf]
  %v197 = vld [vmem:[%s1 + $0x264] sm:$0xf]
  %v198 = vld [vmem:[%s1 + $0x268] sm:$0xf]
  %v199 = vld [vmem:[%s1 + $0x26c] sm:$0xf]
  %v200 = vld [vmem:[%s1 + $0x270] sm:$0xf]
  %v201 = vld [vmem:[%s1 + $0x274] sm:$0xf]
  %v202 = vld [vmem:[%s1 + $0x278] sm:$0xf]
  %v203 = vld [vmem:[%s1 + $0x27c] sm:$0xf]
  %v204 = vld [vmem:[%s1 + $0x280] sm:$0xf]
  %v205 = vld [vmem:[%s1 + $0x284] sm:$0xf]
  %v206 = vld [vmem:[%s1 + $0x288] sm:$0xf]
  %v207 = vld [vmem:[%s1 + $0x28c] sm:$0xf]
  %v208 = vld [vmem:[%s1 + $0x290] sm:$0xf]
  %v209 = vld [vmem:[%s1 + $0x294] sm:$0xf]
  %v210 = vld [vmem:[%s1 + $0x298] sm:$0xf]
  %v211 = vld [vmem:[%s1 + $0x29c] sm:$0xf]
  %v212 = vld [vmem:[%s1 + $0x2a0] sm:$0xf]
  %v213 = vld [vmem:[%s1 + $0x2a4] sm:$0xf]
  %v214 = vld [vmem:[%s1 + $0x2a8] sm:$0xf]
  %v215 = vld [vmem:[%s1 + $0x2ac] sm:$0xf]
  %v216 = vld [vmem:[%s1 + $0x2b0] sm:$0xf]
  %v217 = vld [vmem:[%s1 + $0x2b4] sm:$0xf]
  %v218 = vld [vmem:[%s1 + $0x2b8] sm:$0xf]
  %v219 = vld [vmem:[%s1 + $0x2bc] sm:$0xf]
  %v220 = vld [vmem:[%s1 + $0x2c0] sm:$0xf]
  %v221 = vld [vmem:[%s1 + $0x2c4] sm:$0xf]
  %v222 = vld [vmem:[%s1 + $0x2c8] sm:$0xf]
  %v223 = vld [vmem:[%s1 + $0x2cc] sm:$0xf]
  %v224 = vld [vmem:[%s1 + $0x2d0] sm:$0xf]
  %v225 = vld [vmem:[%s1 + $0x2d4] sm:$0xf]
  %v226 = vld [vmem:[%s1 + $0x2d8] sm:$0xf]
  %v227 = vld [vmem:[%s1 + $0x2dc] sm:$0xf]
  %v228 = vld [vmem:[%s1 + $0x2e0] sm:$0xf]
  %v229 = vld [vmem:[%s1 + $0x2e4] sm:$0xf]
  %v230 = vld [vmem:[%s1 + $0x2e8] sm:$0xf]
  %v231 = vld [vmem:[%s1 + $0x2ec] sm:$0xf]
  %v232 = vld [vmem:[%s1 + $0x2f0] sm:$0xf]
  %v233 = vld [vmem:[%s1 + $0x2f4] sm:$0xf]
  %v234 = vld [vmem:[%s1 + $0x2f8] sm:$0xf]
  %v235 = vld [vmem:[%s1 + $0x2fc] sm:$0xf]
  %v236 = vld [vmem:[%s1 + $0x300] sm:$0xf]
  %v237 = vld [vmem:[%s1 + $0x304] sm:$0xf]
  %v238 = vld [vmem:[%s1 + $0x308] sm:$0xf]
  %v239 = vld [vmem:[%s1 + $0x30c] sm:$0xf]
  %v240 = vld [vmem:[%s1 + $0x310] sm:$0xf]
  %v241 = vld [vmem:[%s1 + $0x314] sm:$0xf]
  %v242 = vld [vmem:[%s1 + $0x318] sm:$0xf]
  %v243 = vld [vmem:[%s1 + $0x31c] sm:$0xf]
  %v244 = vld [vmem:[%s1 + $0x320] sm:$0xf]
  %v245 = vld [vmem:[%s1 + $0x324] sm:$0xf]
  %v246 = vld [vmem:[%s1 + $0x328] sm:$0xf]
  %v247 = vld [vmem:[%s1 + $0x32c] sm:$0xf]
  %v248 = vld [vmem:[%s1 + $0x330] sm:$0xf]
  %v249 = vld [vmem:[%s1 + $0x334] sm:$0xf]
  %v250 = vld [vmem:[%s1 + $0x338] sm:$0xf]
  %v251 = vld [vmem:[%s1 + $0x33c] sm:$0xf]
  %v252 = vld [vmem:[%s1 + $0x340] sm:$0xf]
  %v253 = vld [vmem:[%s1 + $0x344] sm:$0xf]
  %v254 = vld [vmem:[%s1 + $0x348] sm:$0xf]
  %v255 = vld [vmem:[%s1 + $0x34c] sm:$0xf]
  %v256 = vld [vmem:[%s1 + $0x350] sm:$0xf]
  %v257 = vld [vmem:[%s1 + $0x354] sm:$0xf]
  %v258 = vld [vmem:[%s1 + $0x358] sm:$0xf]
  %v259 = vld [vmem:[%s1 + $0x35c] sm:$0xf]
  %v260 = vld [vmem:[%s1 + $0x360] sm:$0xf]
  %v261 = vld [vmem:[%s1 + $0x364] sm:$0xf]
  %v262 = vld [vmem:[%s1 + $0x368] sm:$0xf]
  %v263 = vld [vmem:[%s1 + $0x36c] sm:$0xf]
  %v264 = vld [vmem:[%s1 + $0x370] sm:$0xf]
  %v265 = vld [vmem:[%s1 + $0x374] sm:$0xf]
  %v266 = vld [vmem:[%s1 + $0x378] sm:$0xf]
  %v267 = vld [vmem:[%s1 + $0x37c] sm:$0xf]
  %v268 = vld [vmem:[%s1 + $0x380] sm:$0xf]
  %v269 = vld [vmem:[%s1 + $0x384] sm:$0xf]
  %v270 = vld [vmem:[%s1 + $0x388] sm:$0xf]
  %v271 = vld [vmem:[%s1 + $0x38c] sm:$0xf]
  %v272 = vld [vmem:[%s1 + $0x390] sm:$0xf]
  %v273 = vld [vmem:[%s1 + $0x394] sm:$0xf]
  %v274 = vld [vmem:[%s1 + $0x398] sm:$0xf]
  %v275 = vld [vmem:[%s1 + $0x39c] sm:$0xf]
  %v276 = vld [vmem:[%s1 + $0x3a0] sm:$0xf]
  %v277 = vld [vmem:[%s1 + $0x3a4] sm:$0xf]
  %v278 = vld [vmem:[%s1 + $0x3a8] sm:$0xf]
  %v279 = vld [vmem:[%s1 + $0x3ac] sm:$0xf]
  %v280 = vld [vmem:[%s1 + $0x3b0] sm:$0xf]
  %v281 = vld [vmem:[%s1 + $0x3b4] sm:$0xf]
  %v282 = vld [vmem:[%s1 + $0x3b8] sm:$0xf]
  %v283 = vld [vmem:[%s1 + $0x3bc] sm:$0xf]
  %v284 = vld [vmem:[%s1 + $0x3c0] sm:$0xf]
  %v285 = vld [vmem:[%s1 + $0x3c4] sm:$0xf]
  %v286 = vld [vmem:[%s1 + $0x3c8] sm:$0xf]
  %v287 = vld [vmem:[%s1 + $0x3cc] sm:$0xf]
  %v288 = vld [vmem:[%s1 + $0x3d0] sm:$0xf]
  %v289 = vld [vmem:[%s1 + $0x3d4] sm:$0xf]
  %v290 = vld [vmem:[%s1 + $0x3d8] sm:$0xf]
  %v291 = vld [vmem:[%s1 + $0x3dc] sm:$0xf]
  %v292 = vld [vmem:[%s1 + $0x3e0] sm:$0xf]
  %v293 = vld [vmem:[%s1 + $0x3e4] sm:$0xf]
  %v294 = vld [vmem:[%s1 + $0x3e8] sm:$0xf]
  %v295 = vld [vmem:[%s1 + $0x3ec] sm:$0xf]
  %v296 = vld [vmem:[%s1 + $0x3f0] sm:$0xf]
  %v297 = vld [vmem:[%s1 + $0x3f4] sm:$0xf]
  %v298 = vld [vmem:[%s1 + $0x3f8] sm:$0xf]
  %v299 = vld [vmem:[%s1 + $0x3fc] sm:$0xf]
  %v300 = vld [vmem:[%s1 + $0x400] sm:$0xf]
  %v301 = vld [vmem:[%s1 + $0x404] sm:$0xf]
  %v302 = vld [vmem:[%s1 + $0x408] sm:$0xf]
  %v303 = vld [vmem:[%s1 + $0x40c] sm:$0xf]
  %v304 = vld [vmem:[%s1 + $0x410] sm:$0xf]
  %v305 = vld [vmem:[%s1 + $0x414] sm:$0xf]
  %v306 = vld [vmem:[%s1 + $0x418] sm:$0xf]
  %v307 = vld [vmem:[%s1 + $0x41c] sm:$0xf]
  %v308 = vld [vmem:[%s1 + $0x420] sm:$0xf]
  %v309 = vld [vmem:[%s1 + $0x424] sm:$0xf]
  %v310 = vld [vmem:[%s1 + $0x428] sm:$0xf]
  %v311 = vld [vmem:[%s1 + $0x42c] sm:$0xf]
  %v312 = vld [vmem:[%s1 + $0x430] sm:$0xf]
  %v313 = vld [vmem:[%s1 + $0x434] sm:$0xf]
  %v314 = vld [vmem:[%s1 + $0x438] sm:$0xf]
  %v315 = vld [vmem:[%s1 + $0x43c] sm:$0xf]
  %v316 = vld [vmem:[%s1 + $0x440] sm:$0xf]
  %v317 = vld [vmem:[%s1 + $0x444] sm:$0xf]
  %v318 = vld [vmem:[%s1 + $0x448] sm:$0xf]
  %v319 = vld [vmem:[%s1 + $0x44c] sm:$0xf]
  %v320 = vld [vmem:[%s1 + $0x450] sm:$0xf]
  %v321 = vld [vmem:[%s1 + $0x454] sm:$0xf]
  %v322 = vld [vmem:[%s1 + $0x458] sm:$0xf]
  %v323 = vld [vmem:[%s1 + $0x45c] sm:$0xf]
  %v324 = vld [vmem:[%s1 + $0x460] sm:$0xf]
  %v325 = vld [vmem:[%s1 + $0x464] sm:$0xf]
  %v326 = vld [vmem:[%s1 + $0x468] sm:$0xf]
  %v327 = vld [vmem:[%s1 + $0x46c] sm:$0xf]
  %v328 = vld [vmem:[%s1 + $0x470] sm:$0xf]
  %v329 = vld [vmem:[%s1 + $0x474] sm:$0xf]
  %v330 = vld [vmem:[%s1 + $0x478] sm:$0xf]
  %v331 = vld [vmem:[%s1 + $0x47c] sm:$0xf]
  %v332 = vld [vmem:[%s1 + $0x480] sm:$0xf]
  %v333 = vld [vmem:[%s1 + $0x484] sm:$0xf]
  %v334 = vld [vmem:[%s1 + $0x488] sm:$0xf]
  %v335 = vld [vmem:[%s1 + $0x48c] sm:$0xf]
  %v336 = vld [vmem:[%s1 + $0x490] sm:$0xf]
  %v337 = vld [vmem:[%s1 + $0x494] sm:$0xf]
  %v338 = vld [vmem:[%s1 + $0x498] sm:$0xf]
  %v339 = vld [vmem:[%s1 + $0x49c] sm:$0xf]
  %v340 = vld [vmem:[%s1 + $0x4a0] sm:$0xf]
  %v341 = vld [vmem:[%s1 + $0x4a4] sm:$0xf]
  %v342 = vld [vmem:[%s1 + $0x4a8] sm:$0xf]
  %v343 = vld [vmem:[%s1 + $0x4ac] sm:$0xf]
  %v344 = vld [vmem:[%s1 + $0x4b0] sm:$0xf]
  %v345 = vld [vmem:[%s1 + $0x4b4] sm:$0xf]
  %v346 = vld [vmem:[%s1 + $0x4b8] sm:$0xf]
  %v347 = vld [vmem:[%s1 + $0x4bc] sm:$0xf]
  %v348 = vld [vmem:[%s1 + $0x4c0] sm:$0xf]
  %v349 = vld [vmem:[%s1 + $0x4c4] sm:$0xf]
  %v350 = vld [vmem:[%s1 + $0x4c8] sm:$0xf]
  %v351 = vld [vmem:[%s1 + $0x4cc] sm:$0xf]
  %v352 = vld [vmem:[%s1 + $0x4d0] sm:$0xf]
  %v353 = vld [vmem:[%s1 + $0x4d4] sm:$0xf]
  %v354 = vld [vmem:[%s1 + $0x4d8] sm:$0xf]
  %v355 = vld [vmem:[%s1 + $0x4dc] sm:$0xf]
  %v356 = vld [vmem:[%s1 + $0x4e0] sm:$0xf]
  %v357 = vld [vmem:[%s1 + $0x4e4] sm:$0xf]
  %v358 = vld [vmem:[%s1 + $0x4e8] sm:$0xf]
  %v359 = vld [vmem:[%s1 + $0x4ec] sm:$0xf]
  %v360 = vld [vmem:[%s1 + $0x4f0] sm:$0xf]
  %v361 = vld [vmem:[%s1 + $0x4f4] sm:$0xf]
  %v362 = vld [vmem:[%s1 + $0x4f8] sm:$0xf]
  %v363 = vld [vmem:[%s1 + $0x4fc] sm:$0xf]
  %v364 = vld [vmem:[%s1 + $0x500] sm:$0xf]
  %v365 = vld [vmem:[%s1 + $0x504] sm:$0xf]
  %v366 = vld [vmem:[%s1 + $0x508] sm:$0xf]
  %v367 = vld [vmem:[%s1 + $0x50c] sm:$0xf]
  %v368 = vld [vmem:[%s1 + $0x510] sm:$0xf]
  %v369 = vld [vmem:[%s1 + $0x514] sm:$0xf]
  %v370 = vld [vmem:[%s1 + $0x518] sm:$0xf]
  %v371 = vld [vmem:[%s1 + $0x51c] sm:$0xf]
  %v372 = vld [vmem:[%s1 + $0x520] sm:$0xf]
  %v373 = vld [vmem:[%s1 + $0x524] sm:$0xf]
  %v374 = vld [vmem:[%s1 + $0x528] sm:$0xf]
  %v375 = vld [vmem:[%s1 + $0x52c] sm:$0xf]
  %v376 = vld [vmem:[%s1 + $0x530] sm:$0xf]
  %v377 = vld [vmem:[%s1 + $0x534] sm:$0xf]
  %v378 = vld [vmem:[%s1 + $0x538] sm:$0xf]
  %v379 = vld [vmem:[%s1 + $0x53c] sm:$0xf]
  %v380 = vld [vmem:[%s1 + $0x540] sm:$0xf]
  %v381 = vld [vmem:[%s1 + $0x544] sm:$0xf]
  %v382 = vld [vmem:[%s1 + $0x548] sm:$0xf]
  %v383 = vld [vmem:[%s1 + $0x54c] sm:$0xf]
  %v384 = vld [vmem:[%s1 + $0x550] sm:$0xf]
  %v385 = vld [vmem:[%s1 + $0x554] sm:$0xf]
  %v386 = vld [vmem:[%s1 + $0x558] sm:$0xf]
  %v387 = vld [vmem:[%s1 + $0x55c] sm:$0xf]
  %v388 = vld [vmem:[%s1 + $0x560] sm:$0xf]
  %v389 = vld [vmem:[%s1 + $0x564] sm:$0xf]
  %v390 = vld [vmem:[%s1 + $0x568] sm:$0xf]
  %v391 = vld [vmem:[%s1 + $0x56c] sm:$0xf]
  %v392 = vld [vmem:[%s1 + $0x570] sm:$0xf]
  %v393 = vld [vmem:[%s1 + $0x574] sm:$0xf]
  %v394 = vld [vmem:[%s1 + $0x578] sm:$0xf]
  %v395 = vld [vmem:[%s1 + $0x57c] sm:$0xf]
  %v396 = vld [vmem:[%s1 + $0x580] sm:$0xf]
  %v397 = vld [vmem:[%s1 + $0x584] sm:$0xf]
  %v398 = vld [vmem:[%s1 + $0x588] sm:$0xf]
  %v399 = vld [vmem:[%s1 + $0x58c] sm:$0xf]
  %v400 = vld [vmem:[%s1 + $0x590] sm:$0xf]
  %v401 = vld [vmem:[%s1 + $0x594] sm:$0xf]
  %v402 = vld [vmem:[%s1 + $0x598] sm:$0xf]
  %v403 = vld [vmem:[%s1 + $0x59c] sm:$0xf]
  %v404 = vld [vmem:[%s1 + $0x5a0] sm:$0xf]
  %v405 = vld [vmem:[%s1 + $0x5a4] sm:$0xf]
  %v406 = vld [vmem:[%s1 + $0x5a8] sm:$0xf]
  %v407 = vld [vmem:[%s1 + $0x5ac] sm:$0xf]
  %v408 = vld [vmem:[%s1 + $0x5b0] sm:$0xf]
  %v409 = vld [vmem:[%s1 + $0x5b4] sm:$0xf]
  %v410 = vld [vmem:[%s1 + $0x5b8] sm:$0xf]
  %v411 = vld [vmem:[%s1 + $0x5bc] sm:$0xf]
  %v412 = vld [vmem:[%s1 + $0x5c0] sm:$0xf]
  %v413 = vld [vmem:[%s1 + $0x5c4] sm:$0xf]
  %v414 = vld [vmem:[%s1 + $0x5c8] sm:$0xf]
  %v415 = vld [vmem:[%s1 + $0x5cc] sm:$0xf]
  %v416 = vld [vmem:[%s1 + $0x5d0] sm:$0xf]
  %v417 = vld [vmem:[%s1 + $0x5d4] sm:$0xf]
  %v418 = vld [vmem:[%s1 + $0x5d8] sm:$0xf]
  %v419 = vld [vmem:[%s1 + $0x5dc] sm:$0xf]
  %v420 = vld [vmem:[%s1 + $0x5e0] sm:$0xf]
  %v421 = vld [vmem:[%s1 + $0x5e4] sm:$0xf]
  %v422 = vld [vmem:[%s1 + $0x5e8] sm:$0xf]
  %v423 = vld [vmem:[%s1 + $0x5ec] sm:$0xf]
  %v424 = vld [vmem:[%s1 + $0x5f0] sm:$0xf]
  %v425 = vld [vmem:[%s1 + $0x5f4] sm:$0xf]
  %v426 = vld [vmem:[%s1 + $0x5f8] sm:$0xf]
  %v427 = vld [vmem:[%s1 + $0x5fc] sm:$0xf]
  %v428 = vld [vmem:[%s1 + $0x600] sm:$0xf]
  %v429 = vld [vmem:[%s1 + $0x604] sm:$0xf]
  %v430 = vld [vmem:[%s1 + $0x608] sm:$0xf]
  %v431 = vld [vmem:[%s1 + $0x60c] sm:$0xf]
  %v432 = vld [vmem:[%s1 + $0x610] sm:$0xf]
  %v433 = vld [vmem:[%s1 + $0x614] sm:$0xf]
  %v434 = vld [vmem:[%s1 + $0x618] sm:$0xf]
  %v435 = vld [vmem:[%s1 + $0x61c] sm:$0xf]
  %v436 = vld [vmem:[%s1 + $0x620] sm:$0xf]
  %v437 = vld [vmem:[%s1 + $0x624] sm:$0xf]
  %v438 = vld [vmem:[%s1 + $0x628] sm:$0xf]
  %v439 = vld [vmem:[%s1 + $0x62c] sm:$0xf]
  %v440 = vld [vmem:[%s1 + $0x630] sm:$0xf]
  %v441 = vld [vmem:[%s1 + $0x634] sm:$0xf]
  %v442 = vld [vmem:[%s1 + $0x638] sm:$0xf]
  %v443 = vld [vmem:[%s1 + $0x63c] sm:$0xf]
  %v444 = vld [vmem:[%s1 + $0x640] sm:$0xf]
  %v445 = vld [vmem:[%s1 + $0x644] sm:$0xf]
  %v446 = vld [vmem:[%s1 + $0x648] sm:$0xf]
  %v447 = vld [vmem:[%s1 + $0x64c] sm:$0xf]
  %v448 = vld [vmem:[%s1 + $0x650] sm:$0xf]
  %v449 = vld [vmem:[%s1 + $0x654] sm:$0xf]
  %v450 = vld [vmem:[%s1 + $0x658] sm:$0xf]
  %v451 = vld [vmem:[%s1 + $0x65c] sm:$0xf]
  %v452 = vld [vmem:[%s1 + $0x660] sm:$0xf]
  %v453 = vld [vmem:[%s1 + $0x664] sm:$0xf]
  %v454 = vld [vmem:[%s1 + $0x668] sm:$0xf]
  %v455 = vld [vmem:[%s1 + $0x66c] sm:$0xf]
  %v456 = vld [vmem:[%s1 + $0x670] sm:$0xf]
  %v457 = vld [vmem:[%s1 + $0x674] sm:$0xf]
  %v458 = vld [vmem:[%s1 + $0x678] sm:$0xf]
  %v459 = vld [vmem:[%s1 + $0x67c] sm:$0xf]
  %v460 = vld [vmem:[%s1 + $0x680] sm:$0xf]
  %v461 = vld [vmem:[%s1 + $0x684] sm:$0xf]
  %v462 = vld [vmem:[%s1 + $0x688] sm:$0xf]
  %v463 = vld [vmem:[%s1 + $0x68c] sm:$0xf]
  %v464 = vld [vmem:[%s1 + $0x690] sm:$0xf]
  %v465 = vld [vmem:[%s1 + $0x694] sm:$0xf]
  %v466 = vld [vmem:[%s1 + $0x698] sm:$0xf]
  %v467 = vld [vmem:[%s1 + $0x69c] sm:$0xf]
  %v468 = vld [vmem:[%s1 + $0x6a0] sm:$0xf]
  %v469 = vld [vmem:[%s1 + $0x6a4] sm:$0xf]
  %v470 = vld [vmem:[%s1 + $0x6a8] sm:$0xf]
  %v471 = vld [vmem:[%s1 + $0x6ac] sm:$0xf]
  %v472 = vld [vmem:[%s1 + $0x6b0] sm:$0xf]
  %v473 = vld [vmem:[%s1 + $0x6b4] sm:$0xf]
  %v474 = vld [vmem:[%s1 + $0x6b8] sm:$0xf]
  %v475 = vld [vmem:[%s1 + $0x6bc] sm:$0xf]
  %v476 = vld [vmem:[%s1 + $0x6c0] sm:$0xf]
  %v477 = vld [vmem:[%s1 + $0x6c4] sm:$0xf]
  %v478 = vld [vmem:[%s1 + $0x6c8] sm:$0xf]
  %v479 = vld [vmem:[%s1 + $0x6cc] sm:$0xf]
  %v480 = vld [vmem:[%s1 + $0x6d0] sm:$0xf]
  %v481 = vld [vmem:[%s1 + $0x6d4] sm:$0xf]
  %v482 = vld [vmem:[%s1 + $0x6d8] sm:$0xf]
  %v483 = vld [vmem:[%s1 + $0x6dc] sm:$0xf]
  %v484 = vld [vmem:[%s1 + $0x6e0] sm:$0xf]
  %v485 = vld [vmem:[%s1 + $0x6e4] sm:$0xf]
  %v486 = vld [vmem:[%s1 + $0x6e8] sm:$0xf]
  %v487 = vld [vmem:[%s1 + $0x6ec] sm:$0xf]
  %v488 = vld [vmem:[%s1 + $0x6f0] sm:$0xf]
  %v489 = vld [vmem:[%s1 + $0x6f4] sm:$0xf]
  %v490 = vld [vmem:[%s1 + $0x6f8] sm:$0xf]
  %v491 = vld [vmem:[%s1 + $0x6fc] sm:$0xf]
  %v492 = vld [vmem:[%s1 + $0x700] sm:$0xf]
  %v493 = vld [vmem:[%s1 + $0x704] sm:$0xf]
  %v494 = vld [vmem:[%s1 + $0x708] sm:$0xf]
  %v495 = vld [vmem:[%s1 + $0x70c] sm:$0xf]
  %v496 = vld [vmem:[%s1 + $0x710] sm:$0xf]
  %v497 = vld [vmem:[%s1 + $0x714] sm:$0xf]
  %v498 = vld [vmem:[%s1 + $0x718] sm:$0xf]
  %v499 = vld [vmem:[%s1 + $0x71c] sm:$0xf]
  %v500 = vld [vmem:[%s1 + $0x720] sm:$0xf]
  %v501 = vld [vmem:[%s1 + $0x724] sm:$0xf]
  %v502 = vld [vmem:[%s1 + $0x728] sm:$0xf]
  %v503 = vld [vmem:[%s1 + $0x72c] sm:$0xf]
  %v504 = vld [vmem:[%s1 + $0x730] sm:$0xf]
  %v505 = vld [vmem:[%s1 + $0x734] sm:$0xf]
  %v506 = vld [vmem:[%s1 + $0x738] sm:$0xf]
  %v507 = vld [vmem:[%s1 + $0x73c] sm:$0xf]
  %v508 = vld [vmem:[%s1 + $0x740] sm:$0xf]
  %v509 = vld [vmem:[%s1 + $0x744] sm:$0xf]
  %v510 = vld [vmem:[%s1 + $0x748] sm:$0xf]
  %v511 = vld [vmem:[%s1 + $0x74c] sm:$0xf]
  %v512 = vld [vmem:[%s1 + $0x750] sm:$0xf]
  %v513 = vld [vmem:[%s1 + $0x754] sm:$0xf]
  %v514 = vld [vmem:[%s1 + $0x758] sm:$0xf]
  %v515 = vld [vmem:[%s1 + $0x75c] sm:$0xf]
  %v516 = vld [vmem:[%s1 + $0x760] sm:$0xf]
  %v517 = vld [vmem:[%s1 + $0x764] sm:$0xf]
  %v518 = vld [vmem:[%s1 + $0x768] sm:$0xf]
  %v519 = vld [vmem:[%s1 + $0x76c] sm:$0xf]
  %v520 = vld [vmem:[%s1 + $0x770] sm:$0xf]
  %v521 = vld [vmem:[%s1 + $0x774] sm:$0xf]
  %v522 = vld [vmem:[%s1 + $0x778] sm:$0xf]
  %v523 = vld [vmem:[%s1 + $0x77c] sm:$0xf]
  %v524 = vld [vmem:[%s1 + $0x780] sm:$0xf]
  %v525 = vld [vmem:[%s1 + $0x784] sm:$0xf]
  %v526 = vld [vmem:[%s1 + $0x788] sm:$0xf]
  %v527 = vld [vmem:[%s1 + $0x78c] sm:$0xf]
  %v528 = vld [vmem:[%s1 + $0x790] sm:$0xf]
  %v529 = vld [vmem:[%s1 + $0x794] sm:$0xf]
  %v530 = vld [vmem:[%s1 + $0x798] sm:$0xf]
  %v531 = vld [vmem:[%s1 + $0x79c] sm:$0xf]
  %v532 = vld [vmem:[%s1 + $0x7a0] sm:$0xf]
  %v533 = vld [vmem:[%s1 + $0x7a4] sm:$0xf]
  %v534 = vld [vmem:[%s1 + $0x7a8] sm:$0xf]
  %v535 = vld [vmem:[%s1 + $0x7ac] sm:$0xf]
  %v536 = vld [vmem:[%s1 + $0x7b0] sm:$0xf]
  %v537 = vld [vmem:[%s1 + $0x7b4] sm:$0xf]
  %v538 = vld [vmem:[%s1 + $0x7b8] sm:$0xf]
  %v539 = vld [vmem:[%s1 + $0x7bc] sm:$0xf]
  %v540 = vld [vmem:[%s1 + $0x7c0] sm:$0xf]
  %v541 = vld [vmem:[%s1 + $0x7c4] sm:$0xf]
  %v542 = vld [vmem:[%s1 + $0x7c8] sm:$0xf]
  %v543 = vld [vmem:[%s1 + $0x7cc] sm:$0xf]
  %v544 = vld [vmem:[%s1 + $0x7d0] sm:$0xf]
  %v545 = vld [vmem:[%s1 + $0x7d4] sm:$0xf]
  %v546 = vld [vmem:[%s1 + $0x7d8] sm:$0xf]
  %v547 = vld [vmem:[%s1 + $0x7dc] sm:$0xf]
  %v548 = vld [vmem:[%s1 + $0x7e0] sm:$0xf]
  %v549 = vld [vmem:[%s1 + $0x7e4] sm:$0xf]
  %v550 = vld [vmem:[%s1 + $0x7e8] sm:$0xf]
  %v551 = vld [vmem:[%s1 + $0x7ec] sm:$0xf]
  %v552 = vld [vmem:[%s1 + $0x7f0] sm:$0xf]
  %v553 = vld [vmem:[%s1 + $0x7f4] sm:$0xf]
  %v554 = vld [vmem:[%s1 + $0x7f8] sm:$0xf]
  %v555 = vld [vmem:[%s1 + $0x7fc] sm:$0xf]
  %v556 = vld [vmem:[%s1 + $0x800] sm:$0xf]
  %v557 = vld [vmem:[%s1 + $0x804] sm:$0xf]
  %v558 = vld [vmem:[%s1 + $0x808] sm:$0xf]
  %v559 = vld [vmem:[%s1 + $0x80c] sm:$0xf]
  %v560 = vld [vmem:[%s1 + $0x810] sm:$0xf]
  %v561 = vld [vmem:[%s1 + $0x814] sm:$0xf]
  %v562 = vld [vmem:[%s1 + $0x818] sm:$0xf]
  %v563 = vld [vmem:[%s1 + $0x81c] sm:$0xf]
  %v564 = vld [vmem:[%s1 + $0x820] sm:$0xf]
  %v565 = vld [vmem:[%s1 + $0x824] sm:$0xf]
  %v566 = vld [vmem:[%s1 + $0x828] sm:$0xf]
  %v567 = vld [vmem:[%s1 + $0x82c] sm:$0xf]
  %v568 = vld [vmem:[%s1 + $0x830] sm:$0xf]
  %v569 = vld [vmem:[%s1 + $0x834] sm:$0xf]
  %v570 = vld [vmem:[%s1 + $0x838] sm:$0xf]
  %v571 = vld [vmem:[%s1 + $0x83c] sm:$0xf]
  %v572 = vld [vmem:[%s1 + $0x840] sm:$0xf]
  %v573 = vld [vmem:[%s1 + $0x844] sm:$0xf]
  %v574 = vld [vmem:[%s1 + $0x848] sm:$0xf]
  %v575 = vld [vmem:[%s1 + $0x84c] sm:$0xf]
  %v576 = vld [vmem:[%s1 + $0x850] sm:$0xf]
  %v577 = vld [vmem:[%s1 + $0x854] sm:$0xf]
  %v578 = vld [vmem:[%s1 + $0x858] sm:$0xf]
  %v579 = vld [vmem:[%s1 + $0x85c] sm:$0xf]
  %v580 = vld [vmem:[%s1 + $0x860] sm:$0xf]
  %v581 = vld [vmem:[%s1 + $0x864] sm:$0xf]
  %v582 = vld [vmem:[%s1 + $0x868] sm:$0xf]
  %v583 = vld [vmem:[%s1 + $0x86c] sm:$0xf]
  %v584 = vld [vmem:[%s1 + $0x870] sm:$0xf]
  %v585 = vld [vmem:[%s1 + $0x874] sm:$0xf]
  %v586 = vld [vmem:[%s1 + $0x878] sm:$0xf]
  %v587 = vld [vmem:[%s1 + $0x87c] sm:$0xf]
  %v588 = vld [vmem:[%s1 + $0x880] sm:$0xf]
  %v589 = vld [vmem:[%s1 + $0x884] sm:$0xf]
  %v590 = vld [vmem:[%s1 + $0x888] sm:$0xf]
  %v591 = vld [vmem:[%s1 + $0x88c] sm:$0xf]
  %v592 = vld [vmem:[%s1 + $0x890] sm:$0xf]
  %v593 = vld [vmem:[%s1 + $0x894] sm:$0xf]
  %v594 = vld [vmem:[%s1 + $0x898] sm:$0xf]
  %v595 = vld [vmem:[%s1 + $0x89c] sm:$0xf]
  %v596 = vld [vmem:[%s1 + $0x8a0] sm:$0xf]
  %v597 = vld [vmem:[%s1 + $0x8a4] sm:$0xf]
  %v598 = vld [vmem:[%s1 + $0x8a8] sm:$0xf]
  %v599 = vld [vmem:[%s1 + $0x8ac] sm:$0xf]
  %v600 = vld [vmem:[%s1 + $0x8b0] sm:$0xf]
  %v601 = vld [vmem:[%s1 + $0x8b4] sm:$0xf]
  %v602 = vld [vmem:[%s1 + $0x8b8] sm:$0xf]
  %v603 = vld [vmem:[%s1 + $0x8bc] sm:$0xf]
  %v604 = vld [vmem:[%s1 + $0x8c0] sm:$0xf]
  %v605 = vld [vmem:[%s1 + $0x8c4] sm:$0xf]
  %v606 = vld [vmem:[%s1 + $0x8c8] sm:$0xf]
  %v607 = vld [vmem:[%s1 + $0x8cc] sm:$0xf]
  %v608 = vld [vmem:[%s1 + $0x8d0] sm:$0xf]
  %v609 = vld [vmem:[%s1 + $0x8d4] sm:$0xf]
  %v610 = vld [vmem:[%s1 + $0x8d8] sm:$0xf]
  %v611 = vld [vmem:[%s1 + $0x8dc] sm:$0xf]
  %v612 = vld [vmem:[%s1 + $0x8e0] sm:$0xf]
  %v613 = vld [vmem:[%s1 + $0x8e4] sm:$0xf]
  %v614 = vld [vmem:[%s1 + $0x8e8] sm:$0xf]
  %v615 = vld [vmem:[%s1 + $0x8ec] sm:$0xf]
  %v616 = vld [vmem:[%s1 + $0x8f0] sm:$0xf]
  %v617 = vld [vmem:[%s1 + $0x8f4] sm:$0xf]
  %v618 = vld [vmem:[%s1 + $0x8f8] sm:$0xf]
  %v619 = vld [vmem:[%s1 + $0x8fc] sm:$0xf]
  %v620 = vld [vmem:[%s1 + $0x900] sm:$0xf]
  %v621 = vld [vmem:[%s1 + $0x904] sm:$0xf]
  %v622 = vld [vmem:[%s1 + $0x908] sm:$0xf]
  %v623 = vld [vmem:[%s1 + $0x90c] sm:$0xf]
  %v624 = vld [vmem:[%s1 + $0x910] sm:$0xf]
  %v625 = vld [vmem:[%s1 + $0x914] sm:$0xf]
  %v626 = vld [vmem:[%s1 + $0x918] sm:$0xf]
  %v627 = vld [vmem:[%s1 + $0x91c] sm:$0xf]
  %v628 = vld [vmem:[%s1 + $0x920] sm:$0xf]
  %v629 = vld [vmem:[%s1 + $0x924] sm:$0xf]
  %v630 = vld [vmem:[%s1 + $0x928] sm:$0xf]
  %v631 = vld [vmem:[%s1 + $0x92c] sm:$0xf]
  %v632 = vld [vmem:[%s1 + $0x930] sm:$0xf]
  %v633 = vld [vmem:[%s1 + $0x934] sm:$0xf]
  %v634 = vld [vmem:[%s1 + $0x938] sm:$0xf]
  %v635 = vld [vmem:[%s1 + $0x93c] sm:$0xf]
  %v636 = vld [vmem:[%s1 + $0x940] sm:$0xf]
  %v637 = vld [vmem:[%s1 + $0x944] sm:$0xf]
  %v638 = vld [vmem:[%s1 + $0x948] sm:$0xf]
  %v639 = vld [vmem:[%s1 + $0x94c] sm:$0xf]
  %v640 = vld [vmem:[%s1 + $0x950] sm:$0xf]
  %v641 = vld [vmem:[%s1 + $0x954] sm:$0xf]
  %v642 = vld [vmem:[%s1 + $0x958] sm:$0xf]
  %v643 = vld [vmem:[%s1 + $0x95c] sm:$0xf]
  %v644 = vld [vmem:[%s1 + $0x960] sm:$0xf]
  %v645 = vld [vmem:[%s1 + $0x964] sm:$0xf]
  %v646 = vld [vmem:[%s1 + $0x968] sm:$0xf]
  %v647 = vld [vmem:[%s1 + $0x96c] sm:$0xf]
  %v648 = vld [vmem:[%s1 + $0x970] sm:$0xf]
  %v649 = vld [vmem:[%s1 + $0x974] sm:$0xf]
  %v650 = vld [vmem:[%s1 + $0x978] sm:$0xf]
  %v651 = vld [vmem:[%s1 + $0x97c] sm:$0xf]
  %v652 = vld [vmem:[%s1 + $0x980] sm:$0xf]
  %v653 = vld [vmem:[%s1 + $0x984] sm:$0xf]
  %v654 = vld [vmem:[%s1 + $0x988] sm:$0xf]
  %v655 = vld [vmem:[%s1 + $0x98c] sm:$0xf]
  %v656 = vld [vmem:[%s1 + $0x990] sm:$0xf]
  %v657 = vld [vmem:[%s1 + $0x994] sm:$0xf]
  %v658 = vld [vmem:[%s1 + $0x998] sm:$0xf]
  %v659 = vld [vmem:[%s1 + $0x99c] sm:$0xf]
  %v660 = vld [vmem:[%s1 + $0x9a0] sm:$0xf]
  %v661 = vld [vmem:[%s1 + $0x9a4] sm:$0xf]
  %v662 = vld [vmem:[%s1 + $0x9a8] sm:$0xf]
  %v663 = vld [vmem:[%s1 + $0x9ac] sm:$0xf]
  %v664 = vld [vmem:[%s1 + $0x9b0] sm:$0xf]
  %v665 = vld [vmem:[%s1 + $0x9b4] sm:$0xf]
  %v666 = vld [vmem:[%s1 + $0x9b8] sm:$0xf]
  %v667 = vld [vmem:[%s1 + $0x9bc] sm:$0xf]
  %v668 = vld [vmem:[%s1 + $0x9c0] sm:$0xf]
  %v669 = vld [vmem:[%s1 + $0x9c4] sm:$0xf]
  %v670 = vld [vmem:[%s1 + $0x9c8] sm:$0xf]
  %v671 = vld [vmem:[%s1 + $0x9cc] sm:$0xf]
  %v672 = vld [vmem:[%s1 + $0x9d0] sm:$0xf]
  %v673 = vld [vmem:[%s1 + $0x9d4] sm:$0xf]
  %v674 = vld [vmem:[%s1 + $0x9d8] sm:$0xf]
  %v675 = vld [vmem:[%s1 + $0x9dc] sm:$0xf]
  %v676 = vld [vmem:[%s1 + $0x9e0] sm:$0xf]
  %v677 = vld [vmem:[%s1 + $0x9e4] sm:$0xf]
  %v678 = vld [vmem:[%s1 + $0x9e8] sm:$0xf]
  %v679 = vld [vmem:[%s1 + $0x9ec] sm:$0xf]
  %v680 = vld [vmem:[%s1 + $0x9f0] sm:$0xf]
  %v681 = vld [vmem:[%s1 + $0x9f4] sm:$0xf]
  %v682 = vld [vmem:[%s1 + $0x9f8] sm:$0xf]
  %v683 = vld [vmem:[%s1 + $0x9fc] sm:$0xf]
  %v684 = vld [vmem:[%s1 + $0xa00] sm:$0xf]
  %v685 = vld [vmem:[%s1 + $0xa04] sm:$0xf]
  %v686 = vld [vmem:[%s1 + $0xa08] sm:$0xf]
  %v687 = vld [vmem:[%s1 + $0xa0c] sm:$0xf]
  %v688 = vld [vmem:[%s1 + $0xa10] sm:$0xf]
  %v689 = vld [vmem:[%s1 + $0xa14] sm:$0xf]
  %v690 = vld [vmem:[%s1 + $0xa18] sm:$0xf]
  %v691 = vld [vmem:[%s1 + $0xa1c] sm:$0xf]
  %v692 = vld [vmem:[%s1 + $0xa20] sm:$0xf]
  %v693 = vld [vmem:[%s1 + $0xa24] sm:$0xf]
  %v694 = vld [vmem:[%s1 + $0xa28] sm:$0xf]
  %v695 = vld [vmem:[%s1 + $0xa2c] sm:$0xf]
  %v696 = vld [vmem:[%s1 + $0xa30] sm:$0xf]
  %v697 = vld [vmem:[%s1 + $0xa34] sm:$0xf]
  %v698 = vld [vmem:[%s1 + $0xa38] sm:$0xf]
  %v699 = vld [vmem:[%s1 + $0xa3c] sm:$0xf]
  %v700 = vld [vmem:[%s1 + $0xa40] sm:$0xf]
  %v701 = vld [vmem:[%s1 + $0xa44] sm:$0xf]
  %v702 = vld [vmem:[%s1 + $0xa48] sm:$0xf]
  %v703 = vld [vmem:[%s1 + $0xa4c] sm:$0xf]
  %v704 = vld [vmem:[%s1 + $0xa50] sm:$0xf]
  %v705 = vld [vmem:[%s1 + $0xa54] sm:$0xf]
  %v706 = vld [vmem:[%s1 + $0xa58] sm:$0xf]
  %v707 = vld [vmem:[%s1 + $0xa5c] sm:$0xf]
  %v708 = vld [vmem:[%s1 + $0xa60] sm:$0xf]
  %v709 = vld [vmem:[%s1 + $0xa64] sm:$0xf]
  %v710 = vld [vmem:[%s1 + $0xa68] sm:$0xf]
  %v711 = vld [vmem:[%s1 + $0xa6c] sm:$0xf]
  %v712 = vld [vmem:[%s1 + $0xa70] sm:$0xf]
  %v713 = vld [vmem:[%s1 + $0xa74] sm:$0xf]
  %v714 = vld [vmem:[%s1 + $0xa78] sm:$0xf]
  %v715 = vld [vmem:[%s1 + $0xa7c] sm:$0xf]
  %v716 = vld [vmem:[%s1 + $0xa80] sm:$0xf]
  %v717 = vld [vmem:[%s1 + $0xa84] sm:$0xf]
  %v718 = vld [vmem:[%s1 + $0xa88] sm:$0xf]
  %v719 = vld [vmem:[%s1 + $0xa8c] sm:$0xf]
  %v720 = vld [vmem:[%s1 + $0xa90] sm:$0xf]
  %v721 = vld [vmem:[%s1 + $0xa94] sm:$0xf]
  %v722 = vld [vmem:[%s1 + $0xa98] sm:$0xf]
  %v723 = vld [vmem:[%s1 + $0xa9c] sm:$0xf]
  %v724 = vld [vmem:[%s1 + $0xaa0] sm:$0xf]
  %v725 = vld [vmem:[%s1 + $0xaa4] sm:$0xf]
  %v726 = vld [vmem:[%s1 + $0xaa8] sm:$0xf]
  %v727 = vld [vmem:[%s1 + $0xaac] sm:$0xf]
  %v728 = vld [vmem:[%s1 + $0xab0] sm:$0xf]
  %v729 = vld [vmem:[%s1 + $0xab4] sm:$0xf]
  %v730 = vld [vmem:[%s1 + $0xab8] sm:$0xf]
  %v731 = vld [vmem:[%s1 + $0xabc] sm:$0xf]
  %v732 = vld [vmem:[%s1 + $0xac0] sm:$0xf]
  %v733 = vld [vmem:[%s1 + $0xac4] sm:$0xf]
  %v734 = vld [vmem:[%s1 + $0xac8] sm:$0xf]
  %v735 = vld [vmem:[%s1 + $0xacc] sm:$0xf]
  %v736 = vld [vmem:[%s1 + $0xad0] sm:$0xf]
  %v737 = vld [vmem:[%s1 + $0xad4] sm:$0xf]
  %v738 = vld [vmem:[%s1 + $0xad8] sm:$0xf]
  %v739 = vld [vmem:[%s1 + $0xadc] sm:$0xf]
  %v740 = vld [vmem:[%s1 + $0xae0] sm:$0xf]
  %v741 = vld [vmem:[%s1 + $0xae4] sm:$0xf]
  %v742 = vld [vmem:[%s1 + $0xae8] sm:$0xf]
  %v743 = vld [vmem:[%s1 + $0xaec] sm:$0xf]
  %v744 = vld [vmem:[%s1 + $0xaf0] sm:$0xf]
  %v745 = vld [vmem:[%s1 + $0xaf4] sm:$0xf]
  %v746 = vld [vmem:[%s1 + $0xaf8] sm:$0xf]
  %v747 = vld [vmem:[%s1 + $0xafc] sm:$0xf]
  %v748 = vld [vmem:[%s1 + $0xb00] sm:$0xf]
  %v749 = vld [vmem:[%s1 + $0xb04] sm:$0xf]
  %v750 = vld [vmem:[%s1 + $0xb08] sm:$0xf]
  %v751 = vld [vmem:[%s1 + $0xb0c] sm:$0xf]
  %v752 = vld [vmem:[%s1 + $0xb10] sm:$0xf]
  %v753 = vld [vmem:[%s1 + $0xb14] sm:$0xf]
  %v754 = vld [vmem:[%s1 + $0xb18] sm:$0xf]
  %v755 = vld [vmem:[%s1 + $0xb1c] sm:$0xf]
  %v756 = vld [vmem:[%s1 + $0xb20] sm:$0xf]
  %v757 = vld [vmem:[%s1 + $0xb24] sm:$0xf]
  %v758 = vld [vmem:[%s1 + $0xb28] sm:$0xf]
  %v759 = vld [vmem:[%s1 + $0xb2c] sm:$0xf]
  %v760 = vld [vmem:[%s1 + $0xb30] sm:$0xf]
  %v761 = vld [vmem:[%s1 + $0xb34] sm:$0xf]
  %v762 = vld [vmem:[%s1 + $0xb38] sm:$0xf]
  %v763 = vld [vmem:[%s1 + $0xb3c] sm:$0xf]
  %v764 = vld [vmem:[%s1 + $0xb40] sm:$0xf]
  %v765 = vld [vmem:[%s1 + $0xb44] sm:$0xf]
  %v766 = vld [vmem:[%s1 + $0xb48] sm:$0xf]
  %v767 = vld [vmem:[%s1 + $0xb4c] sm:$0xf]
  %v768 = vld [vmem:[%s1 + $0xb50] sm:$0xf]
  %v769 = vld [vmem:[%s1 + $0xb54] sm:$0xf]
  %v770 = vld [vmem:[%s1 + $0xb58] sm:$0xf]
  %v771 = vld [vmem:[%s1 + $0xb5c] sm:$0xf]
  %v772 = vld [vmem:[%s1 + $0xb60] sm:$0xf]
  %v773 = vld [vmem:[%s1 + $0xb64] sm:$0xf]
  %v774 = vld [vmem:[%s1 + $0xb68] sm:$0xf]
  %v775 = vld [vmem:[%s1 + $0xb6c] sm:$0xf]
  %v776 = vld [vmem:[%s1 + $0xb70] sm:$0xf]
  %v777 = vld [vmem:[%s1 + $0xb74] sm:$0xf]
  %v778 = vld [vmem:[%s1 + $0xb78] sm:$0xf]
  %v779 = vld [vmem:[%s1 + $0xb7c] sm:$0xf]
  %v780 = vld [vmem:[%s1 + $0xb80] sm:$0xf]
  %v781 = vld [vmem:[%s1 + $0xb84] sm:$0xf]
  %v782 = vld [vmem:[%s1 + $0xb88] sm:$0xf]
  %v783 = vld [vmem:[%s1 + $0xb8c] sm:$0xf]
  %v784 = vld [vmem:[%s1 + $0xb90] sm:$0xf]
  %v785 = vld [vmem:[%s1 + $0xb94] sm:$0xf]
  %v786 = vld [vmem:[%s1 + $0xb98] sm:$0xf]
  %v787 = vld [vmem:[%s1 + $0xb9c] sm:$0xf]
  %v788 = vld [vmem:[%s1 + $0xba0] sm:$0xf]
  %v789 = vld [vmem:[%s1 + $0xba4] sm:$0xf]
  %v790 = vld [vmem:[%s1 + $0xba8] sm:$0xf]
  %v791 = vld [vmem:[%s1 + $0xbac] sm:$0xf]
  %v792 = vld [vmem:[%s1 + $0xbb0] sm:$0xf]
  %v793 = vld [vmem:[%s1 + $0xbb4] sm:$0xf]
  %v794 = vld [vmem:[%s1 + $0xbb8] sm:$0xf]
  %v795 = vld [vmem:[%s1 + $0xbbc] sm:$0xf]
  %v796 = vld [vmem:[%s1 + $0xbc0] sm:$0xf]
  %v797 = vld [vmem:[%s1 + $0xbc4] sm:$0xf]
  %v798 = vld [vmem:[%s1 + $0xbc8] sm:$0xf]
  %v799 = vld [vmem:[%s1 + $0xbcc] sm:$0xf]
  %v800 = vld [vmem:[%s1 + $0xbd0] sm:$0xf]
  %v801 = vld [vmem:[%s1 + $0xbd4] sm:$0xf]
  %v802 = vld [vmem:[%s1 + $0xbd8] sm:$0xf]
  %v803 = vld [vmem:[%s1 + $0xbdc] sm:$0xf]
  %v804 = vld [vmem:[%s1 + $0xbe0] sm:$0xf]
  %v805 = vld [vmem:[%s1 + $0xbe4] sm:$0xf]
  %v806 = vld [vmem:[%s1 + $0xbe8] sm:$0xf]
  %v807 = vld [vmem:[%s1 + $0xbec] sm:$0xf]
  %v808 = vld [vmem:[%s1 + $0xbf0] sm:$0xf]
  %v809 = vld [vmem:[%s1 + $0xbf4] sm:$0xf]
  %v810 = vld [vmem:[%s1 + $0xbf8] sm:$0xf]
  %v811 = vld [vmem:[%s1 + $0xbfc] sm:$0xf]
  %v812 = vld [vmem:[%s1 + $0xc00] sm:$0xf]
  %v813 = vld [vmem:[%s1 + $0xc04] sm:$0xf]
  %v814 = vld [vmem:[%s1 + $0xc08] sm:$0xf]
  %v815 = vld [vmem:[%s1 + $0xc0c] sm:$0xf]
  %v816 = vld [vmem:[%s1 + $0xc10] sm:$0xf]
  %v817 = vld [vmem:[%s1 + $0xc14] sm:$0xf]
  %v818 = vld [vmem:[%s1 + $0xc18] sm:$0xf]
  %v819 = vld [vmem:[%s1 + $0xc1c] sm:$0xf]
  %v820 = vld [vmem:[%s1 + $0xc20] sm:$0xf]
  %v821 = vld [vmem:[%s1 + $0xc24] sm:$0xf]
  %v822 = vld [vmem:[%s1 + $0xc28] sm:$0xf]
  %v823 = vld [vmem:[%s1 + $0xc2c] sm:$0xf]
  %v824 = vld [vmem:[%s1 + $0xc30] sm:$0xf]
  %v825 = vld [vmem:[%s1 + $0xc34] sm:$0xf]
  %v826 = vld [vmem:[%s1 + $0xc38] sm:$0xf]
  %v827 = vld [vmem:[%s1 + $0xc3c] sm:$0xf]
  %v828 = vld [vmem:[%s1 + $0xc40] sm:$0xf]
  %v829 = vld [vmem:[%s1 + $0xc44] sm:$0xf]
  %v830 = vld [vmem:[%s1 + $0xc48] sm:$0xf]
  %v831 = vld [vmem:[%s1 + $0xc4c] sm:$0xf]
  %v832 = vld [vmem:[%s1 + $0xc50] sm:$0xf]
  %v833 = vld [vmem:[%s1 + $0xc54] sm:$0xf]
  %v834 = vld [vmem:[%s1 + $0xc58] sm:$0xf]
  %v835 = vld [vmem:[%s1 + $0xc5c] sm:$0xf]
  %v836 = vld [vmem:[%s1 + $0xc60] sm:$0xf]
  %v837 = vld [vmem:[%s1 + $0xc64] sm:$0xf]
  %v838 = vld [vmem:[%s1 + $0xc68] sm:$0xf]
  %v839 = vld [vmem:[%s1 + $0xc6c] sm:$0xf]
  %v840 = vld [vmem:[%s1 + $0xc70] sm:$0xf]
  %v841 = vld [vmem:[%s1 + $0xc74] sm:$0xf]
  %v842 = vld [vmem:[%s1 + $0xc78] sm:$0xf]
  %v843 = vld [vmem:[%s1 + $0xc7c] sm:$0xf]
  %v844 = vld [vmem:[%s1 + $0xc80] sm:$0xf]
  %v845 = vld [vmem:[%s1 + $0xc84] sm:$0xf]
  %v846 = vld [vmem:[%s1 + $0xc88] sm:$0xf]
  %v847 = vld [vmem:[%s1 + $0xc8c] sm:$0xf]
  %v848 = vld [vmem:[%s1 + $0xc90] sm:$0xf]
  %v849 = vld [vmem:[%s1 + $0xc94] sm:$0xf]
  %v850 = vld [vmem:[%s1 + $0xc98] sm:$0xf]
  %v851 = vld [vmem:[%s1 + $0xc9c] sm:$0xf]
  %v852 = vld [vmem:[%s1 + $0xca0] sm:$0xf]
  %v853 = vld [vmem:[%s1 + $0xca4] sm:$0xf]
  %v854 = vld [vmem:[%s1 + $0xca8] sm:$0xf]
  %v855 = vld [vmem:[%s1 + $0xcac] sm:$0xf]
  %v856 = vld [vmem:[%s1 + $0xcb0] sm:$0xf]
  %v857 = vld [vmem:[%s1 + $0xcb4] sm:$0xf]
  %v858 = vld [vmem:[%s1 + $0xcb8] sm:$0xf]
  %v859 = vld [vmem:[%s1 + $0xcbc] sm:$0xf]
  %v860 = vld [vmem:[%s1 + $0xcc0] sm:$0xf]
  %v861 = vld [vmem:[%s1 + $0xcc4] sm:$0xf]
  %v862 = vld [vmem:[%s1 + $0xcc8] sm:$0xf]
  %v863 = vld [vmem:[%s1 + $0xccc] sm:$0xf]
  %v864 = vld [vmem:[%s1 + $0xcd0] sm:$0xf]
  %v865 = vld [vmem:[%s1 + $0xcd4] sm:$0xf]
  %v866 = vld [vmem:[%s1 + $0xcd8] sm:$0xf]
  %v867 = vld [vmem:[%s1 + $0xcdc] sm:$0xf]
  %v868 = vld [vmem:[%s1 + $0xce0] sm:$0xf]
  %v869 = vld [vmem:[%s1 + $0xce4] sm:$0xf]
  %v870 = vld [vmem:[%s1 + $0xce8] sm:$0xf]
  %v871 = vld [vmem:[%s1 + $0xcec] sm:$0xf]
  %v872 = vld [vmem:[%s1 + $0xcf0] sm:$0xf]
  %v873 = vld [vmem:[%s1 + $0xcf4] sm:$0xf]
  %v874 = vld [vmem:[%s1 + $0xcf8] sm:$0xf]
  %v875 = vld [vmem:[%s1 + $0xcfc] sm:$0xf]
  %v876 = vld [vmem:[%s1 + $0xd00] sm:$0xf]
  %v877 = vld [vmem:[%s1 + $0xd04] sm:$0xf]
  %v878 = vld [vmem:[%s1 + $0xd08] sm:$0xf]
  %v879 = vld [vmem:[%s1 + $0xd0c] sm:$0xf]
  %v880 = vld [vmem:[%s1 + $0xd10] sm:$0xf]
  %v881 = vld [vmem:[%s1 + $0xd14] sm:$0xf]
  %v882 = vld [vmem:[%s1 + $0xd18] sm:$0xf]
  %v883 = vld [vmem:[%s1 + $0xd1c] sm:$0xf]
  %v884 = vld [vmem:[%s1 + $0xd20] sm:$0xf]
  %v885 = vld [vmem:[%s1 + $0xd24] sm:$0xf]
  %v886 = vld [vmem:[%s1 + $0xd28] sm:$0xf]
  %v887 = vld [vmem:[%s1 + $0xd2c] sm:$0xf]
  %v888 = vld [vmem:[%s1 + $0xd30] sm:$0xf]
  %v889 = vld [vmem:[%s1 + $0xd34] sm:$0xf]
  %v890 = vld [vmem:[%s1 + $0xd38] sm:$0xf]
  %v891 = vld [vmem:[%s1 + $0xd3c] sm:$0xf]
  %v892 = vld [vmem:[%s1 + $0xd40] sm:$0xf]
  %v893 = vld [vmem:[%s1 + $0xd44] sm:$0xf]
  %v894 = vld [vmem:[%s1 + $0xd48] sm:$0xf]
  %v895 = vld [vmem:[%s1 + $0xd4c] sm:$0xf]
  %v896 = vld [vmem:[%s1 + $0xd50] sm:$0xf]
  %v897 = vld [vmem:[%s1 + $0xd54] sm:$0xf]
  %v898 = vld [vmem:[%s1 + $0xd58] sm:$0xf]
  %v899 = vld [vmem:[%s1 + $0xd5c] sm:$0xf]
  %v900 = vld [vmem:[%s1 + $0xd60] sm:$0xf]
  %v901 = vld [vmem:[%s1 + $0xd64] sm:$0xf]
  %v902 = vld [vmem:[%s1 + $0xd68] sm:$0xf]
  %v903 = vld [vmem:[%s1 + $0xd6c] sm:$0xf]
  %v904 = vld [vmem:[%s1 + $0xd70] sm:$0xf]
  %v905 = vld [vmem:[%s1 + $0xd74] sm:$0xf]
  %v906 = vld [vmem:[%s1 + $0xd78] sm:$0xf]
  %v907 = vld [vmem:[%s1 + $0xd7c] sm:$0xf]
  %v908 = vld [vmem:[%s1 + $0xd80] sm:$0xf]
  %v909 = vld [vmem:[%s1 + $0xd84] sm:$0xf]
  %v910 = vld [vmem:[%s1 + $0xd88] sm:$0xf]
  %v911 = vld [vmem:[%s1 + $0xd8c] sm:$0xf]
  %v912 = vld [vmem:[%s1 + $0xd90] sm:$0xf]
  %v913 = vld [vmem:[%s1 + $0xd94] sm:$0xf]
  %v914 = vld [vmem:[%s1 + $0xd98] sm:$0xf]
  %v915 = vld [vmem:[%s1 + $0xd9c] sm:$0xf]
  %v916 = vld [vmem:[%s1 + $0xda0] sm:$0xf]
  %v917 = vld [vmem:[%s1 + $0xda4] sm:$0xf]
  %v918 = vld [vmem:[%s1 + $0xda8] sm:$0xf]
  %v919 = vld [vmem:[%s1 + $0xdac] sm:$0xf]
  %v920 = vld [vmem:[%s1 + $0xdb0] sm:$0xf]
  %v921 = vld [vmem:[%s1 + $0xdb4] sm:$0xf]
  %v922 = vld [vmem:[%s1 + $0xdb8] sm:$0xf]
  %v923 = vld [vmem:[%s1 + $0xdbc] sm:$0xf]
  %v924 = vld [vmem:[%s1 + $0xdc0] sm:$0xf]
  %v925 = vld [vmem:[%s1 + $0xdc4] sm:$0xf]
  %v926 = vld [vmem:[%s1 + $0xdc8] sm:$0xf]
  %v927 = vld [vmem:[%s1 + $0xdcc] sm:$0xf]
  %v928 = vld [vmem:[%s1 + $0xdd0] sm:$0xf]
  %v929 = vld [vmem:[%s1 + $0xdd4] sm:$0xf]
  %v930 = vld [vmem:[%s1 + $0xdd8] sm:$0xf]
  %v931 = vld [vmem:[%s1 + $0xddc] sm:$0xf]
  %v932 = vld [vmem:[%s1 + $0xde0] sm:$0xf]
  %v933 = vld [vmem:[%s1 + $0xde4] sm:$0xf]
  %v934 = vld [vmem:[%s1 + $0xde8] sm:$0xf]
  %v935 = vld [vmem:[%s1 + $0xdec] sm:$0xf]
  %v936 = vld [vmem:[%s1 + $0xdf0] sm:$0xf]
  %v937 = vld [vmem:[%s1 + $0xdf4] sm:$0xf]
  %v938 = vld [vmem:[%s1 + $0xdf8] sm:$0xf]
  %v939 = vld [vmem:[%s1 + $0xdfc] sm:$0xf]
  %v940 = vld [vmem:[%s1 + $0xe00] sm:$0xf]
  %v941 = vld [vmem:[%s1 + $0xe04] sm:$0xf]
  %v942 = vld [vmem:[%s1 + $0xe08] sm:$0xf]
  %v943 = vld [vmem:[%s1 + $0xe0c] sm:$0xf]
  %v944 = vld [vmem:[%s1 + $0xe10] sm:$0xf]
  %v945 = vld [vmem:[%s1 + $0xe14] sm:$0xf]
  %v946 = vld [vmem:[%s1 + $0xe18] sm:$0xf]
  %v947 = vld [vmem:[%s1 + $0xe1c] sm:$0xf]
  %v948 = vld [vmem:[%s1 + $0xe20] sm:$0xf]
  %v949 = vld [vmem:[%s1 + $0xe24] sm:$0xf]
  %v950 = vld [vmem:[%s1 + $0xe28] sm:$0xf]
  %v951 = vld [vmem:[%s1 + $0xe2c] sm:$0xf]
  %v952 = vld [vmem:[%s1 + $0xe30] sm:$0xf]
  %v953 = vld [vmem:[%s1 + $0xe34] sm:$0xf]
  %v954 = vld [vmem:[%s1 + $0xe38] sm:$0xf]
  %v955 = vld [vmem:[%s1 + $0xe3c] sm:$0xf]
  %v956 = vld [vmem:[%s1 + $0xe40] sm:$0xf]
  %v957 = vld [vmem:[%s1 + $0xe44] sm:$0xf]
  %v958 = vld [vmem:[%s1 + $0xe48] sm:$0xf]
  %v959 = vld [vmem:[%s1 + $0xe4c] sm:$0xf]
  %v960 = vld [vmem:[%s1 + $0xe50] sm:$0xf]
  %v961 = vld [vmem:[%s1 + $0xe54] sm:$0xf]
  %v962 = vld [vmem:[%s1 + $0xe58] sm:$0xf]
  %v963 = vld [vmem:[%s1 + $0xe5c] sm:$0xf]
  %v964 = vld [vmem:[%s1 + $0xe60] sm:$0xf]
  %v965 = vld [vmem:[%s1 + $0xe64] sm:$0xf]
  %v966 = vld [vmem:[%s1 + $0xe68] sm:$0xf]
  %v967 = vld [vmem:[%s1 + $0xe6c] sm:$0xf]
  %v968 = vld [vmem:[%s1 + $0xe70] sm:$0xf]
  %v969 = vld [vmem:[%s1 + $0xe74] sm:$0xf]
  %v970 = vld [vmem:[%s1 + $0xe78] sm:$0xf]
  %v971 = vld [vmem:[%s1 + $0xe7c] sm:$0xf]
  %v972 = vld [vmem:[%s1 + $0xe80] sm:$0xf]
  %v973 = vld [vmem:[%s1 + $0xe84] sm:$0xf]
  %v974 = vld [vmem:[%s1 + $0xe88] sm:$0xf]
  %v975 = vld [vmem:[%s1 + $0xe8c] sm:$0xf]
  %v976 = vld [vmem:[%s1 + $0xe90] sm:$0xf]
  %v977 = vld [vmem:[%s1 + $0xe94] sm:$0xf]
  %v978 = vld [vmem:[%s1 + $0xe98] sm:$0xf]
  %v979 = vld [vmem:[%s1 + $0xe9c] sm:$0xf]
  %v980 = vld [vmem:[%s1 + $0xea0] sm:$0xf]
  %v981 = vld [vmem:[%s1 + $0xea4] sm:$0xf]
  %v982 = vld [vmem:[%s1 + $0xea8] sm:$0xf]
  %v983 = vld [vmem:[%s1 + $0xeac] sm:$0xf]
  %v984 = vld [vmem:[%s1 + $0xeb0] sm:$0xf]
  %v985 = vld [vmem:[%s1 + $0xeb4] sm:$0xf]
  %v986 = vld [vmem:[%s1 + $0xeb8] sm:$0xf]
  %v987 = vld [vmem:[%s1 + $0xebc] sm:$0xf]
  %v988 = vld [vmem:[%s1 + $0xec0] sm:$0xf]
  %v989 = vld [vmem:[%s1 + $0xec4] sm:$0xf]
  %v990 = vld [vmem:[%s1 + $0xec8] sm:$0xf]
  %v991 = vld [vmem:[%s1 + $0xecc] sm:$0xf]
  %v992 = vld [vmem:[%s1 + $0xed0] sm:$0xf]
  %v993 = vld [vmem:[%s1 + $0xed4] sm:$0xf]
  %v994 = vld [vmem:[%s1 + $0xed8] sm:$0xf]
  %v995 = vld [vmem:[%s1 + $0xedc] sm:$0xf]
  %v996 = vld [vmem:[%s1 + $0xee0] sm:$0xf]
  %v997 = vld [vmem:[%s1 + $0xee4] sm:$0xf]
  %v998 = vld [vmem:[%s1 + $0xee8] sm:$0xf]
  %v999 = vld [vmem:[%s1 + $0xeec] sm:$0xf]
  %v1000 = vld [vmem:[%s1 + $0xef0] sm:$0xf]
  %v1001 = vld [vmem:[%s1 + $0xef4] sm:$0xf]
  %v1002 = vld [vmem:[%s1 + $0xef8] sm:$0xf]
  %v1003 = vld [vmem:[%s1 + $0xefc] sm:$0xf]
  %v1004 = vld [vmem:[%s1 + $0xf00] sm:$0xf]
  %v1005 = vld [vmem:[%s1 + $0xf04] sm:$0xf]
  %v1006 = vld [vmem:[%s1 + $0xf08] sm:$0xf]
  %v1007 = vld [vmem:[%s1 + $0xf0c] sm:$0xf]
  %v1008 = vld [vmem:[%s1 + $0xf10] sm:$0xf]
  %v1009 = vld [vmem:[%s1 + $0xf14] sm:$0xf]
  %v1010 = vld [vmem:[%s1 + $0xf18] sm:$0xf]
  %v1011 = vld [vmem:[%s1 + $0xf1c] sm:$0xf]
  %v1012 = vld [vmem:[%s1 + $0xf20] sm:$0xf]
  %v1013 = vld [vmem:[%s1 + $0xf24] sm:$0xf]
  %v1014 = vld [vmem:[%s1 + $0xf28] sm:$0xf]
  %v1015 = vld [vmem:[%s1 + $0xf2c] sm:$0xf]
  %v1016 = vld [vmem:[%s1 + $0xf30] sm:$0xf]
  %v1017 = vld [vmem:[%s1 + $0xf34] sm:$0xf]
  %v1018 = vld [vmem:[%s1 + $0xf38] sm:$0xf]
  %v1019 = vld [vmem:[%s1 + $0xf3c] sm:$0xf]
  %v1020 = vld [vmem:[%s1 + $0xf40] sm:$0xf]
  %v1021 = vld [vmem:[%s1 + $0xf44] sm:$0xf]
  %v1022 = vld [vmem:[%s1 + $0xf48] sm:$0xf]
  %v1023 = vld [vmem:[%s1 + $0xf4c] sm:$0xf]
  %v1024 = vld [vmem:[%s1 + $0xf50] sm:$0xf]
  %v1025 = vld [vmem:[%s1 + $0xf54] sm:$0xf]
  %v1026 = vld [vmem:[%s1 + $0xf58] sm:$0xf]
  %v1027 = vld [vmem:[%s1 + $0xf5c] sm:$0xf]
  %v1028 = vld [vmem:[%s1 + $0xf60] sm:$0xf]
  %v1029 = vld [vmem:[%s1 + $0xf64] sm:$0xf]
  %v1030 = vld [vmem:[%s1 + $0xf68] sm:$0xf]
  %v1031 = vld [vmem:[%s1 + $0xf6c] sm:$0xf]
  %v1032 = vld [vmem:[%s1 + $0xf70] sm:$0xf]
  %v1033 = vld [vmem:[%s1 + $0xf74] sm:$0xf]
  %v1034 = vld [vmem:[%s1 + $0xf78] sm:$0xf]
  %v1035 = vld [vmem:[%s1 + $0xf7c] sm:$0xf]
  %v1036 = vld [vmem:[%s1 + $0xf80] sm:$0xf]
  %v1037 = vld [vmem:[%s1 + $0xf84] sm:$0xf]
  %v1038 = vld [vmem:[%s1 + $0xf88] sm:$0xf]
  %v1039 = vld [vmem:[%s1 + $0xf8c] sm:$0xf]
  %v1040 = vld [vmem:[%s1 + $0xf90] sm:$0xf]
  %v1041 = vld [vmem:[%s1 + $0xf94] sm:$0xf]
  %v1042 = vld [vmem:[%s1 + $0xf98] sm:$0xf]
  %v1043 = vld [vmem:[%s1 + $0xf9c] sm:$0xf]
  %v1044 = vld [vmem:[%s1 + $0xfa0] sm:$0xf]
  %v1045 = vld [vmem:[%s1 + $0xfa4] sm:$0xf]
  %v1046 = vld [vmem:[%s1 + $0xfa8] sm:$0xf]
  %v1047 = vld [vmem:[%s1 + $0xfac] sm:$0xf]
  %v1048 = vld [vmem:[%s1 + $0xfb0] sm:$0xf]
  %v1049 = vld [vmem:[%s1 + $0xfb4] sm:$0xf]
  %v1050 = vld [vmem:[%s1 + $0xfb8] sm:$0xf]
  %v1051 = vld [vmem:[%s1 + $0xfbc] sm:$0xf]
  %v1052 = vld [vmem:[%s1 + $0xfc0] sm:$0xf]
  %v1053 = vld [vmem:[%s1 + $0xfc4] sm:$0xf]
  %v1054 = vld [vmem:[%s1 + $0xfc8] sm:$0xf]
  %v1055 = vld [vmem:[%s1 + $0xfcc] sm:$0xf]
  %v1056 = vld [vmem:[%s1 + $0xfd0] sm:$0xf]
  %v1057 = vld [vmem:[%s1 + $0xfd4] sm:$0xf]
  %v1058 = vld [vmem:[%s1 + $0xfd8] sm:$0xf]
  %v1059 = vld [vmem:[%s1 + $0xfdc] sm:$0xf]
  %v1060 = vld [vmem:[%s1 + $0xfe0] sm:$0xf]
  %v1061 = vld [vmem:[%s1 + $0xfe4] sm:$0xf]
  %v1062 = vld [vmem:[%s1 + $0xfe8] sm:$0xf]
  %v1063 = vld [vmem:[%s1 + $0xfec] sm:$0xf]
  %v1064 = vld [vmem:[%s1 + $0xff0] sm:$0xf]
  %v1065 = vld [vmem:[%s1 + $0xff4] sm:$0xf]
  %v1066 = vld [vmem:[%s1 + $0xff8] sm:$0xf]
  %v1067 = vld [vmem:[%s1 + $0xffc] sm:$0xf]
  %v1100 = vunpack.c.l.b16 %v12
  %v1101 = vunpack.c.h.b16 %v12
  %v1102 = vunpack.c.l.b16 %v13
  %v1103 = vunpack.c.h.b16 %v13
  %v1104 = vunpack.c.l.b16 %v14
  %v1105 = vunpack.c.h.b16 %v14
  %v1106 = vunpack.c.l.b16 %v15
  %v1107 = vunpack.c.h.b16 %v15
  %v1108 = vunpack.c.l.b16 %v16
  %v1109 = vunpack.c.h.b16 %v16
  %v1110 = vunpack.c.l.b16 %v17
  %v1111 = vunpack.c.h.b16 %v17
  %v1112 = vunpack.c.l.b16 %v18
  %v1113 = vunpack.c.h.b16 %v18
  %v1114 = vunpack.c.l.b16 %v19
  %v1115 = vunpack.c.h.b16 %v19
  %v1116 = vunpack.c.l.b16 %v20
  %v1117 = vunpack.c.h.b16 %v20
  %v1118 = vunpack.c.l.b16 %v21
  %v1119 = vunpack.c.h.b16 %v21
  %v1120 = vunpack.c.l.b16 %v22
  %v1121 = vunpack.c.h.b16 %v22
  %v1122 = vunpack.c.l.b16 %v23
  %v1123 = vunpack.c.h.b16 %v23
  %v1124 = vunpack.c.l.b16 %v24
  %v1125 = vunpack.c.h.b16 %v24
  %v1126 = vunpack.c.l.b16 %v25
  %v1127 = vunpack.c.h.b16 %v25
  %v1128 = vunpack.c.l.b16 %v26
  %v1129 = vunpack.c.h.b16 %v26
  %v1130 = vunpack.c.l.b16 %v27
  %v1131 = vunpack.c.h.b16 %v27
  %v1132 = vunpack.c.l.b16 %v28
  %v1133 = vunpack.c.h.b16 %v28
  %v1134 = vunpack.c.l.b16 %v29
  %v1135 = vunpack.c.h.b16 %v29
  %v1136 = vunpack.c.l.b16 %v30
  %v1137 = vunpack.c.h.b16 %v30
  %v1138 = vunpack.c.l.b16 %v31
  %v1139 = vunpack.c.h.b16 %v31
  %v1140 = vunpack.c.l.b16 %v32
  %v1141 = vunpack.c.h.b16 %v32
  %v1142 = vunpack.c.l.b16 %v33
  %v1143 = vunpack.c.h.b16 %v33
  %v1144 = vunpack.c.l.b16 %v34
  %v1145 = vunpack.c.h.b16 %v34
  %v1146 = vunpack.c.l.b16 %v35
  %v1147 = vunpack.c.h.b16 %v35
  %v1148 = vunpack.c.l.b16 %v36
  %v1149 = vunpack.c.h.b16 %v36
  %v1150 = vunpack.c.l.b16 %v37
  %v1151 = vunpack.c.h.b16 %v37
  %v1152 = vunpack.c.l.b16 %v38
  %v1153 = vunpack.c.h.b16 %v38
  %v1154 = vunpack.c.l.b16 %v39
  %v1155 = vunpack.c.h.b16 %v39
  %v1156 = vunpack.c.l.b16 %v40
  %v1157 = vunpack.c.h.b16 %v40
  %v1158 = vunpack.c.l.b16 %v41
  %v1159 = vunpack.c.h.b16 %v41
  %v1160 = vunpack.c.l.b16 %v42
  %v1161 = vunpack.c.h.b16 %v42
  %v1162 = vunpack.c.l.b16 %v43
  %v1163 = vunpack.c.h.b16 %v43
  %v1164 = vpack.c.b16 %v1100, %v1100
  %v1165 = vpack.c.b16 %v1101, %v1101
  %v1166 = vpack.c.b16 %v1102, %v1102
  %v1167 = vpack.c.b16 %v1103, %v1103
  %v1168 = vpack.c.b16 %v1104, %v1104
  %v1169 = vpack.c.b16 %v1105, %v1105
  %v1170 = vpack.c.b16 %v1106, %v1106
  %v1171 = vpack.c.b16 %v1107, %v1107
  %v1172 = vpack.c.b16 %v1108, %v1108
  %v1173 = vpack.c.b16 %v1109, %v1109
  %v1174 = vpack.c.b16 %v1110, %v1110
  %v1175 = vpack.c.b16 %v1111, %v1111
  %v1176 = vpack.c.b16 %v1112, %v1112
  %v1177 = vpack.c.b16 %v1113, %v1113
  %v1178 = vpack.c.b16 %v1114, %v1114
  %v1179 = vpack.c.b16 %v1115, %v1115
  %v1180 = vpack.c.b16 %v1116, %v1116
  %v1181 = vpack.c.b16 %v1117, %v1117
  %v1182 = vpack.c.b16 %v1118, %v1118
  %v1183 = vpack.c.b16 %v1119, %v1119
  %v1184 = vpack.c.b16 %v1120, %v1120
  %v1185 = vpack.c.b16 %v1121, %v1121
  %v1186 = vpack.c.b16 %v1122, %v1122
  %v1187 = vpack.c.b16 %v1123, %v1123
  %v1188 = vpack.c.b16 %v1124, %v1124
  %v1189 = vpack.c.b16 %v1125, %v1125
  %v1190 = vpack.c.b16 %v1126, %v1126
  %v1191 = vpack.c.b16 %v1127, %v1127
  %v1192 = vpack.c.b16 %v1128, %v1128
  %v1193 = vpack.c.b16 %v1129, %v1129
  %v1194 = vpack.c.b16 %v1130, %v1130
  %v1195 = vpack.c.b16 %v1131, %v1131
  %v1196 = vpack.c.b16 %v1132, %v1132
  %v1197 = vpack.c.b16 %v1133, %v1133
  %v1198 = vpack.c.b16 %v1134, %v1134
  %v1199 = vpack.c.b16 %v1135, %v1135
  %v1200 = vpack.c.b16 %v1136, %v1136
  %v1201 = vpack.c.b16 %v1137, %v1137
  %v1202 = vpack.c.b16 %v1138, %v1138
  %v1203 = vpack.c.b16 %v1139, %v1139
  %v1204 = vpack.c.b16 %v1140, %v1140
  %v1205 = vpack.c.b16 %v1141, %v1141
  %v1206 = vpack.c.b16 %v1142, %v1142
  %v1207 = vpack.c.b16 %v1143, %v1143
  %v1208 = vpack.c.b16 %v1144, %v1144
  %v1209 = vpack.c.b16 %v1145, %v1145
  %v1210 = vpack.c.b16 %v1146, %v1146
  %v1211 = vpack.c.b16 %v1147, %v1147
  %v1212 = vpack.c.b16 %v1148, %v1148
  %v1213 = vpack.c.b16 %v1149, %v1149
  %v1214 = vpack.c.b16 %v1150, %v1150
  %v1215 = vpack.c.b16 %v1151, %v1151
  %v1216 = vpack.c.b16 %v1152, %v1152
  %v1217 = vpack.c.b16 %v1153, %v1153
  %v1218 = vpack.c.b16 %v1154, %v1154
  %v1219 = vpack.c.b16 %v1155, %v1155
  %v1220 = vpack.c.b16 %v1156, %v1156
  %v1221 = vpack.c.b16 %v1157, %v1157
  %v1222 = vpack.c.b16 %v1158, %v1158
  %v1223 = vpack.c.b16 %v1159, %v1159
  %v1224 = vpack.c.b16 %v1160, %v1160
  %v1225 = vpack.c.b16 %v1161, %v1161
  %v1226 = vpack.c.b16 %v1162, %v1162
  %v1227 = vpack.c.b16 %v1163, %v1163
  %v2316 = vunpack.c.l.b16 %v44
  %v2317 = vunpack.c.l.b16 %v45
  %v2318 = vunpack.c.l.b16 %v46
  %v2319 = vunpack.c.l.b16 %v47
  %v2320 = vunpack.c.l.b16 %v48
  %v2321 = vunpack.c.l.b16 %v49
  %v2322 = vunpack.c.l.b16 %v50
  %v2323 = vunpack.c.l.b16 %v51
  %v2324 = vunpack.c.l.b16 %v52
  %v2325 = vunpack.c.l.b16 %v53
  %v2326 = vunpack.c.l.b16 %v54
  %v2327 = vunpack.c.l.b16 %v55
  %v2328 = vunpack.c.l.b16 %v56
  %v2329 = vunpack.c.l.b16 %v57
  %v2330 = vunpack.c.l.b16 %v58
  %v2331 = vunpack.c.l.b16 %v59
  %v2332 = vunpack.c.l.b16 %v60
  %v2333 = vunpack.c.l.b16 %v61
  %v2334 = vunpack.c.l.b16 %v62
  %v2335 = vunpack.c.l.b16 %v63
  %v2336 = vunpack.c.l.b16 %v64
  %v2337 = vunpack.c.l.b16 %v65
  %v2338 = vunpack.c.l.b16 %v66
  %v2339 = vunpack.c.l.b16 %v67
  %v2340 = vunpack.c.l.b16 %v68
  %v2341 = vunpack.c.l.b16 %v69
  %v2342 = vunpack.c.l.b16 %v70
  %v2343 = vunpack.c.l.b16 %v71
  %v2344 = vunpack.c.l.b16 %v72
  %v2345 = vunpack.c.l.b16 %v73
  %v2346 = vunpack.c.l.b16 %v74
  %v2347 = vunpack.c.l.b16 %v75
  %v2348 = vunpack.c.l.b16 %v76
  %v2349 = vunpack.c.l.b16 %v77
  %v2350 = vunpack.c.l.b16 %v78
  %v2351 = vunpack.c.l.b16 %v79
  %v2352 = vunpack.c.l.b16 %v80
  %v2353 = vunpack.c.l.b16 %v81
  %v2354 = vunpack.c.l.b16 %v82
  %v2355 = vunpack.c.l.b16 %v83
  %v2356 = vunpack.c.l.b16 %v84
  %v2357 = vunpack.c.l.b16 %v85
  %v2358 = vunpack.c.l.b16 %v86
  %v2359 = vunpack.c.l.b16 %v87
  %v2360 = vunpack.c.l.b16 %v88
  %v2361 = vunpack.c.l.b16 %v89
  %v2362 = vunpack.c.l.b16 %v90
  %v2363 = vunpack.c.l.b16 %v91
  %v2364 = vunpack.c.l.b16 %v92
  %v2365 = vunpack.c.l.b16 %v93
  %v2366 = vunpack.c.l.b16 %v94
  %v2367 = vunpack.c.l.b16 %v95
  %v2368 = vunpack.c.l.b16 %v96
  %v2369 = vunpack.c.l.b16 %v97
  %v2370 = vunpack.c.l.b16 %v98
  %v2371 = vunpack.c.l.b16 %v99
  %v2372 = vunpack.c.l.b16 %v100
  %v2373 = vunpack.c.l.b16 %v101
  %v2374 = vunpack.c.l.b16 %v102
  %v2375 = vunpack.c.l.b16 %v103
  %v2376 = vunpack.c.l.b16 %v104
  %v2377 = vunpack.c.l.b16 %v105
  %v2378 = vunpack.c.l.b16 %v106
  %v2379 = vunpack.c.l.b16 %v107
  %v2380 = vunpack.c.l.b16 %v108
  %v2381 = vunpack.c.l.b16 %v109
  %v2382 = vunpack.c.l.b16 %v110
  %v2383 = vunpack.c.l.b16 %v111
  %v2384 = vunpack.c.l.b16 %v112
  %v2385 = vunpack.c.l.b16 %v113
  %v2386 = vunpack.c.l.b16 %v114
  %v2387 = vunpack.c.l.b16 %v115
  %v2388 = vunpack.c.l.b16 %v116
  %v2389 = vunpack.c.l.b16 %v117
  %v2390 = vunpack.c.l.b16 %v118
  %v2391 = vunpack.c.l.b16 %v119
  %v2392 = vunpack.c.l.b16 %v120
  %v2393 = vunpack.c.l.b16 %v121
  %v2394 = vunpack.c.l.b16 %v122
  %v2395 = vunpack.c.l.b16 %v123
  %v2396 = vunpack.c.l.b16 %v124
  %v2397 = vunpack.c.l.b16 %v125
  %v2398 = vunpack.c.l.b16 %v126
  %v2399 = vunpack.c.l.b16 %v127
  %v2400 = vunpack.c.l.b16 %v128
  %v2401 = vunpack.c.l.b16 %v129
  %v2402 = vunpack.c.l.b16 %v130
  %v2403 = vunpack.c.l.b16 %v131
  %v2404 = vunpack.c.l.b16 %v132
  %v2405 = vunpack.c.l.b16 %v133
  %v2406 = vunpack.c.l.b16 %v134
  %v2407 = vunpack.c.l.b16 %v135
  %v2408 = vunpack.c.l.b16 %v136
  %v2409 = vunpack.c.l.b16 %v137
  %v2410 = vunpack.c.l.b16 %v138
  %v2411 = vunpack.c.l.b16 %v139
  %v2412 = vunpack.c.l.b16 %v140
  %v2413 = vunpack.c.l.b16 %v141
  %v2414 = vunpack.c.l.b16 %v142
  %v2415 = vunpack.c.l.b16 %v143
  %v2416 = vunpack.c.l.b16 %v144
  %v2417 = vunpack.c.l.b16 %v145
  %v2418 = vunpack.c.l.b16 %v146
  %v2419 = vunpack.c.l.b16 %v147
  %v2420 = vunpack.c.l.b16 %v148
  %v2421 = vunpack.c.l.b16 %v149
  %v2422 = vunpack.c.l.b16 %v150
  %v2423 = vunpack.c.l.b16 %v151
  %v2424 = vunpack.c.l.b16 %v152
  %v2425 = vunpack.c.l.b16 %v153
  %v2426 = vunpack.c.l.b16 %v154
  %v2427 = vunpack.c.l.b16 %v155
  %v2428 = vunpack.c.l.b16 %v156
  %v2429 = vunpack.c.l.b16 %v157
  %v2430 = vunpack.c.l.b16 %v158
  %v2431 = vunpack.c.l.b16 %v159
  %v2432 = vunpack.c.l.b16 %v160
  %v2433 = vunpack.c.l.b16 %v161
  %v2434 = vunpack.c.l.b16 %v162
  %v2435 = vunpack.c.l.b16 %v163
  %v2436 = vunpack.c.l.b16 %v164
  %v2437 = vunpack.c.l.b16 %v165
  %v2438 = vunpack.c.l.b16 %v166
  %v2439 = vunpack.c.l.b16 %v167
  %v2440 = vunpack.c.l.b16 %v168
  %v2441 = vunpack.c.l.b16 %v169
  %v2442 = vunpack.c.l.b16 %v170
  %v2443 = vunpack.c.l.b16 %v171
  %v2444 = vunpack.c.l.b16 %v172
  %v2445 = vunpack.c.l.b16 %v173
  %v2446 = vunpack.c.l.b16 %v174
  %v2447 = vunpack.c.l.b16 %v175
  %v2448 = vunpack.c.l.b16 %v176
  %v2449 = vunpack.c.l.b16 %v177
  %v2450 = vunpack.c.l.b16 %v178
  %v2451 = vunpack.c.l.b16 %v179
  %v2452 = vunpack.c.l.b16 %v180
  %v2453 = vunpack.c.l.b16 %v181
  %v2454 = vunpack.c.l.b16 %v182
  %v2455 = vunpack.c.l.b16 %v183
  %v2456 = vunpack.c.l.b16 %v184
  %v2457 = vunpack.c.l.b16 %v185
  %v2458 = vunpack.c.l.b16 %v186
  %v2459 = vunpack.c.l.b16 %v187
  %v2460 = vunpack.c.l.b16 %v188
  %v2461 = vunpack.c.l.b16 %v189
  %v2462 = vunpack.c.l.b16 %v190
  %v2463 = vunpack.c.l.b16 %v191
  %v2464 = vunpack.c.l.b16 %v192
  %v2465 = vunpack.c.l.b16 %v193
  %v2466 = vunpack.c.l.b16 %v194
  %v2467 = vunpack.c.l.b16 %v195
  %v2468 = vunpack.c.l.b16 %v196
  %v2469 = vunpack.c.l.b16 %v197
  %v2470 = vunpack.c.l.b16 %v198
  %v2471 = vunpack.c.l.b16 %v199
  %v2472 = vunpack.c.l.b16 %v200
  %v2473 = vunpack.c.l.b16 %v201
  %v2474 = vunpack.c.l.b16 %v202
  %v2475 = vunpack.c.l.b16 %v203
  %v2476 = vunpack.c.l.b16 %v204
  %v2477 = vunpack.c.l.b16 %v205
  %v2478 = vunpack.c.l.b16 %v206
  %v2479 = vunpack.c.l.b16 %v207
  %v2480 = vunpack.c.l.b16 %v208
  %v2481 = vunpack.c.l.b16 %v209
  %v2482 = vunpack.c.l.b16 %v210
  %v2483 = vunpack.c.l.b16 %v211
  %v2484 = vunpack.c.l.b16 %v212
  %v2485 = vunpack.c.l.b16 %v213
  %v2486 = vunpack.c.l.b16 %v214
  %v2487 = vunpack.c.l.b16 %v215
  %v2488 = vunpack.c.l.b16 %v216
  %v2489 = vunpack.c.l.b16 %v217
  %v2490 = vunpack.c.l.b16 %v218
  %v2491 = vunpack.c.l.b16 %v219
  %v2492 = vunpack.c.l.b16 %v220
  %v2493 = vunpack.c.l.b16 %v221
  %v2494 = vunpack.c.l.b16 %v222
  %v2495 = vunpack.c.l.b16 %v223
  %v2496 = vunpack.c.l.b16 %v224
  %v2497 = vunpack.c.l.b16 %v225
  %v2498 = vunpack.c.l.b16 %v226
  %v2499 = vunpack.c.l.b16 %v227
  %v2500 = vunpack.c.l.b16 %v228
  %v2501 = vunpack.c.l.b16 %v229
  %v2502 = vunpack.c.l.b16 %v230
  %v2503 = vunpack.c.l.b16 %v231
  %v2504 = vunpack.c.l.b16 %v232
  %v2505 = vunpack.c.l.b16 %v233
  %v2506 = vunpack.c.l.b16 %v234
  %v2507 = vunpack.c.l.b16 %v235
  %v2508 = vunpack.c.l.b16 %v236
  %v2509 = vunpack.c.l.b16 %v237
  %v2510 = vunpack.c.l.b16 %v238
  %v2511 = vunpack.c.l.b16 %v239
  %v2512 = vunpack.c.l.b16 %v240
  %v2513 = vunpack.c.l.b16 %v241
  %v2514 = vunpack.c.l.b16 %v242
  %v2515 = vunpack.c.l.b16 %v243
  %v2516 = vunpack.c.l.b16 %v244
  %v2517 = vunpack.c.l.b16 %v245
  %v2518 = vunpack.c.l.b16 %v246
  %v2519 = vunpack.c.l.b16 %v247
  %v2520 = vunpack.c.l.b16 %v248
  %v2521 = vunpack.c.l.b16 %v249
  %v2522 = vunpack.c.l.b16 %v250
  %v2523 = vunpack.c.l.b16 %v251
  %v2524 = vunpack.c.l.b16 %v252
  %v2525 = vunpack.c.l.b16 %v253
  %v2526 = vunpack.c.l.b16 %v254
  %v2527 = vunpack.c.l.b16 %v255
  %v2528 = vunpack.c.l.b16 %v256
  %v2529 = vunpack.c.l.b16 %v257
  %v2530 = vunpack.c.l.b16 %v258
  %v2531 = vunpack.c.l.b16 %v259
  %v2532 = vunpack.c.l.b16 %v260
  %v2533 = vunpack.c.l.b16 %v261
  %v2534 = vunpack.c.l.b16 %v262
  %v2535 = vunpack.c.l.b16 %v263
  %v2536 = vunpack.c.l.b16 %v264
  %v2537 = vunpack.c.l.b16 %v265
  %v2538 = vunpack.c.l.b16 %v266
  %v2539 = vunpack.c.l.b16 %v267
  %v2540 = vunpack.c.l.b16 %v268
  %v2541 = vunpack.c.l.b16 %v269
  %v2542 = vunpack.c.l.b16 %v270
  %v2543 = vunpack.c.l.b16 %v271
  %v2544 = vunpack.c.l.b16 %v272
  %v2545 = vunpack.c.l.b16 %v273
  %v2546 = vunpack.c.l.b16 %v274
  %v2547 = vunpack.c.l.b16 %v275
  %v2548 = vunpack.c.l.b16 %v276
  %v2549 = vunpack.c.l.b16 %v277
  %v2550 = vunpack.c.l.b16 %v278
  %v2551 = vunpack.c.l.b16 %v279
  %v2552 = vunpack.c.l.b16 %v280
  %v2553 = vunpack.c.l.b16 %v281
  %v2554 = vunpack.c.l.b16 %v282
  %v2555 = vunpack.c.l.b16 %v283
  %v2556 = vunpack.c.l.b16 %v284
  %v2557 = vunpack.c.l.b16 %v285
  %v2558 = vunpack.c.l.b16 %v286
  %v2559 = vunpack.c.l.b16 %v287
  %v2560 = vunpack.c.l.b16 %v288
  %v2561 = vunpack.c.l.b16 %v289
  %v2562 = vunpack.c.l.b16 %v290
  %v2563 = vunpack.c.l.b16 %v291
  %v2564 = vunpack.c.l.b16 %v292
  %v2565 = vunpack.c.l.b16 %v293
  %v2566 = vunpack.c.l.b16 %v294
  %v2567 = vunpack.c.l.b16 %v295
  %v2568 = vunpack.c.l.b16 %v296
  %v2569 = vunpack.c.l.b16 %v297
  %v2570 = vunpack.c.l.b16 %v298
  %v2571 = vunpack.c.l.b16 %v299
  %v2572 = vunpack.c.l.b16 %v300
  %v2573 = vunpack.c.l.b16 %v301
  %v2574 = vunpack.c.l.b16 %v302
  %v2575 = vunpack.c.l.b16 %v303
  %v2576 = vunpack.c.l.b16 %v304
  %v2577 = vunpack.c.l.b16 %v305
  %v2578 = vunpack.c.l.b16 %v306
  %v2579 = vunpack.c.l.b16 %v307
  %v2580 = vunpack.c.l.b16 %v308
  %v2581 = vunpack.c.l.b16 %v309
  %v2582 = vunpack.c.l.b16 %v310
  %v2583 = vunpack.c.l.b16 %v311
  %v2584 = vunpack.c.l.b16 %v312
  %v2585 = vunpack.c.l.b16 %v313
  %v2586 = vunpack.c.l.b16 %v314
  %v2587 = vunpack.c.l.b16 %v315
  %v2588 = vunpack.c.l.b16 %v316
  %v2589 = vunpack.c.l.b16 %v317
  %v2590 = vunpack.c.l.b16 %v318
  %v2591 = vunpack.c.l.b16 %v319
  %v2592 = vunpack.c.l.b16 %v320
  %v2593 = vunpack.c.l.b16 %v321
  %v2594 = vunpack.c.l.b16 %v322
  %v2595 = vunpack.c.l.b16 %v323
  %v2596 = vunpack.c.l.b16 %v324
  %v2597 = vunpack.c.l.b16 %v325
  %v2598 = vunpack.c.l.b16 %v326
  %v2599 = vunpack.c.l.b16 %v327
  %v2600 = vunpack.c.l.b16 %v328
  %v2601 = vunpack.c.l.b16 %v329
  %v2602 = vunpack.c.l.b16 %v330
  %v2603 = vunpack.c.l.b16 %v331
  %v2604 = vunpack.c.l.b16 %v332
  %v2605 = vunpack.c.l.b16 %v333
  %v2606 = vunpack.c.l.b16 %v334
  %v2607 = vunpack.c.l.b16 %v335
  %v2608 = vunpack.c.l.b16 %v336
  %v2609 = vunpack.c.l.b16 %v337
  %v2610 = vunpack.c.l.b16 %v338
  %v2611 = vunpack.c.l.b16 %v339
  %v2612 = vunpack.c.l.b16 %v340
  %v2613 = vunpack.c.l.b16 %v341
  %v2614 = vunpack.c.l.b16 %v342
  %v2615 = vunpack.c.l.b16 %v343
  %v2616 = vunpack.c.l.b16 %v344
  %v2617 = vunpack.c.l.b16 %v345
  %v2618 = vunpack.c.l.b16 %v346
  %v2619 = vunpack.c.l.b16 %v347
  %v2620 = vunpack.c.l.b16 %v348
  %v2621 = vunpack.c.l.b16 %v349
  %v2622 = vunpack.c.l.b16 %v350
  %v2623 = vunpack.c.l.b16 %v351
  %v2624 = vunpack.c.l.b16 %v352
  %v2625 = vunpack.c.l.b16 %v353
  %v2626 = vunpack.c.l.b16 %v354
  %v2627 = vunpack.c.l.b16 %v355
  %v2628 = vunpack.c.l.b16 %v356
  %v2629 = vunpack.c.l.b16 %v357
  %v2630 = vunpack.c.l.b16 %v358
  %v2631 = vunpack.c.l.b16 %v359
  %v2632 = vunpack.c.l.b16 %v360
  %v2633 = vunpack.c.l.b16 %v361
  %v2634 = vunpack.c.l.b16 %v362
  %v2635 = vunpack.c.l.b16 %v363
  %v2636 = vunpack.c.l.b16 %v364
  %v2637 = vunpack.c.l.b16 %v365
  %v2638 = vunpack.c.l.b16 %v366
  %v2639 = vunpack.c.l.b16 %v367
  %v2640 = vunpack.c.l.b16 %v368
  %v2641 = vunpack.c.l.b16 %v369
  %v2642 = vunpack.c.l.b16 %v370
  %v2643 = vunpack.c.l.b16 %v371
  %v2644 = vunpack.c.l.b16 %v372
  %v2645 = vunpack.c.l.b16 %v373
  %v2646 = vunpack.c.l.b16 %v374
  %v2647 = vunpack.c.l.b16 %v375
  %v2648 = vunpack.c.l.b16 %v376
  %v2649 = vunpack.c.l.b16 %v377
  %v2650 = vunpack.c.l.b16 %v378
  %v2651 = vunpack.c.l.b16 %v379
  %v2652 = vunpack.c.l.b16 %v380
  %v2653 = vunpack.c.l.b16 %v381
  %v2654 = vunpack.c.l.b16 %v382
  %v2655 = vunpack.c.l.b16 %v383
  %v2656 = vunpack.c.l.b16 %v384
  %v2657 = vunpack.c.l.b16 %v385
  %v2658 = vunpack.c.l.b16 %v386
  %v2659 = vunpack.c.l.b16 %v387
  %v2660 = vunpack.c.l.b16 %v388
  %v2661 = vunpack.c.l.b16 %v389
  %v2662 = vunpack.c.l.b16 %v390
  %v2663 = vunpack.c.l.b16 %v391
  %v2664 = vunpack.c.l.b16 %v392
  %v2665 = vunpack.c.l.b16 %v393
  %v2666 = vunpack.c.l.b16 %v394
  %v2667 = vunpack.c.l.b16 %v395
  %v2668 = vunpack.c.l.b16 %v396
  %v2669 = vunpack.c.l.b16 %v397
  %v2670 = vunpack.c.l.b16 %v398
  %v2671 = vunpack.c.l.b16 %v399
  %v2672 = vunpack.c.l.b16 %v400
  %v2673 = vunpack.c.l.b16 %v401
  %v2674 = vunpack.c.l.b16 %v402
  %v2675 = vunpack.c.l.b16 %v403
  %v2676 = vunpack.c.l.b16 %v404
  %v2677 = vunpack.c.l.b16 %v405
  %v2678 = vunpack.c.l.b16 %v406
  %v2679 = vunpack.c.l.b16 %v407
  %v2680 = vunpack.c.l.b16 %v408
  %v2681 = vunpack.c.l.b16 %v409
  %v2682 = vunpack.c.l.b16 %v410
  %v2683 = vunpack.c.l.b16 %v411
  %v2684 = vunpack.c.l.b16 %v412
  %v2685 = vunpack.c.l.b16 %v413
  %v2686 = vunpack.c.l.b16 %v414
  %v2687 = vunpack.c.l.b16 %v415
  %v2688 = vunpack.c.l.b16 %v416
  %v2689 = vunpack.c.l.b16 %v417
  %v2690 = vunpack.c.l.b16 %v418
  %v2691 = vunpack.c.l.b16 %v419
  %v2692 = vunpack.c.l.b16 %v420
  %v2693 = vunpack.c.l.b16 %v421
  %v2694 = vunpack.c.l.b16 %v422
  %v2695 = vunpack.c.l.b16 %v423
  %v2696 = vunpack.c.l.b16 %v424
  %v2697 = vunpack.c.l.b16 %v425
  %v2698 = vunpack.c.l.b16 %v426
  %v2699 = vunpack.c.l.b16 %v427
  %v2700 = vunpack.c.l.b16 %v428
  %v2701 = vunpack.c.l.b16 %v429
  %v2702 = vunpack.c.l.b16 %v430
  %v2703 = vunpack.c.l.b16 %v431
  %v2704 = vunpack.c.l.b16 %v432
  %v2705 = vunpack.c.l.b16 %v433
  %v2706 = vunpack.c.l.b16 %v434
  %v2707 = vunpack.c.l.b16 %v435
  %v2708 = vunpack.c.l.b16 %v436
  %v2709 = vunpack.c.l.b16 %v437
  %v2710 = vunpack.c.l.b16 %v438
  %v2711 = vunpack.c.l.b16 %v439
  %v2712 = vunpack.c.l.b16 %v440
  %v2713 = vunpack.c.l.b16 %v441
  %v2714 = vunpack.c.l.b16 %v442
  %v2715 = vunpack.c.l.b16 %v443
  %v2716 = vunpack.c.l.b16 %v444
  %v2717 = vunpack.c.l.b16 %v445
  %v2718 = vunpack.c.l.b16 %v446
  %v2719 = vunpack.c.l.b16 %v447
  %v2720 = vunpack.c.l.b16 %v448
  %v2721 = vunpack.c.l.b16 %v449
  %v2722 = vunpack.c.l.b16 %v450
  %v2723 = vunpack.c.l.b16 %v451
  %v2724 = vunpack.c.l.b16 %v452
  %v2725 = vunpack.c.l.b16 %v453
  %v2726 = vunpack.c.l.b16 %v454
  %v2727 = vunpack.c.l.b16 %v455
  %v2728 = vunpack.c.l.b16 %v456
  %v2729 = vunpack.c.l.b16 %v457
  %v2730 = vunpack.c.l.b16 %v458
  %v2731 = vunpack.c.l.b16 %v459
  %v2732 = vunpack.c.l.b16 %v460
  %v2733 = vunpack.c.l.b16 %v461
  %v2734 = vunpack.c.l.b16 %v462
  %v2735 = vunpack.c.l.b16 %v463
  %v2736 = vunpack.c.l.b16 %v464
  %v2737 = vunpack.c.l.b16 %v465
  %v2738 = vunpack.c.l.b16 %v466
  %v2739 = vunpack.c.l.b16 %v467
  %v2740 = vunpack.c.l.b16 %v468
  %v2741 = vunpack.c.l.b16 %v469
  %v2742 = vunpack.c.l.b16 %v470
  %v2743 = vunpack.c.l.b16 %v471
  %v2744 = vunpack.c.l.b16 %v472
  %v2745 = vunpack.c.l.b16 %v473
  %v2746 = vunpack.c.l.b16 %v474
  %v2747 = vunpack.c.l.b16 %v475
  %v2748 = vunpack.c.l.b16 %v476
  %v2749 = vunpack.c.l.b16 %v477
  %v2750 = vunpack.c.l.b16 %v478
  %v2751 = vunpack.c.l.b16 %v479
  %v2752 = vunpack.c.l.b16 %v480
  %v2753 = vunpack.c.l.b16 %v481
  %v2754 = vunpack.c.l.b16 %v482
  %v2755 = vunpack.c.l.b16 %v483
  %v2756 = vunpack.c.l.b16 %v484
  %v2757 = vunpack.c.l.b16 %v485
  %v2758 = vunpack.c.l.b16 %v486
  %v2759 = vunpack.c.l.b16 %v487
  %v2760 = vunpack.c.l.b16 %v488
  %v2761 = vunpack.c.l.b16 %v489
  %v2762 = vunpack.c.l.b16 %v490
  %v2763 = vunpack.c.l.b16 %v491
  %v2764 = vunpack.c.l.b16 %v492
  %v2765 = vunpack.c.l.b16 %v493
  %v2766 = vunpack.c.l.b16 %v494
  %v2767 = vunpack.c.l.b16 %v495
  %v2768 = vunpack.c.l.b16 %v496
  %v2769 = vunpack.c.l.b16 %v497
  %v2770 = vunpack.c.l.b16 %v498
  %v2771 = vunpack.c.l.b16 %v499
  %v2772 = vunpack.c.l.b16 %v500
  %v2773 = vunpack.c.l.b16 %v501
  %v2774 = vunpack.c.l.b16 %v502
  %v2775 = vunpack.c.l.b16 %v503
  %v2776 = vunpack.c.l.b16 %v504
  %v2777 = vunpack.c.l.b16 %v505
  %v2778 = vunpack.c.l.b16 %v506
  %v2779 = vunpack.c.l.b16 %v507
  %v2780 = vunpack.c.l.b16 %v508
  %v2781 = vunpack.c.l.b16 %v509
  %v2782 = vunpack.c.l.b16 %v510
  %v2783 = vunpack.c.l.b16 %v511
  %v2784 = vunpack.c.l.b16 %v512
  %v2785 = vunpack.c.l.b16 %v513
  %v2786 = vunpack.c.l.b16 %v514
  %v2787 = vunpack.c.l.b16 %v515
  %v2788 = vunpack.c.l.b16 %v516
  %v2789 = vunpack.c.l.b16 %v517
  %v2790 = vunpack.c.l.b16 %v518
  %v2791 = vunpack.c.l.b16 %v519
  %v2792 = vunpack.c.l.b16 %v520
  %v2793 = vunpack.c.l.b16 %v521
  %v2794 = vunpack.c.l.b16 %v522
  %v2795 = vunpack.c.l.b16 %v523
  %v2796 = vunpack.c.l.b16 %v524
  %v2797 = vunpack.c.l.b16 %v525
  %v2798 = vunpack.c.l.b16 %v526
  %v2799 = vunpack.c.l.b16 %v527
  %v2800 = vunpack.c.l.b16 %v528
  %v2801 = vunpack.c.l.b16 %v529
  %v2802 = vunpack.c.l.b16 %v530
  %v2803 = vunpack.c.l.b16 %v531
  %v2804 = vunpack.c.l.b16 %v532
  %v2805 = vunpack.c.l.b16 %v533
  %v2806 = vunpack.c.l.b16 %v534
  %v2807 = vunpack.c.l.b16 %v535
  %v2808 = vunpack.c.l.b16 %v536
  %v2809 = vunpack.c.l.b16 %v537
  %v2810 = vunpack.c.l.b16 %v538
  %v2811 = vunpack.c.l.b16 %v539
  %v2812 = vunpack.c.l.b16 %v540
  %v2813 = vunpack.c.l.b16 %v541
  %v2814 = vunpack.c.l.b16 %v542
  %v2815 = vunpack.c.l.b16 %v543
  %v2816 = vunpack.c.l.b16 %v544
  %v2817 = vunpack.c.l.b16 %v545
  %v2818 = vunpack.c.l.b16 %v546
  %v2819 = vunpack.c.l.b16 %v547
  %v2820 = vunpack.c.l.b16 %v548
  %v2821 = vunpack.c.l.b16 %v549
  %v2822 = vunpack.c.l.b16 %v550
  %v2823 = vunpack.c.l.b16 %v551
  %v2824 = vunpack.c.l.b16 %v552
  %v2825 = vunpack.c.l.b16 %v553
  %v2826 = vunpack.c.l.b16 %v554
  %v2827 = vunpack.c.l.b16 %v555
  %v2828 = vunpack.c.l.b16 %v556
  %v2829 = vunpack.c.l.b16 %v557
  %v2830 = vunpack.c.l.b16 %v558
  %v2831 = vunpack.c.l.b16 %v559
  %v2832 = vunpack.c.l.b16 %v560
  %v2833 = vunpack.c.l.b16 %v561
  %v2834 = vunpack.c.l.b16 %v562
  %v2835 = vunpack.c.l.b16 %v563
  %v2836 = vunpack.c.l.b16 %v564
  %v2837 = vunpack.c.l.b16 %v565
  %v2838 = vunpack.c.l.b16 %v566
  %v2839 = vunpack.c.l.b16 %v567
  %v2840 = vunpack.c.l.b16 %v568
  %v2841 = vunpack.c.l.b16 %v569
  %v2842 = vunpack.c.l.b16 %v570
  %v2843 = vunpack.c.l.b16 %v571
  %v2844 = vunpack.c.l.b16 %v572
  %v2845 = vunpack.c.l.b16 %v573
  %v2846 = vunpack.c.l.b16 %v574
  %v2847 = vunpack.c.l.b16 %v575
  %v2848 = vunpack.c.l.b16 %v576
  %v2849 = vunpack.c.l.b16 %v577
  %v2850 = vunpack.c.l.b16 %v578
  %v2851 = vunpack.c.l.b16 %v579
  %v2852 = vunpack.c.l.b16 %v580
  %v2853 = vunpack.c.l.b16 %v581
  %v2854 = vunpack.c.l.b16 %v582
  %v2855 = vunpack.c.l.b16 %v583
  %v2856 = vunpack.c.l.b16 %v584
  %v2857 = vunpack.c.l.b16 %v585
  %v2858 = vunpack.c.l.b16 %v586
  %v2859 = vunpack.c.l.b16 %v587
  %v2860 = vunpack.c.l.b16 %v588
  %v2861 = vunpack.c.l.b16 %v589
  %v2862 = vunpack.c.l.b16 %v590
  %v2863 = vunpack.c.l.b16 %v591
  %v2864 = vunpack.c.l.b16 %v592
  %v2865 = vunpack.c.l.b16 %v593
  %v2866 = vunpack.c.l.b16 %v594
  %v2867 = vunpack.c.l.b16 %v595
  %v2868 = vunpack.c.l.b16 %v596
  %v2869 = vunpack.c.l.b16 %v597
  %v2870 = vunpack.c.l.b16 %v598
  %v2871 = vunpack.c.l.b16 %v599
  %v2872 = vunpack.c.l.b16 %v600
  %v2873 = vunpack.c.l.b16 %v601
  %v2874 = vunpack.c.l.b16 %v602
  %v2875 = vunpack.c.l.b16 %v603
  %v2876 = vunpack.c.l.b16 %v604
  %v2877 = vunpack.c.l.b16 %v605
  %v2878 = vunpack.c.l.b16 %v606
  %v2879 = vunpack.c.l.b16 %v607
  %v2880 = vunpack.c.l.b16 %v608
  %v2881 = vunpack.c.l.b16 %v609
  %v2882 = vunpack.c.l.b16 %v610
  %v2883 = vunpack.c.l.b16 %v611
  %v2884 = vunpack.c.l.b16 %v612
  %v2885 = vunpack.c.l.b16 %v613
  %v2886 = vunpack.c.l.b16 %v614
  %v2887 = vunpack.c.l.b16 %v615
  %v2888 = vunpack.c.l.b16 %v616
  %v2889 = vunpack.c.l.b16 %v617
  %v2890 = vunpack.c.l.b16 %v618
  %v2891 = vunpack.c.l.b16 %v619
  %v2892 = vunpack.c.l.b16 %v620
  %v2893 = vunpack.c.l.b16 %v621
  %v2894 = vunpack.c.l.b16 %v622
  %v2895 = vunpack.c.l.b16 %v623
  %v2896 = vunpack.c.l.b16 %v624
  %v2897 = vunpack.c.l.b16 %v625
  %v2898 = vunpack.c.l.b16 %v626
  %v2899 = vunpack.c.l.b16 %v627
  %v2900 = vunpack.c.l.b16 %v628
  %v2901 = vunpack.c.l.b16 %v629
  %v2902 = vunpack.c.l.b16 %v630
  %v2903 = vunpack.c.l.b16 %v631
  %v2904 = vunpack.c.l.b16 %v632
  %v2905 = vunpack.c.l.b16 %v633
  %v2906 = vunpack.c.l.b16 %v634
  %v2907 = vunpack.c.l.b16 %v635
  %v2908 = vunpack.c.l.b16 %v636
  %v2909 = vunpack.c.l.b16 %v637
  %v2910 = vunpack.c.l.b16 %v638
  %v2911 = vunpack.c.l.b16 %v639
  %v2912 = vunpack.c.l.b16 %v640
  %v2913 = vunpack.c.l.b16 %v641
  %v2914 = vunpack.c.l.b16 %v642
  %v2915 = vunpack.c.l.b16 %v643
  %v2916 = vunpack.c.l.b16 %v644
  %v2917 = vunpack.c.l.b16 %v645
  %v2918 = vunpack.c.l.b16 %v646
  %v2919 = vunpack.c.l.b16 %v647
  %v2920 = vunpack.c.l.b16 %v648
  %v2921 = vunpack.c.l.b16 %v649
  %v2922 = vunpack.c.l.b16 %v650
  %v2923 = vunpack.c.l.b16 %v651
  %v2924 = vunpack.c.l.b16 %v652
  %v2925 = vunpack.c.l.b16 %v653
  %v2926 = vunpack.c.l.b16 %v654
  %v2927 = vunpack.c.l.b16 %v655
  %v2928 = vunpack.c.l.b16 %v656
  %v2929 = vunpack.c.l.b16 %v657
  %v2930 = vunpack.c.l.b16 %v658
  %v2931 = vunpack.c.l.b16 %v659
  %v2932 = vunpack.c.l.b16 %v660
  %v2933 = vunpack.c.l.b16 %v661
  %v2934 = vunpack.c.l.b16 %v662
  %v2935 = vunpack.c.l.b16 %v663
  %v2936 = vunpack.c.l.b16 %v664
  %v2937 = vunpack.c.l.b16 %v665
  %v2938 = vunpack.c.l.b16 %v666
  %v2939 = vunpack.c.l.b16 %v667
  %v2940 = vunpack.c.l.b16 %v668
  %v2941 = vunpack.c.l.b16 %v669
  %v2942 = vunpack.c.l.b16 %v670
  %v2943 = vunpack.c.l.b16 %v671
  %v2944 = vunpack.c.l.b16 %v672
  %v2945 = vunpack.c.l.b16 %v673
  %v2946 = vunpack.c.l.b16 %v674
  %v2947 = vunpack.c.l.b16 %v675
  %v2948 = vunpack.c.l.b16 %v676
  %v2949 = vunpack.c.l.b16 %v677
  %v2950 = vunpack.c.l.b16 %v678
  %v2951 = vunpack.c.l.b16 %v679
  %v2952 = vunpack.c.l.b16 %v680
  %v2953 = vunpack.c.l.b16 %v681
  %v2954 = vunpack.c.l.b16 %v682
  %v2955 = vunpack.c.l.b16 %v683
  %v2956 = vunpack.c.l.b16 %v684
  %v2957 = vunpack.c.l.b16 %v685
  %v2958 = vunpack.c.l.b16 %v686
  %v2959 = vunpack.c.l.b16 %v687
  %v2960 = vunpack.c.l.b16 %v688
  %v2961 = vunpack.c.l.b16 %v689
  %v2962 = vunpack.c.l.b16 %v690
  %v2963 = vunpack.c.l.b16 %v691
  %v2964 = vunpack.c.l.b16 %v692
  %v2965 = vunpack.c.l.b16 %v693
  %v2966 = vunpack.c.l.b16 %v694
  %v2967 = vunpack.c.l.b16 %v695
  %v2968 = vunpack.c.l.b16 %v696
  %v2969 = vunpack.c.l.b16 %v697
  %v2970 = vunpack.c.l.b16 %v698
  %v2971 = vunpack.c.l.b16 %v699
  %v2972 = vunpack.c.l.b16 %v700
  %v2973 = vunpack.c.l.b16 %v701
  %v2974 = vunpack.c.l.b16 %v702
  %v2975 = vunpack.c.l.b16 %v703
  %v2976 = vunpack.c.l.b16 %v704
  %v2977 = vunpack.c.l.b16 %v705
  %v2978 = vunpack.c.l.b16 %v706
  %v2979 = vunpack.c.l.b16 %v707
  %v2980 = vunpack.c.l.b16 %v708
  %v2981 = vunpack.c.l.b16 %v709
  %v2982 = vunpack.c.l.b16 %v710
  %v2983 = vunpack.c.l.b16 %v711
  %v2984 = vunpack.c.l.b16 %v712
  %v2985 = vunpack.c.l.b16 %v713
  %v2986 = vunpack.c.l.b16 %v714
  %v2987 = vunpack.c.l.b16 %v715
  %v2988 = vunpack.c.l.b16 %v716
  %v2989 = vunpack.c.l.b16 %v717
  %v2990 = vunpack.c.l.b16 %v718
  %v2991 = vunpack.c.l.b16 %v719
  %v2992 = vunpack.c.l.b16 %v720
  %v2993 = vunpack.c.l.b16 %v721
  %v2994 = vunpack.c.l.b16 %v722
  %v2995 = vunpack.c.l.b16 %v723
  %v2996 = vunpack.c.l.b16 %v724
  %v2997 = vunpack.c.l.b16 %v725
  %v2998 = vunpack.c.l.b16 %v726
  %v2999 = vunpack.c.l.b16 %v727
  %v3000 = vunpack.c.l.b16 %v728
  %v3001 = vunpack.c.l.b16 %v729
  %v3002 = vunpack.c.l.b16 %v730
  %v3003 = vunpack.c.l.b16 %v731
  %v3004 = vunpack.c.l.b16 %v732
  %v3005 = vunpack.c.l.b16 %v733
  %v3006 = vunpack.c.l.b16 %v734
  %v3007 = vunpack.c.l.b16 %v735
  %v3008 = vunpack.c.l.b16 %v736
  %v3009 = vunpack.c.l.b16 %v737
  %v3010 = vunpack.c.l.b16 %v738
  %v3011 = vunpack.c.l.b16 %v739
  %v3012 = vunpack.c.l.b16 %v740
  %v3013 = vunpack.c.l.b16 %v741
  %v3014 = vunpack.c.l.b16 %v742
  %v3015 = vunpack.c.l.b16 %v743
  %v3016 = vunpack.c.l.b16 %v744
  %v3017 = vunpack.c.l.b16 %v745
  %v3018 = vunpack.c.l.b16 %v746
  %v3019 = vunpack.c.l.b16 %v747
  %v3020 = vunpack.c.l.b16 %v748
  %v3021 = vunpack.c.l.b16 %v749
  %v3022 = vunpack.c.l.b16 %v750
  %v3023 = vunpack.c.l.b16 %v751
  %v3024 = vunpack.c.l.b16 %v752
  %v3025 = vunpack.c.l.b16 %v753
  %v3026 = vunpack.c.l.b16 %v754
  %v3027 = vunpack.c.l.b16 %v755
  %v3028 = vunpack.c.l.b16 %v756
  %v3029 = vunpack.c.l.b16 %v757
  %v3030 = vunpack.c.l.b16 %v758
  %v3031 = vunpack.c.l.b16 %v759
  %v3032 = vunpack.c.l.b16 %v760
  %v3033 = vunpack.c.l.b16 %v761
  %v3034 = vunpack.c.l.b16 %v762
  %v3035 = vunpack.c.l.b16 %v763
  %v3036 = vunpack.c.l.b16 %v764
  %v3037 = vunpack.c.l.b16 %v765
  %v3038 = vunpack.c.l.b16 %v766
  %v3039 = vunpack.c.l.b16 %v767
  %v3040 = vunpack.c.l.b16 %v768
  %v3041 = vunpack.c.l.b16 %v769
  %v3042 = vunpack.c.l.b16 %v770
  %v3043 = vunpack.c.l.b16 %v771
  %v3044 = vunpack.c.l.b16 %v772
  %v3045 = vunpack.c.l.b16 %v773
  %v3046 = vunpack.c.l.b16 %v774
  %v3047 = vunpack.c.l.b16 %v775
  %v3048 = vunpack.c.l.b16 %v776
  %v3049 = vunpack.c.l.b16 %v777
  %v3050 = vunpack.c.l.b16 %v778
  %v3051 = vunpack.c.l.b16 %v779
  %v3052 = vunpack.c.l.b16 %v780
  %v3053 = vunpack.c.l.b16 %v781
  %v3054 = vunpack.c.l.b16 %v782
  %v3055 = vunpack.c.l.b16 %v783
  %v3056 = vunpack.c.l.b16 %v784
  %v3057 = vunpack.c.l.b16 %v785
  %v3058 = vunpack.c.l.b16 %v786
  %v3059 = vunpack.c.l.b16 %v787
  %v3060 = vunpack.c.l.b16 %v788
  %v3061 = vunpack.c.l.b16 %v789
  %v3062 = vunpack.c.l.b16 %v790
  %v3063 = vunpack.c.l.b16 %v791
  %v3064 = vunpack.c.l.b16 %v792
  %v3065 = vunpack.c.l.b16 %v793
  %v3066 = vunpack.c.l.b16 %v794
  %v3067 = vunpack.c.l.b16 %v795
  %v3068 = vunpack.c.l.b16 %v796
  %v3069 = vunpack.c.l.b16 %v797
  %v3070 = vunpack.c.l.b16 %v798
  %v3071 = vunpack.c.l.b16 %v799
  %v3072 = vunpack.c.l.b16 %v800
  %v3073 = vunpack.c.l.b16 %v801
  %v3074 = vunpack.c.l.b16 %v802
  %v3075 = vunpack.c.l.b16 %v803
  %v3076 = vunpack.c.l.b16 %v804
  %v3077 = vunpack.c.l.b16 %v805
  %v3078 = vunpack.c.l.b16 %v806
  %v3079 = vunpack.c.l.b16 %v807
  %v3080 = vunpack.c.l.b16 %v808
  %v3081 = vunpack.c.l.b16 %v809
  %v3082 = vunpack.c.l.b16 %v810
  %v3083 = vunpack.c.l.b16 %v811
  %v3084 = vunpack.c.l.b16 %v812
  %v3085 = vunpack.c.l.b16 %v813
  %v3086 = vunpack.c.l.b16 %v814
  %v3087 = vunpack.c.l.b16 %v815
  %v3088 = vunpack.c.l.b16 %v816
  %v3089 = vunpack.c.l.b16 %v817
  %v3090 = vunpack.c.l.b16 %v818
  %v3091 = vunpack.c.l.b16 %v819
  %v3092 = vunpack.c.l.b16 %v820
  %v3093 = vunpack.c.l.b16 %v821
  %v3094 = vunpack.c.l.b16 %v822
  %v3095 = vunpack.c.l.b16 %v823
  %v3096 = vunpack.c.l.b16 %v824
  %v3097 = vunpack.c.l.b16 %v825
  %v3098 = vunpack.c.l.b16 %v826
  %v3099 = vunpack.c.l.b16 %v827
  %v3100 = vunpack.c.l.b16 %v828
  %v3101 = vunpack.c.l.b16 %v829
  %v3102 = vunpack.c.l.b16 %v830
  %v3103 = vunpack.c.l.b16 %v831
  %v3104 = vunpack.c.l.b16 %v832
  %v3105 = vunpack.c.l.b16 %v833
  %v3106 = vunpack.c.l.b16 %v834
  %v3107 = vunpack.c.l.b16 %v835
  %v3108 = vunpack.c.l.b16 %v836
  %v3109 = vunpack.c.l.b16 %v837
  %v3110 = vunpack.c.l.b16 %v838
  %v3111 = vunpack.c.l.b16 %v839
  %v3112 = vunpack.c.l.b16 %v840
  %v3113 = vunpack.c.l.b16 %v841
  %v3114 = vunpack.c.l.b16 %v842
  %v3115 = vunpack.c.l.b16 %v843
  %v3116 = vunpack.c.l.b16 %v844
  %v3117 = vunpack.c.l.b16 %v845
  %v3118 = vunpack.c.l.b16 %v846
  %v3119 = vunpack.c.l.b16 %v847
  %v3120 = vunpack.c.l.b16 %v848
  %v3121 = vunpack.c.l.b16 %v849
  %v3122 = vunpack.c.l.b16 %v850
  %v3123 = vunpack.c.l.b16 %v851
  %v3124 = vunpack.c.l.b16 %v852
  %v3125 = vunpack.c.l.b16 %v853
  %v3126 = vunpack.c.l.b16 %v854
  %v3127 = vunpack.c.l.b16 %v855
  %v3128 = vunpack.c.l.b16 %v856
  %v3129 = vunpack.c.l.b16 %v857
  %v3130 = vunpack.c.l.b16 %v858
  %v3131 = vunpack.c.l.b16 %v859
  %v3132 = vunpack.c.l.b16 %v860
  %v3133 = vunpack.c.l.b16 %v861
  %v3134 = vunpack.c.l.b16 %v862
  %v3135 = vunpack.c.l.b16 %v863
  %v3136 = vunpack.c.l.b16 %v864
  %v3137 = vunpack.c.l.b16 %v865
  %v3138 = vunpack.c.l.b16 %v866
  %v3139 = vunpack.c.l.b16 %v867
  %v3140 = vunpack.c.l.b16 %v868
  %v3141 = vunpack.c.l.b16 %v869
  %v3142 = vunpack.c.l.b16 %v870
  %v3143 = vunpack.c.l.b16 %v871
  %v3144 = vunpack.c.l.b16 %v872
  %v3145 = vunpack.c.l.b16 %v873
  %v3146 = vunpack.c.l.b16 %v874
  %v3147 = vunpack.c.l.b16 %v875
  %v3148 = vunpack.c.l.b16 %v876
  %v3149 = vunpack.c.l.b16 %v877
  %v3150 = vunpack.c.l.b16 %v878
  %v3151 = vunpack.c.l.b16 %v879
  %v3152 = vunpack.c.l.b16 %v880
  %v3153 = vunpack.c.l.b16 %v881
  %v3154 = vunpack.c.l.b16 %v882
  %v3155 = vunpack.c.l.b16 %v883
  %v3156 = vunpack.c.l.b16 %v884
  %v3157 = vunpack.c.l.b16 %v885
  %v3158 = vunpack.c.l.b16 %v886
  %v3159 = vunpack.c.l.b16 %v887
  %v3160 = vunpack.c.l.b16 %v888
  %v3161 = vunpack.c.l.b16 %v889
  %v3162 = vunpack.c.l.b16 %v890
  %v3163 = vunpack.c.l.b16 %v891
  %v3164 = vunpack.c.l.b16 %v892
  %v3165 = vunpack.c.l.b16 %v893
  %v3166 = vunpack.c.l.b16 %v894
  %v3167 = vunpack.c.l.b16 %v895
  %v3168 = vunpack.c.l.b16 %v896
  %v3169 = vunpack.c.l.b16 %v897
  %v3170 = vunpack.c.l.b16 %v898
  %v3171 = vunpack.c.l.b16 %v899
  %v3172 = vunpack.c.l.b16 %v900
  %v3173 = vunpack.c.l.b16 %v901
  %v3174 = vunpack.c.l.b16 %v902
  %v3175 = vunpack.c.l.b16 %v903
  %v3176 = vunpack.c.l.b16 %v904
  %v3177 = vunpack.c.l.b16 %v905
  %v3178 = vunpack.c.l.b16 %v906
  %v3179 = vunpack.c.l.b16 %v907
  %v3180 = vunpack.c.l.b16 %v908
  %v3181 = vunpack.c.l.b16 %v909
  %v3182 = vunpack.c.l.b16 %v910
  %v3183 = vunpack.c.l.b16 %v911
  %v3184 = vunpack.c.l.b16 %v912
  %v3185 = vunpack.c.l.b16 %v913
  %v3186 = vunpack.c.l.b16 %v914
  %v3187 = vunpack.c.l.b16 %v915
  %v3188 = vunpack.c.l.b16 %v916
  %v3189 = vunpack.c.l.b16 %v917
  %v3190 = vunpack.c.l.b16 %v918
  %v3191 = vunpack.c.l.b16 %v919
  %v3192 = vunpack.c.l.b16 %v920
  %v3193 = vunpack.c.l.b16 %v921
  %v3194 = vunpack.c.l.b16 %v922
  %v3195 = vunpack.c.l.b16 %v923
  %v3196 = vunpack.c.l.b16 %v924
  %v3197 = vunpack.c.l.b16 %v925
  %v3198 = vunpack.c.l.b16 %v926
  %v3199 = vunpack.c.l.b16 %v927
  %v3200 = vunpack.c.l.b16 %v928
  %v3201 = vunpack.c.l.b16 %v929
  %v3202 = vunpack.c.l.b16 %v930
  %v3203 = vunpack.c.l.b16 %v931
  %v3204 = vunpack.c.l.b16 %v932
  %v3205 = vunpack.c.l.b16 %v933
  %v3206 = vunpack.c.l.b16 %v934
  %v3207 = vunpack.c.l.b16 %v935
  %v3208 = vunpack.c.l.b16 %v936
  %v3209 = vunpack.c.l.b16 %v937
  %v3210 = vunpack.c.l.b16 %v938
  %v3211 = vunpack.c.l.b16 %v939
  %v3212 = vunpack.c.l.b16 %v940
  %v3213 = vunpack.c.l.b16 %v941
  %v3214 = vunpack.c.l.b16 %v942
  %v3215 = vunpack.c.l.b16 %v943
  %v3216 = vunpack.c.l.b16 %v944
  %v3217 = vunpack.c.l.b16 %v945
  %v3218 = vunpack.c.l.b16 %v946
  %v3219 = vunpack.c.l.b16 %v947
  %v3220 = vunpack.c.l.b16 %v948
  %v3221 = vunpack.c.l.b16 %v949
  %v3222 = vunpack.c.l.b16 %v950
  %v3223 = vunpack.c.l.b16 %v951
  %v3224 = vunpack.c.l.b16 %v952
  %v3225 = vunpack.c.l.b16 %v953
  %v3226 = vunpack.c.l.b16 %v954
  %v3227 = vunpack.c.l.b16 %v955
  %v3228 = vunpack.c.l.b16 %v956
  %v3229 = vunpack.c.l.b16 %v957
  %v3230 = vunpack.c.l.b16 %v958
  %v3231 = vunpack.c.l.b16 %v959
  %v3232 = vunpack.c.l.b16 %v960
  %v3233 = vunpack.c.l.b16 %v961
  %v3234 = vunpack.c.l.b16 %v962
  %v3235 = vunpack.c.l.b16 %v963
  %v3236 = vunpack.c.l.b16 %v964
  %v3237 = vunpack.c.l.b16 %v965
  %v3238 = vunpack.c.l.b16 %v966
  %v3239 = vunpack.c.l.b16 %v967
  %v3240 = vunpack.c.l.b16 %v968
  %v3241 = vunpack.c.l.b16 %v969
  %v3242 = vunpack.c.l.b16 %v970
  %v3243 = vunpack.c.l.b16 %v971
  %v3244 = vunpack.c.l.b16 %v972
  %v3245 = vunpack.c.l.b16 %v973
  %v3246 = vunpack.c.l.b16 %v974
  %v3247 = vunpack.c.l.b16 %v975
  %v3248 = vunpack.c.l.b16 %v976
  %v3249 = vunpack.c.l.b16 %v977
  %v3250 = vunpack.c.l.b16 %v978
  %v3251 = vunpack.c.l.b16 %v979
  %v3252 = vunpack.c.l.b16 %v980
  %v3253 = vunpack.c.l.b16 %v981
  %v3254 = vunpack.c.l.b16 %v982
  %v3255 = vunpack.c.l.b16 %v983
  %v3256 = vunpack.c.l.b16 %v984
  %v3257 = vunpack.c.l.b16 %v985
  %v3258 = vunpack.c.l.b16 %v986
  %v3259 = vunpack.c.l.b16 %v987
  %v3260 = vunpack.c.l.b16 %v988
  %v3261 = vunpack.c.l.b16 %v989
  %v3262 = vunpack.c.l.b16 %v990
  %v3263 = vunpack.c.l.b16 %v991
  %v3264 = vunpack.c.l.b16 %v992
  %v3265 = vunpack.c.l.b16 %v993
  %v3266 = vunpack.c.l.b16 %v994
  %v3267 = vunpack.c.l.b16 %v995
  %v3268 = vunpack.c.l.b16 %v996
  %v3269 = vunpack.c.l.b16 %v997
  %v3270 = vunpack.c.l.b16 %v998
  %v3271 = vunpack.c.l.b16 %v999
  %v3272 = vunpack.c.l.b16 %v1000
  %v3273 = vunpack.c.l.b16 %v1001
  %v3274 = vunpack.c.l.b16 %v1002
  %v3275 = vunpack.c.l.b16 %v1003
  %v3276 = vunpack.c.l.b16 %v1004
  %v3277 = vunpack.c.l.b16 %v1005
  %v3278 = vunpack.c.l.b16 %v1006
  %v3279 = vunpack.c.l.b16 %v1007
  %v3280 = vunpack.c.l.b16 %v1008
  %v3281 = vunpack.c.l.b16 %v1009
  %v3282 = vunpack.c.l.b16 %v1010
  %v3283 = vunpack.c.l.b16 %v1011
  %v3284 = vunpack.c.l.b16 %v1012
  %v3285 = vunpack.c.l.b16 %v1013
  %v3286 = vunpack.c.l.b16 %v1014
  %v3287 = vunpack.c.l.b16 %v1015
  %v3288 = vunpack.c.l.b16 %v1016
  %v3289 = vunpack.c.l.b16 %v1017
  %v3290 = vunpack.c.l.b16 %v1018
  %v3291 = vunpack.c.l.b16 %v1019
  %v3292 = vunpack.c.l.b16 %v1020
  %v3293 = vunpack.c.l.b16 %v1021
  %v3294 = vunpack.c.l.b16 %v1022
  %v3295 = vunpack.c.l.b16 %v1023
  %v3296 = vunpack.c.l.b16 %v1024
  %v3297 = vunpack.c.l.b16 %v1025
  %v3298 = vunpack.c.l.b16 %v1026
  %v3299 = vunpack.c.l.b16 %v1027
  %v3300 = vunpack.c.l.b16 %v1028
  %v3301 = vunpack.c.l.b16 %v1029
  %v3302 = vunpack.c.l.b16 %v1030
  %v3303 = vunpack.c.l.b16 %v1031
  %v3304 = vunpack.c.l.b16 %v1032
  %v3305 = vunpack.c.l.b16 %v1033
  %v3306 = vunpack.c.l.b16 %v1034
  %v3307 = vunpack.c.l.b16 %v1035
  %v3308 = vunpack.c.l.b16 %v1036
  %v3309 = vunpack.c.l.b16 %v1037
  %v3310 = vunpack.c.l.b16 %v1038
  %v3311 = vunpack.c.l.b16 %v1039
  %v3312 = vunpack.c.l.b16 %v1040
  %v3313 = vunpack.c.l.b16 %v1041
  %v3314 = vunpack.c.l.b16 %v1042
  %v3315 = vunpack.c.l.b16 %v1043
  %v3316 = vunpack.c.l.b16 %v1044
  %v3317 = vunpack.c.l.b16 %v1045
  %v3318 = vunpack.c.l.b16 %v1046
  %v3319 = vunpack.c.l.b16 %v1047
  %v3320 = vunpack.c.l.b16 %v1048
  %v3321 = vunpack.c.l.b16 %v1049
  %v3322 = vunpack.c.l.b16 %v1050
  %v3323 = vunpack.c.l.b16 %v1051
  %v3324 = vunpack.c.l.b16 %v1052
  %v3325 = vunpack.c.l.b16 %v1053
  %v3326 = vunpack.c.l.b16 %v1054
  %v3327 = vunpack.c.l.b16 %v1055
  %v3328 = vunpack.c.l.b16 %v1056
  %v3329 = vunpack.c.l.b16 %v1057
  %v3330 = vunpack.c.l.b16 %v1058
  %v3331 = vunpack.c.l.b16 %v1059
  %v3332 = vunpack.c.l.b16 %v1060
  %v3333 = vunpack.c.l.b16 %v1061
  %v3334 = vunpack.c.l.b16 %v1062
  %v3335 = vunpack.c.l.b16 %v1063
  %v3336 = vunpack.c.l.b16 %v1064
  %v3337 = vunpack.c.l.b16 %v1065
  %v3338 = vunpack.c.l.b16 %v1066
  %v3339 = vunpack.c.l.b16 %v1067
  %v3340 = vpack.c.b16 %v2317, %v2316
  %v3341 = vpack.c.b16 %v2319, %v2318
  %v3342 = vpack.c.b16 %v2321, %v2320
  %v3343 = vpack.c.b16 %v2323, %v2322
  %v3344 = vpack.c.b16 %v2325, %v2324
  %v3345 = vpack.c.b16 %v2327, %v2326
  %v3346 = vpack.c.b16 %v2329, %v2328
  %v3347 = vpack.c.b16 %v2331, %v2330
  %v3348 = vpack.c.b16 %v2333, %v2332
  %v3349 = vpack.c.b16 %v2335, %v2334
  %v3350 = vpack.c.b16 %v2337, %v2336
  %v3351 = vpack.c.b16 %v2339, %v2338
  %v3352 = vpack.c.b16 %v2341, %v2340
  %v3353 = vpack.c.b16 %v2343, %v2342
  %v3354 = vpack.c.b16 %v2345, %v2344
  %v3355 = vpack.c.b16 %v2347, %v2346
  %v3356 = vpack.c.b16 %v2349, %v2348
  %v3357 = vpack.c.b16 %v2351, %v2350
  %v3358 = vpack.c.b16 %v2353, %v2352
  %v3359 = vpack.c.b16 %v2355, %v2354
  %v3360 = vpack.c.b16 %v2357, %v2356
  %v3361 = vpack.c.b16 %v2359, %v2358
  %v3362 = vpack.c.b16 %v2361, %v2360
  %v3363 = vpack.c.b16 %v2363, %v2362
  %v3364 = vpack.c.b16 %v2365, %v2364
  %v3365 = vpack.c.b16 %v2367, %v2366
  %v3366 = vpack.c.b16 %v2369, %v2368
  %v3367 = vpack.c.b16 %v2371, %v2370
  %v3368 = vpack.c.b16 %v2373, %v2372
  %v3369 = vpack.c.b16 %v2375, %v2374
  %v3370 = vpack.c.b16 %v2377, %v2376
  %v3371 = vpack.c.b16 %v2379, %v2378
  %v3372 = vpack.c.b16 %v2381, %v2380
  %v3373 = vpack.c.b16 %v2383, %v2382
  %v3374 = vpack.c.b16 %v2385, %v2384
  %v3375 = vpack.c.b16 %v2387, %v2386
  %v3376 = vpack.c.b16 %v2389, %v2388
  %v3377 = vpack.c.b16 %v2391, %v2390
  %v3378 = vpack.c.b16 %v2393, %v2392
  %v3379 = vpack.c.b16 %v2395, %v2394
  %v3380 = vpack.c.b16 %v2397, %v2396
  %v3381 = vpack.c.b16 %v2399, %v2398
  %v3382 = vpack.c.b16 %v2401, %v2400
  %v3383 = vpack.c.b16 %v2403, %v2402
  %v3384 = vpack.c.b16 %v2405, %v2404
  %v3385 = vpack.c.b16 %v2407, %v2406
  %v3386 = vpack.c.b16 %v2409, %v2408
  %v3387 = vpack.c.b16 %v2411, %v2410
  %v3388 = vpack.c.b16 %v2413, %v2412
  %v3389 = vpack.c.b16 %v2415, %v2414
  %v3390 = vpack.c.b16 %v2417, %v2416
  %v3391 = vpack.c.b16 %v2419, %v2418
  %v3392 = vpack.c.b16 %v2421, %v2420
  %v3393 = vpack.c.b16 %v2423, %v2422
  %v3394 = vpack.c.b16 %v2425, %v2424
  %v3395 = vpack.c.b16 %v2427, %v2426
  %v3396 = vpack.c.b16 %v2429, %v2428
  %v3397 = vpack.c.b16 %v2431, %v2430
  %v3398 = vpack.c.b16 %v2433, %v2432
  %v3399 = vpack.c.b16 %v2435, %v2434
  %v3400 = vpack.c.b16 %v2437, %v2436
  %v3401 = vpack.c.b16 %v2439, %v2438
  %v3402 = vpack.c.b16 %v2441, %v2440
  %v3403 = vpack.c.b16 %v2443, %v2442
  %v3404 = vpack.c.b16 %v2445, %v2444
  %v3405 = vpack.c.b16 %v2447, %v2446
  %v3406 = vpack.c.b16 %v2449, %v2448
  %v3407 = vpack.c.b16 %v2451, %v2450
  %v3408 = vpack.c.b16 %v2453, %v2452
  %v3409 = vpack.c.b16 %v2455, %v2454
  %v3410 = vpack.c.b16 %v2457, %v2456
  %v3411 = vpack.c.b16 %v2459, %v2458
  %v3412 = vpack.c.b16 %v2461, %v2460
  %v3413 = vpack.c.b16 %v2463, %v2462
  %v3414 = vpack.c.b16 %v2465, %v2464
  %v3415 = vpack.c.b16 %v2467, %v2466
  %v3416 = vpack.c.b16 %v2469, %v2468
  %v3417 = vpack.c.b16 %v2471, %v2470
  %v3418 = vpack.c.b16 %v2473, %v2472
  %v3419 = vpack.c.b16 %v2475, %v2474
  %v3420 = vpack.c.b16 %v2477, %v2476
  %v3421 = vpack.c.b16 %v2479, %v2478
  %v3422 = vpack.c.b16 %v2481, %v2480
  %v3423 = vpack.c.b16 %v2483, %v2482
  %v3424 = vpack.c.b16 %v2485, %v2484
  %v3425 = vpack.c.b16 %v2487, %v2486
  %v3426 = vpack.c.b16 %v2489, %v2488
  %v3427 = vpack.c.b16 %v2491, %v2490
  %v3428 = vpack.c.b16 %v2493, %v2492
  %v3429 = vpack.c.b16 %v2495, %v2494
  %v3430 = vpack.c.b16 %v2497, %v2496
  %v3431 = vpack.c.b16 %v2499, %v2498
  %v3432 = vpack.c.b16 %v2501, %v2500
  %v3433 = vpack.c.b16 %v2503, %v2502
  %v3434 = vpack.c.b16 %v2505, %v2504
  %v3435 = vpack.c.b16 %v2507, %v2506
  %v3436 = vpack.c.b16 %v2509, %v2508
  %v3437 = vpack.c.b16 %v2511, %v2510
  %v3438 = vpack.c.b16 %v2513, %v2512
  %v3439 = vpack.c.b16 %v2515, %v2514
  %v3440 = vpack.c.b16 %v2517, %v2516
  %v3441 = vpack.c.b16 %v2519, %v2518
  %v3442 = vpack.c.b16 %v2521, %v2520
  %v3443 = vpack.c.b16 %v2523, %v2522
  %v3444 = vpack.c.b16 %v2525, %v2524
  %v3445 = vpack.c.b16 %v2527, %v2526
  %v3446 = vpack.c.b16 %v2529, %v2528
  %v3447 = vpack.c.b16 %v2531, %v2530
  %v3448 = vpack.c.b16 %v2533, %v2532
  %v3449 = vpack.c.b16 %v2535, %v2534
  %v3450 = vpack.c.b16 %v2537, %v2536
  %v3451 = vpack.c.b16 %v2539, %v2538
  %v3452 = vpack.c.b16 %v2541, %v2540
  %v3453 = vpack.c.b16 %v2543, %v2542
  %v3454 = vpack.c.b16 %v2545, %v2544
  %v3455 = vpack.c.b16 %v2547, %v2546
  %v3456 = vpack.c.b16 %v2549, %v2548
  %v3457 = vpack.c.b16 %v2551, %v2550
  %v3458 = vpack.c.b16 %v2553, %v2552
  %v3459 = vpack.c.b16 %v2555, %v2554
  %v3460 = vpack.c.b16 %v2557, %v2556
  %v3461 = vpack.c.b16 %v2559, %v2558
  %v3462 = vpack.c.b16 %v2561, %v2560
  %v3463 = vpack.c.b16 %v2563, %v2562
  %v3464 = vpack.c.b16 %v2565, %v2564
  %v3465 = vpack.c.b16 %v2567, %v2566
  %v3466 = vpack.c.b16 %v2569, %v2568
  %v3467 = vpack.c.b16 %v2571, %v2570
  %v3468 = vpack.c.b16 %v2573, %v2572
  %v3469 = vpack.c.b16 %v2575, %v2574
  %v3470 = vpack.c.b16 %v2577, %v2576
  %v3471 = vpack.c.b16 %v2579, %v2578
  %v3472 = vpack.c.b16 %v2581, %v2580
  %v3473 = vpack.c.b16 %v2583, %v2582
  %v3474 = vpack.c.b16 %v2585, %v2584
  %v3475 = vpack.c.b16 %v2587, %v2586
  %v3476 = vpack.c.b16 %v2589, %v2588
  %v3477 = vpack.c.b16 %v2591, %v2590
  %v3478 = vpack.c.b16 %v2593, %v2592
  %v3479 = vpack.c.b16 %v2595, %v2594
  %v3480 = vpack.c.b16 %v2597, %v2596
  %v3481 = vpack.c.b16 %v2599, %v2598
  %v3482 = vpack.c.b16 %v2601, %v2600
  %v3483 = vpack.c.b16 %v2603, %v2602
  %v3484 = vpack.c.b16 %v2605, %v2604
  %v3485 = vpack.c.b16 %v2607, %v2606
  %v3486 = vpack.c.b16 %v2609, %v2608
  %v3487 = vpack.c.b16 %v2611, %v2610
  %v3488 = vpack.c.b16 %v2613, %v2612
  %v3489 = vpack.c.b16 %v2615, %v2614
  %v3490 = vpack.c.b16 %v2617, %v2616
  %v3491 = vpack.c.b16 %v2619, %v2618
  %v3492 = vpack.c.b16 %v2621, %v2620
  %v3493 = vpack.c.b16 %v2623, %v2622
  %v3494 = vpack.c.b16 %v2625, %v2624
  %v3495 = vpack.c.b16 %v2627, %v2626
  %v3496 = vpack.c.b16 %v2629, %v2628
  %v3497 = vpack.c.b16 %v2631, %v2630
  %v3498 = vpack.c.b16 %v2633, %v2632
  %v3499 = vpack.c.b16 %v2635, %v2634
  %v3500 = vpack.c.b16 %v2637, %v2636
  %v3501 = vpack.c.b16 %v2639, %v2638
  %v3502 = vpack.c.b16 %v2641, %v2640
  %v3503 = vpack.c.b16 %v2643, %v2642
  %v3504 = vpack.c.b16 %v2645, %v2644
  %v3505 = vpack.c.b16 %v2647, %v2646
  %v3506 = vpack.c.b16 %v2649, %v2648
  %v3507 = vpack.c.b16 %v2651, %v2650
  %v3508 = vpack.c.b16 %v2653, %v2652
  %v3509 = vpack.c.b16 %v2655, %v2654
  %v3510 = vpack.c.b16 %v2657, %v2656
  %v3511 = vpack.c.b16 %v2659, %v2658
  %v3512 = vpack.c.b16 %v2661, %v2660
  %v3513 = vpack.c.b16 %v2663, %v2662
  %v3514 = vpack.c.b16 %v2665, %v2664
  %v3515 = vpack.c.b16 %v2667, %v2666
  %v3516 = vpack.c.b16 %v2669, %v2668
  %v3517 = vpack.c.b16 %v2671, %v2670
  %v3518 = vpack.c.b16 %v2673, %v2672
  %v3519 = vpack.c.b16 %v2675, %v2674
  %v3520 = vpack.c.b16 %v2677, %v2676
  %v3521 = vpack.c.b16 %v2679, %v2678
  %v3522 = vpack.c.b16 %v2681, %v2680
  %v3523 = vpack.c.b16 %v2683, %v2682
  %v3524 = vpack.c.b16 %v2685, %v2684
  %v3525 = vpack.c.b16 %v2687, %v2686
  %v3526 = vpack.c.b16 %v2689, %v2688
  %v3527 = vpack.c.b16 %v2691, %v2690
  %v3528 = vpack.c.b16 %v2693, %v2692
  %v3529 = vpack.c.b16 %v2695, %v2694
  %v3530 = vpack.c.b16 %v2697, %v2696
  %v3531 = vpack.c.b16 %v2699, %v2698
  %v3532 = vpack.c.b16 %v2701, %v2700
  %v3533 = vpack.c.b16 %v2703, %v2702
  %v3534 = vpack.c.b16 %v2705, %v2704
  %v3535 = vpack.c.b16 %v2707, %v2706
  %v3536 = vpack.c.b16 %v2709, %v2708
  %v3537 = vpack.c.b16 %v2711, %v2710
  %v3538 = vpack.c.b16 %v2713, %v2712
  %v3539 = vpack.c.b16 %v2715, %v2714
  %v3540 = vpack.c.b16 %v2717, %v2716
  %v3541 = vpack.c.b16 %v2719, %v2718
  %v3542 = vpack.c.b16 %v2721, %v2720
  %v3543 = vpack.c.b16 %v2723, %v2722
  %v3544 = vpack.c.b16 %v2725, %v2724
  %v3545 = vpack.c.b16 %v2727, %v2726
  %v3546 = vpack.c.b16 %v2729, %v2728
  %v3547 = vpack.c.b16 %v2731, %v2730
  %v3548 = vpack.c.b16 %v2733, %v2732
  %v3549 = vpack.c.b16 %v2735, %v2734
  %v3550 = vpack.c.b16 %v2737, %v2736
  %v3551 = vpack.c.b16 %v2739, %v2738
  %v3552 = vpack.c.b16 %v2741, %v2740
  %v3553 = vpack.c.b16 %v2743, %v2742
  %v3554 = vpack.c.b16 %v2745, %v2744
  %v3555 = vpack.c.b16 %v2747, %v2746
  %v3556 = vpack.c.b16 %v2749, %v2748
  %v3557 = vpack.c.b16 %v2751, %v2750
  %v3558 = vpack.c.b16 %v2753, %v2752
  %v3559 = vpack.c.b16 %v2755, %v2754
  %v3560 = vpack.c.b16 %v2757, %v2756
  %v3561 = vpack.c.b16 %v2759, %v2758
  %v3562 = vpack.c.b16 %v2761, %v2760
  %v3563 = vpack.c.b16 %v2763, %v2762
  %v3564 = vpack.c.b16 %v2765, %v2764
  %v3565 = vpack.c.b16 %v2767, %v2766
  %v3566 = vpack.c.b16 %v2769, %v2768
  %v3567 = vpack.c.b16 %v2771, %v2770
  %v3568 = vpack.c.b16 %v2773, %v2772
  %v3569 = vpack.c.b16 %v2775, %v2774
  %v3570 = vpack.c.b16 %v2777, %v2776
  %v3571 = vpack.c.b16 %v2779, %v2778
  %v3572 = vpack.c.b16 %v2781, %v2780
  %v3573 = vpack.c.b16 %v2783, %v2782
  %v3574 = vpack.c.b16 %v2785, %v2784
  %v3575 = vpack.c.b16 %v2787, %v2786
  %v3576 = vpack.c.b16 %v2789, %v2788
  %v3577 = vpack.c.b16 %v2791, %v2790
  %v3578 = vpack.c.b16 %v2793, %v2792
  %v3579 = vpack.c.b16 %v2795, %v2794
  %v3580 = vpack.c.b16 %v2797, %v2796
  %v3581 = vpack.c.b16 %v2799, %v2798
  %v3582 = vpack.c.b16 %v2801, %v2800
  %v3583 = vpack.c.b16 %v2803, %v2802
  %v3584 = vpack.c.b16 %v2805, %v2804
  %v3585 = vpack.c.b16 %v2807, %v2806
  %v3586 = vpack.c.b16 %v2809, %v2808
  %v3587 = vpack.c.b16 %v2811, %v2810
  %v3588 = vpack.c.b16 %v2813, %v2812
  %v3589 = vpack.c.b16 %v2815, %v2814
  %v3590 = vpack.c.b16 %v2817, %v2816
  %v3591 = vpack.c.b16 %v2819, %v2818
  %v3592 = vpack.c.b16 %v2821, %v2820
  %v3593 = vpack.c.b16 %v2823, %v2822
  %v3594 = vpack.c.b16 %v2825, %v2824
  %v3595 = vpack.c.b16 %v2827, %v2826
  %v3596 = vpack.c.b16 %v2829, %v2828
  %v3597 = vpack.c.b16 %v2831, %v2830
  %v3598 = vpack.c.b16 %v2833, %v2832
  %v3599 = vpack.c.b16 %v2835, %v2834
  %v3600 = vpack.c.b16 %v2837, %v2836
  %v3601 = vpack.c.b16 %v2839, %v2838
  %v3602 = vpack.c.b16 %v2841, %v2840
  %v3603 = vpack.c.b16 %v2843, %v2842
  %v3604 = vpack.c.b16 %v2845, %v2844
  %v3605 = vpack.c.b16 %v2847, %v2846
  %v3606 = vpack.c.b16 %v2849, %v2848
  %v3607 = vpack.c.b16 %v2851, %v2850
  %v3608 = vpack.c.b16 %v2853, %v2852
  %v3609 = vpack.c.b16 %v2855, %v2854
  %v3610 = vpack.c.b16 %v2857, %v2856
  %v3611 = vpack.c.b16 %v2859, %v2858
  %v3612 = vpack.c.b16 %v2861, %v2860
  %v3613 = vpack.c.b16 %v2863, %v2862
  %v3614 = vpack.c.b16 %v2865, %v2864
  %v3615 = vpack.c.b16 %v2867, %v2866
  %v3616 = vpack.c.b16 %v2869, %v2868
  %v3617 = vpack.c.b16 %v2871, %v2870
  %v3618 = vpack.c.b16 %v2873, %v2872
  %v3619 = vpack.c.b16 %v2875, %v2874
  %v3620 = vpack.c.b16 %v2877, %v2876
  %v3621 = vpack.c.b16 %v2879, %v2878
  %v3622 = vpack.c.b16 %v2881, %v2880
  %v3623 = vpack.c.b16 %v2883, %v2882
  %v3624 = vpack.c.b16 %v2885, %v2884
  %v3625 = vpack.c.b16 %v2887, %v2886
  %v3626 = vpack.c.b16 %v2889, %v2888
  %v3627 = vpack.c.b16 %v2891, %v2890
  %v3628 = vpack.c.b16 %v2893, %v2892
  %v3629 = vpack.c.b16 %v2895, %v2894
  %v3630 = vpack.c.b16 %v2897, %v2896
  %v3631 = vpack.c.b16 %v2899, %v2898
  %v3632 = vpack.c.b16 %v2901, %v2900
  %v3633 = vpack.c.b16 %v2903, %v2902
  %v3634 = vpack.c.b16 %v2905, %v2904
  %v3635 = vpack.c.b16 %v2907, %v2906
  %v3636 = vpack.c.b16 %v2909, %v2908
  %v3637 = vpack.c.b16 %v2911, %v2910
  %v3638 = vpack.c.b16 %v2913, %v2912
  %v3639 = vpack.c.b16 %v2915, %v2914
  %v3640 = vpack.c.b16 %v2917, %v2916
  %v3641 = vpack.c.b16 %v2919, %v2918
  %v3642 = vpack.c.b16 %v2921, %v2920
  %v3643 = vpack.c.b16 %v2923, %v2922
  %v3644 = vpack.c.b16 %v2925, %v2924
  %v3645 = vpack.c.b16 %v2927, %v2926
  %v3646 = vpack.c.b16 %v2929, %v2928
  %v3647 = vpack.c.b16 %v2931, %v2930
  %v3648 = vpack.c.b16 %v2933, %v2932
  %v3649 = vpack.c.b16 %v2935, %v2934
  %v3650 = vpack.c.b16 %v2937, %v2936
  %v3651 = vpack.c.b16 %v2939, %v2938
  %v3652 = vpack.c.b16 %v2941, %v2940
  %v3653 = vpack.c.b16 %v2943, %v2942
  %v3654 = vpack.c.b16 %v2945, %v2944
  %v3655 = vpack.c.b16 %v2947, %v2946
  %v3656 = vpack.c.b16 %v2949, %v2948
  %v3657 = vpack.c.b16 %v2951, %v2950
  %v3658 = vpack.c.b16 %v2953, %v2952
  %v3659 = vpack.c.b16 %v2955, %v2954
  %v3660 = vpack.c.b16 %v2957, %v2956
  %v3661 = vpack.c.b16 %v2959, %v2958
  %v3662 = vpack.c.b16 %v2961, %v2960
  %v3663 = vpack.c.b16 %v2963, %v2962
  %v3664 = vpack.c.b16 %v2965, %v2964
  %v3665 = vpack.c.b16 %v2967, %v2966
  %v3666 = vpack.c.b16 %v2969, %v2968
  %v3667 = vpack.c.b16 %v2971, %v2970
  %v3668 = vpack.c.b16 %v2973, %v2972
  %v3669 = vpack.c.b16 %v2975, %v2974
  %v3670 = vpack.c.b16 %v2977, %v2976
  %v3671 = vpack.c.b16 %v2979, %v2978
  %v3672 = vpack.c.b16 %v2981, %v2980
  %v3673 = vpack.c.b16 %v2983, %v2982
  %v3674 = vpack.c.b16 %v2985, %v2984
  %v3675 = vpack.c.b16 %v2987, %v2986
  %v3676 = vpack.c.b16 %v2989, %v2988
  %v3677 = vpack.c.b16 %v2991, %v2990
  %v3678 = vpack.c.b16 %v2993, %v2992
  %v3679 = vpack.c.b16 %v2995, %v2994
  %v3680 = vpack.c.b16 %v2997, %v2996
  %v3681 = vpack.c.b16 %v2999, %v2998
  %v3682 = vpack.c.b16 %v3001, %v3000
  %v3683 = vpack.c.b16 %v3003, %v3002
  %v3684 = vpack.c.b16 %v3005, %v3004
  %v3685 = vpack.c.b16 %v3007, %v3006
  %v3686 = vpack.c.b16 %v3009, %v3008
  %v3687 = vpack.c.b16 %v3011, %v3010
  %v3688 = vpack.c.b16 %v3013, %v3012
  %v3689 = vpack.c.b16 %v3015, %v3014
  %v3690 = vpack.c.b16 %v3017, %v3016
  %v3691 = vpack.c.b16 %v3019, %v3018
  %v3692 = vpack.c.b16 %v3021, %v3020
  %v3693 = vpack.c.b16 %v3023, %v3022
  %v3694 = vpack.c.b16 %v3025, %v3024
  %v3695 = vpack.c.b16 %v3027, %v3026
  %v3696 = vpack.c.b16 %v3029, %v3028
  %v3697 = vpack.c.b16 %v3031, %v3030
  %v3698 = vpack.c.b16 %v3033, %v3032
  %v3699 = vpack.c.b16 %v3035, %v3034
  %v3700 = vpack.c.b16 %v3037, %v3036
  %v3701 = vpack.c.b16 %v3039, %v3038
  %v3702 = vpack.c.b16 %v3041, %v3040
  %v3703 = vpack.c.b16 %v3043, %v3042
  %v3704 = vpack.c.b16 %v3045, %v3044
  %v3705 = vpack.c.b16 %v3047, %v3046
  %v3706 = vpack.c.b16 %v3049, %v3048
  %v3707 = vpack.c.b16 %v3051, %v3050
  %v3708 = vpack.c.b16 %v3053, %v3052
  %v3709 = vpack.c.b16 %v3055, %v3054
  %v3710 = vpack.c.b16 %v3057, %v3056
  %v3711 = vpack.c.b16 %v3059, %v3058
  %v3712 = vpack.c.b16 %v3061, %v3060
  %v3713 = vpack.c.b16 %v3063, %v3062
  %v3714 = vpack.c.b16 %v3065, %v3064
  %v3715 = vpack.c.b16 %v3067, %v3066
  %v3716 = vpack.c.b16 %v3069, %v3068
  %v3717 = vpack.c.b16 %v3071, %v3070
  %v3718 = vpack.c.b16 %v3073, %v3072
  %v3719 = vpack.c.b16 %v3075, %v3074
  %v3720 = vpack.c.b16 %v3077, %v3076
  %v3721 = vpack.c.b16 %v3079, %v3078
  %v3722 = vpack.c.b16 %v3081, %v3080
  %v3723 = vpack.c.b16 %v3083, %v3082
  %v3724 = vpack.c.b16 %v3085, %v3084
  %v3725 = vpack.c.b16 %v3087, %v3086
  %v3726 = vpack.c.b16 %v3089, %v3088
  %v3727 = vpack.c.b16 %v3091, %v3090
  %v3728 = vpack.c.b16 %v3093, %v3092
  %v3729 = vpack.c.b16 %v3095, %v3094
  %v3730 = vpack.c.b16 %v3097, %v3096
  %v3731 = vpack.c.b16 %v3099, %v3098
  %v3732 = vpack.c.b16 %v3101, %v3100
  %v3733 = vpack.c.b16 %v3103, %v3102
  %v3734 = vpack.c.b16 %v3105, %v3104
  %v3735 = vpack.c.b16 %v3107, %v3106
  %v3736 = vpack.c.b16 %v3109, %v3108
  %v3737 = vpack.c.b16 %v3111, %v3110
  %v3738 = vpack.c.b16 %v3113, %v3112
  %v3739 = vpack.c.b16 %v3115, %v3114
  %v3740 = vpack.c.b16 %v3117, %v3116
  %v3741 = vpack.c.b16 %v3119, %v3118
  %v3742 = vpack.c.b16 %v3121, %v3120
  %v3743 = vpack.c.b16 %v3123, %v3122
  %v3744 = vpack.c.b16 %v3125, %v3124
  %v3745 = vpack.c.b16 %v3127, %v3126
  %v3746 = vpack.c.b16 %v3129, %v3128
  %v3747 = vpack.c.b16 %v3131, %v3130
  %v3748 = vpack.c.b16 %v3133, %v3132
  %v3749 = vpack.c.b16 %v3135, %v3134
  %v3750 = vpack.c.b16 %v3137, %v3136
  %v3751 = vpack.c.b16 %v3139, %v3138
  %v3752 = vpack.c.b16 %v3141, %v3140
  %v3753 = vpack.c.b16 %v3143, %v3142
  %v3754 = vpack.c.b16 %v3145, %v3144
  %v3755 = vpack.c.b16 %v3147, %v3146
  %v3756 = vpack.c.b16 %v3149, %v3148
  %v3757 = vpack.c.b16 %v3151, %v3150
  %v3758 = vpack.c.b16 %v3153, %v3152
  %v3759 = vpack.c.b16 %v3155, %v3154
  %v3760 = vpack.c.b16 %v3157, %v3156
  %v3761 = vpack.c.b16 %v3159, %v3158
  %v3762 = vpack.c.b16 %v3161, %v3160
  %v3763 = vpack.c.b16 %v3163, %v3162
  %v3764 = vpack.c.b16 %v3165, %v3164
  %v3765 = vpack.c.b16 %v3167, %v3166
  %v3766 = vpack.c.b16 %v3169, %v3168
  %v3767 = vpack.c.b16 %v3171, %v3170
  %v3768 = vpack.c.b16 %v3173, %v3172
  %v3769 = vpack.c.b16 %v3175, %v3174
  %v3770 = vpack.c.b16 %v3177, %v3176
  %v3771 = vpack.c.b16 %v3179, %v3178
  %v3772 = vpack.c.b16 %v3181, %v3180
  %v3773 = vpack.c.b16 %v3183, %v3182
  %v3774 = vpack.c.b16 %v3185, %v3184
  %v3775 = vpack.c.b16 %v3187, %v3186
  %v3776 = vpack.c.b16 %v3189, %v3188
  %v3777 = vpack.c.b16 %v3191, %v3190
  %v3778 = vpack.c.b16 %v3193, %v3192
  %v3779 = vpack.c.b16 %v3195, %v3194
  %v3780 = vpack.c.b16 %v3197, %v3196
  %v3781 = vpack.c.b16 %v3199, %v3198
  %v3782 = vpack.c.b16 %v3201, %v3200
  %v3783 = vpack.c.b16 %v3203, %v3202
  %v3784 = vpack.c.b16 %v3205, %v3204
  %v3785 = vpack.c.b16 %v3207, %v3206
  %v3786 = vpack.c.b16 %v3209, %v3208
  %v3787 = vpack.c.b16 %v3211, %v3210
  %v3788 = vpack.c.b16 %v3213, %v3212
  %v3789 = vpack.c.b16 %v3215, %v3214
  %v3790 = vpack.c.b16 %v3217, %v3216
  %v3791 = vpack.c.b16 %v3219, %v3218
  %v3792 = vpack.c.b16 %v3221, %v3220
  %v3793 = vpack.c.b16 %v3223, %v3222
  %v3794 = vpack.c.b16 %v3225, %v3224
  %v3795 = vpack.c.b16 %v3227, %v3226
  %v3796 = vpack.c.b16 %v3229, %v3228
  %v3797 = vpack.c.b16 %v3231, %v3230
  %v3798 = vpack.c.b16 %v3233, %v3232
  %v3799 = vpack.c.b16 %v3235, %v3234
  %v3800 = vpack.c.b16 %v3237, %v3236
  %v3801 = vpack.c.b16 %v3239, %v3238
  %v3802 = vpack.c.b16 %v3241, %v3240
  %v3803 = vpack.c.b16 %v3243, %v3242
  %v3804 = vpack.c.b16 %v3245, %v3244
  %v3805 = vpack.c.b16 %v3247, %v3246
  %v3806 = vpack.c.b16 %v3249, %v3248
  %v3807 = vpack.c.b16 %v3251, %v3250
  %v3808 = vpack.c.b16 %v3253, %v3252
  %v3809 = vpack.c.b16 %v3255, %v3254
  %v3810 = vpack.c.b16 %v3257, %v3256
  %v3811 = vpack.c.b16 %v3259, %v3258
  %v3812 = vpack.c.b16 %v3261, %v3260
  %v3813 = vpack.c.b16 %v3263, %v3262
  %v3814 = vpack.c.b16 %v3265, %v3264
  %v3815 = vpack.c.b16 %v3267, %v3266
  %v3816 = vpack.c.b16 %v3269, %v3268
  %v3817 = vpack.c.b16 %v3271, %v3270
  %v3818 = vpack.c.b16 %v3273, %v3272
  %v3819 = vpack.c.b16 %v3275, %v3274
  %v3820 = vpack.c.b16 %v3277, %v3276
  %v3821 = vpack.c.b16 %v3279, %v3278
  %v3822 = vpack.c.b16 %v3281, %v3280
  %v3823 = vpack.c.b16 %v3283, %v3282
  %v3824 = vpack.c.b16 %v3285, %v3284
  %v3825 = vpack.c.b16 %v3287, %v3286
  %v3826 = vpack.c.b16 %v3289, %v3288
  %v3827 = vpack.c.b16 %v3291, %v3290
  %v3828 = vpack.c.b16 %v3293, %v3292
  %v3829 = vpack.c.b16 %v3295, %v3294
  %v3830 = vpack.c.b16 %v3297, %v3296
  %v3831 = vpack.c.b16 %v3299, %v3298
  %v3832 = vpack.c.b16 %v3301, %v3300
  %v3833 = vpack.c.b16 %v3303, %v3302
  %v3834 = vpack.c.b16 %v3305, %v3304
  %v3835 = vpack.c.b16 %v3307, %v3306
  %v3836 = vpack.c.b16 %v3309, %v3308
  %v3837 = vpack.c.b16 %v3311, %v3310
  %v3838 = vpack.c.b16 %v3313, %v3312
  %v3839 = vpack.c.b16 %v3315, %v3314
  %v3840 = vpack.c.b16 %v3317, %v3316
  %v3841 = vpack.c.b16 %v3319, %v3318
  %v3842 = vpack.c.b16 %v3321, %v3320
  %v3843 = vpack.c.b16 %v3323, %v3322
  %v3844 = vpack.c.b16 %v3325, %v3324
  %v3845 = vpack.c.b16 %v3327, %v3326
  %v3846 = vpack.c.b16 %v3329, %v3328
  %v3847 = vpack.c.b16 %v3331, %v3330
  %v3848 = vpack.c.b16 %v3333, %v3332
  %v3849 = vpack.c.b16 %v3335, %v3334
  %v3850 = vpack.c.b16 %v3337, %v3336
  %v3851 = vpack.c.b16 %v3339, %v3338
  %4364 = vmatprep.subr.bf16.mxu0 0
  %4365 = vmatpush1.bf16.msra.mxu0 %v3340
  %4366 = vmatprep.subr.bf16.mxu0 0
  %4367 = vmatpush1.bf16.msra.mxu0 %v3341
  %4368 = vmatprep.subr.bf16.mxu0 0
  %4369 = vmatpush1.bf16.msra.mxu0 %v3342
  %4370 = vmatprep.subr.bf16.mxu0 0
  %4371 = vmatpush1.bf16.msra.mxu0 %v3343
  %4372 = vmatprep.subr.bf16.mxu0 0
  %4373 = vmatpush1.bf16.msra.mxu0 %v3344
  %4374 = vmatprep.subr.bf16.mxu0 0
  %4375 = vmatpush1.bf16.msra.mxu0 %v3345
  %4376 = vmatprep.subr.bf16.mxu0 0
  %4377 = vmatpush1.bf16.msra.mxu0 %v3346
  %4378 = vmatprep.subr.bf16.mxu0 0
  %4379 = vmatpush1.bf16.msra.mxu0 %v3347
  %4380 = vmatprep.subr.bf16.mxu0 0
  %4381 = vmatpush1.bf16.msra.mxu0 %v3348
  %4382 = vmatprep.subr.bf16.mxu0 0
  %4383 = vmatpush1.bf16.msra.mxu0 %v3349
  %4384 = vmatprep.subr.bf16.mxu0 0
  %4385 = vmatpush1.bf16.msra.mxu0 %v3350
  %4386 = vmatprep.subr.bf16.mxu0 0
  %4387 = vmatpush1.bf16.msra.mxu0 %v3351
  %4388 = vmatprep.subr.bf16.mxu0 0
  %4389 = vmatpush1.bf16.msra.mxu0 %v3352
  %4390 = vmatprep.subr.bf16.mxu0 0
  %4391 = vmatpush1.bf16.msra.mxu0 %v3353
  %4392 = vmatprep.subr.bf16.mxu0 0
  %4393 = vmatpush1.bf16.msra.mxu0 %v3354
  %4394 = vmatprep.subr.bf16.mxu0 0
  %4395 = vmatpush1.bf16.msra.mxu0 %v3355
  %4396 = vmatprep.mubr.bf16.mxu0 %v1165
  %4397 = vmatmul.mubr.bf16.gmra.mrb[0].mxu0 %v1164
  %v4398 = vpop.f32.mrb[0].mxu0
  %v4399 = vadd.f32 0.0, %v4398
  %v4400 = vpop.f32.mrb[0].mxu0
  %v4401 = vpop.f32.mrb[0].mxu0
  %v4402 = vpop.f32.mrb[0].mxu0
  %4403 = vdwg.mxu0
  %4404 = vmatprep.subr.bf16.mxu0 0
  %4405 = vmatpush1.bf16.msra.mxu0 %v3356
  %4406 = vmatprep.subr.bf16.mxu0 0
  %4407 = vmatpush1.bf16.msra.mxu0 %v3357
  %4408 = vmatprep.subr.bf16.mxu0 0
  %4409 = vmatpush1.bf16.msra.mxu0 %v3358
  %4410 = vmatprep.subr.bf16.mxu0 0
  %4411 = vmatpush1.bf16.msra.mxu0 %v3359
  %4412 = vmatprep.subr.bf16.mxu0 0
  %4413 = vmatpush1.bf16.msra.mxu0 %v3360
  %4414 = vmatprep.subr.bf16.mxu0 0
  %4415 = vmatpush1.bf16.msra.mxu0 %v3361
  %4416 = vmatprep.subr.bf16.mxu0 0
  %4417 = vmatpush1.bf16.msra.mxu0 %v3362
  %4418 = vmatprep.subr.bf16.mxu0 0
  %4419 = vmatpush1.bf16.msra.mxu0 %v3363
  %4420 = vmatprep.subr.bf16.mxu0 0
  %4421 = vmatpush1.bf16.msra.mxu0 %v3364
  %4422 = vmatprep.subr.bf16.mxu0 0
  %4423 = vmatpush1.bf16.msra.mxu0 %v3365
  %4424 = vmatprep.subr.bf16.mxu0 0
  %4425 = vmatpush1.bf16.msra.mxu0 %v3366
  %4426 = vmatprep.subr.bf16.mxu0 0
  %4427 = vmatpush1.bf16.msra.mxu0 %v3367
  %4428 = vmatprep.subr.bf16.mxu0 0
  %4429 = vmatpush1.bf16.msra.mxu0 %v3368
  %4430 = vmatprep.subr.bf16.mxu0 0
  %4431 = vmatpush1.bf16.msra.mxu0 %v3369
  %4432 = vmatprep.subr.bf16.mxu0 0
  %4433 = vmatpush1.bf16.msra.mxu0 %v3370
  %4434 = vmatprep.subr.bf16.mxu0 0
  %4435 = vmatpush1.bf16.msra.mxu0 %v3371
  %4436 = vmatprep.mubr.bf16.mxu0 %v1167
  %4437 = vmatmul.mubr.bf16.gmra.mrb[0].mxu0 %v1166
  %v4438 = vpop.f32.mrb[0].mxu0
  %v4439 = vadd.f32 %v4399, %v4438
  %v4440 = vpop.f32.mrb[0].mxu0
  %v4441 = vpop.f32.mrb[0].mxu0
  %v4442 = vpop.f32.mrb[0].mxu0
  %4443 = vdwg.mxu0
  %4444 = vmatprep.subr.bf16.mxu0 0
  %4445 = vmatpush1.bf16.msra.mxu0 %v3372
  %4446 = vmatprep.subr.bf16.mxu0 0
  %4447 = vmatpush1.bf16.msra.mxu0 %v3373
  %4448 = vmatprep.subr.bf16.mxu0 0
  %4449 = vmatpush1.bf16.msra.mxu0 %v3374
  %4450 = vmatprep.subr.bf16.mxu0 0
  %4451 = vmatpush1.bf16.msra.mxu0 %v3375
  %4452 = vmatprep.subr.bf16.mxu0 0
  %4453 = vmatpush1.bf16.msra.mxu0 %v3376
  %4454 = vmatprep.subr.bf16.mxu0 0
  %4455 = vmatpush1.bf16.msra.mxu0 %v3377
  %4456 = vmatprep.subr.bf16.mxu0 0
  %4457 = vmatpush1.bf16.msra.mxu0 %v3378
  %4458 = vmatprep.subr.bf16.mxu0 0
  %4459 = vmatpush1.bf16.msra.mxu0 %v3379
  %4460 = vmatprep.subr.bf16.mxu0 0
  %4461 = vmatpush1.bf16.msra.mxu0 %v3380
  %4462 = vmatprep.subr.bf16.mxu0 0
  %4463 = vmatpush1.bf16.msra.mxu0 %v3381
  %4464 = vmatprep.subr.bf16.mxu0 0
  %4465 = vmatpush1.bf16.msra.mxu0 %v3382
  %4466 = vmatprep.subr.bf16.mxu0 0
  %4467 = vmatpush1.bf16.msra.mxu0 %v3383
  %4468 = vmatprep.subr.bf16.mxu0 0
  %4469 = vmatpush1.bf16.msra.mxu0 %v3384
  %4470 = vmatprep.subr.bf16.mxu0 0
  %4471 = vmatpush1.bf16.msra.mxu0 %v3385
  %4472 = vmatprep.subr.bf16.mxu0 0
  %4473 = vmatpush1.bf16.msra.mxu0 %v3386
  %4474 = vmatprep.subr.bf16.mxu0 0
  %4475 = vmatpush1.bf16.msra.mxu0 %v3387
  %4476 = vmatprep.mubr.bf16.mxu0 %v1169
  %4477 = vmatmul.mubr.bf16.gmra.mrb[0].mxu0 %v1168
  %v4478 = vpop.f32.mrb[0].mxu0
  %v4479 = vadd.f32 %v4439, %v4478
  %v4480 = vpop.f32.mrb[0].mxu0
  %v4481 = vpop.f32.mrb[0].mxu0
  %v4482 = vpop.f32.mrb[0].mxu0
  %4483 = vdwg.mxu0
  %4484 = vmatprep.subr.bf16.mxu0 0
  %4485 = vmatpush1.bf16.msra.mxu0 %v3388
  %4486 = vmatprep.subr.bf16.mxu0 0
  %4487 = vmatpush1.bf16.msra.mxu0 %v3389
  %4488 = vmatprep.subr.bf16.mxu0 0
  %4489 = vmatpush1.bf16.msra.mxu0 %v3390
  %4490 = vmatprep.subr.bf16.mxu0 0
  %4491 = vmatpush1.bf16.msra.mxu0 %v3391
  %4492 = vmatprep.subr.bf16.mxu0 0
  %4493 = vmatpush1.bf16.msra.mxu0 %v3392
  %4494 = vmatprep.subr.bf16.mxu0 0
  %4495 = vmatpush1.bf16.msra.mxu0 %v3393
  %4496 = vmatprep.subr.bf16.mxu0 0
  %4497 = vmatpush1.bf16.msra.mxu0 %v3394
  %4498 = vmatprep.subr.bf16.mxu0 0
  %4499 = vmatpush1.bf16.msra.mxu0 %v3395
  %4500 = vmatprep.subr.bf16.mxu0 0
  %4501 = vmatpush1.bf16.msra.mxu0 %v3396
  %4502 = vmatprep.subr.bf16.mxu0 0
  %4503 = vmatpush1.bf16.msra.mxu0 %v3397
  %4504 = vmatprep.subr.bf16.mxu0 0
  %4505 = vmatpush1.bf16.msra.mxu0 %v3398
  %4506 = vmatprep.subr.bf16.mxu0 0
  %4507 = vmatpush1.bf16.msra.mxu0 %v3399
  %4508 = vmatprep.subr.bf16.mxu0 0
  %4509 = vmatpush1.bf16.msra.mxu0 %v3400
  %4510 = vmatprep.subr.bf16.mxu0 0
  %4511 = vmatpush1.bf16.msra.mxu0 %v3401
  %4512 = vmatprep.subr.bf16.mxu0 0
  %4513 = vmatpush1.bf16.msra.mxu0 %v3402
  %4514 = vmatprep.subr.bf16.mxu0 0
  %4515 = vmatpush1.bf16.msra.mxu0 %v3403
  %4516 = vmatprep.mubr.bf16.mxu0 %v1171
  %4517 = vmatmul.mubr.bf16.gmra.mrb[0].mxu0 %v1170
  %v4518 = vpop.f32.mrb[0].mxu0
  %v4519 = vadd.f32 %v4479, %v4518
  %v4520 = vpop.f32.mrb[0].mxu0
  %v4521 = vpop.f32.mrb[0].mxu0
  %v4522 = vpop.f32.mrb[0].mxu0
  %4523 = vdwg.mxu0
  %4524 = vmatprep.subr.bf16.mxu0 0
  %4525 = vmatpush1.bf16.msra.mxu0 %v3404
  %4526 = vmatprep.subr.bf16.mxu0 0
  %4527 = vmatpush1.bf16.msra.mxu0 %v3405
  %4528 = vmatprep.subr.bf16.mxu0 0
  %4529 = vmatpush1.bf16.msra.mxu0 %v3406
  %4530 = vmatprep.subr.bf16.mxu0 0
  %4531 = vmatpush1.bf16.msra.mxu0 %v3407
  %4532 = vmatprep.subr.bf16.mxu0 0
  %4533 = vmatpush1.bf16.msra.mxu0 %v3408
  %4534 = vmatprep.subr.bf16.mxu0 0
  %4535 = vmatpush1.bf16.msra.mxu0 %v3409
  %4536 = vmatprep.subr.bf16.mxu0 0
  %4537 = vmatpush1.bf16.msra.mxu0 %v3410
  %4538 = vmatprep.subr.bf16.mxu0 0
  %4539 = vmatpush1.bf16.msra.mxu0 %v3411
  %4540 = vmatprep.subr.bf16.mxu0 0
  %4541 = vmatpush1.bf16.msra.mxu0 %v3412
  %4542 = vmatprep.subr.bf16.mxu0 0
  %4543 = vmatpush1.bf16.msra.mxu0 %v3413
  %4544 = vmatprep.subr.bf16.mxu0 0
  %4545 = vmatpush1.bf16.msra.mxu0 %v3414
  %4546 = vmatprep.subr.bf16.mxu0 0
  %4547 = vmatpush1.bf16.msra.mxu0 %v3415
  %4548 = vmatprep.subr.bf16.mxu0 0
  %4549 = vmatpush1.bf16.msra.mxu0 %v3416
  %4550 = vmatprep.subr.bf16.mxu0 0
  %4551 = vmatpush1.bf16.msra.mxu0 %v3417
  %4552 = vmatprep.subr.bf16.mxu0 0
  %4553 = vmatpush1.bf16.msra.mxu0 %v3418
  %4554 = vmatprep.subr.bf16.mxu0 0
  %4555 = vmatpush1.bf16.msra.mxu0 %v3419
  %4556 = vmatprep.mubr.bf16.mxu0 %v1173
  %4557 = vmatmul.mubr.bf16.gmra.mrb[0].mxu0 %v1172
  %v4558 = vpop.f32.mrb[0].mxu0
  %v4559 = vadd.f32 %v4519, %v4558
  %v4560 = vpop.f32.mrb[0].mxu0
  %v4561 = vpop.f32.mrb[0].mxu0
  %v4562 = vpop.f32.mrb[0].mxu0
  %4563 = vdwg.mxu0
  %4564 = vmatprep.subr.bf16.mxu0 0
  %4565 = vmatpush1.bf16.msra.mxu0 %v3420
  %4566 = vmatprep.subr.bf16.mxu0 0
  %4567 = vmatpush1.bf16.msra.mxu0 %v3421
  %4568 = vmatprep.subr.bf16.mxu0 0
  %4569 = vmatpush1.bf16.msra.mxu0 %v3422
  %4570 = vmatprep.subr.bf16.mxu0 0
  %4571 = vmatpush1.bf16.msra.mxu0 %v3423
  %4572 = vmatprep.subr.bf16.mxu0 0
  %4573 = vmatpush1.bf16.msra.mxu0 %v3424
  %4574 = vmatprep.subr.bf16.mxu0 0
  %4575 = vmatpush1.bf16.msra.mxu0 %v3425
  %4576 = vmatprep.subr.bf16.mxu0 0
  %4577 = vmatpush1.bf16.msra.mxu0 %v3426
  %4578 = vmatprep.subr.bf16.mxu0 0
  %4579 = vmatpush1.bf16.msra.mxu0 %v3427
  %4580 = vmatprep.subr.bf16.mxu0 0
  %4581 = vmatpush1.bf16.msra.mxu0 %v3428
  %4582 = vmatprep.subr.bf16.mxu0 0
  %4583 = vmatpush1.bf16.msra.mxu0 %v3429
  %4584 = vmatprep.subr.bf16.mxu0 0
  %4585 = vmatpush1.bf16.msra.mxu0 %v3430
  %4586 = vmatprep.subr.bf16.mxu0 0
  %4587 = vmatpush1.bf16.msra.mxu0 %v3431
  %4588 = vmatprep.subr.bf16.mxu0 0
  %4589 = vmatpush1.bf16.msra.mxu0 %v3432
  %4590 = vmatprep.subr.bf16.mxu0 0
  %4591 = vmatpush1.bf16.msra.mxu0 %v3433
  %4592 = vmatprep.subr.bf16.mxu0 0
  %4593 = vmatpush1.bf16.msra.mxu0 %v3434
  %4594 = vmatprep.subr.bf16.mxu0 0
  %4595 = vmatpush1.bf16.msra.mxu0 %v3435
  %4596 = vmatprep.mubr.bf16.mxu0 %v1175
  %4597 = vmatmul.mubr.bf16.gmra.mrb[0].mxu0 %v1174
  %v4598 = vpop.f32.mrb[0].mxu0
  %v4599 = vadd.f32 %v4559, %v4598
  %v4600 = vpop.f32.mrb[0].mxu0
  %v4601 = vpop.f32.mrb[0].mxu0
  %v4602 = vpop.f32.mrb[0].mxu0
  %4603 = vdwg.mxu0
  %4604 = vmatprep.subr.bf16.mxu0 0
  %4605 = vmatpush1.bf16.msra.mxu0 %v3436
  %4606 = vmatprep.subr.bf16.mxu0 0
  %4607 = vmatpush1.bf16.msra.mxu0 %v3437
  %4608 = vmatprep.subr.bf16.mxu0 0
  %4609 = vmatpush1.bf16.msra.mxu0 %v3438
  %4610 = vmatprep.subr.bf16.mxu0 0
  %4611 = vmatpush1.bf16.msra.mxu0 %v3439
  %4612 = vmatprep.subr.bf16.mxu0 0
  %4613 = vmatpush1.bf16.msra.mxu0 %v3440
  %4614 = vmatprep.subr.bf16.mxu0 0
  %4615 = vmatpush1.bf16.msra.mxu0 %v3441
  %4616 = vmatprep.subr.bf16.mxu0 0
  %4617 = vmatpush1.bf16.msra.mxu0 %v3442
  %4618 = vmatprep.subr.bf16.mxu0 0
  %4619 = vmatpush1.bf16.msra.mxu0 %v3443
  %4620 = vmatprep.subr.bf16.mxu0 0
  %4621 = vmatpush1.bf16.msra.mxu0 %v3444
  %4622 = vmatprep.subr.bf16.mxu0 0
  %4623 = vmatpush1.bf16.msra.mxu0 %v3445
  %4624 = vmatprep.subr.bf16.mxu0 0
  %4625 = vmatpush1.bf16.msra.mxu0 %v3446
  %4626 = vmatprep.subr.bf16.mxu0 0
  %4627 = vmatpush1.bf16.msra.mxu0 %v3447
  %4628 = vmatprep.subr.bf16.mxu0 0
  %4629 = vmatpush1.bf16.msra.mxu0 %v3448
  %4630 = vmatprep.subr.bf16.mxu0 0
  %4631 = vmatpush1.bf16.msra.mxu0 %v3449
  %4632 = vmatprep.subr.bf16.mxu0 0
  %4633 = vmatpush1.bf16.msra.mxu0 %v3450
  %4634 = vmatprep.subr.bf16.mxu0 0
  %4635 = vmatpush1.bf16.msra.mxu0 %v3451
  %4636 = vmatprep.mubr.bf16.mxu0 %v1177
  %4637 = vmatmul.mubr.bf16.gmra.mrb[0].mxu0 %v1176
  %v4638 = vpop.f32.mrb[0].mxu0
  %v4639 = vadd.f32 %v4599, %v4638
  %v4640 = vpop.f32.mrb[0].mxu0
  %v4641 = vpop.f32.mrb[0].mxu0
  %v4642 = vpop.f32.mrb[0].mxu0
  %4643 = vdwg.mxu0
  %4644 = vmatprep.subr.bf16.mxu0 0
  %4645 = vmatpush1.bf16.msra.mxu0 %v3452
  %4646 = vmatprep.subr.bf16.mxu0 0
  %4647 = vmatpush1.bf16.msra.mxu0 %v3453
  %4648 = vmatprep.subr.bf16.mxu0 0
  %4649 = vmatpush1.bf16.msra.mxu0 %v3454
  %4650 = vmatprep.subr.bf16.mxu0 0
  %4651 = vmatpush1.bf16.msra.mxu0 %v3455
  %4652 = vmatprep.subr.bf16.mxu0 0
  %4653 = vmatpush1.bf16.msra.mxu0 %v3456
  %4654 = vmatprep.subr.bf16.mxu0 0
  %4655 = vmatpush1.bf16.msra.mxu0 %v3457
  %4656 = vmatprep.subr.bf16.mxu0 0
  %4657 = vmatpush1.bf16.msra.mxu0 %v3458
  %4658 = vmatprep.subr.bf16.mxu0 0
  %4659 = vmatpush1.bf16.msra.mxu0 %v3459
  %4660 = vmatprep.subr.bf16.mxu0 0
  %4661 = vmatpush1.bf16.msra.mxu0 %v3460
  %4662 = vmatprep.subr.bf16.mxu0 0
  %4663 = vmatpush1.bf16.msra.mxu0 %v3461
  %4664 = vmatprep.subr.bf16.mxu0 0
  %4665 = vmatpush1.bf16.msra.mxu0 %v3462
  %4666 = vmatprep.subr.bf16.mxu0 0
  %4667 = vmatpush1.bf16.msra.mxu0 %v3463
  %4668 = vmatprep.subr.bf16.mxu0 0
  %4669 = vmatpush1.bf16.msra.mxu0 %v3464
  %4670 = vmatprep.subr.bf16.mxu0 0
  %4671 = vmatpush1.bf16.msra.mxu0 %v3465
  %4672 = vmatprep.subr.bf16.mxu0 0
  %4673 = vmatpush1.bf16.msra.mxu0 %v3466
  %4674 = vmatprep.subr.bf16.mxu0 0
  %4675 = vmatpush1.bf16.msra.mxu0 %v3467
  %4676 = vmatprep.mubr.bf16.mxu0 %v1179
  %4677 = vmatmul.mubr.bf16.gmra.mrb[0].mxu0 %v1178
  %v4678 = vpop.f32.mrb[0].mxu0
  %v4679 = vadd.f32 %v4639, %v4678
  %v4680 = vpop.f32.mrb[0].mxu0
  %v4681 = vpop.f32.mrb[0].mxu0
  %v4682 = vpop.f32.mrb[0].mxu0
  %4683 = vdwg.mxu0
  %4684 = vmatprep.subr.bf16.mxu0 0
  %4685 = vmatpush1.bf16.msra.mxu0 %v3468
  %4686 = vmatprep.subr.bf16.mxu0 0
  %4687 = vmatpush1.bf16.msra.mxu0 %v3469
  %4688 = vmatprep.subr.bf16.mxu0 0
  %4689 = vmatpush1.bf16.msra.mxu0 %v3470
  %4690 = vmatprep.subr.bf16.mxu0 0
  %4691 = vmatpush1.bf16.msra.mxu0 %v3471
  %4692 = vmatprep.subr.bf16.mxu0 0
  %4693 = vmatpush1.bf16.msra.mxu0 %v3472
  %4694 = vmatprep.subr.bf16.mxu0 0
  %4695 = vmatpush1.bf16.msra.mxu0 %v3473
  %4696 = vmatprep.subr.bf16.mxu0 0
  %4697 = vmatpush1.bf16.msra.mxu0 %v3474
  %4698 = vmatprep.subr.bf16.mxu0 0
  %4699 = vmatpush1.bf16.msra.mxu0 %v3475
  %4700 = vmatprep.subr.bf16.mxu0 0
  %4701 = vmatpush1.bf16.msra.mxu0 %v3476
  %4702 = vmatprep.subr.bf16.mxu0 0
  %4703 = vmatpush1.bf16.msra.mxu0 %v3477
  %4704 = vmatprep.subr.bf16.mxu0 0
  %4705 = vmatpush1.bf16.msra.mxu0 %v3478
  %4706 = vmatprep.subr.bf16.mxu0 0
  %4707 = vmatpush1.bf16.msra.mxu0 %v3479
  %4708 = vmatprep.subr.bf16.mxu0 0
  %4709 = vmatpush1.bf16.msra.mxu0 %v3480
  %4710 = vmatprep.subr.bf16.mxu0 0
  %4711 = vmatpush1.bf16.msra.mxu0 %v3481
  %4712 = vmatprep.subr.bf16.mxu0 0
  %4713 = vmatpush1.bf16.msra.mxu0 %v3482
  %4714 = vmatprep.subr.bf16.mxu0 0
  %4715 = vmatpush1.bf16.msra.mxu0 %v3483
  %4716 = vmatprep.mubr.bf16.mxu0 %v1181
  %4717 = vmatmul.mubr.bf16.gmra.mrb[0].mxu0 %v1180
  %v4718 = vpop.f32.mrb[0].mxu0
  %v4719 = vadd.f32 %v4679, %v4718
  %v4720 = vpop.f32.mrb[0].mxu0
  %v4721 = vpop.f32.mrb[0].mxu0
  %v4722 = vpop.f32.mrb[0].mxu0
  %4723 = vdwg.mxu0
  %4724 = vmatprep.subr.bf16.mxu0 0
  %4725 = vmatpush1.bf16.msra.mxu0 %v3484
  %4726 = vmatprep.subr.bf16.mxu0 0
  %4727 = vmatpush1.bf16.msra.mxu0 %v3485
  %4728 = vmatprep.subr.bf16.mxu0 0
  %4729 = vmatpush1.bf16.msra.mxu0 %v3486
  %4730 = vmatprep.subr.bf16.mxu0 0
  %4731 = vmatpush1.bf16.msra.mxu0 %v3487
  %4732 = vmatprep.subr.bf16.mxu0 0
  %4733 = vmatpush1.bf16.msra.mxu0 %v3488
  %4734 = vmatprep.subr.bf16.mxu0 0
  %4735 = vmatpush1.bf16.msra.mxu0 %v3489
  %4736 = vmatprep.subr.bf16.mxu0 0
  %4737 = vmatpush1.bf16.msra.mxu0 %v3490
  %4738 = vmatprep.subr.bf16.mxu0 0
  %4739 = vmatpush1.bf16.msra.mxu0 %v3491
  %4740 = vmatprep.subr.bf16.mxu0 0
  %4741 = vmatpush1.bf16.msra.mxu0 %v3492
  %4742 = vmatprep.subr.bf16.mxu0 0
  %4743 = vmatpush1.bf16.msra.mxu0 %v3493
  %4744 = vmatprep.subr.bf16.mxu0 0
  %4745 = vmatpush1.bf16.msra.mxu0 %v3494
  %4746 = vmatprep.subr.bf16.mxu0 0
  %4747 = vmatpush1.bf16.msra.mxu0 %v3495
  %4748 = vmatprep.subr.bf16.mxu0 0
  %4749 = vmatpush1.bf16.msra.mxu0 %v3496
  %4750 = vmatprep.subr.bf16.mxu0 0
  %4751 = vmatpush1.bf16.msra.mxu0 %v3497
  %4752 = vmatprep.subr.bf16.mxu0 0
  %4753 = vmatpush1.bf16.msra.mxu0 %v3498
  %4754 = vmatprep.subr.bf16.mxu0 0
  %4755 = vmatpush1.bf16.msra.mxu0 %v3499
  %4756 = vmatprep.mubr.bf16.mxu0 %v1183
  %4757 = vmatmul.mubr.bf16.gmra.mrb[0].mxu0 %v1182
  %v4758 = vpop.f32.mrb[0].mxu0
  %v4759 = vadd.f32 %v4719, %v4758
  %v4760 = vpop.f32.mrb[0].mxu0
  %v4761 = vpop.f32.mrb[0].mxu0
  %v4762 = vpop.f32.mrb[0].mxu0
  %4763 = vdwg.mxu0
  %4764 = vmatprep.subr.bf16.mxu0 0
  %4765 = vmatpush1.bf16.msra.mxu0 %v3500
  %4766 = vmatprep.subr.bf16.mxu0 0
  %4767 = vmatpush1.bf16.msra.mxu0 %v3501
  %4768 = vmatprep.subr.bf16.mxu0 0
  %4769 = vmatpush1.bf16.msra.mxu0 %v3502
  %4770 = vmatprep.subr.bf16.mxu0 0
  %4771 = vmatpush1.bf16.msra.mxu0 %v3503
  %4772 = vmatprep.subr.bf16.mxu0 0
  %4773 = vmatpush1.bf16.msra.mxu0 %v3504
  %4774 = vmatprep.subr.bf16.mxu0 0
  %4775 = vmatpush1.bf16.msra.mxu0 %v3505
  %4776 = vmatprep.subr.bf16.mxu0 0
  %4777 = vmatpush1.bf16.msra.mxu0 %v3506
  %4778 = vmatprep.subr.bf16.mxu0 0
  %4779 = vmatpush1.bf16.msra.mxu0 %v3507
  %4780 = vmatprep.subr.bf16.mxu0 0
  %4781 = vmatpush1.bf16.msra.mxu0 %v3508
  %4782 = vmatprep.subr.bf16.mxu0 0
  %4783 = vmatpush1.bf16.msra.mxu0 %v3509
  %4784 = vmatprep.subr.bf16.mxu0 0
  %4785 = vmatpush1.bf16.msra.mxu0 %v3510
  %4786 = vmatprep.subr.bf16.mxu0 0
  %4787 = vmatpush1.bf16.msra.mxu0 %v3511
  %4788 = vmatprep.subr.bf16.mxu0 0
  %4789 = vmatpush1.bf16.msra.mxu0 %v3512
  %4790 = vmatprep.subr.bf16.mxu0 0
  %4791 = vmatpush1.bf16.msra.mxu0 %v3513
  %4792 = vmatprep.subr.bf16.mxu0 0
  %4793 = vmatpush1.bf16.msra.mxu0 %v3514
  %4794 = vmatprep.subr.bf16.mxu0 0
  %4795 = vmatpush1.bf16.msra.mxu0 %v3515
  %4796 = vmatprep.mubr.bf16.mxu0 %v1185
  %4797 = vmatmul.mubr.bf16.gmra.mrb[0].mxu0 %v1184
  %v4798 = vpop.f32.mrb[0].mxu0
  %v4799 = vadd.f32 %v4759, %v4798
  %v4800 = vpop.f32.mrb[0].mxu0
  %v4801 = vpop.f32.mrb[0].mxu0
  %v4802 = vpop.f32.mrb[0].mxu0
  %4803 = vdwg.mxu0
  %4804 = vmatprep.subr.bf16.mxu0 0
  %4805 = vmatpush1.bf16.msra.mxu0 %v3516
  %4806 = vmatprep.subr.bf16.mxu0 0
  %4807 = vmatpush1.bf16.msra.mxu0 %v3517
  %4808 = vmatprep.subr.bf16.mxu0 0
  %4809 = vmatpush1.bf16.msra.mxu0 %v3518
  %4810 = vmatprep.subr.bf16.mxu0 0
  %4811 = vmatpush1.bf16.msra.mxu0 %v3519
  %4812 = vmatprep.subr.bf16.mxu0 0
  %4813 = vmatpush1.bf16.msra.mxu0 %v3520
  %4814 = vmatprep.subr.bf16.mxu0 0
  %4815 = vmatpush1.bf16.msra.mxu0 %v3521
  %4816 = vmatprep.subr.bf16.mxu0 0
  %4817 = vmatpush1.bf16.msra.mxu0 %v3522
  %4818 = vmatprep.subr.bf16.mxu0 0
  %4819 = vmatpush1.bf16.msra.mxu0 %v3523
  %4820 = vmatprep.subr.bf16.mxu0 0
  %4821 = vmatpush1.bf16.msra.mxu0 %v3524
  %4822 = vmatprep.subr.bf16.mxu0 0
  %4823 = vmatpush1.bf16.msra.mxu0 %v3525
  %4824 = vmatprep.subr.bf16.mxu0 0
  %4825 = vmatpush1.bf16.msra.mxu0 %v3526
  %4826 = vmatprep.subr.bf16.mxu0 0
  %4827 = vmatpush1.bf16.msra.mxu0 %v3527
  %4828 = vmatprep.subr.bf16.mxu0 0
  %4829 = vmatpush1.bf16.msra.mxu0 %v3528
  %4830 = vmatprep.subr.bf16.mxu0 0
  %4831 = vmatpush1.bf16.msra.mxu0 %v3529
  %4832 = vmatprep.subr.bf16.mxu0 0
  %4833 = vmatpush1.bf16.msra.mxu0 %v3530
  %4834 = vmatprep.subr.bf16.mxu0 0
  %4835 = vmatpush1.bf16.msra.mxu0 %v3531
  %4836 = vmatprep.mubr.bf16.mxu0 %v1187
  %4837 = vmatmul.mubr.bf16.gmra.mrb[0].mxu0 %v1186
  %v4838 = vpop.f32.mrb[0].mxu0
  %v4839 = vadd.f32 %v4799, %v4838
  %v4840 = vpop.f32.mrb[0].mxu0
  %v4841 = vpop.f32.mrb[0].mxu0
  %v4842 = vpop.f32.mrb[0].mxu0
  %4843 = vdwg.mxu0
  %4844 = vmatprep.subr.bf16.mxu0 0
  %4845 = vmatpush1.bf16.msra.mxu0 %v3532
  %4846 = vmatprep.subr.bf16.mxu0 0
  %4847 = vmatpush1.bf16.msra.mxu0 %v3533
  %4848 = vmatprep.subr.bf16.mxu0 0
  %4849 = vmatpush1.bf16.msra.mxu0 %v3534
  %4850 = vmatprep.subr.bf16.mxu0 0
  %4851 = vmatpush1.bf16.msra.mxu0 %v3535
  %4852 = vmatprep.subr.bf16.mxu0 0
  %4853 = vmatpush1.bf16.msra.mxu0 %v3536
  %4854 = vmatprep.subr.bf16.mxu0 0
  %4855 = vmatpush1.bf16.msra.mxu0 %v3537
  %4856 = vmatprep.subr.bf16.mxu0 0
  %4857 = vmatpush1.bf16.msra.mxu0 %v3538
  %4858 = vmatprep.subr.bf16.mxu0 0
  %4859 = vmatpush1.bf16.msra.mxu0 %v3539
  %4860 = vmatprep.subr.bf16.mxu0 0
  %4861 = vmatpush1.bf16.msra.mxu0 %v3540
  %4862 = vmatprep.subr.bf16.mxu0 0
  %4863 = vmatpush1.bf16.msra.mxu0 %v3541
  %4864 = vmatprep.subr.bf16.mxu0 0
  %4865 = vmatpush1.bf16.msra.mxu0 %v3542
  %4866 = vmatprep.subr.bf16.mxu0 0
  %4867 = vmatpush1.bf16.msra.mxu0 %v3543
  %4868 = vmatprep.subr.bf16.mxu0 0
  %4869 = vmatpush1.bf16.msra.mxu0 %v3544
  %4870 = vmatprep.subr.bf16.mxu0 0
  %4871 = vmatpush1.bf16.msra.mxu0 %v3545
  %4872 = vmatprep.subr.bf16.mxu0 0
  %4873 = vmatpush1.bf16.msra.mxu0 %v3546
  %4874 = vmatprep.subr.bf16.mxu0 0
  %4875 = vmatpush1.bf16.msra.mxu0 %v3547
  %4876 = vmatprep.mubr.bf16.mxu0 %v1189
  %4877 = vmatmul.mubr.bf16.gmra.mrb[0].mxu0 %v1188
  %v4878 = vpop.f32.mrb[0].mxu0
  %v4879 = vadd.f32 %v4839, %v4878
  %v4880 = vpop.f32.mrb[0].mxu0
  %v4881 = vpop.f32.mrb[0].mxu0
  %v4882 = vpop.f32.mrb[0].mxu0
  %4883 = vdwg.mxu0
  %4884 = vmatprep.subr.bf16.mxu0 0
  %4885 = vmatpush1.bf16.msra.mxu0 %v3548
  %4886 = vmatprep.subr.bf16.mxu0 0
  %4887 = vmatpush1.bf16.msra.mxu0 %v3549
  %4888 = vmatprep.subr.bf16.mxu0 0
  %4889 = vmatpush1.bf16.msra.mxu0 %v3550
  %4890 = vmatprep.subr.bf16.mxu0 0
  %4891 = vmatpush1.bf16.msra.mxu0 %v3551
  %4892 = vmatprep.subr.bf16.mxu0 0
  %4893 = vmatpush1.bf16.msra.mxu0 %v3552
  %4894 = vmatprep.subr.bf16.mxu0 0
  %4895 = vmatpush1.bf16.msra.mxu0 %v3553
  %4896 = vmatprep.subr.bf16.mxu0 0
  %4897 = vmatpush1.bf16.msra.mxu0 %v3554
  %4898 = vmatprep.subr.bf16.mxu0 0
  %4899 = vmatpush1.bf16.msra.mxu0 %v3555
  %4900 = vmatprep.subr.bf16.mxu0 0
  %4901 = vmatpush1.bf16.msra.mxu0 %v3556
  %4902 = vmatprep.subr.bf16.mxu0 0
  %4903 = vmatpush1.bf16.msra.mxu0 %v3557
  %4904 = vmatprep.subr.bf16.mxu0 0
  %4905 = vmatpush1.bf16.msra.mxu0 %v3558
  %4906 = vmatprep.subr.bf16.mxu0 0
  %4907 = vmatpush1.bf16.msra.mxu0 %v3559
  %4908 = vmatprep.subr.bf16.mxu0 0
  %4909 = vmatpush1.bf16.msra.mxu0 %v3560
  %4910 = vmatprep.subr.bf16.mxu0 0
  %4911 = vmatpush1.bf16.msra.mxu0 %v3561
  %4912 = vmatprep.subr.bf16.mxu0 0
  %4913 = vmatpush1.bf16.msra.mxu0 %v3562
  %4914 = vmatprep.subr.bf16.mxu0 0
  %4915 = vmatpush1.bf16.msra.mxu0 %v3563
  %4916 = vmatprep.mubr.bf16.mxu0 %v1191
  %4917 = vmatmul.mubr.bf16.gmra.mrb[0].mxu0 %v1190
  %v4918 = vpop.f32.mrb[0].mxu0
  %v4919 = vadd.f32 %v4879, %v4918
  %v4920 = vpop.f32.mrb[0].mxu0
  %v4921 = vpop.f32.mrb[0].mxu0
  %v4922 = vpop.f32.mrb[0].mxu0
  %4923 = vdwg.mxu0
  %4924 = vmatprep.subr.bf16.mxu0 0
  %4925 = vmatpush1.bf16.msra.mxu0 %v3564
  %4926 = vmatprep.subr.bf16.mxu0 0
  %4927 = vmatpush1.bf16.msra.mxu0 %v3565
  %4928 = vmatprep.subr.bf16.mxu0 0
  %4929 = vmatpush1.bf16.msra.mxu0 %v3566
  %4930 = vmatprep.subr.bf16.mxu0 0
  %4931 = vmatpush1.bf16.msra.mxu0 %v3567
  %4932 = vmatprep.subr.bf16.mxu0 0
  %4933 = vmatpush1.bf16.msra.mxu0 %v3568
  %4934 = vmatprep.subr.bf16.mxu0 0
  %4935 = vmatpush1.bf16.msra.mxu0 %v3569
  %4936 = vmatprep.subr.bf16.mxu0 0
  %4937 = vmatpush1.bf16.msra.mxu0 %v3570
  %4938 = vmatprep.subr.bf16.mxu0 0
  %4939 = vmatpush1.bf16.msra.mxu0 %v3571
  %4940 = vmatprep.subr.bf16.mxu0 0
  %4941 = vmatpush1.bf16.msra.mxu0 %v3572
  %4942 = vmatprep.subr.bf16.mxu0 0
  %4943 = vmatpush1.bf16.msra.mxu0 %v3573
  %4944 = vmatprep.subr.bf16.mxu0 0
  %4945 = vmatpush1.bf16.msra.mxu0 %v3574
  %4946 = vmatprep.subr.bf16.mxu0 0
  %4947 = vmatpush1.bf16.msra.mxu0 %v3575
  %4948 = vmatprep.subr.bf16.mxu0 0
  %4949 = vmatpush1.bf16.msra.mxu0 %v3576
  %4950 = vmatprep.subr.bf16.mxu0 0
  %4951 = vmatpush1.bf16.msra.mxu0 %v3577
  %4952 = vmatprep.subr.bf16.mxu0 0
  %4953 = vmatpush1.bf16.msra.mxu0 %v3578
  %4954 = vmatprep.subr.bf16.mxu0 0
  %4955 = vmatpush1.bf16.msra.mxu0 %v3579
  %4956 = vmatprep.mubr.bf16.mxu0 %v1193
  %4957 = vmatmul.mubr.bf16.gmra.mrb[0].mxu0 %v1192
  %v4958 = vpop.f32.mrb[0].mxu0
  %v4959 = vadd.f32 %v4919, %v4958
  %v4960 = vpop.f32.mrb[0].mxu0
  %v4961 = vpop.f32.mrb[0].mxu0
  %v4962 = vpop.f32.mrb[0].mxu0
  %4963 = vdwg.mxu0
  %4964 = vmatprep.subr.bf16.mxu0 0
  %4965 = vmatpush1.bf16.msra.mxu0 %v3580
  %4966 = vmatprep.subr.bf16.mxu0 0
  %4967 = vmatpush1.bf16.msra.mxu0 %v3581
  %4968 = vmatprep.subr.bf16.mxu0 0
  %4969 = vmatpush1.bf16.msra.mxu0 %v3582
  %4970 = vmatprep.subr.bf16.mxu0 0
  %4971 = vmatpush1.bf16.msra.mxu0 %v3583
  %4972 = vmatprep.subr.bf16.mxu0 0
  %4973 = vmatpush1.bf16.msra.mxu0 %v3584
  %4974 = vmatprep.subr.bf16.mxu0 0
  %4975 = vmatpush1.bf16.msra.mxu0 %v3585
  %4976 = vmatprep.subr.bf16.mxu0 0
  %4977 = vmatpush1.bf16.msra.mxu0 %v3586
  %4978 = vmatprep.subr.bf16.mxu0 0
  %4979 = vmatpush1.bf16.msra.mxu0 %v3587
  %4980 = vmatprep.subr.bf16.mxu0 0
  %4981 = vmatpush1.bf16.msra.mxu0 %v3588
  %4982 = vmatprep.subr.bf16.mxu0 0
  %4983 = vmatpush1.bf16.msra.mxu0 %v3589
  %4984 = vmatprep.subr.bf16.mxu0 0
  %4985 = vmatpush1.bf16.msra.mxu0 %v3590
  %4986 = vmatprep.subr.bf16.mxu0 0
  %4987 = vmatpush1.bf16.msra.mxu0 %v3591
  %4988 = vmatprep.subr.bf16.mxu0 0
  %4989 = vmatpush1.bf16.msra.mxu0 %v3592
  %4990 = vmatprep.subr.bf16.mxu0 0
  %4991 = vmatpush1.bf16.msra.mxu0 %v3593
  %4992 = vmatprep.subr.bf16.mxu0 0
  %4993 = vmatpush1.bf16.msra.mxu0 %v3594
  %4994 = vmatprep.subr.bf16.mxu0 0
  %4995 = vmatpush1.bf16.msra.mxu0 %v3595
  %4996 = vmatprep.mubr.bf16.mxu0 %v1195
  %4997 = vmatmul.mubr.bf16.gmra.mrb[0].mxu0 %v1194
  %v4998 = vpop.f32.mrb[0].mxu0
  %v4999 = vadd.f32 %v4959, %v4998
  %v5000 = vpop.f32.mrb[0].mxu0
  %v5001 = vpop.f32.mrb[0].mxu0
  %v5002 = vpop.f32.mrb[0].mxu0
  %5003 = vdwg.mxu0
  %5004 = vmatprep.subr.bf16.mxu0 0
  %5005 = vmatpush1.bf16.msra.mxu0 %v3596
  %5006 = vmatprep.subr.bf16.mxu0 0
  %5007 = vmatpush1.bf16.msra.mxu0 %v3597
  %5008 = vmatprep.subr.bf16.mxu0 0
  %5009 = vmatpush1.bf16.msra.mxu0 %v3598
  %5010 = vmatprep.subr.bf16.mxu0 0
  %5011 = vmatpush1.bf16.msra.mxu0 %v3599
  %5012 = vmatprep.subr.bf16.mxu0 0
  %5013 = vmatpush1.bf16.msra.mxu0 %v3600
  %5014 = vmatprep.subr.bf16.mxu0 0
  %5015 = vmatpush1.bf16.msra.mxu0 %v3601
  %5016 = vmatprep.subr.bf16.mxu0 0
  %5017 = vmatpush1.bf16.msra.mxu0 %v3602
  %5018 = vmatprep.subr.bf16.mxu0 0
  %5019 = vmatpush1.bf16.msra.mxu0 %v3603
  %5020 = vmatprep.subr.bf16.mxu0 0
  %5021 = vmatpush1.bf16.msra.mxu0 %v3604
  %5022 = vmatprep.subr.bf16.mxu0 0
  %5023 = vmatpush1.bf16.msra.mxu0 %v3605
  %5024 = vmatprep.subr.bf16.mxu0 0
  %5025 = vmatpush1.bf16.msra.mxu0 %v3606
  %5026 = vmatprep.subr.bf16.mxu0 0
  %5027 = vmatpush1.bf16.msra.mxu0 %v3607
  %5028 = vmatprep.subr.bf16.mxu0 0
  %5029 = vmatpush1.bf16.msra.mxu0 %v3608
  %5030 = vmatprep.subr.bf16.mxu0 0
  %5031 = vmatpush1.bf16.msra.mxu0 %v3609
  %5032 = vmatprep.subr.bf16.mxu0 0
  %5033 = vmatpush1.bf16.msra.mxu0 %v3610
  %5034 = vmatprep.subr.bf16.mxu0 0
  %5035 = vmatpush1.bf16.msra.mxu0 %v3611
  %5036 = vmatprep.mubr.bf16.mxu0 %v1197
  %5037 = vmatmul.mubr.bf16.gmra.mrb[0].mxu0 %v1196
  %v5038 = vpop.f32.mrb[0].mxu0
  %v5039 = vadd.f32 %v4999, %v5038
  %v5040 = vpop.f32.mrb[0].mxu0
  %v5041 = vpop.f32.mrb[0].mxu0
  %v5042 = vpop.f32.mrb[0].mxu0
  %5043 = vdwg.mxu0
  %5044 = vmatprep.subr.bf16.mxu0 0
  %5045 = vmatpush1.bf16.msra.mxu0 %v3612
  %5046 = vmatprep.subr.bf16.mxu0 0
  %5047 = vmatpush1.bf16.msra.mxu0 %v3613
  %5048 = vmatprep.subr.bf16.mxu0 0
  %5049 = vmatpush1.bf16.msra.mxu0 %v3614
  %5050 = vmatprep.subr.bf16.mxu0 0
  %5051 = vmatpush1.bf16.msra.mxu0 %v3615
  %5052 = vmatprep.subr.bf16.mxu0 0
  %5053 = vmatpush1.bf16.msra.mxu0 %v3616
  %5054 = vmatprep.subr.bf16.mxu0 0
  %5055 = vmatpush1.bf16.msra.mxu0 %v3617
  %5056 = vmatprep.subr.bf16.mxu0 0
  %5057 = vmatpush1.bf16.msra.mxu0 %v3618
  %5058 = vmatprep.subr.bf16.mxu0 0
  %5059 = vmatpush1.bf16.msra.mxu0 %v3619
  %5060 = vmatprep.subr.bf16.mxu0 0
  %5061 = vmatpush1.bf16.msra.mxu0 %v3620
  %5062 = vmatprep.subr.bf16.mxu0 0
  %5063 = vmatpush1.bf16.msra.mxu0 %v3621
  %5064 = vmatprep.subr.bf16.mxu0 0
  %5065 = vmatpush1.bf16.msra.mxu0 %v3622
  %5066 = vmatprep.subr.bf16.mxu0 0
  %5067 = vmatpush1.bf16.msra.mxu0 %v3623
  %5068 = vmatprep.subr.bf16.mxu0 0
  %5069 = vmatpush1.bf16.msra.mxu0 %v3624
  %5070 = vmatprep.subr.bf16.mxu0 0
  %5071 = vmatpush1.bf16.msra.mxu0 %v3625
  %5072 = vmatprep.subr.bf16.mxu0 0
  %5073 = vmatpush1.bf16.msra.mxu0 %v3626
  %5074 = vmatprep.subr.bf16.mxu0 0
  %5075 = vmatpush1.bf16.msra.mxu0 %v3627
  %5076 = vmatprep.mubr.bf16.mxu0 %v1199
  %5077 = vmatmul.mubr.bf16.gmra.mrb[0].mxu0 %v1198
  %v5078 = vpop.f32.mrb[0].mxu0
  %v5079 = vadd.f32 %v5039, %v5078
  %v5080 = vpop.f32.mrb[0].mxu0
  %v5081 = vpop.f32.mrb[0].mxu0
  %v5082 = vpop.f32.mrb[0].mxu0
  %5083 = vdwg.mxu0
  %5084 = vmatprep.subr.bf16.mxu0 0
  %5085 = vmatpush1.bf16.msra.mxu0 %v3628
  %5086 = vmatprep.subr.bf16.mxu0 0
  %5087 = vmatpush1.bf16.msra.mxu0 %v3629
  %5088 = vmatprep.subr.bf16.mxu0 0
  %5089 = vmatpush1.bf16.msra.mxu0 %v3630
  %5090 = vmatprep.subr.bf16.mxu0 0
  %5091 = vmatpush1.bf16.msra.mxu0 %v3631
  %5092 = vmatprep.subr.bf16.mxu0 0
  %5093 = vmatpush1.bf16.msra.mxu0 %v3632
  %5094 = vmatprep.subr.bf16.mxu0 0
  %5095 = vmatpush1.bf16.msra.mxu0 %v3633
  %5096 = vmatprep.subr.bf16.mxu0 0
  %5097 = vmatpush1.bf16.msra.mxu0 %v3634
  %5098 = vmatprep.subr.bf16.mxu0 0
  %5099 = vmatpush1.bf16.msra.mxu0 %v3635
  %5100 = vmatprep.subr.bf16.mxu0 0
  %5101 = vmatpush1.bf16.msra.mxu0 %v3636
  %5102 = vmatprep.subr.bf16.mxu0 0
  %5103 = vmatpush1.bf16.msra.mxu0 %v3637
  %5104 = vmatprep.subr.bf16.mxu0 0
  %5105 = vmatpush1.bf16.msra.mxu0 %v3638
  %5106 = vmatprep.subr.bf16.mxu0 0
  %5107 = vmatpush1.bf16.msra.mxu0 %v3639
  %5108 = vmatprep.subr.bf16.mxu0 0
  %5109 = vmatpush1.bf16.msra.mxu0 %v3640
  %5110 = vmatprep.subr.bf16.mxu0 0
  %5111 = vmatpush1.bf16.msra.mxu0 %v3641
  %5112 = vmatprep.subr.bf16.mxu0 0
  %5113 = vmatpush1.bf16.msra.mxu0 %v3642
  %5114 = vmatprep.subr.bf16.mxu0 0
  %5115 = vmatpush1.bf16.msra.mxu0 %v3643
  %5116 = vmatprep.mubr.bf16.mxu0 %v1201
  %5117 = vmatmul.mubr.bf16.gmra.mrb[0].mxu0 %v1200
  %v5118 = vpop.f32.mrb[0].mxu0
  %v5119 = vadd.f32 %v5079, %v5118
  %v5120 = vpop.f32.mrb[0].mxu0
  %v5121 = vpop.f32.mrb[0].mxu0
  %v5122 = vpop.f32.mrb[0].mxu0
  %5123 = vdwg.mxu0
  %5124 = vmatprep.subr.bf16.mxu0 0
  %5125 = vmatpush1.bf16.msra.mxu0 %v3644
  %5126 = vmatprep.subr.bf16.mxu0 0
  %5127 = vmatpush1.bf16.msra.mxu0 %v3645
  %5128 = vmatprep.subr.bf16.mxu0 0
  %5129 = vmatpush1.bf16.msra.mxu0 %v3646
  %5130 = vmatprep.subr.bf16.mxu0 0
  %5131 = vmatpush1.bf16.msra.mxu0 %v3647
  %5132 = vmatprep.subr.bf16.mxu0 0
  %5133 = vmatpush1.bf16.msra.mxu0 %v3648
  %5134 = vmatprep.subr.bf16.mxu0 0
  %5135 = vmatpush1.bf16.msra.mxu0 %v3649
  %5136 = vmatprep.subr.bf16.mxu0 0
  %5137 = vmatpush1.bf16.msra.mxu0 %v3650
  %5138 = vmatprep.subr.bf16.mxu0 0
  %5139 = vmatpush1.bf16.msra.mxu0 %v3651
  %5140 = vmatprep.subr.bf16.mxu0 0
  %5141 = vmatpush1.bf16.msra.mxu0 %v3652
  %5142 = vmatprep.subr.bf16.mxu0 0
  %5143 = vmatpush1.bf16.msra.mxu0 %v3653
  %5144 = vmatprep.subr.bf16.mxu0 0
  %5145 = vmatpush1.bf16.msra.mxu0 %v3654
  %5146 = vmatprep.subr.bf16.mxu0 0
  %5147 = vmatpush1.bf16.msra.mxu0 %v3655
  %5148 = vmatprep.subr.bf16.mxu0 0
  %5149 = vmatpush1.bf16.msra.mxu0 %v3656
  %5150 = vmatprep.subr.bf16.mxu0 0
  %5151 = vmatpush1.bf16.msra.mxu0 %v3657
  %5152 = vmatprep.subr.bf16.mxu0 0
  %5153 = vmatpush1.bf16.msra.mxu0 %v3658
  %5154 = vmatprep.subr.bf16.mxu0 0
  %5155 = vmatpush1.bf16.msra.mxu0 %v3659
  %5156 = vmatprep.mubr.bf16.mxu0 %v1203
  %5157 = vmatmul.mubr.bf16.gmra.mrb[0].mxu0 %v1202
  %v5158 = vpop.f32.mrb[0].mxu0
  %v5159 = vadd.f32 %v5119, %v5158
  %v5160 = vpop.f32.mrb[0].mxu0
  %v5161 = vpop.f32.mrb[0].mxu0
  %v5162 = vpop.f32.mrb[0].mxu0
  %5163 = vdwg.mxu0
  %5164 = vmatprep.subr.bf16.mxu0 0
  %5165 = vmatpush1.bf16.msra.mxu0 %v3660
  %5166 = vmatprep.subr.bf16.mxu0 0
  %5167 = vmatpush1.bf16.msra.mxu0 %v3661
  %5168 = vmatprep.subr.bf16.mxu0 0
  %5169 = vmatpush1.bf16.msra.mxu0 %v3662
  %5170 = vmatprep.subr.bf16.mxu0 0
  %5171 = vmatpush1.bf16.msra.mxu0 %v3663
  %5172 = vmatprep.subr.bf16.mxu0 0
  %5173 = vmatpush1.bf16.msra.mxu0 %v3664
  %5174 = vmatprep.subr.bf16.mxu0 0
  %5175 = vmatpush1.bf16.msra.mxu0 %v3665
  %5176 = vmatprep.subr.bf16.mxu0 0
  %5177 = vmatpush1.bf16.msra.mxu0 %v3666
  %5178 = vmatprep.subr.bf16.mxu0 0
  %5179 = vmatpush1.bf16.msra.mxu0 %v3667
  %5180 = vmatprep.subr.bf16.mxu0 0
  %5181 = vmatpush1.bf16.msra.mxu0 %v3668
  %5182 = vmatprep.subr.bf16.mxu0 0
  %5183 = vmatpush1.bf16.msra.mxu0 %v3669
  %5184 = vmatprep.subr.bf16.mxu0 0
  %5185 = vmatpush1.bf16.msra.mxu0 %v3670
  %5186 = vmatprep.subr.bf16.mxu0 0
  %5187 = vmatpush1.bf16.msra.mxu0 %v3671
  %5188 = vmatprep.subr.bf16.mxu0 0
  %5189 = vmatpush1.bf16.msra.mxu0 %v3672
  %5190 = vmatprep.subr.bf16.mxu0 0
  %5191 = vmatpush1.bf16.msra.mxu0 %v3673
  %5192 = vmatprep.subr.bf16.mxu0 0
  %5193 = vmatpush1.bf16.msra.mxu0 %v3674
  %5194 = vmatprep.subr.bf16.mxu0 0
  %5195 = vmatpush1.bf16.msra.mxu0 %v3675
  %5196 = vmatprep.mubr.bf16.mxu0 %v1205
  %5197 = vmatmul.mubr.bf16.gmra.mrb[0].mxu0 %v1204
  %v5198 = vpop.f32.mrb[0].mxu0
  %v5199 = vadd.f32 %v5159, %v5198
  %v5200 = vpop.f32.mrb[0].mxu0
  %v5201 = vpop.f32.mrb[0].mxu0
  %v5202 = vpop.f32.mrb[0].mxu0
  %5203 = vdwg.mxu0
  %5204 = vmatprep.subr.bf16.mxu0 0
  %5205 = vmatpush1.bf16.msra.mxu0 %v3676
  %5206 = vmatprep.subr.bf16.mxu0 0
  %5207 = vmatpush1.bf16.msra.mxu0 %v3677
  %5208 = vmatprep.subr.bf16.mxu0 0
  %5209 = vmatpush1.bf16.msra.mxu0 %v3678
  %5210 = vmatprep.subr.bf16.mxu0 0
  %5211 = vmatpush1.bf16.msra.mxu0 %v3679
  %5212 = vmatprep.subr.bf16.mxu0 0
  %5213 = vmatpush1.bf16.msra.mxu0 %v3680
  %5214 = vmatprep.subr.bf16.mxu0 0
  %5215 = vmatpush1.bf16.msra.mxu0 %v3681
  %5216 = vmatprep.subr.bf16.mxu0 0
  %5217 = vmatpush1.bf16.msra.mxu0 %v3682
  %5218 = vmatprep.subr.bf16.mxu0 0
  %5219 = vmatpush1.bf16.msra.mxu0 %v3683
  %5220 = vmatprep.subr.bf16.mxu0 0
  %5221 = vmatpush1.bf16.msra.mxu0 %v3684
  %5222 = vmatprep.subr.bf16.mxu0 0
  %5223 = vmatpush1.bf16.msra.mxu0 %v3685
  %5224 = vmatprep.subr.bf16.mxu0 0
  %5225 = vmatpush1.bf16.msra.mxu0 %v3686
  %5226 = vmatprep.subr.bf16.mxu0 0
  %5227 = vmatpush1.bf16.msra.mxu0 %v3687
  %5228 = vmatprep.subr.bf16.mxu0 0
  %5229 = vmatpush1.bf16.msra.mxu0 %v3688
  %5230 = vmatprep.subr.bf16.mxu0 0
  %5231 = vmatpush1.bf16.msra.mxu0 %v3689
  %5232 = vmatprep.subr.bf16.mxu0 0
  %5233 = vmatpush1.bf16.msra.mxu0 %v3690
  %5234 = vmatprep.subr.bf16.mxu0 0
  %5235 = vmatpush1.bf16.msra.mxu0 %v3691
  %5236 = vmatprep.mubr.bf16.mxu0 %v1207
  %5237 = vmatmul.mubr.bf16.gmra.mrb[0].mxu0 %v1206
  %v5238 = vpop.f32.mrb[0].mxu0
  %v5239 = vadd.f32 %v5199, %v5238
  %v5240 = vpop.f32.mrb[0].mxu0
  %v5241 = vpop.f32.mrb[0].mxu0
  %v5242 = vpop.f32.mrb[0].mxu0
  %5243 = vdwg.mxu0
  %5244 = vmatprep.subr.bf16.mxu0 0
  %5245 = vmatpush1.bf16.msra.mxu0 %v3692
  %5246 = vmatprep.subr.bf16.mxu0 0
  %5247 = vmatpush1.bf16.msra.mxu0 %v3693
  %5248 = vmatprep.subr.bf16.mxu0 0
  %5249 = vmatpush1.bf16.msra.mxu0 %v3694
  %5250 = vmatprep.subr.bf16.mxu0 0
  %5251 = vmatpush1.bf16.msra.mxu0 %v3695
  %5252 = vmatprep.subr.bf16.mxu0 0
  %5253 = vmatpush1.bf16.msra.mxu0 %v3696
  %5254 = vmatprep.subr.bf16.mxu0 0
  %5255 = vmatpush1.bf16.msra.mxu0 %v3697
  %5256 = vmatprep.subr.bf16.mxu0 0
  %5257 = vmatpush1.bf16.msra.mxu0 %v3698
  %5258 = vmatprep.subr.bf16.mxu0 0
  %5259 = vmatpush1.bf16.msra.mxu0 %v3699
  %5260 = vmatprep.subr.bf16.mxu0 0
  %5261 = vmatpush1.bf16.msra.mxu0 %v3700
  %5262 = vmatprep.subr.bf16.mxu0 0
  %5263 = vmatpush1.bf16.msra.mxu0 %v3701
  %5264 = vmatprep.subr.bf16.mxu0 0
  %5265 = vmatpush1.bf16.msra.mxu0 %v3702
  %5266 = vmatprep.subr.bf16.mxu0 0
  %5267 = vmatpush1.bf16.msra.mxu0 %v3703
  %5268 = vmatprep.subr.bf16.mxu0 0
  %5269 = vmatpush1.bf16.msra.mxu0 %v3704
  %5270 = vmatprep.subr.bf16.mxu0 0
  %5271 = vmatpush1.bf16.msra.mxu0 %v3705
  %5272 = vmatprep.subr.bf16.mxu0 0
  %5273 = vmatpush1.bf16.msra.mxu0 %v3706
  %5274 = vmatprep.subr.bf16.mxu0 0
  %5275 = vmatpush1.bf16.msra.mxu0 %v3707
  %5276 = vmatprep.mubr.bf16.mxu0 %v1209
  %5277 = vmatmul.mubr.bf16.gmra.mrb[0].mxu0 %v1208
  %v5278 = vpop.f32.mrb[0].mxu0
  %v5279 = vadd.f32 %v5239, %v5278
  %v5280 = vpop.f32.mrb[0].mxu0
  %v5281 = vpop.f32.mrb[0].mxu0
  %v5282 = vpop.f32.mrb[0].mxu0
  %5283 = vdwg.mxu0
  %5284 = vmatprep.subr.bf16.mxu0 0
  %5285 = vmatpush1.bf16.msra.mxu0 %v3708
  %5286 = vmatprep.subr.bf16.mxu0 0
  %5287 = vmatpush1.bf16.msra.mxu0 %v3709
  %5288 = vmatprep.subr.bf16.mxu0 0
  %5289 = vmatpush1.bf16.msra.mxu0 %v3710
  %5290 = vmatprep.subr.bf16.mxu0 0
  %5291 = vmatpush1.bf16.msra.mxu0 %v3711
  %5292 = vmatprep.subr.bf16.mxu0 0
  %5293 = vmatpush1.bf16.msra.mxu0 %v3712
  %5294 = vmatprep.subr.bf16.mxu0 0
  %5295 = vmatpush1.bf16.msra.mxu0 %v3713
  %5296 = vmatprep.subr.bf16.mxu0 0
  %5297 = vmatpush1.bf16.msra.mxu0 %v3714
  %5298 = vmatprep.subr.bf16.mxu0 0
  %5299 = vmatpush1.bf16.msra.mxu0 %v3715
  %5300 = vmatprep.subr.bf16.mxu0 0
  %5301 = vmatpush1.bf16.msra.mxu0 %v3716
  %5302 = vmatprep.subr.bf16.mxu0 0
  %5303 = vmatpush1.bf16.msra.mxu0 %v3717
  %5304 = vmatprep.subr.bf16.mxu0 0
  %5305 = vmatpush1.bf16.msra.mxu0 %v3718
  %5306 = vmatprep.subr.bf16.mxu0 0
  %5307 = vmatpush1.bf16.msra.mxu0 %v3719
  %5308 = vmatprep.subr.bf16.mxu0 0
  %5309 = vmatpush1.bf16.msra.mxu0 %v3720
  %5310 = vmatprep.subr.bf16.mxu0 0
  %5311 = vmatpush1.bf16.msra.mxu0 %v3721
  %5312 = vmatprep.subr.bf16.mxu0 0
  %5313 = vmatpush1.bf16.msra.mxu0 %v3722
  %5314 = vmatprep.subr.bf16.mxu0 0
  %5315 = vmatpush1.bf16.msra.mxu0 %v3723
  %5316 = vmatprep.mubr.bf16.mxu0 %v1211
  %5317 = vmatmul.mubr.bf16.gmra.mrb[0].mxu0 %v1210
  %v5318 = vpop.f32.mrb[0].mxu0
  %v5319 = vadd.f32 %v5279, %v5318
  %v5320 = vpop.f32.mrb[0].mxu0
  %v5321 = vpop.f32.mrb[0].mxu0
  %v5322 = vpop.f32.mrb[0].mxu0
  %5323 = vdwg.mxu0
  %5324 = vmatprep.subr.bf16.mxu0 0
  %5325 = vmatpush1.bf16.msra.mxu0 %v3724
  %5326 = vmatprep.subr.bf16.mxu0 0
  %5327 = vmatpush1.bf16.msra.mxu0 %v3725
  %5328 = vmatprep.subr.bf16.mxu0 0
  %5329 = vmatpush1.bf16.msra.mxu0 %v3726
  %5330 = vmatprep.subr.bf16.mxu0 0
  %5331 = vmatpush1.bf16.msra.mxu0 %v3727
  %5332 = vmatprep.subr.bf16.mxu0 0
  %5333 = vmatpush1.bf16.msra.mxu0 %v3728
  %5334 = vmatprep.subr.bf16.mxu0 0
  %5335 = vmatpush1.bf16.msra.mxu0 %v3729
  %5336 = vmatprep.subr.bf16.mxu0 0
  %5337 = vmatpush1.bf16.msra.mxu0 %v3730
  %5338 = vmatprep.subr.bf16.mxu0 0
  %5339 = vmatpush1.bf16.msra.mxu0 %v3731
  %5340 = vmatprep.subr.bf16.mxu0 0
  %5341 = vmatpush1.bf16.msra.mxu0 %v3732
  %5342 = vmatprep.subr.bf16.mxu0 0
  %5343 = vmatpush1.bf16.msra.mxu0 %v3733
  %5344 = vmatprep.subr.bf16.mxu0 0
  %5345 = vmatpush1.bf16.msra.mxu0 %v3734
  %5346 = vmatprep.subr.bf16.mxu0 0
  %5347 = vmatpush1.bf16.msra.mxu0 %v3735
  %5348 = vmatprep.subr.bf16.mxu0 0
  %5349 = vmatpush1.bf16.msra.mxu0 %v3736
  %5350 = vmatprep.subr.bf16.mxu0 0
  %5351 = vmatpush1.bf16.msra.mxu0 %v3737
  %5352 = vmatprep.subr.bf16.mxu0 0
  %5353 = vmatpush1.bf16.msra.mxu0 %v3738
  %5354 = vmatprep.subr.bf16.mxu0 0
  %5355 = vmatpush1.bf16.msra.mxu0 %v3739
  %5356 = vmatprep.mubr.bf16.mxu0 %v1213
  %5357 = vmatmul.mubr.bf16.gmra.mrb[0].mxu0 %v1212
  %v5358 = vpop.f32.mrb[0].mxu0
  %v5359 = vadd.f32 %v5319, %v5358
  %v5360 = vpop.f32.mrb[0].mxu0
  %v5361 = vpop.f32.mrb[0].mxu0
  %v5362 = vpop.f32.mrb[0].mxu0
  %5363 = vdwg.mxu0
  %5364 = vmatprep.subr.bf16.mxu0 0
  %5365 = vmatpush1.bf16.msra.mxu0 %v3740
  %5366 = vmatprep.subr.bf16.mxu0 0
  %5367 = vmatpush1.bf16.msra.mxu0 %v3741
  %5368 = vmatprep.subr.bf16.mxu0 0
  %5369 = vmatpush1.bf16.msra.mxu0 %v3742
  %5370 = vmatprep.subr.bf16.mxu0 0
  %5371 = vmatpush1.bf16.msra.mxu0 %v3743
  %5372 = vmatprep.subr.bf16.mxu0 0
  %5373 = vmatpush1.bf16.msra.mxu0 %v3744
  %5374 = vmatprep.subr.bf16.mxu0 0
  %5375 = vmatpush1.bf16.msra.mxu0 %v3745
  %5376 = vmatprep.subr.bf16.mxu0 0
  %5377 = vmatpush1.bf16.msra.mxu0 %v3746
  %5378 = vmatprep.subr.bf16.mxu0 0
  %5379 = vmatpush1.bf16.msra.mxu0 %v3747
  %5380 = vmatprep.subr.bf16.mxu0 0
  %5381 = vmatpush1.bf16.msra.mxu0 %v3748
  %5382 = vmatprep.subr.bf16.mxu0 0
  %5383 = vmatpush1.bf16.msra.mxu0 %v3749
  %5384 = vmatprep.subr.bf16.mxu0 0
  %5385 = vmatpush1.bf16.msra.mxu0 %v3750
  %5386 = vmatprep.subr.bf16.mxu0 0
  %5387 = vmatpush1.bf16.msra.mxu0 %v3751
  %5388 = vmatprep.subr.bf16.mxu0 0
  %5389 = vmatpush1.bf16.msra.mxu0 %v3752
  %5390 = vmatprep.subr.bf16.mxu0 0
  %5391 = vmatpush1.bf16.msra.mxu0 %v3753
  %5392 = vmatprep.subr.bf16.mxu0 0
  %5393 = vmatpush1.bf16.msra.mxu0 %v3754
  %5394 = vmatprep.subr.bf16.mxu0 0
  %5395 = vmatpush1.bf16.msra.mxu0 %v3755
  %5396 = vmatprep.mubr.bf16.mxu0 %v1215
  %5397 = vmatmul.mubr.bf16.gmra.mrb[0].mxu0 %v1214
  %v5398 = vpop.f32.mrb[0].mxu0
  %v5399 = vadd.f32 %v5359, %v5398
  %v5400 = vpop.f32.mrb[0].mxu0
  %v5401 = vpop.f32.mrb[0].mxu0
  %v5402 = vpop.f32.mrb[0].mxu0
  %5403 = vdwg.mxu0
  %5404 = vmatprep.subr.bf16.mxu0 0
  %5405 = vmatpush1.bf16.msra.mxu0 %v3756
  %5406 = vmatprep.subr.bf16.mxu0 0
  %5407 = vmatpush1.bf16.msra.mxu0 %v3757
  %5408 = vmatprep.subr.bf16.mxu0 0
  %5409 = vmatpush1.bf16.msra.mxu0 %v3758
  %5410 = vmatprep.subr.bf16.mxu0 0
  %5411 = vmatpush1.bf16.msra.mxu0 %v3759
  %5412 = vmatprep.subr.bf16.mxu0 0
  %5413 = vmatpush1.bf16.msra.mxu0 %v3760
  %5414 = vmatprep.subr.bf16.mxu0 0
  %5415 = vmatpush1.bf16.msra.mxu0 %v3761
  %5416 = vmatprep.subr.bf16.mxu0 0
  %5417 = vmatpush1.bf16.msra.mxu0 %v3762
  %5418 = vmatprep.subr.bf16.mxu0 0
  %5419 = vmatpush1.bf16.msra.mxu0 %v3763
  %5420 = vmatprep.subr.bf16.mxu0 0
  %5421 = vmatpush1.bf16.msra.mxu0 %v3764
  %5422 = vmatprep.subr.bf16.mxu0 0
  %5423 = vmatpush1.bf16.msra.mxu0 %v3765
  %5424 = vmatprep.subr.bf16.mxu0 0
  %5425 = vmatpush1.bf16.msra.mxu0 %v3766
  %5426 = vmatprep.subr.bf16.mxu0 0
  %5427 = vmatpush1.bf16.msra.mxu0 %v3767
  %5428 = vmatprep.subr.bf16.mxu0 0
  %5429 = vmatpush1.bf16.msra.mxu0 %v3768
  %5430 = vmatprep.subr.bf16.mxu0 0
  %5431 = vmatpush1.bf16.msra.mxu0 %v3769
  %5432 = vmatprep.subr.bf16.mxu0 0
  %5433 = vmatpush1.bf16.msra.mxu0 %v3770
  %5434 = vmatprep.subr.bf16.mxu0 0
  %5435 = vmatpush1.bf16.msra.mxu0 %v3771
  %5436 = vmatprep.mubr.bf16.mxu0 %v1217
  %5437 = vmatmul.mubr.bf16.gmra.mrb[0].mxu0 %v1216
  %v5438 = vpop.f32.mrb[0].mxu0
  %v5439 = vadd.f32 %v5399, %v5438
  %v5440 = vpop.f32.mrb[0].mxu0
  %v5441 = vpop.f32.mrb[0].mxu0
  %v5442 = vpop.f32.mrb[0].mxu0
  %5443 = vdwg.mxu0
  %5444 = vmatprep.subr.bf16.mxu0 0
  %5445 = vmatpush1.bf16.msra.mxu0 %v3772
  %5446 = vmatprep.subr.bf16.mxu0 0
  %5447 = vmatpush1.bf16.msra.mxu0 %v3773
  %5448 = vmatprep.subr.bf16.mxu0 0
  %5449 = vmatpush1.bf16.msra.mxu0 %v3774
  %5450 = vmatprep.subr.bf16.mxu0 0
  %5451 = vmatpush1.bf16.msra.mxu0 %v3775
  %5452 = vmatprep.subr.bf16.mxu0 0
  %5453 = vmatpush1.bf16.msra.mxu0 %v3776
  %5454 = vmatprep.subr.bf16.mxu0 0
  %5455 = vmatpush1.bf16.msra.mxu0 %v3777
  %5456 = vmatprep.subr.bf16.mxu0 0
  %5457 = vmatpush1.bf16.msra.mxu0 %v3778
  %5458 = vmatprep.subr.bf16.mxu0 0
  %5459 = vmatpush1.bf16.msra.mxu0 %v3779
  %5460 = vmatprep.subr.bf16.mxu0 0
  %5461 = vmatpush1.bf16.msra.mxu0 %v3780
  %5462 = vmatprep.subr.bf16.mxu0 0
  %5463 = vmatpush1.bf16.msra.mxu0 %v3781
  %5464 = vmatprep.subr.bf16.mxu0 0
  %5465 = vmatpush1.bf16.msra.mxu0 %v3782
  %5466 = vmatprep.subr.bf16.mxu0 0
  %5467 = vmatpush1.bf16.msra.mxu0 %v3783
  %5468 = vmatprep.subr.bf16.mxu0 0
  %5469 = vmatpush1.bf16.msra.mxu0 %v3784
  %5470 = vmatprep.subr.bf16.mxu0 0
  %5471 = vmatpush1.bf16.msra.mxu0 %v3785
  %5472 = vmatprep.subr.bf16.mxu0 0
  %5473 = vmatpush1.bf16.msra.mxu0 %v3786
  %5474 = vmatprep.subr.bf16.mxu0 0
  %5475 = vmatpush1.bf16.msra.mxu0 %v3787
  %5476 = vmatprep.mubr.bf16.mxu0 %v1219
  %5477 = vmatmul.mubr.bf16.gmra.mrb[0].mxu0 %v1218
  %v5478 = vpop.f32.mrb[0].mxu0
  %v5479 = vadd.f32 %v5439, %v5478
  %v5480 = vpop.f32.mrb[0].mxu0
  %v5481 = vpop.f32.mrb[0].mxu0
  %v5482 = vpop.f32.mrb[0].mxu0
  %5483 = vdwg.mxu0
  %5484 = vmatprep.subr.bf16.mxu0 0
  %5485 = vmatpush1.bf16.msra.mxu0 %v3788
  %5486 = vmatprep.subr.bf16.mxu0 0
  %5487 = vmatpush1.bf16.msra.mxu0 %v3789
  %5488 = vmatprep.subr.bf16.mxu0 0
  %5489 = vmatpush1.bf16.msra.mxu0 %v3790
  %5490 = vmatprep.subr.bf16.mxu0 0
  %5491 = vmatpush1.bf16.msra.mxu0 %v3791
  %5492 = vmatprep.subr.bf16.mxu0 0
  %5493 = vmatpush1.bf16.msra.mxu0 %v3792
  %5494 = vmatprep.subr.bf16.mxu0 0
  %5495 = vmatpush1.bf16.msra.mxu0 %v3793
  %5496 = vmatprep.subr.bf16.mxu0 0
  %5497 = vmatpush1.bf16.msra.mxu0 %v3794
  %5498 = vmatprep.subr.bf16.mxu0 0
  %5499 = vmatpush1.bf16.msra.mxu0 %v3795
  %5500 = vmatprep.subr.bf16.mxu0 0
  %5501 = vmatpush1.bf16.msra.mxu0 %v3796
  %5502 = vmatprep.subr.bf16.mxu0 0
  %5503 = vmatpush1.bf16.msra.mxu0 %v3797
  %5504 = vmatprep.subr.bf16.mxu0 0
  %5505 = vmatpush1.bf16.msra.mxu0 %v3798
  %5506 = vmatprep.subr.bf16.mxu0 0
  %5507 = vmatpush1.bf16.msra.mxu0 %v3799
  %5508 = vmatprep.subr.bf16.mxu0 0
  %5509 = vmatpush1.bf16.msra.mxu0 %v3800
  %5510 = vmatprep.subr.bf16.mxu0 0
  %5511 = vmatpush1.bf16.msra.mxu0 %v3801
  %5512 = vmatprep.subr.bf16.mxu0 0
  %5513 = vmatpush1.bf16.msra.mxu0 %v3802
  %5514 = vmatprep.subr.bf16.mxu0 0
  %5515 = vmatpush1.bf16.msra.mxu0 %v3803
  %5516 = vmatprep.mubr.bf16.mxu0 %v1221
  %5517 = vmatmul.mubr.bf16.gmra.mrb[0].mxu0 %v1220
  %v5518 = vpop.f32.mrb[0].mxu0
  %v5519 = vadd.f32 %v5479, %v5518
  %v5520 = vpop.f32.mrb[0].mxu0
  %v5521 = vpop.f32.mrb[0].mxu0
  %v5522 = vpop.f32.mrb[0].mxu0
  %5523 = vdwg.mxu0
  %5524 = vmatprep.subr.bf16.mxu0 0
  %5525 = vmatpush1.bf16.msra.mxu0 %v3804
  %5526 = vmatprep.subr.bf16.mxu0 0
  %5527 = vmatpush1.bf16.msra.mxu0 %v3805
  %5528 = vmatprep.subr.bf16.mxu0 0
  %5529 = vmatpush1.bf16.msra.mxu0 %v3806
  %5530 = vmatprep.subr.bf16.mxu0 0
  %5531 = vmatpush1.bf16.msra.mxu0 %v3807
  %5532 = vmatprep.subr.bf16.mxu0 0
  %5533 = vmatpush1.bf16.msra.mxu0 %v3808
  %5534 = vmatprep.subr.bf16.mxu0 0
  %5535 = vmatpush1.bf16.msra.mxu0 %v3809
  %5536 = vmatprep.subr.bf16.mxu0 0
  %5537 = vmatpush1.bf16.msra.mxu0 %v3810
  %5538 = vmatprep.subr.bf16.mxu0 0
  %5539 = vmatpush1.bf16.msra.mxu0 %v3811
  %5540 = vmatprep.subr.bf16.mxu0 0
  %5541 = vmatpush1.bf16.msra.mxu0 %v3812
  %5542 = vmatprep.subr.bf16.mxu0 0
  %5543 = vmatpush1.bf16.msra.mxu0 %v3813
  %5544 = vmatprep.subr.bf16.mxu0 0
  %5545 = vmatpush1.bf16.msra.mxu0 %v3814
  %5546 = vmatprep.subr.bf16.mxu0 0
  %5547 = vmatpush1.bf16.msra.mxu0 %v3815
  %5548 = vmatprep.subr.bf16.mxu0 0
  %5549 = vmatpush1.bf16.msra.mxu0 %v3816
  %5550 = vmatprep.subr.bf16.mxu0 0
  %5551 = vmatpush1.bf16.msra.mxu0 %v3817
  %5552 = vmatprep.subr.bf16.mxu0 0
  %5553 = vmatpush1.bf16.msra.mxu0 %v3818
  %5554 = vmatprep.subr.bf16.mxu0 0
  %5555 = vmatpush1.bf16.msra.mxu0 %v3819
  %5556 = vmatprep.mubr.bf16.mxu0 %v1223
  %5557 = vmatmul.mubr.bf16.gmra.mrb[0].mxu0 %v1222
  %v5558 = vpop.f32.mrb[0].mxu0
  %v5559 = vadd.f32 %v5519, %v5558
  %v5560 = vpop.f32.mrb[0].mxu0
  %v5561 = vpop.f32.mrb[0].mxu0
  %v5562 = vpop.f32.mrb[0].mxu0
  %5563 = vdwg.mxu0
  %5564 = vmatprep.subr.bf16.mxu0 0
  %5565 = vmatpush1.bf16.msra.mxu0 %v3820
  %5566 = vmatprep.subr.bf16.mxu0 0
  %5567 = vmatpush1.bf16.msra.mxu0 %v3821
  %5568 = vmatprep.subr.bf16.mxu0 0
  %5569 = vmatpush1.bf16.msra.mxu0 %v3822
  %5570 = vmatprep.subr.bf16.mxu0 0
  %5571 = vmatpush1.bf16.msra.mxu0 %v3823
  %5572 = vmatprep.subr.bf16.mxu0 0
  %5573 = vmatpush1.bf16.msra.mxu0 %v3824
  %5574 = vmatprep.subr.bf16.mxu0 0
  %5575 = vmatpush1.bf16.msra.mxu0 %v3825
  %5576 = vmatprep.subr.bf16.mxu0 0
  %5577 = vmatpush1.bf16.msra.mxu0 %v3826
  %5578 = vmatprep.subr.bf16.mxu0 0
  %5579 = vmatpush1.bf16.msra.mxu0 %v3827
  %5580 = vmatprep.subr.bf16.mxu0 0
  %5581 = vmatpush1.bf16.msra.mxu0 %v3828
  %5582 = vmatprep.subr.bf16.mxu0 0
  %5583 = vmatpush1.bf16.msra.mxu0 %v3829
  %5584 = vmatprep.subr.bf16.mxu0 0
  %5585 = vmatpush1.bf16.msra.mxu0 %v3830
  %5586 = vmatprep.subr.bf16.mxu0 0
  %5587 = vmatpush1.bf16.msra.mxu0 %v3831
  %5588 = vmatprep.subr.bf16.mxu0 0
  %5589 = vmatpush1.bf16.msra.mxu0 %v3832
  %5590 = vmatprep.subr.bf16.mxu0 0
  %5591 = vmatpush1.bf16.msra.mxu0 %v3833
  %5592 = vmatprep.subr.bf16.mxu0 0
  %5593 = vmatpush1.bf16.msra.mxu0 %v3834
  %5594 = vmatprep.subr.bf16.mxu0 0
  %5595 = vmatpush1.bf16.msra.mxu0 %v3835
  %5596 = vmatprep.mubr.bf16.mxu0 %v1225
  %5597 = vmatmul.mubr.bf16.gmra.mrb[0].mxu0 %v1224
  %v5598 = vpop.f32.mrb[0].mxu0
  %v5599 = vadd.f32 %v5559, %v5598
  %v5600 = vpop.f32.mrb[0].mxu0
  %v5601 = vpop.f32.mrb[0].mxu0
  %v5602 = vpop.f32.mrb[0].mxu0
  %5603 = vdwg.mxu0
  %5604 = vmatprep.subr.bf16.mxu0 0
  %5605 = vmatpush1.bf16.msra.mxu0 %v3836
  %5606 = vmatprep.subr.bf16.mxu0 0
  %5607 = vmatpush1.bf16.msra.mxu0 %v3837
  %5608 = vmatprep.subr.bf16.mxu0 0
  %5609 = vmatpush1.bf16.msra.mxu0 %v3838
  %5610 = vmatprep.subr.bf16.mxu0 0
  %5611 = vmatpush1.bf16.msra.mxu0 %v3839
  %5612 = vmatprep.subr.bf16.mxu0 0
  %5613 = vmatpush1.bf16.msra.mxu0 %v3840
  %5614 = vmatprep.subr.bf16.mxu0 0
  %5615 = vmatpush1.bf16.msra.mxu0 %v3841
  %5616 = vmatprep.subr.bf16.mxu0 0
  %5617 = vmatpush1.bf16.msra.mxu0 %v3842
  %5618 = vmatprep.subr.bf16.mxu0 0
  %5619 = vmatpush1.bf16.msra.mxu0 %v3843
  %5620 = vmatprep.subr.bf16.mxu0 0
  %5621 = vmatpush1.bf16.msra.mxu0 %v3844
  %5622 = vmatprep.subr.bf16.mxu0 0
  %5623 = vmatpush1.bf16.msra.mxu0 %v3845
  %5624 = vmatprep.subr.bf16.mxu0 0
  %5625 = vmatpush1.bf16.msra.mxu0 %v3846
  %5626 = vmatprep.subr.bf16.mxu0 0
  %5627 = vmatpush1.bf16.msra.mxu0 %v3847
  %5628 = vmatprep.subr.bf16.mxu0 0
  %5629 = vmatpush1.bf16.msra.mxu0 %v3848
  %5630 = vmatprep.subr.bf16.mxu0 0
  %5631 = vmatpush1.bf16.msra.mxu0 %v3849
  %5632 = vmatprep.subr.bf16.mxu0 0
  %5633 = vmatpush1.bf16.msra.mxu0 %v3850
  %5634 = vmatprep.subr.bf16.mxu0 0
  %5635 = vmatpush1.bf16.msra.mxu0 %v3851
  %5636 = vmatprep.mubr.bf16.mxu0 %v1227
  %5637 = vmatmul.mubr.bf16.gmra.mrb[0].mxu0 %v1226
  %v5638 = vpop.f32.mrb[0].mxu0
  %v5639 = vadd.f32 %v5599, %v5638
  %v5640 = vpop.f32.mrb[0].mxu0
  %v5641 = vpop.f32.mrb[0].mxu0
  %v5642 = vpop.f32.mrb[0].mxu0
  %5643 = vdwg.mxu0
  %5644 = vst [vmem:[%s2] sm:$0xff] %v5639
  // Predicated region
  $region10: #{discriminator_forward.9} parent=0 // pred_check
    _
  $region11: #{discriminator_forward.9} parent=0 // pred_check_branch
    %5646 = sbr.rel (0) target = $region13
  $region12: #{discriminator_forward.9} parent=0 // pred_region
    _
  $region13: #{discriminator_forward.9} parent=0 // pred_fallthru
    _
  // Predicated region
  $region14: #{discriminator_forward.9} parent=0 // pred_check
    _
  $region15: #{discriminator_forward.9} parent=0 // pred_check_branch
    %5648 = sbr.rel (0) target = $region17
  $region16: #{discriminator_forward.9} parent=0 // pred_region
    _
  $region17: #{discriminator_forward.9} parent=0 // pred_fallthru
    _

</llo_original>
